<compile_context>
chip_gen: v6e
topology: v6e:2x2x1
jax: 0.10.0
libtpu: 0.0.40
codegen_flags: <defaults>
</compile_context>

<pallas_src>
import jax
import jax.numpy as jnp
from jax import lax
from jax.experimental import pallas as pl
from jax.experimental.pallas import tpu as pltpu

# ----------------------------- config (small) -------------------------------
IMAGE_SIZE = (8, 8, 8)
PATCH_SIZE = (4, 4, 4)
CHANNELS = 4
DIM = 64
DEPTH = 2
HEADS = 4
DIM_HEAD = 16
MLP_DIM = 128
NUM_CLASSES = 10
BATCH = 2

PATCHNUMS = tuple(IMAGE_SIZE[i] // PATCH_SIZE[i] for i in range(3))
NUM_PATCHES = PATCHNUMS[0] * PATCHNUMS[1] * PATCHNUMS[2]
PATCH_DIM = CHANNELS * PATCH_SIZE[0] * PATCH_SIZE[1] * PATCH_SIZE[2]
N1 = NUM_PATCHES + 1                          # tokens incl. cls (= 9)
NP = ((N1 + 7) // 8) * 8                      # padded token count (= 16)
NC_PAD = 128                                  # lane-dense head output
INNER = HEADS * DIM_HEAD
SCALE = DIM_HEAD ** (-0.5)
LN_EPS = 1e-5
MASK_VALUE = float(-jnp.finfo(jnp.float32).max)
INV_SQRT2 = 0.7071067811865476


# ------------------------------ kernel helpers -------------------------------
def _erf_approx(x):
    # Abramowitz & Stegun 7.1.26, |err| < 1.5e-7.
    a1, a2, a3, a4, a5 = 0.254829592, -0.284496736, 1.421413741, -1.453152027, 1.061405429
    p = 0.3275911
    s = jnp.where(x >= 0.0, 1.0, -1.0)
    z = jnp.abs(x)
    t = 1.0 / (1.0 + p * z)
    poly = ((((a5 * t + a4) * t + a3) * t + a2) * t + a1) * t
    return s * (1.0 - poly * jnp.exp(-z * z))


def _gelu_exact(x):
    return 0.5 * x * (1.0 + _erf_approx(x * INV_SQRT2))


def _layer_norm(x, g, b):
    mu = jnp.mean(x, axis=-1, keepdims=True)
    var = jnp.mean((x - mu) ** 2, axis=-1, keepdims=True)
    return (x - mu) * lax.rsqrt(var + LN_EPS) * g + b


# ------------------------------ fused kernel ---------------------------------
def fused_kernel(patches_ref, bias_ref, base_ref, pw_ref,
                 wq_ref, wk_ref, wv_ref,
                 ln1g_ref, ln1b_ref, wout_ref, bout_ref,
                 ln2g_ref, ln2b_ref, w1_ref, b1_ref, w2_ref, b2_ref,
                 hg_ref, hb_ref, hw_ref, hbias_ref,
                 o_ref, attn_ref):
    # Patch embedding + cls/pos: base already holds (cls+pos0) in row 0,
    # (pos_r + patch_bias) in rows 1..N1-1, zeros in pad rows; patch rows of
    # `patches` are zero for row 0 and the pad rows.
    x = base_ref[...] + jnp.dot(patches_ref[0], pw_ref[...],
                                preferred_element_type=jnp.float32)   # [NP, DIM]
    bias = bias_ref[0]                                                # [NP, NP] additive mask

    for l in range(DEPTH):
        # ---- Residual(PreNorm(Attention)) ----
        xn = _layer_norm(x, ln1g_ref[l], ln1b_ref[l])
        for h in range(HEADS):
            qh = jnp.dot(xn, wq_ref[l, h], preferred_element_type=jnp.float32)  # scale folded in
            kh = jnp.dot(xn, wk_ref[l, h], preferred_element_type=jnp.float32)
            vh = jnp.dot(xn, wv_ref[l, h], preferred_element_type=jnp.float32)
            dots = lax.dot_general(qh, kh, (((1,), (1,)), ((), ())),
                                   preferred_element_type=jnp.float32) + bias
            dots = dots - jnp.max(dots, axis=-1, keepdims=True)
            p = jnp.exp(dots)
            p = p * pl.reciprocal(jnp.sum(p, axis=-1, keepdims=True), approx=True)
            lo = h * DIM_HEAD
            attn_ref[:, lo:lo + DIM_HEAD] = jnp.dot(p, vh,
                                                    preferred_element_type=jnp.float32)
        proj = jnp.dot(attn_ref[...], wout_ref[l],
                       preferred_element_type=jnp.float32) + bout_ref[l]
        x = x + proj

        # ---- Residual(PreNorm(FeedForward)) ----
        xn2 = _layer_norm(x, ln2g_ref[l], ln2b_ref[l])
        h1 = jnp.dot(xn2, w1_ref[l], preferred_element_type=jnp.float32) + b1_ref[l]
        h1 = _gelu_exact(h1)
        x = x + jnp.dot(h1, w2_ref[l], preferred_element_type=jnp.float32) + b2_ref[l]

    # ---- final LayerNorm + head (lane-dense, padded to NC_PAD) ----
    xc = _layer_norm(x, hg_ref[...], hb_ref[...])
    o_ref[0] = jnp.dot(xc, hw_ref[...], preferred_element_type=jnp.float32) + hbias_ref[...]


# ------------------------------- glue / model --------------------------------
def _full_spec(shape):
    return pl.BlockSpec(shape, lambda *_: (0,) * len(shape))


def _patchify(x):
    b = x.shape[0]
    d, h, w = PATCHNUMS
    p0, p1, p2 = PATCH_SIZE
    # 'b c (d p0) (h p1) (w p2) -> b (d h w) (p0 p1 p2 c)'
    xp = x.reshape(b, CHANNELS, d, p0, h, p1, w, p2)
    xp = jnp.transpose(xp, (0, 2, 4, 6, 3, 5, 7, 1))
    return xp.reshape(b, NUM_PATCHES, PATCH_DIM)


def compute_mask2d(mask):
    """mask: [B, D, 1] -> pairwise attention keep-mask [B, N1, N1] (float 0/1)."""
    b = mask.shape[0]
    d, h, w = PATCHNUMS
    p0 = PATCH_SIZE[0]
    mf = mask.astype(jnp.float32).reshape(b, d, p0, 1)
    slab = mf.mean(axis=2)                               # per-depth-slab mean
    ez = slab != 0.0
    emask = jnp.broadcast_to(ez.reshape(b, d, 1, 1), (b, d, h, w))
    mflat = emask.reshape(b, NUM_PATCHES)                # mask.flatten(1)
    mpad = jnp.concatenate([jnp.ones((b, 1), dtype=bool), mflat], axis=1)  # F.pad(value=True)
    return (mpad[:, :, None] & mpad[:, None, :]).astype(jnp.float32)


def compute_mask_bias(mask):
    """Additive attention bias [B, NP, NP]: 0 where both tokens valid, else -FLT_MAX."""
    keep = compute_mask2d(mask) > 0.5                    # [B, N1, N1] bool
    keep = jnp.pad(keep, ((0, 0), (0, NP - N1), (0, NP - N1)), constant_values=False)
    return jnp.where(keep, 0.0, MASK_VALUE).astype(jnp.float32)


def _prepare_fused_inputs(x, mask, params):
    b = x.shape[0]
    xp = _patchify(x)
    patches = jnp.zeros((b, NP, PATCH_DIM), jnp.float32).at[:, 1:N1].set(xp)
    bias = compute_mask_bias(mask)

    base = jnp.zeros((NP, DIM), jnp.float32)
    base = base.at[0].set(params['cls'][0, 0] + params['pos'][0, 0])
    base = base.at[1:N1].set(params['pos'][0, 1:N1] + params['patch_b'])

    stack = lambda key: jnp.stack([lp[key] for lp in params['layers']], axis=0)
    wqkv = stack('wqkv')                                  # [DEPTH, DIM, 3*INNER]
    wq, wk, wv = jnp.split(wqkv, 3, axis=-1)              # each [DEPTH, DIM, INNER]
    tohead = lambda w: jnp.transpose(
        w.reshape(DEPTH, DIM, HEADS, DIM_HEAD), (0, 2, 1, 3))   # [DEPTH, HEADS, DIM, DH]

    head_w = jnp.zeros((DIM, NC_PAD), jnp.float32).at[:, :NUM_CLASSES].set(params['head_w'])
    head_b = jnp.zeros((1, NC_PAD), jnp.float32).at[:, :NUM_CLASSES].set(params['head_b'])

    return (patches, bias, base, params['patch_w'],
            tohead(wq) * SCALE, tohead(wk), tohead(wv),
            stack('ln1_g'), stack('ln1_b'),
            stack('wout'), stack('bout'),
            stack('ln2_g'), stack('ln2_b'),
            stack('w1'), stack('b1'), stack('w2'), stack('b2'),
            params['head_g'], params['head_beta'], head_w, head_b)


@jax.jit
def vit3d_forward(x, mask, params):
    b = x.shape[0]
    fused_inputs = _prepare_fused_inputs(x, mask, params)

    in_specs = [
        pl.BlockSpec((1, NP, PATCH_DIM), lambda i: (i, 0, 0)),   # padded patches
        pl.BlockSpec((1, NP, NP), lambda i: (i, 0, 0)),          # additive mask bias
        _full_spec((NP, DIM)),                                   # base (cls+pos+patch_b)
        _full_spec((PATCH_DIM, DIM)),                            # patch_w
        _full_spec((DEPTH, HEADS, DIM, DIM_HEAD)),               # wq (pre-scaled)
        _full_spec((DEPTH, HEADS, DIM, DIM_HEAD)),               # wk
        _full_spec((DEPTH, HEADS, DIM, DIM_HEAD)),               # wv
        _full_spec((DEPTH, 1, DIM)), _full_spec((DEPTH, 1, DIM)),        # ln1 g,b
        _full_spec((DEPTH, INNER, DIM)), _full_spec((DEPTH, 1, DIM)),    # wout, bout
        _full_spec((DEPTH, 1, DIM)), _full_spec((DEPTH, 1, DIM)),        # ln2 g,b
        _full_spec((DEPTH, DIM, MLP_DIM)), _full_spec((DEPTH, 1, MLP_DIM)),  # w1, b1
        _full_spec((DEPTH, MLP_DIM, DIM)), _full_spec((DEPTH, 1, DIM)),      # w2, b2
        _full_spec((1, DIM)), _full_spec((1, DIM)),              # head ln g, beta
        _full_spec((DIM, NC_PAD)), _full_spec((1, NC_PAD)),      # head w, bias (padded)
    ]

    out = pl.pallas_call(
        fused_kernel,
        out_shape=jax.ShapeDtypeStruct((b, NP, NC_PAD), jnp.float32),
        grid=(b,),
        in_specs=in_specs,
        out_specs=pl.BlockSpec((1, NP, NC_PAD), lambda i: (i, 0, 0)),
        scratch_shapes=[pltpu.VMEM((NP, INNER), jnp.float32)],
        compiler_params=pltpu.CompilerParams(dimension_semantics=("parallel",)),
    )(*fused_inputs)

    # row 0 is the cls token; slice the padded class lanes back down.
    return out[:, 0, :NUM_CLASSES]


# ---------------------------- pure-JAX reference -----------------------------
def _ln_ref(x, g, b):
    mu = x.mean(-1, keepdims=True)
    var = ((x - mu) ** 2).mean(-1, keepdims=True)
    return (x - mu) / jnp.sqrt(var + LN_EPS) * g + b


def vit3d_reference(x, mask, params):
    b = x.shape[0]
    xp = _patchify(x)
    tok = jnp.einsum('bnp,pd->bnd', xp, params['patch_w'],
                     precision='highest') + params['patch_b']
    xt = jnp.concatenate([jnp.broadcast_to(params['cls'], (b, 1, DIM)), tok], axis=1)
    xt = xt + params['pos']
    m2d = compute_mask2d(mask) > 0.5
    for lp in params['layers']:
        xn = _ln_ref(xt, lp['ln1_g'], lp['ln1_b'])
        qkv = jnp.einsum('bnd,de->bne', xn, lp['wqkv'], precision='highest')
        q, k, v = jnp.split(qkv, 3, axis=-1)
        to_heads = lambda t: t.reshape(b, N1, HEADS, DIM_HEAD).transpose(0, 2, 1, 3)
        q, k, v = to_heads(q), to_heads(k), to_heads(v)
        dots = jnp.einsum('bhid,bhjd->bhij', q, k, precision='highest') * SCALE
        dots = jnp.where(m2d[:, None], dots, MASK_VALUE)
        attn = jax.nn.softmax(dots, axis=-1)
        out = jnp.einsum('bhij,bhjd->bhid', attn, v, precision='highest')
        out = out.transpose(0, 2, 1, 3).reshape(b, N1, INNER)
        out = jnp.einsum('bne,ed->bnd', out, lp['wout'], precision='highest') + lp['bout']
        xt = xt + out
        xn2 = _ln_ref(xt, lp['ln2_g'], lp['ln2_b'])
        h1 = jnp.einsum('bnd,dm->bnm', xn2, lp['w1'], precision='highest') + lp['b1']
        h1 = jax.nn.gelu(h1, approximate=False)
        ff = jnp.einsum('bnm,md->bnd', h1, lp['w2'], precision='highest') + lp['b2']
        xt = xt + ff
    xc = _ln_ref(xt[:, 0], params['head_g'], params['head_beta'])
    return jnp.einsum('bd,dc->bc', xc, params['head_w'],
                      precision='highest') + params['head_b']


# ------------------------------ param init -----------------------------------
def init_params(key):
    keys = iter(jax.random.split(key, 64))

    def nrm(shape, scale):
        return jax.random.normal(next(keys), shape, jnp.float32) * scale

    params = {
        'patch_w': nrm((PATCH_DIM, DIM), 0.02),
        'patch_b': nrm((1, DIM), 0.02),
        'cls': nrm((1, 1, DIM), 1.0),
        'pos': nrm((1, N1, DIM), 1.0),
        'head_g': jnp.ones((1, DIM), jnp.float32),
        'head_beta': jnp.zeros((1, DIM), jnp.float32),
        'head_w': nrm((DIM, NUM_CLASSES), 0.02),
        'head_b': jnp.zeros((1, NUM_CLASSES), jnp.float32),
        'layers': [],
    }
    for _ in range(DEPTH):
        params['layers'].append({
            'ln1_g': jnp.ones((1, DIM), jnp.float32),
            'ln1_b': jnp.zeros((1, DIM), jnp.float32),
            'wqkv': nrm((DIM, 3 * INNER), 0.02),
            'wout': nrm((INNER, DIM), 0.02),
            'bout': jnp.zeros((1, DIM), jnp.float32),
            'ln2_g': jnp.ones((1, DIM), jnp.float32),
            'ln2_b': jnp.zeros((1, DIM), jnp.float32),
            'w1': nrm((DIM, MLP_DIM), 0.02),
            'b1': jnp.zeros((1, MLP_DIM), jnp.float32),
            'w2': nrm((MLP_DIM, DIM), 0.02),
            'b2': jnp.zeros((1, DIM), jnp.float32),
        })
    return params


# ---------------------------------- main --------------------------------------
if __name__ == "__main__":
    key = jax.random.PRNGKey(0)
    kp, kx, km = jax.random.split(key, 3)
    params = init_params(kp)
    x = jax.random.normal(kx, (BATCH, CHANNELS) + IMAGE_SIZE, jnp.float32)
    mask = (jax.random.uniform(km, (BATCH, IMAGE_SIZE[0], 1)) > 0.4).astype(jnp.float32)

    out = jax.block_until_ready(vit3d_forward(x, mask, params))
    ref = vit3d_reference(x, mask, params)

    assert out.shape == (BATCH, NUM_CLASSES), out.shape
    max_diff = float(jnp.max(jnp.abs(out - ref)))
    assert jnp.allclose(out, ref, atol=5e-3, rtol=1e-2), f"max abs diff {max_diff}"
    print("KERNEL_OK")
</pallas_src>

<mosaic_0001>
module attributes {stable_mosaic.version = 11 : i64} {
  func.func @fused_kernel(%arg0: i32, %arg1: memref<1x16x256xf32, #tpu.memory_space<vmem>>, %arg2: memref<1x16x16xf32, #tpu.memory_space<vmem>>, %arg3: memref<16x64xf32, #tpu.memory_space<vmem>>, %arg4: memref<256x64xf32, #tpu.memory_space<vmem>>, %arg5: memref<2x4x64x16xf32, #tpu.memory_space<vmem>>, %arg6: memref<2x4x64x16xf32, #tpu.memory_space<vmem>>, %arg7: memref<2x4x64x16xf32, #tpu.memory_space<vmem>>, %arg8: memref<2x1x64xf32, #tpu.memory_space<vmem>>, %arg9: memref<2x1x64xf32, #tpu.memory_space<vmem>>, %arg10: memref<2x64x64xf32, #tpu.memory_space<vmem>>, %arg11: memref<2x1x64xf32, #tpu.memory_space<vmem>>, %arg12: memref<2x1x64xf32, #tpu.memory_space<vmem>>, %arg13: memref<2x1x64xf32, #tpu.memory_space<vmem>>, %arg14: memref<2x64x128xf32, #tpu.memory_space<vmem>>, %arg15: memref<2x1x128xf32, #tpu.memory_space<vmem>>, %arg16: memref<2x128x64xf32, #tpu.memory_space<vmem>>, %arg17: memref<2x1x64xf32, #tpu.memory_space<vmem>>, %arg18: memref<1x64xf32, #tpu.memory_space<vmem>>, %arg19: memref<1x64xf32, #tpu.memory_space<vmem>>, %arg20: memref<64x128xf32, #tpu.memory_space<vmem>>, %arg21: memref<1x128xf32, #tpu.memory_space<vmem>>, %arg22: memref<1x16x128xf32, #tpu.memory_space<vmem>>, %arg23: memref<16x64xf32, #tpu.memory_space<vmem>>) attributes {dimension_semantics = [#tpu.dimension_semantics<parallel>], iteration_bounds = array<i64: 2>, scalar_prefetch = 0 : i64, scratch_operands = 1 : i64, tpu.core_type = #tpu.core_type<tc>, window_params = [{transform_indices = @transform_0, window_bounds = array<i64: 1, 16, 256>}, {transform_indices = @transform_1, window_bounds = array<i64: 1, 16, 16>}, {pipeline_mode = #tpu.pipeline_mode<synchronous>, transform_indices = @transform_2, window_bounds = array<i64: 16, 64>}, {pipeline_mode = #tpu.pipeline_mode<synchronous>, transform_indices = @transform_3, window_bounds = array<i64: 256, 64>}, {pipeline_mode = #tpu.pipeline_mode<synchronous>, transform_indices = @transform_4, window_bounds = array<i64: 2, 4, 64, 16>}, {pipeline_mode = #tpu.pipeline_mode<synchronous>, transform_indices = @transform_5, window_bounds = array<i64: 2, 4, 64, 16>}, {pipeline_mode = #tpu.pipeline_mode<synchronous>, transform_indices = @transform_6, window_bounds = array<i64: 2, 4, 64, 16>}, {pipeline_mode = #tpu.pipeline_mode<synchronous>, transform_indices = @transform_7, window_bounds = array<i64: 2, 1, 64>}, {pipeline_mode = #tpu.pipeline_mode<synchronous>, transform_indices = @transform_8, window_bounds = array<i64: 2, 1, 64>}, {pipeline_mode = #tpu.pipeline_mode<synchronous>, transform_indices = @transform_9, window_bounds = array<i64: 2, 64, 64>}, {pipeline_mode = #tpu.pipeline_mode<synchronous>, transform_indices = @transform_10, window_bounds = array<i64: 2, 1, 64>}, {pipeline_mode = #tpu.pipeline_mode<synchronous>, transform_indices = @transform_11, window_bounds = array<i64: 2, 1, 64>}, {pipeline_mode = #tpu.pipeline_mode<synchronous>, transform_indices = @transform_12, window_bounds = array<i64: 2, 1, 64>}, {pipeline_mode = #tpu.pipeline_mode<synchronous>, transform_indices = @transform_13, window_bounds = array<i64: 2, 64, 128>}, {pipeline_mode = #tpu.pipeline_mode<synchronous>, transform_indices = @transform_14, window_bounds = array<i64: 2, 1, 128>}, {pipeline_mode = #tpu.pipeline_mode<synchronous>, transform_indices = @transform_15, window_bounds = array<i64: 2, 128, 64>}, {pipeline_mode = #tpu.pipeline_mode<synchronous>, transform_indices = @transform_16, window_bounds = array<i64: 2, 1, 64>}, {pipeline_mode = #tpu.pipeline_mode<synchronous>, transform_indices = @transform_17, window_bounds = array<i64: 1, 64>}, {pipeline_mode = #tpu.pipeline_mode<synchronous>, transform_indices = @transform_18, window_bounds = array<i64: 1, 64>}, {pipeline_mode = #tpu.pipeline_mode<synchronous>, transform_indices = @transform_19, window_bounds = array<i64: 64, 128>}, {pipeline_mode = #tpu.pipeline_mode<synchronous>, transform_indices = @transform_20, window_bounds = array<i64: 1, 128>}, {transform_indices = @transform_21, window_bounds = array<i64: 1, 16, 128>}]} {
    %c0 = arith.constant 0 : index
    %c0_0 = arith.constant 0 : index
    %0 = vector.load %arg3[%c0, %c0_0] : memref<16x64xf32, #tpu.memory_space<vmem>>, vector<16x64xf32>
    %c0_1 = arith.constant 0 : index
    %c0_2 = arith.constant 0 : index
    %c0_3 = arith.constant 0 : index
    %1 = vector.load %arg1[%c0_1, %c0_2, %c0_3] : memref<1x16x256xf32, #tpu.memory_space<vmem>>, vector<1x16x256xf32>
    %2 = vector.shape_cast %1 : vector<1x16x256xf32> to vector<16x256xf32>
    %c0_4 = arith.constant 0 : index
    %c0_5 = arith.constant 0 : index
    %3 = vector.load %arg4[%c0_4, %c0_5] : memref<256x64xf32, #tpu.memory_space<vmem>>, vector<256x64xf32>
    %cst = arith.constant dense<0.000000e+00> : vector<16x64xf32>
    %4 = tpu.matmul %2, %3, %cst {dimension_numbers = #tpu.dot_dimension_numbers<[1], [0], [0], [1], [0, 0, 1, 1], [], []>} : vector<16x256xf32>, vector<256x64xf32>, vector<16x64xf32> -> vector<16x64xf32>
    %5 = arith.addf %0, %4 : vector<16x64xf32>
    %c0_6 = arith.constant 0 : index
    %c0_7 = arith.constant 0 : index
    %c0_8 = arith.constant 0 : index
    %6 = vector.load %arg2[%c0_6, %c0_7, %c0_8] : memref<1x16x16xf32, #tpu.memory_space<vmem>>, vector<1x16x16xf32>
    %7 = vector.shape_cast %6 : vector<1x16x16xf32> to vector<16x16xf32>
    %c0_9 = arith.constant 0 : index
    %c0_10 = arith.constant 0 : index
    %c0_11 = arith.constant 0 : index
    %8 = vector.load %arg8[%c0_9, %c0_10, %c0_11] : memref<2x1x64xf32, #tpu.memory_space<vmem>>, vector<1x1x64xf32>
    %9 = vector.shape_cast %8 : vector<1x1x64xf32> to vector<1x64xf32>
    %c0_12 = arith.constant 0 : index
    %c0_13 = arith.constant 0 : index
    %c0_14 = arith.constant 0 : index
    %10 = vector.load %arg9[%c0_12, %c0_13, %c0_14] : memref<2x1x64xf32, #tpu.memory_space<vmem>>, vector<1x1x64xf32>
    %11 = vector.shape_cast %10 : vector<1x1x64xf32> to vector<1x64xf32>
    %cst_15 = arith.constant dense<0.000000e+00> : vector<16xf32>
    %12 = vector.multi_reduction <add>, %5, %cst_15 [1] : vector<16x64xf32> to vector<16xf32>
    %13 = vector.shape_cast %12 : vector<16xf32> to vector<16x1xf32>
    %cst_16 = arith.constant 6.400000e+01 : f32
    %14 = vector.broadcast %cst_16 : f32 to vector<16x1xf32>
    %15 = arith.divf %13, %14 : vector<16x1xf32>
    %16 = vector.broadcast %15 : vector<16x1xf32> to vector<16x64xf32>
    %17 = arith.subf %5, %16 : vector<16x64xf32>
    %18 = arith.mulf %17, %17 : vector<16x64xf32>
    %cst_17 = arith.constant dense<0.000000e+00> : vector<16xf32>
    %19 = vector.multi_reduction <add>, %18, %cst_17 [1] : vector<16x64xf32> to vector<16xf32>
    %20 = vector.shape_cast %19 : vector<16xf32> to vector<16x1xf32>
    %cst_18 = arith.constant 6.400000e+01 : f32
    %21 = vector.broadcast %cst_18 : f32 to vector<16x1xf32>
    %22 = arith.divf %20, %21 : vector<16x1xf32>
    %23 = vector.broadcast %15 : vector<16x1xf32> to vector<16x64xf32>
    %24 = arith.subf %5, %23 : vector<16x64xf32>
    %cst_19 = arith.constant 9.99999974E-6 : f32
    %25 = vector.broadcast %cst_19 : f32 to vector<16x1xf32>
    %26 = arith.addf %22, %25 : vector<16x1xf32>
    %27 = math.rsqrt %26 : vector<16x1xf32>
    %28 = vector.broadcast %27 : vector<16x1xf32> to vector<16x64xf32>
    %29 = arith.mulf %24, %28 : vector<16x64xf32>
    %30 = vector.broadcast %9 : vector<1x64xf32> to vector<16x64xf32>
    %31 = arith.mulf %29, %30 : vector<16x64xf32>
    %32 = vector.broadcast %11 : vector<1x64xf32> to vector<16x64xf32>
    %33 = arith.addf %31, %32 : vector<16x64xf32>
    %c0_20 = arith.constant 0 : index
    %c0_21 = arith.constant 0 : index
    %c0_22 = arith.constant 0 : index
    %c0_23 = arith.constant 0 : index
    %34 = vector.load %arg5[%c0_20, %c0_21, %c0_22, %c0_23] : memref<2x4x64x16xf32, #tpu.memory_space<vmem>>, vector<1x1x64x16xf32>
    %35 = vector.shape_cast %34 : vector<1x1x64x16xf32> to vector<64x16xf32>
    %cst_24 = arith.constant dense<0.000000e+00> : vector<16x16xf32>
    %36 = tpu.matmul %33, %35, %cst_24 {dimension_numbers = #tpu.dot_dimension_numbers<[1], [0], [0], [1], [0, 0, 1, 1], [], []>} : vector<16x64xf32>, vector<64x16xf32>, vector<16x16xf32> -> vector<16x16xf32>
    %c0_25 = arith.constant 0 : index
    %c0_26 = arith.constant 0 : index
    %c0_27 = arith.constant 0 : index
    %c0_28 = arith.constant 0 : index
    %37 = vector.load %arg6[%c0_25, %c0_26, %c0_27, %c0_28] : memref<2x4x64x16xf32, #tpu.memory_space<vmem>>, vector<1x1x64x16xf32>
    %38 = vector.shape_cast %37 : vector<1x1x64x16xf32> to vector<64x16xf32>
    %cst_29 = arith.constant dense<0.000000e+00> : vector<16x16xf32>
    %39 = tpu.matmul %33, %38, %cst_29 {dimension_numbers = #tpu.dot_dimension_numbers<[1], [0], [0], [1], [0, 0, 1, 1], [], []>} : vector<16x64xf32>, vector<64x16xf32>, vector<16x16xf32> -> vector<16x16xf32>
    %c0_30 = arith.constant 0 : index
    %c0_31 = arith.constant 0 : index
    %c0_32 = arith.constant 0 : index
    %c0_33 = arith.constant 0 : index
    %40 = vector.load %arg7[%c0_30, %c0_31, %c0_32, %c0_33] : memref<2x4x64x16xf32, #tpu.memory_space<vmem>>, vector<1x1x64x16xf32>
    %41 = vector.shape_cast %40 : vector<1x1x64x16xf32> to vector<64x16xf32>
    %cst_34 = arith.constant dense<0.000000e+00> : vector<16x16xf32>
    %42 = tpu.matmul %33, %41, %cst_34 {dimension_numbers = #tpu.dot_dimension_numbers<[1], [0], [0], [1], [0, 0, 1, 1], [], []>} : vector<16x64xf32>, vector<64x16xf32>, vector<16x16xf32> -> vector<16x16xf32>
    %cst_35 = arith.constant dense<0.000000e+00> : vector<16x16xf32>
    %43 = tpu.matmul %36, %39, %cst_35 {dimension_numbers = #tpu.dot_dimension_numbers<[1], [1], [0], [0], [0, 0, 1, 0], [], []>} : vector<16x16xf32>, vector<16x16xf32>, vector<16x16xf32> -> vector<16x16xf32>
    %44 = arith.addf %43, %7 : vector<16x16xf32>
    %cst_36 = arith.constant dense<0xFF800000> : vector<16xf32>
    %45 = vector.multi_reduction <maximumf>, %44, %cst_36 [1] : vector<16x16xf32> to vector<16xf32>
    %46 = vector.shape_cast %45 : vector<16xf32> to vector<16x1xf32>
    %47 = vector.broadcast %46 : vector<16x1xf32> to vector<16x16xf32>
    %48 = arith.subf %44, %47 : vector<16x16xf32>
    %49 = math.exp %48 : vector<16x16xf32>
    %cst_37 = arith.constant dense<0.000000e+00> : vector<16xf32>
    %50 = vector.multi_reduction <add>, %49, %cst_37 [1] : vector<16x16xf32> to vector<16xf32>
    %51 = vector.shape_cast %50 : vector<16xf32> to vector<16x1xf32>
    %52 = tpu.reciprocal %51 {approx = true} : vector<16x1xf32> -> vector<16x1xf32>
    %53 = vector.broadcast %52 : vector<16x1xf32> to vector<16x16xf32>
    %54 = arith.mulf %49, %53 : vector<16x16xf32>
    %cst_38 = arith.constant dense<0.000000e+00> : vector<16x16xf32>
    %55 = tpu.matmul %54, %42, %cst_38 {dimension_numbers = #tpu.dot_dimension_numbers<[1], [0], [0], [1], [0, 0, 1, 1], [], []>} : vector<16x16xf32>, vector<16x16xf32>, vector<16x16xf32> -> vector<16x16xf32>
    %c0_39 = arith.constant 0 : index
    %c0_40 = arith.constant 0 : index
    %56 = vector.load %arg23[%c0_39, %c0_40] : memref<16x64xf32, #tpu.memory_space<vmem>>, vector<16x16xf32>
    tpu.vector_store %arg23[%c0_39, %c0_40], %55 {strides = array<i32>} : memref<16x64xf32, #tpu.memory_space<vmem>>, vector<16x16xf32>,
    %c0_41 = arith.constant 0 : index
    %c1 = arith.constant 1 : index
    %c0_42 = arith.constant 0 : index
    %c0_43 = arith.constant 0 : index
    %57 = vector.load %arg5[%c0_41, %c1, %c0_42, %c0_43] : memref<2x4x64x16xf32, #tpu.memory_space<vmem>>, vector<1x1x64x16xf32>
    %58 = vector.shape_cast %57 : vector<1x1x64x16xf32> to vector<64x16xf32>
    %cst_44 = arith.constant dense<0.000000e+00> : vector<16x16xf32>
    %59 = tpu.matmul %33, %58, %cst_44 {dimension_numbers = #tpu.dot_dimension_numbers<[1], [0], [0], [1], [0, 0, 1, 1], [], []>} : vector<16x64xf32>, vector<64x16xf32>, vector<16x16xf32> -> vector<16x16xf32>
    %c0_45 = arith.constant 0 : index
    %c1_46 = arith.constant 1 : index
    %c0_47 = arith.constant 0 : index
    %c0_48 = arith.constant 0 : index
    %60 = vector.load %arg6[%c0_45, %c1_46, %c0_47, %c0_48] : memref<2x4x64x16xf32, #tpu.memory_space<vmem>>, vector<1x1x64x16xf32>
    %61 = vector.shape_cast %60 : vector<1x1x64x16xf32> to vector<64x16xf32>
    %cst_49 = arith.constant dense<0.000000e+00> : vector<16x16xf32>
    %62 = tpu.matmul %33, %61, %cst_49 {dimension_numbers = #tpu.dot_dimension_numbers<[1], [0], [0], [1], [0, 0, 1, 1], [], []>} : vector<16x64xf32>, vector<64x16xf32>, vector<16x16xf32> -> vector<16x16xf32>
    %c0_50 = arith.constant 0 : index
    %c1_51 = arith.constant 1 : index
    %c0_52 = arith.constant 0 : index
    %c0_53 = arith.constant 0 : index
    %63 = vector.load %arg7[%c0_50, %c1_51, %c0_52, %c0_53] : memref<2x4x64x16xf32, #tpu.memory_space<vmem>>, vector<1x1x64x16xf32>
    %64 = vector.shape_cast %63 : vector<1x1x64x16xf32> to vector<64x16xf32>
    %cst_54 = arith.constant dense<0.000000e+00> : vector<16x16xf32>
    %65 = tpu.matmul %33, %64, %cst_54 {dimension_numbers = #tpu.dot_dimension_numbers<[1], [0], [0], [1], [0, 0, 1, 1], [], []>} : vector<16x64xf32>, vector<64x16xf32>, vector<16x16xf32> -> vector<16x16xf32>
    %cst_55 = arith.constant dense<0.000000e+00> : vector<16x16xf32>
    %66 = tpu.matmul %59, %62, %cst_55 {dimension_numbers = #tpu.dot_dimension_numbers<[1], [1], [0], [0], [0, 0, 1, 0], [], []>} : vector<16x16xf32>, vector<16x16xf32>, vector<16x16xf32> -> vector<16x16xf32>
    %67 = arith.addf %66, %7 : vector<16x16xf32>
    %cst_56 = arith.constant dense<0xFF800000> : vector<16xf32>
    %68 = vector.multi_reduction <maximumf>, %67, %cst_56 [1] : vector<16x16xf32> to vector<16xf32>
    %69 = vector.shape_cast %68 : vector<16xf32> to vector<16x1xf32>
    %70 = vector.broadcast %69 : vector<16x1xf32> to vector<16x16xf32>
    %71 = arith.subf %67, %70 : vector<16x16xf32>
    %72 = math.exp %71 : vector<16x16xf32>
    %cst_57 = arith.constant dense<0.000000e+00> : vector<16xf32>
    %73 = vector.multi_reduction <add>, %72, %cst_57 [1] : vector<16x16xf32> to vector<16xf32>
    %74 = vector.shape_cast %73 : vector<16xf32> to vector<16x1xf32>
    %75 = tpu.reciprocal %74 {approx = true} : vector<16x1xf32> -> vector<16x1xf32>
    %76 = vector.broadcast %75 : vector<16x1xf32> to vector<16x16xf32>
    %77 = arith.mulf %72, %76 : vector<16x16xf32>
    %cst_58 = arith.constant dense<0.000000e+00> : vector<16x16xf32>
    %78 = tpu.matmul %77, %65, %cst_58 {dimension_numbers = #tpu.dot_dimension_numbers<[1], [0], [0], [1], [0, 0, 1, 1], [], []>} : vector<16x16xf32>, vector<16x16xf32>, vector<16x16xf32> -> vector<16x16xf32>
    %c0_59 = arith.constant 0 : index
    %c16 = arith.constant 16 : index
    %79 = vector.load %arg23[%c0_59, %c16] : memref<16x64xf32, #tpu.memory_space<vmem>>, vector<16x16xf32>
    tpu.vector_store %arg23[%c0_59, %c16], %78 {strides = array<i32>} : memref<16x64xf32, #tpu.memory_space<vmem>>, vector<16x16xf32>,
    %c0_60 = arith.constant 0 : index
    %c2 = arith.constant 2 : index
    %c0_61 = arith.constant 0 : index
    %c0_62 = arith.constant 0 : index
    %80 = vector.load %arg5[%c0_60, %c2, %c0_61, %c0_62] : memref<2x4x64x16xf32, #tpu.memory_space<vmem>>, vector<1x1x64x16xf32>
    %81 = vector.shape_cast %80 : vector<1x1x64x16xf32> to vector<64x16xf32>
    %cst_63 = arith.constant dense<0.000000e+00> : vector<16x16xf32>
    %82 = tpu.matmul %33, %81, %cst_63 {dimension_numbers = #tpu.dot_dimension_numbers<[1], [0], [0], [1], [0, 0, 1, 1], [], []>} : vector<16x64xf32>, vector<64x16xf32>, vector<16x16xf32> -> vector<16x16xf32>
    %c0_64 = arith.constant 0 : index
    %c2_65 = arith.constant 2 : index
    %c0_66 = arith.constant 0 : index
    %c0_67 = arith.constant 0 : index
    %83 = vector.load %arg6[%c0_64, %c2_65, %c0_66, %c0_67] : memref<2x4x64x16xf32, #tpu.memory_space<vmem>>, vector<1x1x64x16xf32>
    %84 = vector.shape_cast %83 : vector<1x1x64x16xf32> to vector<64x16xf32>
    %cst_68 = arith.constant dense<0.000000e+00> : vector<16x16xf32>
    %85 = tpu.matmul %33, %84, %cst_68 {dimension_numbers = #tpu.dot_dimension_numbers<[1], [0], [0], [1], [0, 0, 1, 1], [], []>} : vector<16x64xf32>, vector<64x16xf32>, vector<16x16xf32> -> vector<16x16xf32>
    %c0_69 = arith.constant 0 : index
    %c2_70 = arith.constant 2 : index
    %c0_71 = arith.constant 0 : index
    %c0_72 = arith.constant 0 : index
    %86 = vector.load %arg7[%c0_69, %c2_70, %c0_71, %c0_72] : memref<2x4x64x16xf32, #tpu.memory_space<vmem>>, vector<1x1x64x16xf32>
    %87 = vector.shape_cast %86 : vector<1x1x64x16xf32> to vector<64x16xf32>
    %cst_73 = arith.constant dense<0.000000e+00> : vector<16x16xf32>
    %88 = tpu.matmul %33, %87, %cst_73 {dimension_numbers = #tpu.dot_dimension_numbers<[1], [0], [0], [1], [0, 0, 1, 1], [], []>} : vector<16x64xf32>, vector<64x16xf32>, vector<16x16xf32> -> vector<16x16xf32>
    %cst_74 = arith.constant dense<0.000000e+00> : vector<16x16xf32>
    %89 = tpu.matmul %82, %85, %cst_74 {dimension_numbers = #tpu.dot_dimension_numbers<[1], [1], [0], [0], [0, 0, 1, 0], [], []>} : vector<16x16xf32>, vector<16x16xf32>, vector<16x16xf32> -> vector<16x16xf32>
    %90 = arith.addf %89, %7 : vector<16x16xf32>
    %cst_75 = arith.constant dense<0xFF800000> : vector<16xf32>
    %91 = vector.multi_reduction <maximumf>, %90, %cst_75 [1] : vector<16x16xf32> to vector<16xf32>
    %92 = vector.shape_cast %91 : vector<16xf32> to vector<16x1xf32>
    %93 = vector.broadcast %92 : vector<16x1xf32> to vector<16x16xf32>
    %94 = arith.subf %90, %93 : vector<16x16xf32>
    %95 = math.exp %94 : vector<16x16xf32>
    %cst_76 = arith.constant dense<0.000000e+00> : vector<16xf32>
    %96 = vector.multi_reduction <add>, %95, %cst_76 [1] : vector<16x16xf32> to vector<16xf32>
    %97 = vector.shape_cast %96 : vector<16xf32> to vector<16x1xf32>
    %98 = tpu.reciprocal %97 {approx = true} : vector<16x1xf32> -> vector<16x1xf32>
    %99 = vector.broadcast %98 : vector<16x1xf32> to vector<16x16xf32>
    %100 = arith.mulf %95, %99 : vector<16x16xf32>
    %cst_77 = arith.constant dense<0.000000e+00> : vector<16x16xf32>
    %101 = tpu.matmul %100, %88, %cst_77 {dimension_numbers = #tpu.dot_dimension_numbers<[1], [0], [0], [1], [0, 0, 1, 1], [], []>} : vector<16x16xf32>, vector<16x16xf32>, vector<16x16xf32> -> vector<16x16xf32>
    %c0_78 = arith.constant 0 : index
    %c32 = arith.constant 32 : index
    %102 = vector.load %arg23[%c0_78, %c32] : memref<16x64xf32, #tpu.memory_space<vmem>>, vector<16x16xf32>
    tpu.vector_store %arg23[%c0_78, %c32], %101 {strides = array<i32>} : memref<16x64xf32, #tpu.memory_space<vmem>>, vector<16x16xf32>,
    %c0_79 = arith.constant 0 : index
    %c3 = arith.constant 3 : index
    %c0_80 = arith.constant 0 : index
    %c0_81 = arith.constant 0 : index
    %103 = vector.load %arg5[%c0_79, %c3, %c0_80, %c0_81] : memref<2x4x64x16xf32, #tpu.memory_space<vmem>>, vector<1x1x64x16xf32>
    %104 = vector.shape_cast %103 : vector<1x1x64x16xf32> to vector<64x16xf32>
    %cst_82 = arith.constant dense<0.000000e+00> : vector<16x16xf32>
    %105 = tpu.matmul %33, %104, %cst_82 {dimension_numbers = #tpu.dot_dimension_numbers<[1], [0], [0], [1], [0, 0, 1, 1], [], []>} : vector<16x64xf32>, vector<64x16xf32>, vector<16x16xf32> -> vector<16x16xf32>
    %c0_83 = arith.constant 0 : index
    %c3_84 = arith.constant 3 : index
    %c0_85 = arith.constant 0 : index
    %c0_86 = arith.constant 0 : index
    %106 = vector.load %arg6[%c0_83, %c3_84, %c0_85, %c0_86] : memref<2x4x64x16xf32, #tpu.memory_space<vmem>>, vector<1x1x64x16xf32>
    %107 = vector.shape_cast %106 : vector<1x1x64x16xf32> to vector<64x16xf32>
    %cst_87 = arith.constant dense<0.000000e+00> : vector<16x16xf32>
    %108 = tpu.matmul %33, %107, %cst_87 {dimension_numbers = #tpu.dot_dimension_numbers<[1], [0], [0], [1], [0, 0, 1, 1], [], []>} : vector<16x64xf32>, vector<64x16xf32>, vector<16x16xf32> -> vector<16x16xf32>
    %c0_88 = arith.constant 0 : index
    %c3_89 = arith.constant 3 : index
    %c0_90 = arith.constant 0 : index
    %c0_91 = arith.constant 0 : index
    %109 = vector.load %arg7[%c0_88, %c3_89, %c0_90, %c0_91] : memref<2x4x64x16xf32, #tpu.memory_space<vmem>>, vector<1x1x64x16xf32>
    %110 = vector.shape_cast %109 : vector<1x1x64x16xf32> to vector<64x16xf32>
    %cst_92 = arith.constant dense<0.000000e+00> : vector<16x16xf32>
    %111 = tpu.matmul %33, %110, %cst_92 {dimension_numbers = #tpu.dot_dimension_numbers<[1], [0], [0], [1], [0, 0, 1, 1], [], []>} : vector<16x64xf32>, vector<64x16xf32>, vector<16x16xf32> -> vector<16x16xf32>
    %cst_93 = arith.constant dense<0.000000e+00> : vector<16x16xf32>
    %112 = tpu.matmul %105, %108, %cst_93 {dimension_numbers = #tpu.dot_dimension_numbers<[1], [1], [0], [0], [0, 0, 1, 0], [], []>} : vector<16x16xf32>, vector<16x16xf32>, vector<16x16xf32> -> vector<16x16xf32>
    %113 = arith.addf %112, %7 : vector<16x16xf32>
    %cst_94 = arith.constant dense<0xFF800000> : vector<16xf32>
    %114 = vector.multi_reduction <maximumf>, %113, %cst_94 [1] : vector<16x16xf32> to vector<16xf32>
    %115 = vector.shape_cast %114 : vector<16xf32> to vector<16x1xf32>
    %116 = vector.broadcast %115 : vector<16x1xf32> to vector<16x16xf32>
    %117 = arith.subf %113, %116 : vector<16x16xf32>
    %118 = math.exp %117 : vector<16x16xf32>
    %cst_95 = arith.constant dense<0.000000e+00> : vector<16xf32>
    %119 = vector.multi_reduction <add>, %118, %cst_95 [1] : vector<16x16xf32> to vector<16xf32>
    %120 = vector.shape_cast %119 : vector<16xf32> to vector<16x1xf32>
    %121 = tpu.reciprocal %120 {approx = true} : vector<16x1xf32> -> vector<16x1xf32>
    %122 = vector.broadcast %121 : vector<16x1xf32> to vector<16x16xf32>
    %123 = arith.mulf %118, %122 : vector<16x16xf32>
    %cst_96 = arith.constant dense<0.000000e+00> : vector<16x16xf32>
    %124 = tpu.matmul %123, %111, %cst_96 {dimension_numbers = #tpu.dot_dimension_numbers<[1], [0], [0], [1], [0, 0, 1, 1], [], []>} : vector<16x16xf32>, vector<16x16xf32>, vector<16x16xf32> -> vector<16x16xf32>
    %c0_97 = arith.constant 0 : index
    %c48 = arith.constant 48 : index
    %125 = vector.load %arg23[%c0_97, %c48] : memref<16x64xf32, #tpu.memory_space<vmem>>, vector<16x16xf32>
    tpu.vector_store %arg23[%c0_97, %c48], %124 {strides = array<i32>} : memref<16x64xf32, #tpu.memory_space<vmem>>, vector<16x16xf32>,
    %c0_98 = arith.constant 0 : index
    %c0_99 = arith.constant 0 : index
    %126 = vector.load %arg23[%c0_98, %c0_99] : memref<16x64xf32, #tpu.memory_space<vmem>>, vector<16x64xf32>
    %c0_100 = arith.constant 0 : index
    %c0_101 = arith.constant 0 : index
    %c0_102 = arith.constant 0 : index
    %127 = vector.load %arg10[%c0_100, %c0_101, %c0_102] : memref<2x64x64xf32, #tpu.memory_space<vmem>>, vector<1x64x64xf32>
    %128 = vector.shape_cast %127 : vector<1x64x64xf32> to vector<64x64xf32>
    %cst_103 = arith.constant dense<0.000000e+00> : vector<16x64xf32>
    %129 = tpu.matmul %126, %128, %cst_103 {dimension_numbers = #tpu.dot_dimension_numbers<[1], [0], [0], [1], [0, 0, 1, 1], [], []>} : vector<16x64xf32>, vector<64x64xf32>, vector<16x64xf32> -> vector<16x64xf32>
    %c0_104 = arith.constant 0 : index
    %c0_105 = arith.constant 0 : index
    %c0_106 = arith.constant 0 : index
    %130 = vector.load %arg11[%c0_104, %c0_105, %c0_106] : memref<2x1x64xf32, #tpu.memory_space<vmem>>, vector<1x1x64xf32>
    %131 = vector.shape_cast %130 : vector<1x1x64xf32> to vector<1x64xf32>
    %132 = vector.broadcast %131 : vector<1x64xf32> to vector<16x64xf32>
    %133 = arith.addf %129, %132 : vector<16x64xf32>
    %134 = arith.addf %5, %133 : vector<16x64xf32>
    %c0_107 = arith.constant 0 : index
    %c0_108 = arith.constant 0 : index
    %c0_109 = arith.constant 0 : index
    %135 = vector.load %arg12[%c0_107, %c0_108, %c0_109] : memref<2x1x64xf32, #tpu.memory_space<vmem>>, vector<1x1x64xf32>
    %136 = vector.shape_cast %135 : vector<1x1x64xf32> to vector<1x64xf32>
    %c0_110 = arith.constant 0 : index
    %c0_111 = arith.constant 0 : index
    %c0_112 = arith.constant 0 : index
    %137 = vector.load %arg13[%c0_110, %c0_111, %c0_112] : memref<2x1x64xf32, #tpu.memory_space<vmem>>, vector<1x1x64xf32>
    %138 = vector.shape_cast %137 : vector<1x1x64xf32> to vector<1x64xf32>
    %cst_113 = arith.constant dense<0.000000e+00> : vector<16xf32>
    %139 = vector.multi_reduction <add>, %134, %cst_113 [1] : vector<16x64xf32> to vector<16xf32>
    %140 = vector.shape_cast %139 : vector<16xf32> to vector<16x1xf32>
    %cst_114 = arith.constant 6.400000e+01 : f32
    %141 = vector.broadcast %cst_114 : f32 to vector<16x1xf32>
    %142 = arith.divf %140, %141 : vector<16x1xf32>
    %143 = vector.broadcast %142 : vector<16x1xf32> to vector<16x64xf32>
    %144 = arith.subf %134, %143 : vector<16x64xf32>
    %145 = arith.mulf %144, %144 : vector<16x64xf32>
    %cst_115 = arith.constant dense<0.000000e+00> : vector<16xf32>
    %146 = vector.multi_reduction <add>, %145, %cst_115 [1] : vector<16x64xf32> to vector<16xf32>
    %147 = vector.shape_cast %146 : vector<16xf32> to vector<16x1xf32>
    %cst_116 = arith.constant 6.400000e+01 : f32
    %148 = vector.broadcast %cst_116 : f32 to vector<16x1xf32>
    %149 = arith.divf %147, %148 : vector<16x1xf32>
    %150 = vector.broadcast %142 : vector<16x1xf32> to vector<16x64xf32>
    %151 = arith.subf %134, %150 : vector<16x64xf32>
    %cst_117 = arith.constant 9.99999974E-6 : f32
    %152 = vector.broadcast %cst_117 : f32 to vector<16x1xf32>
    %153 = arith.addf %149, %152 : vector<16x1xf32>
    %154 = math.rsqrt %153 : vector<16x1xf32>
    %155 = vector.broadcast %154 : vector<16x1xf32> to vector<16x64xf32>
    %156 = arith.mulf %151, %155 : vector<16x64xf32>
    %157 = vector.broadcast %136 : vector<1x64xf32> to vector<16x64xf32>
    %158 = arith.mulf %156, %157 : vector<16x64xf32>
    %159 = vector.broadcast %138 : vector<1x64xf32> to vector<16x64xf32>
    %160 = arith.addf %158, %159 : vector<16x64xf32>
    %c0_118 = arith.constant 0 : index
    %c0_119 = arith.constant 0 : index
    %c0_120 = arith.constant 0 : index
    %161 = vector.load %arg14[%c0_118, %c0_119, %c0_120] : memref<2x64x128xf32, #tpu.memory_space<vmem>>, vector<1x64x128xf32>
    %162 = vector.shape_cast %161 : vector<1x64x128xf32> to vector<64x128xf32>
    %cst_121 = arith.constant dense<0.000000e+00> : vector<16x128xf32>
    %163 = tpu.matmul %160, %162, %cst_121 {dimension_numbers = #tpu.dot_dimension_numbers<[1], [0], [0], [1], [0, 0, 1, 1], [], []>} : vector<16x64xf32>, vector<64x128xf32>, vector<16x128xf32> -> vector<16x128xf32>
    %c0_122 = arith.constant 0 : index
    %c0_123 = arith.constant 0 : index
    %c0_124 = arith.constant 0 : index
    %164 = vector.load %arg15[%c0_122, %c0_123, %c0_124] : memref<2x1x128xf32, #tpu.memory_space<vmem>>, vector<1x1x128xf32>
    %165 = vector.shape_cast %164 : vector<1x1x128xf32> to vector<1x128xf32>
    %166 = vector.broadcast %165 : vector<1x128xf32> to vector<16x128xf32>
    %167 = arith.addf %163, %166 : vector<16x128xf32>
    %cst_125 = arith.constant 5.000000e-01 : f32
    %168 = vector.broadcast %cst_125 : f32 to vector<16x128xf32>
    %169 = arith.mulf %168, %167 : vector<16x128xf32>
    %cst_126 = arith.constant 0.707106769 : f32
    %170 = vector.broadcast %cst_126 : f32 to vector<16x128xf32>
    %171 = arith.mulf %167, %170 : vector<16x128xf32>
    %cst_127 = arith.constant 0.000000e+00 : f32
    %172 = vector.broadcast %cst_127 : f32 to vector<16x128xf32>
    %173 = arith.cmpf oge, %171, %172 : vector<16x128xf32>
    %cst_128 = arith.constant 1.000000e+00 : f32
    %cst_129 = arith.constant -1.000000e+00 : f32
    %174 = vector.broadcast %cst_128 : f32 to vector<16x128xf32>
    %175 = vector.broadcast %cst_129 : f32 to vector<16x128xf32>
    %176 = arith.select %173, %174, %175 : vector<16x128xi1>, vector<16x128xf32>
    %177 = math.absf %171 : vector<16x128xf32>
    %cst_130 = arith.constant 0.327591091 : f32
    %178 = vector.broadcast %cst_130 : f32 to vector<16x128xf32>
    %179 = arith.mulf %178, %177 : vector<16x128xf32>
    %cst_131 = arith.constant 1.000000e+00 : f32
    %180 = vector.broadcast %cst_131 : f32 to vector<16x128xf32>
    %181 = arith.addf %180, %179 : vector<16x128xf32>
    %cst_132 = arith.constant 1.000000e+00 : f32
    %182 = vector.broadcast %cst_132 : f32 to vector<16x128xf32>
    %183 = arith.divf %182, %181 : vector<16x128xf32>
    %cst_133 = arith.constant 1.06140542 : f32
    %184 = vector.broadcast %cst_133 : f32 to vector<16x128xf32>
    %185 = arith.mulf %184, %183 : vector<16x128xf32>
    %cst_134 = arith.constant -1.45315206 : f32
    %186 = vector.broadcast %cst_134 : f32 to vector<16x128xf32>
    %187 = arith.addf %185, %186 : vector<16x128xf32>
    %188 = arith.mulf %187, %183 : vector<16x128xf32>
    %cst_135 = arith.constant 1.42141378 : f32
    %189 = vector.broadcast %cst_135 : f32 to vector<16x128xf32>
    %190 = arith.addf %188, %189 : vector<16x128xf32>
    %191 = arith.mulf %190, %183 : vector<16x128xf32>
    %cst_136 = arith.constant -0.284496725 : f32
    %192 = vector.broadcast %cst_136 : f32 to vector<16x128xf32>
    %193 = arith.addf %191, %192 : vector<16x128xf32>
    %194 = arith.mulf %193, %183 : vector<16x128xf32>
    %cst_137 = arith.constant 0.254829586 : f32
    %195 = vector.broadcast %cst_137 : f32 to vector<16x128xf32>
    %196 = arith.addf %194, %195 : vector<16x128xf32>
    %197 = arith.mulf %196, %183 : vector<16x128xf32>
    %cst_138 = arith.constant 0.000000e+00 : f32
    %198 = vector.broadcast %cst_138 : f32 to vector<16x128xf32>
    %199 = arith.subf %198, %177 : vector<16x128xf32>
    %200 = arith.mulf %199, %177 : vector<16x128xf32>
    %201 = math.exp %200 : vector<16x128xf32>
    %202 = arith.mulf %197, %201 : vector<16x128xf32>
    %cst_139 = arith.constant 1.000000e+00 : f32
    %203 = vector.broadcast %cst_139 : f32 to vector<16x128xf32>
    %204 = arith.subf %203, %202 : vector<16x128xf32>
    %205 = arith.mulf %176, %204 : vector<16x128xf32>
    %cst_140 = arith.constant 1.000000e+00 : f32
    %206 = vector.broadcast %cst_140 : f32 to vector<16x128xf32>
    %207 = arith.addf %206, %205 : vector<16x128xf32>
    %208 = arith.mulf %169, %207 : vector<16x128xf32>
    %c0_141 = arith.constant 0 : index
    %c0_142 = arith.constant 0 : index
    %c0_143 = arith.constant 0 : index
    %209 = vector.load %arg16[%c0_141, %c0_142, %c0_143] : memref<2x128x64xf32, #tpu.memory_space<vmem>>, vector<1x128x64xf32>
    %210 = vector.shape_cast %209 : vector<1x128x64xf32> to vector<128x64xf32>
    %cst_144 = arith.constant dense<0.000000e+00> : vector<16x64xf32>
    %211 = tpu.matmul %208, %210, %cst_144 {dimension_numbers = #tpu.dot_dimension_numbers<[1], [0], [0], [1], [0, 0, 1, 1], [], []>} : vector<16x128xf32>, vector<128x64xf32>, vector<16x64xf32> -> vector<16x64xf32>
    %212 = arith.addf %134, %211 : vector<16x64xf32>
    %c0_145 = arith.constant 0 : index
    %c0_146 = arith.constant 0 : index
    %c0_147 = arith.constant 0 : index
    %213 = vector.load %arg17[%c0_145, %c0_146, %c0_147] : memref<2x1x64xf32, #tpu.memory_space<vmem>>, vector<1x1x64xf32>
    %214 = vector.shape_cast %213 : vector<1x1x64xf32> to vector<1x64xf32>
    %215 = vector.broadcast %214 : vector<1x64xf32> to vector<16x64xf32>
    %216 = arith.addf %212, %215 : vector<16x64xf32>
    %c1_148 = arith.constant 1 : index
    %c0_149 = arith.constant 0 : index
    %c0_150 = arith.constant 0 : index
    %217 = vector.load %arg8[%c1_148, %c0_149, %c0_150] : memref<2x1x64xf32, #tpu.memory_space<vmem>>, vector<1x1x64xf32>
    %218 = vector.shape_cast %217 : vector<1x1x64xf32> to vector<1x64xf32>
    %c1_151 = arith.constant 1 : index
    %c0_152 = arith.constant 0 : index
    %c0_153 = arith.constant 0 : index
    %219 = vector.load %arg9[%c1_151, %c0_152, %c0_153] : memref<2x1x64xf32, #tpu.memory_space<vmem>>, vector<1x1x64xf32>
    %220 = vector.shape_cast %219 : vector<1x1x64xf32> to vector<1x64xf32>
    %cst_154 = arith.constant dense<0.000000e+00> : vector<16xf32>
    %221 = vector.multi_reduction <add>, %216, %cst_154 [1] : vector<16x64xf32> to vector<16xf32>
    %222 = vector.shape_cast %221 : vector<16xf32> to vector<16x1xf32>
    %cst_155 = arith.constant 6.400000e+01 : f32
    %223 = vector.broadcast %cst_155 : f32 to vector<16x1xf32>
    %224 = arith.divf %222, %223 : vector<16x1xf32>
    %225 = vector.broadcast %224 : vector<16x1xf32> to vector<16x64xf32>
    %226 = arith.subf %216, %225 : vector<16x64xf32>
    %227 = arith.mulf %226, %226 : vector<16x64xf32>
    %cst_156 = arith.constant dense<0.000000e+00> : vector<16xf32>
    %228 = vector.multi_reduction <add>, %227, %cst_156 [1] : vector<16x64xf32> to vector<16xf32>
    %229 = vector.shape_cast %228 : vector<16xf32> to vector<16x1xf32>
    %cst_157 = arith.constant 6.400000e+01 : f32
    %230 = vector.broadcast %cst_157 : f32 to vector<16x1xf32>
    %231 = arith.divf %229, %230 : vector<16x1xf32>
    %232 = vector.broadcast %224 : vector<16x1xf32> to vector<16x64xf32>
    %233 = arith.subf %216, %232 : vector<16x64xf32>
    %cst_158 = arith.constant 9.99999974E-6 : f32
    %234 = vector.broadcast %cst_158 : f32 to vector<16x1xf32>
    %235 = arith.addf %231, %234 : vector<16x1xf32>
    %236 = math.rsqrt %235 : vector<16x1xf32>
    %237 = vector.broadcast %236 : vector<16x1xf32> to vector<16x64xf32>
    %238 = arith.mulf %233, %237 : vector<16x64xf32>
    %239 = vector.broadcast %218 : vector<1x64xf32> to vector<16x64xf32>
    %240 = arith.mulf %238, %239 : vector<16x64xf32>
    %241 = vector.broadcast %220 : vector<1x64xf32> to vector<16x64xf32>
    %242 = arith.addf %240, %241 : vector<16x64xf32>
    %c1_159 = arith.constant 1 : index
    %c0_160 = arith.constant 0 : index
    %c0_161 = arith.constant 0 : index
    %c0_162 = arith.constant 0 : index
    %243 = vector.load %arg5[%c1_159, %c0_160, %c0_161, %c0_162] : memref<2x4x64x16xf32, #tpu.memory_space<vmem>>, vector<1x1x64x16xf32>
    %244 = vector.shape_cast %243 : vector<1x1x64x16xf32> to vector<64x16xf32>
    %cst_163 = arith.constant dense<0.000000e+00> : vector<16x16xf32>
    %245 = tpu.matmul %242, %244, %cst_163 {dimension_numbers = #tpu.dot_dimension_numbers<[1], [0], [0], [1], [0, 0, 1, 1], [], []>} : vector<16x64xf32>, vector<64x16xf32>, vector<16x16xf32> -> vector<16x16xf32>
    %c1_164 = arith.constant 1 : index
    %c0_165 = arith.constant 0 : index
    %c0_166 = arith.constant 0 : index
    %c0_167 = arith.constant 0 : index
    %246 = vector.load %arg6[%c1_164, %c0_165, %c0_166, %c0_167] : memref<2x4x64x16xf32, #tpu.memory_space<vmem>>, vector<1x1x64x16xf32>
    %247 = vector.shape_cast %246 : vector<1x1x64x16xf32> to vector<64x16xf32>
    %cst_168 = arith.constant dense<0.000000e+00> : vector<16x16xf32>
    %248 = tpu.matmul %242, %247, %cst_168 {dimension_numbers = #tpu.dot_dimension_numbers<[1], [0], [0], [1], [0, 0, 1, 1], [], []>} : vector<16x64xf32>, vector<64x16xf32>, vector<16x16xf32> -> vector<16x16xf32>
    %c1_169 = arith.constant 1 : index
    %c0_170 = arith.constant 0 : index
    %c0_171 = arith.constant 0 : index
    %c0_172 = arith.constant 0 : index
    %249 = vector.load %arg7[%c1_169, %c0_170, %c0_171, %c0_172] : memref<2x4x64x16xf32, #tpu.memory_space<vmem>>, vector<1x1x64x16xf32>
    %250 = vector.shape_cast %249 : vector<1x1x64x16xf32> to vector<64x16xf32>
    %cst_173 = arith.constant dense<0.000000e+00> : vector<16x16xf32>
    %251 = tpu.matmul %242, %250, %cst_173 {dimension_numbers = #tpu.dot_dimension_numbers<[1], [0], [0], [1], [0, 0, 1, 1], [], []>} : vector<16x64xf32>, vector<64x16xf32>, vector<16x16xf32> -> vector<16x16xf32>
    %cst_174 = arith.constant dense<0.000000e+00> : vector<16x16xf32>
    %252 = tpu.matmul %245, %248, %cst_174 {dimension_numbers = #tpu.dot_dimension_numbers<[1], [1], [0], [0], [0, 0, 1, 0], [], []>} : vector<16x16xf32>, vector<16x16xf32>, vector<16x16xf32> -> vector<16x16xf32>
    %253 = arith.addf %252, %7 : vector<16x16xf32>
    %cst_175 = arith.constant dense<0xFF800000> : vector<16xf32>
    %254 = vector.multi_reduction <maximumf>, %253, %cst_175 [1] : vector<16x16xf32> to vector<16xf32>
    %255 = vector.shape_cast %254 : vector<16xf32> to vector<16x1xf32>
    %256 = vector.broadcast %255 : vector<16x1xf32> to vector<16x16xf32>
    %257 = arith.subf %253, %256 : vector<16x16xf32>
    %258 = math.exp %257 : vector<16x16xf32>
    %cst_176 = arith.constant dense<0.000000e+00> : vector<16xf32>
    %259 = vector.multi_reduction <add>, %258, %cst_176 [1] : vector<16x16xf32> to vector<16xf32>
    %260 = vector.shape_cast %259 : vector<16xf32> to vector<16x1xf32>
    %261 = tpu.reciprocal %260 {approx = true} : vector<16x1xf32> -> vector<16x1xf32>
    %262 = vector.broadcast %261 : vector<16x1xf32> to vector<16x16xf32>
    %263 = arith.mulf %258, %262 : vector<16x16xf32>
    %cst_177 = arith.constant dense<0.000000e+00> : vector<16x16xf32>
    %264 = tpu.matmul %263, %251, %cst_177 {dimension_numbers = #tpu.dot_dimension_numbers<[1], [0], [0], [1], [0, 0, 1, 1], [], []>} : vector<16x16xf32>, vector<16x16xf32>, vector<16x16xf32> -> vector<16x16xf32>
    %c0_178 = arith.constant 0 : index
    %c0_179 = arith.constant 0 : index
    %265 = vector.load %arg23[%c0_178, %c0_179] : memref<16x64xf32, #tpu.memory_space<vmem>>, vector<16x16xf32>
    tpu.vector_store %arg23[%c0_178, %c0_179], %264 {strides = array<i32>} : memref<16x64xf32, #tpu.memory_space<vmem>>, vector<16x16xf32>,
    %c1_180 = arith.constant 1 : index
    %c1_181 = arith.constant 1 : index
    %c0_182 = arith.constant 0 : index
    %c0_183 = arith.constant 0 : index
    %266 = vector.load %arg5[%c1_180, %c1_181, %c0_182, %c0_183] : memref<2x4x64x16xf32, #tpu.memory_space<vmem>>, vector<1x1x64x16xf32>
    %267 = vector.shape_cast %266 : vector<1x1x64x16xf32> to vector<64x16xf32>
    %cst_184 = arith.constant dense<0.000000e+00> : vector<16x16xf32>
    %268 = tpu.matmul %242, %267, %cst_184 {dimension_numbers = #tpu.dot_dimension_numbers<[1], [0], [0], [1], [0, 0, 1, 1], [], []>} : vector<16x64xf32>, vector<64x16xf32>, vector<16x16xf32> -> vector<16x16xf32>
    %c1_185 = arith.constant 1 : index
    %c1_186 = arith.constant 1 : index
    %c0_187 = arith.constant 0 : index
    %c0_188 = arith.constant 0 : index
    %269 = vector.load %arg6[%c1_185, %c1_186, %c0_187, %c0_188] : memref<2x4x64x16xf32, #tpu.memory_space<vmem>>, vector<1x1x64x16xf32>
    %270 = vector.shape_cast %269 : vector<1x1x64x16xf32> to vector<64x16xf32>
    %cst_189 = arith.constant dense<0.000000e+00> : vector<16x16xf32>
    %271 = tpu.matmul %242, %270, %cst_189 {dimension_numbers = #tpu.dot_dimension_numbers<[1], [0], [0], [1], [0, 0, 1, 1], [], []>} : vector<16x64xf32>, vector<64x16xf32>, vector<16x16xf32> -> vector<16x16xf32>
    %c1_190 = arith.constant 1 : index
    %c1_191 = arith.constant 1 : index
    %c0_192 = arith.constant 0 : index
    %c0_193 = arith.constant 0 : index
    %272 = vector.load %arg7[%c1_190, %c1_191, %c0_192, %c0_193] : memref<2x4x64x16xf32, #tpu.memory_space<vmem>>, vector<1x1x64x16xf32>
    %273 = vector.shape_cast %272 : vector<1x1x64x16xf32> to vector<64x16xf32>
    %cst_194 = arith.constant dense<0.000000e+00> : vector<16x16xf32>
    %274 = tpu.matmul %242, %273, %cst_194 {dimension_numbers = #tpu.dot_dimension_numbers<[1], [0], [0], [1], [0, 0, 1, 1], [], []>} : vector<16x64xf32>, vector<64x16xf32>, vector<16x16xf32> -> vector<16x16xf32>
    %cst_195 = arith.constant dense<0.000000e+00> : vector<16x16xf32>
    %275 = tpu.matmul %268, %271, %cst_195 {dimension_numbers = #tpu.dot_dimension_numbers<[1], [1], [0], [0], [0, 0, 1, 0], [], []>} : vector<16x16xf32>, vector<16x16xf32>, vector<16x16xf32> -> vector<16x16xf32>
    %276 = arith.addf %275, %7 : vector<16x16xf32>
    %cst_196 = arith.constant dense<0xFF800000> : vector<16xf32>
    %277 = vector.multi_reduction <maximumf>, %276, %cst_196 [1] : vector<16x16xf32> to vector<16xf32>
    %278 = vector.shape_cast %277 : vector<16xf32> to vector<16x1xf32>
    %279 = vector.broadcast %278 : vector<16x1xf32> to vector<16x16xf32>
    %280 = arith.subf %276, %279 : vector<16x16xf32>
    %281 = math.exp %280 : vector<16x16xf32>
    %cst_197 = arith.constant dense<0.000000e+00> : vector<16xf32>
    %282 = vector.multi_reduction <add>, %281, %cst_197 [1] : vector<16x16xf32> to vector<16xf32>
    %283 = vector.shape_cast %282 : vector<16xf32> to vector<16x1xf32>
    %284 = tpu.reciprocal %283 {approx = true} : vector<16x1xf32> -> vector<16x1xf32>
    %285 = vector.broadcast %284 : vector<16x1xf32> to vector<16x16xf32>
    %286 = arith.mulf %281, %285 : vector<16x16xf32>
    %cst_198 = arith.constant dense<0.000000e+00> : vector<16x16xf32>
    %287 = tpu.matmul %286, %274, %cst_198 {dimension_numbers = #tpu.dot_dimension_numbers<[1], [0], [0], [1], [0, 0, 1, 1], [], []>} : vector<16x16xf32>, vector<16x16xf32>, vector<16x16xf32> -> vector<16x16xf32>
    %c0_199 = arith.constant 0 : index
    %c16_200 = arith.constant 16 : index
    %288 = vector.load %arg23[%c0_199, %c16_200] : memref<16x64xf32, #tpu.memory_space<vmem>>, vector<16x16xf32>
    tpu.vector_store %arg23[%c0_199, %c16_200], %287 {strides = array<i32>} : memref<16x64xf32, #tpu.memory_space<vmem>>, vector<16x16xf32>,
    %c1_201 = arith.constant 1 : index
    %c2_202 = arith.constant 2 : index
    %c0_203 = arith.constant 0 : index
    %c0_204 = arith.constant 0 : index
    %289 = vector.load %arg5[%c1_201, %c2_202, %c0_203, %c0_204] : memref<2x4x64x16xf32, #tpu.memory_space<vmem>>, vector<1x1x64x16xf32>
    %290 = vector.shape_cast %289 : vector<1x1x64x16xf32> to vector<64x16xf32>
    %cst_205 = arith.constant dense<0.000000e+00> : vector<16x16xf32>
    %291 = tpu.matmul %242, %290, %cst_205 {dimension_numbers = #tpu.dot_dimension_numbers<[1], [0], [0], [1], [0, 0, 1, 1], [], []>} : vector<16x64xf32>, vector<64x16xf32>, vector<16x16xf32> -> vector<16x16xf32>
    %c1_206 = arith.constant 1 : index
    %c2_207 = arith.constant 2 : index
    %c0_208 = arith.constant 0 : index
    %c0_209 = arith.constant 0 : index
    %292 = vector.load %arg6[%c1_206, %c2_207, %c0_208, %c0_209] : memref<2x4x64x16xf32, #tpu.memory_space<vmem>>, vector<1x1x64x16xf32>
    %293 = vector.shape_cast %292 : vector<1x1x64x16xf32> to vector<64x16xf32>
    %cst_210 = arith.constant dense<0.000000e+00> : vector<16x16xf32>
    %294 = tpu.matmul %242, %293, %cst_210 {dimension_numbers = #tpu.dot_dimension_numbers<[1], [0], [0], [1], [0, 0, 1, 1], [], []>} : vector<16x64xf32>, vector<64x16xf32>, vector<16x16xf32> -> vector<16x16xf32>
    %c1_211 = arith.constant 1 : index
    %c2_212 = arith.constant 2 : index
    %c0_213 = arith.constant 0 : index
    %c0_214 = arith.constant 0 : index
    %295 = vector.load %arg7[%c1_211, %c2_212, %c0_213, %c0_214] : memref<2x4x64x16xf32, #tpu.memory_space<vmem>>, vector<1x1x64x16xf32>
    %296 = vector.shape_cast %295 : vector<1x1x64x16xf32> to vector<64x16xf32>
    %cst_215 = arith.constant dense<0.000000e+00> : vector<16x16xf32>
    %297 = tpu.matmul %242, %296, %cst_215 {dimension_numbers = #tpu.dot_dimension_numbers<[1], [0], [0], [1], [0, 0, 1, 1], [], []>} : vector<16x64xf32>, vector<64x16xf32>, vector<16x16xf32> -> vector<16x16xf32>
    %cst_216 = arith.constant dense<0.000000e+00> : vector<16x16xf32>
    %298 = tpu.matmul %291, %294, %cst_216 {dimension_numbers = #tpu.dot_dimension_numbers<[1], [1], [0], [0], [0, 0, 1, 0], [], []>} : vector<16x16xf32>, vector<16x16xf32>, vector<16x16xf32> -> vector<16x16xf32>
    %299 = arith.addf %298, %7 : vector<16x16xf32>
    %cst_217 = arith.constant dense<0xFF800000> : vector<16xf32>
    %300 = vector.multi_reduction <maximumf>, %299, %cst_217 [1] : vector<16x16xf32> to vector<16xf32>
    %301 = vector.shape_cast %300 : vector<16xf32> to vector<16x1xf32>
    %302 = vector.broadcast %301 : vector<16x1xf32> to vector<16x16xf32>
    %303 = arith.subf %299, %302 : vector<16x16xf32>
    %304 = math.exp %303 : vector<16x16xf32>
    %cst_218 = arith.constant dense<0.000000e+00> : vector<16xf32>
    %305 = vector.multi_reduction <add>, %304, %cst_218 [1] : vector<16x16xf32> to vector<16xf32>
    %306 = vector.shape_cast %305 : vector<16xf32> to vector<16x1xf32>
    %307 = tpu.reciprocal %306 {approx = true} : vector<16x1xf32> -> vector<16x1xf32>
    %308 = vector.broadcast %307 : vector<16x1xf32> to vector<16x16xf32>
    %309 = arith.mulf %304, %308 : vector<16x16xf32>
    %cst_219 = arith.constant dense<0.000000e+00> : vector<16x16xf32>
    %310 = tpu.matmul %309, %297, %cst_219 {dimension_numbers = #tpu.dot_dimension_numbers<[1], [0], [0], [1], [0, 0, 1, 1], [], []>} : vector<16x16xf32>, vector<16x16xf32>, vector<16x16xf32> -> vector<16x16xf32>
    %c0_220 = arith.constant 0 : index
    %c32_221 = arith.constant 32 : index
    %311 = vector.load %arg23[%c0_220, %c32_221] : memref<16x64xf32, #tpu.memory_space<vmem>>, vector<16x16xf32>
    tpu.vector_store %arg23[%c0_220, %c32_221], %310 {strides = array<i32>} : memref<16x64xf32, #tpu.memory_space<vmem>>, vector<16x16xf32>,
    %c1_222 = arith.constant 1 : index
    %c3_223 = arith.constant 3 : index
    %c0_224 = arith.constant 0 : index
    %c0_225 = arith.constant 0 : index
    %312 = vector.load %arg5[%c1_222, %c3_223, %c0_224, %c0_225] : memref<2x4x64x16xf32, #tpu.memory_space<vmem>>, vector<1x1x64x16xf32>
    %313 = vector.shape_cast %312 : vector<1x1x64x16xf32> to vector<64x16xf32>
    %cst_226 = arith.constant dense<0.000000e+00> : vector<16x16xf32>
    %314 = tpu.matmul %242, %313, %cst_226 {dimension_numbers = #tpu.dot_dimension_numbers<[1], [0], [0], [1], [0, 0, 1, 1], [], []>} : vector<16x64xf32>, vector<64x16xf32>, vector<16x16xf32> -> vector<16x16xf32>
    %c1_227 = arith.constant 1 : index
    %c3_228 = arith.constant 3 : index
    %c0_229 = arith.constant 0 : index
    %c0_230 = arith.constant 0 : index
    %315 = vector.load %arg6[%c1_227, %c3_228, %c0_229, %c0_230] : memref<2x4x64x16xf32, #tpu.memory_space<vmem>>, vector<1x1x64x16xf32>
    %316 = vector.shape_cast %315 : vector<1x1x64x16xf32> to vector<64x16xf32>
    %cst_231 = arith.constant dense<0.000000e+00> : vector<16x16xf32>
    %317 = tpu.matmul %242, %316, %cst_231 {dimension_numbers = #tpu.dot_dimension_numbers<[1], [0], [0], [1], [0, 0, 1, 1], [], []>} : vector<16x64xf32>, vector<64x16xf32>, vector<16x16xf32> -> vector<16x16xf32>
    %c1_232 = arith.constant 1 : index
    %c3_233 = arith.constant 3 : index
    %c0_234 = arith.constant 0 : index
    %c0_235 = arith.constant 0 : index
    %318 = vector.load %arg7[%c1_232, %c3_233, %c0_234, %c0_235] : memref<2x4x64x16xf32, #tpu.memory_space<vmem>>, vector<1x1x64x16xf32>
    %319 = vector.shape_cast %318 : vector<1x1x64x16xf32> to vector<64x16xf32>
    %cst_236 = arith.constant dense<0.000000e+00> : vector<16x16xf32>
    %320 = tpu.matmul %242, %319, %cst_236 {dimension_numbers = #tpu.dot_dimension_numbers<[1], [0], [0], [1], [0, 0, 1, 1], [], []>} : vector<16x64xf32>, vector<64x16xf32>, vector<16x16xf32> -> vector<16x16xf32>
    %cst_237 = arith.constant dense<0.000000e+00> : vector<16x16xf32>
    %321 = tpu.matmul %314, %317, %cst_237 {dimension_numbers = #tpu.dot_dimension_numbers<[1], [1], [0], [0], [0, 0, 1, 0], [], []>} : vector<16x16xf32>, vector<16x16xf32>, vector<16x16xf32> -> vector<16x16xf32>
    %322 = arith.addf %321, %7 : vector<16x16xf32>
    %cst_238 = arith.constant dense<0xFF800000> : vector<16xf32>
    %323 = vector.multi_reduction <maximumf>, %322, %cst_238 [1] : vector<16x16xf32> to vector<16xf32>
    %324 = vector.shape_cast %323 : vector<16xf32> to vector<16x1xf32>
    %325 = vector.broadcast %324 : vector<16x1xf32> to vector<16x16xf32>
    %326 = arith.subf %322, %325 : vector<16x16xf32>
    %327 = math.exp %326 : vector<16x16xf32>
    %cst_239 = arith.constant dense<0.000000e+00> : vector<16xf32>
    %328 = vector.multi_reduction <add>, %327, %cst_239 [1] : vector<16x16xf32> to vector<16xf32>
    %329 = vector.shape_cast %328 : vector<16xf32> to vector<16x1xf32>
    %330 = tpu.reciprocal %329 {approx = true} : vector<16x1xf32> -> vector<16x1xf32>
    %331 = vector.broadcast %330 : vector<16x1xf32> to vector<16x16xf32>
    %332 = arith.mulf %327, %331 : vector<16x16xf32>
    %cst_240 = arith.constant dense<0.000000e+00> : vector<16x16xf32>
    %333 = tpu.matmul %332, %320, %cst_240 {dimension_numbers = #tpu.dot_dimension_numbers<[1], [0], [0], [1], [0, 0, 1, 1], [], []>} : vector<16x16xf32>, vector<16x16xf32>, vector<16x16xf32> -> vector<16x16xf32>
    %c0_241 = arith.constant 0 : index
    %c48_242 = arith.constant 48 : index
    %334 = vector.load %arg23[%c0_241, %c48_242] : memref<16x64xf32, #tpu.memory_space<vmem>>, vector<16x16xf32>
    tpu.vector_store %arg23[%c0_241, %c48_242], %333 {strides = array<i32>} : memref<16x64xf32, #tpu.memory_space<vmem>>, vector<16x16xf32>,
    %c0_243 = arith.constant 0 : index
    %c0_244 = arith.constant 0 : index
    %335 = vector.load %arg23[%c0_243, %c0_244] : memref<16x64xf32, #tpu.memory_space<vmem>>, vector<16x64xf32>
    %c1_245 = arith.constant 1 : index
    %c0_246 = arith.constant 0 : index
    %c0_247 = arith.constant 0 : index
    %336 = vector.load %arg10[%c1_245, %c0_246, %c0_247] : memref<2x64x64xf32, #tpu.memory_space<vmem>>, vector<1x64x64xf32>
    %337 = vector.shape_cast %336 : vector<1x64x64xf32> to vector<64x64xf32>
    %cst_248 = arith.constant dense<0.000000e+00> : vector<16x64xf32>
    %338 = tpu.matmul %335, %337, %cst_248 {dimension_numbers = #tpu.dot_dimension_numbers<[1], [0], [0], [1], [0, 0, 1, 1], [], []>} : vector<16x64xf32>, vector<64x64xf32>, vector<16x64xf32> -> vector<16x64xf32>
    %c1_249 = arith.constant 1 : index
    %c0_250 = arith.constant 0 : index
    %c0_251 = arith.constant 0 : index
    %339 = vector.load %arg11[%c1_249, %c0_250, %c0_251] : memref<2x1x64xf32, #tpu.memory_space<vmem>>, vector<1x1x64xf32>
    %340 = vector.shape_cast %339 : vector<1x1x64xf32> to vector<1x64xf32>
    %341 = vector.broadcast %340 : vector<1x64xf32> to vector<16x64xf32>
    %342 = arith.addf %338, %341 : vector<16x64xf32>
    %343 = arith.addf %216, %342 : vector<16x64xf32>
    %c1_252 = arith.constant 1 : index
    %c0_253 = arith.constant 0 : index
    %c0_254 = arith.constant 0 : index
    %344 = vector.load %arg12[%c1_252, %c0_253, %c0_254] : memref<2x1x64xf32, #tpu.memory_space<vmem>>, vector<1x1x64xf32>
    %345 = vector.shape_cast %344 : vector<1x1x64xf32> to vector<1x64xf32>
    %c1_255 = arith.constant 1 : index
    %c0_256 = arith.constant 0 : index
    %c0_257 = arith.constant 0 : index
    %346 = vector.load %arg13[%c1_255, %c0_256, %c0_257] : memref<2x1x64xf32, #tpu.memory_space<vmem>>, vector<1x1x64xf32>
    %347 = vector.shape_cast %346 : vector<1x1x64xf32> to vector<1x64xf32>
    %cst_258 = arith.constant dense<0.000000e+00> : vector<16xf32>
    %348 = vector.multi_reduction <add>, %343, %cst_258 [1] : vector<16x64xf32> to vector<16xf32>
    %349 = vector.shape_cast %348 : vector<16xf32> to vector<16x1xf32>
    %cst_259 = arith.constant 6.400000e+01 : f32
    %350 = vector.broadcast %cst_259 : f32 to vector<16x1xf32>
    %351 = arith.divf %349, %350 : vector<16x1xf32>
    %352 = vector.broadcast %351 : vector<16x1xf32> to vector<16x64xf32>
    %353 = arith.subf %343, %352 : vector<16x64xf32>
    %354 = arith.mulf %353, %353 : vector<16x64xf32>
    %cst_260 = arith.constant dense<0.000000e+00> : vector<16xf32>
    %355 = vector.multi_reduction <add>, %354, %cst_260 [1] : vector<16x64xf32> to vector<16xf32>
    %356 = vector.shape_cast %355 : vector<16xf32> to vector<16x1xf32>
    %cst_261 = arith.constant 6.400000e+01 : f32
    %357 = vector.broadcast %cst_261 : f32 to vector<16x1xf32>
    %358 = arith.divf %356, %357 : vector<16x1xf32>
    %359 = vector.broadcast %351 : vector<16x1xf32> to vector<16x64xf32>
    %360 = arith.subf %343, %359 : vector<16x64xf32>
    %cst_262 = arith.constant 9.99999974E-6 : f32
    %361 = vector.broadcast %cst_262 : f32 to vector<16x1xf32>
    %362 = arith.addf %358, %361 : vector<16x1xf32>
    %363 = math.rsqrt %362 : vector<16x1xf32>
    %364 = vector.broadcast %363 : vector<16x1xf32> to vector<16x64xf32>
    %365 = arith.mulf %360, %364 : vector<16x64xf32>
    %366 = vector.broadcast %345 : vector<1x64xf32> to vector<16x64xf32>
    %367 = arith.mulf %365, %366 : vector<16x64xf32>
    %368 = vector.broadcast %347 : vector<1x64xf32> to vector<16x64xf32>
    %369 = arith.addf %367, %368 : vector<16x64xf32>
    %c1_263 = arith.constant 1 : index
    %c0_264 = arith.constant 0 : index
    %c0_265 = arith.constant 0 : index
    %370 = vector.load %arg14[%c1_263, %c0_264, %c0_265] : memref<2x64x128xf32, #tpu.memory_space<vmem>>, vector<1x64x128xf32>
    %371 = vector.shape_cast %370 : vector<1x64x128xf32> to vector<64x128xf32>
    %cst_266 = arith.constant dense<0.000000e+00> : vector<16x128xf32>
    %372 = tpu.matmul %369, %371, %cst_266 {dimension_numbers = #tpu.dot_dimension_numbers<[1], [0], [0], [1], [0, 0, 1, 1], [], []>} : vector<16x64xf32>, vector<64x128xf32>, vector<16x128xf32> -> vector<16x128xf32>
    %c1_267 = arith.constant 1 : index
    %c0_268 = arith.constant 0 : index
    %c0_269 = arith.constant 0 : index
    %373 = vector.load %arg15[%c1_267, %c0_268, %c0_269] : memref<2x1x128xf32, #tpu.memory_space<vmem>>, vector<1x1x128xf32>
    %374 = vector.shape_cast %373 : vector<1x1x128xf32> to vector<1x128xf32>
    %375 = vector.broadcast %374 : vector<1x128xf32> to vector<16x128xf32>
    %376 = arith.addf %372, %375 : vector<16x128xf32>
    %cst_270 = arith.constant 5.000000e-01 : f32
    %377 = vector.broadcast %cst_270 : f32 to vector<16x128xf32>
    %378 = arith.mulf %377, %376 : vector<16x128xf32>
    %cst_271 = arith.constant 0.707106769 : f32
    %379 = vector.broadcast %cst_271 : f32 to vector<16x128xf32>
    %380 = arith.mulf %376, %379 : vector<16x128xf32>
    %cst_272 = arith.constant 0.000000e+00 : f32
    %381 = vector.broadcast %cst_272 : f32 to vector<16x128xf32>
    %382 = arith.cmpf oge, %380, %381 : vector<16x128xf32>
    %cst_273 = arith.constant 1.000000e+00 : f32
    %cst_274 = arith.constant -1.000000e+00 : f32
    %383 = vector.broadcast %cst_273 : f32 to vector<16x128xf32>
    %384 = vector.broadcast %cst_274 : f32 to vector<16x128xf32>
    %385 = arith.select %382, %383, %384 : vector<16x128xi1>, vector<16x128xf32>
    %386 = math.absf %380 : vector<16x128xf32>
    %cst_275 = arith.constant 0.327591091 : f32
    %387 = vector.broadcast %cst_275 : f32 to vector<16x128xf32>
    %388 = arith.mulf %387, %386 : vector<16x128xf32>
    %cst_276 = arith.constant 1.000000e+00 : f32
    %389 = vector.broadcast %cst_276 : f32 to vector<16x128xf32>
    %390 = arith.addf %389, %388 : vector<16x128xf32>
    %cst_277 = arith.constant 1.000000e+00 : f32
    %391 = vector.broadcast %cst_277 : f32 to vector<16x128xf32>
    %392 = arith.divf %391, %390 : vector<16x128xf32>
    %cst_278 = arith.constant 1.06140542 : f32
    %393 = vector.broadcast %cst_278 : f32 to vector<16x128xf32>
    %394 = arith.mulf %393, %392 : vector<16x128xf32>
    %cst_279 = arith.constant -1.45315206 : f32
    %395 = vector.broadcast %cst_279 : f32 to vector<16x128xf32>
    %396 = arith.addf %394, %395 : vector<16x128xf32>
    %397 = arith.mulf %396, %392 : vector<16x128xf32>
    %cst_280 = arith.constant 1.42141378 : f32
    %398 = vector.broadcast %cst_280 : f32 to vector<16x128xf32>
    %399 = arith.addf %397, %398 : vector<16x128xf32>
    %400 = arith.mulf %399, %392 : vector<16x128xf32>
    %cst_281 = arith.constant -0.284496725 : f32
    %401 = vector.broadcast %cst_281 : f32 to vector<16x128xf32>
    %402 = arith.addf %400, %401 : vector<16x128xf32>
    %403 = arith.mulf %402, %392 : vector<16x128xf32>
    %cst_282 = arith.constant 0.254829586 : f32
    %404 = vector.broadcast %cst_282 : f32 to vector<16x128xf32>
    %405 = arith.addf %403, %404 : vector<16x128xf32>
    %406 = arith.mulf %405, %392 : vector<16x128xf32>
    %cst_283 = arith.constant 0.000000e+00 : f32
    %407 = vector.broadcast %cst_283 : f32 to vector<16x128xf32>
    %408 = arith.subf %407, %386 : vector<16x128xf32>
    %409 = arith.mulf %408, %386 : vector<16x128xf32>
    %410 = math.exp %409 : vector<16x128xf32>
    %411 = arith.mulf %406, %410 : vector<16x128xf32>
    %cst_284 = arith.constant 1.000000e+00 : f32
    %412 = vector.broadcast %cst_284 : f32 to vector<16x128xf32>
    %413 = arith.subf %412, %411 : vector<16x128xf32>
    %414 = arith.mulf %385, %413 : vector<16x128xf32>
    %cst_285 = arith.constant 1.000000e+00 : f32
    %415 = vector.broadcast %cst_285 : f32 to vector<16x128xf32>
    %416 = arith.addf %415, %414 : vector<16x128xf32>
    %417 = arith.mulf %378, %416 : vector<16x128xf32>
    %c1_286 = arith.constant 1 : index
    %c0_287 = arith.constant 0 : index
    %c0_288 = arith.constant 0 : index
    %418 = vector.load %arg16[%c1_286, %c0_287, %c0_288] : memref<2x128x64xf32, #tpu.memory_space<vmem>>, vector<1x128x64xf32>
    %419 = vector.shape_cast %418 : vector<1x128x64xf32> to vector<128x64xf32>
    %cst_289 = arith.constant dense<0.000000e+00> : vector<16x64xf32>
    %420 = tpu.matmul %417, %419, %cst_289 {dimension_numbers = #tpu.dot_dimension_numbers<[1], [0], [0], [1], [0, 0, 1, 1], [], []>} : vector<16x128xf32>, vector<128x64xf32>, vector<16x64xf32> -> vector<16x64xf32>
    %421 = arith.addf %343, %420 : vector<16x64xf32>
    %c1_290 = arith.constant 1 : index
    %c0_291 = arith.constant 0 : index
    %c0_292 = arith.constant 0 : index
    %422 = vector.load %arg17[%c1_290, %c0_291, %c0_292] : memref<2x1x64xf32, #tpu.memory_space<vmem>>, vector<1x1x64xf32>
    %423 = vector.shape_cast %422 : vector<1x1x64xf32> to vector<1x64xf32>
    %424 = vector.broadcast %423 : vector<1x64xf32> to vector<16x64xf32>
    %425 = arith.addf %421, %424 : vector<16x64xf32>
    %c0_293 = arith.constant 0 : index
    %c0_294 = arith.constant 0 : index
    %426 = vector.load %arg18[%c0_293, %c0_294] : memref<1x64xf32, #tpu.memory_space<vmem>>, vector<1x64xf32>
    %c0_295 = arith.constant 0 : index
    %c0_296 = arith.constant 0 : index
    %427 = vector.load %arg19[%c0_295, %c0_296] : memref<1x64xf32, #tpu.memory_space<vmem>>, vector<1x64xf32>
    %cst_297 = arith.constant dense<0.000000e+00> : vector<16xf32>
    %428 = vector.multi_reduction <add>, %425, %cst_297 [1] : vector<16x64xf32> to vector<16xf32>
    %429 = vector.shape_cast %428 : vector<16xf32> to vector<16x1xf32>
    %cst_298 = arith.constant 6.400000e+01 : f32
    %430 = vector.broadcast %cst_298 : f32 to vector<16x1xf32>
    %431 = arith.divf %429, %430 : vector<16x1xf32>
    %432 = vector.broadcast %431 : vector<16x1xf32> to vector<16x64xf32>
    %433 = arith.subf %425, %432 : vector<16x64xf32>
    %434 = arith.mulf %433, %433 : vector<16x64xf32>
    %cst_299 = arith.constant dense<0.000000e+00> : vector<16xf32>
    %435 = vector.multi_reduction <add>, %434, %cst_299 [1] : vector<16x64xf32> to vector<16xf32>
    %436 = vector.shape_cast %435 : vector<16xf32> to vector<16x1xf32>
    %cst_300 = arith.constant 6.400000e+01 : f32
    %437 = vector.broadcast %cst_300 : f32 to vector<16x1xf32>
    %438 = arith.divf %436, %437 : vector<16x1xf32>
    %439 = vector.broadcast %431 : vector<16x1xf32> to vector<16x64xf32>
    %440 = arith.subf %425, %439 : vector<16x64xf32>
    %cst_301 = arith.constant 9.99999974E-6 : f32
    %441 = vector.broadcast %cst_301 : f32 to vector<16x1xf32>
    %442 = arith.addf %438, %441 : vector<16x1xf32>
    %443 = math.rsqrt %442 : vector<16x1xf32>
    %444 = vector.broadcast %443 : vector<16x1xf32> to vector<16x64xf32>
    %445 = arith.mulf %440, %444 : vector<16x64xf32>
    %446 = vector.broadcast %426 : vector<1x64xf32> to vector<16x64xf32>
    %447 = arith.mulf %445, %446 : vector<16x64xf32>
    %448 = vector.broadcast %427 : vector<1x64xf32> to vector<16x64xf32>
    %449 = arith.addf %447, %448 : vector<16x64xf32>
    %c0_302 = arith.constant 0 : index
    %c0_303 = arith.constant 0 : index
    %450 = vector.load %arg20[%c0_302, %c0_303] : memref<64x128xf32, #tpu.memory_space<vmem>>, vector<64x128xf32>
    %cst_304 = arith.constant dense<0.000000e+00> : vector<16x128xf32>
    %451 = tpu.matmul %449, %450, %cst_304 {dimension_numbers = #tpu.dot_dimension_numbers<[1], [0], [0], [1], [0, 0, 1, 1], [], []>} : vector<16x64xf32>, vector<64x128xf32>, vector<16x128xf32> -> vector<16x128xf32>
    %c0_305 = arith.constant 0 : index
    %c0_306 = arith.constant 0 : index
    %452 = vector.load %arg21[%c0_305, %c0_306] : memref<1x128xf32, #tpu.memory_space<vmem>>, vector<1x128xf32>
    %453 = vector.broadcast %452 : vector<1x128xf32> to vector<16x128xf32>
    %454 = arith.addf %451, %453 : vector<16x128xf32>
    %c0_307 = arith.constant 0 : index
    %c0_308 = arith.constant 0 : index
    %c0_309 = arith.constant 0 : index
    %455 = vector.load %arg22[%c0_307, %c0_308, %c0_309] : memref<1x16x128xf32, #tpu.memory_space<vmem>>, vector<1x16x128xf32>
    %456 = vector.shape_cast %455 : vector<1x16x128xf32> to vector<16x128xf32>
    %457 = vector.shape_cast %454 : vector<16x128xf32> to vector<1x16x128xf32>
    tpu.vector_store %arg22[%c0_307, %c0_308, %c0_309], %457 {strides = array<i32>} : memref<1x16x128xf32, #tpu.memory_space<vmem>>, vector<1x16x128xf32>,
    return
  }
  func.func @transform_0(%arg0: i32) -> (i32, i32, i32) {
    %c0_i32 = arith.constant 0 : i32
    %c0_i32_0 = arith.constant 0 : i32
    %c0_i32_1 = arith.constant 0 : i32
    return %arg0, %c0_i32, %c0_i32_0 : i32, i32, i32
  }
  func.func @transform_1(%arg0: i32) -> (i32, i32, i32) {
    %c0_i32 = arith.constant 0 : i32
    %c0_i32_0 = arith.constant 0 : i32
    %c0_i32_1 = arith.constant 0 : i32
    return %arg0, %c0_i32, %c0_i32_0 : i32, i32, i32
  }
  func.func @transform_2(%arg0: i32) -> (i32, i32) {
    %c0_i32 = arith.constant 0 : i32
    %c0_i32_0 = arith.constant 0 : i32
    %c0_i32_1 = arith.constant 0 : i32
    return %c0_i32, %c0_i32_0 : i32, i32
  }
  func.func @transform_3(%arg0: i32) -> (i32, i32) {
    %c0_i32 = arith.constant 0 : i32
    %c0_i32_0 = arith.constant 0 : i32
    %c0_i32_1 = arith.constant 0 : i32
    return %c0_i32, %c0_i32_0 : i32, i32
  }
  func.func @transform_4(%arg0: i32) -> (i32, i32, i32, i32) {
    %c0_i32 = arith.constant 0 : i32
    %c0_i32_0 = arith.constant 0 : i32
    %c0_i32_1 = arith.constant 0 : i32
    %c0_i32_2 = arith.constant 0 : i32
    %c0_i32_3 = arith.constant 0 : i32
    return %c0_i32, %c0_i32_0, %c0_i32_1, %c0_i32_2 : i32, i32, i32, i32
  }
  func.func @transform_5(%arg0: i32) -> (i32, i32, i32, i32) {
    %c0_i32 = arith.constant 0 : i32
    %c0_i32_0 = arith.constant 0 : i32
    %c0_i32_1 = arith.constant 0 : i32
    %c0_i32_2 = arith.constant 0 : i32
    %c0_i32_3 = arith.constant 0 : i32
    return %c0_i32, %c0_i32_0, %c0_i32_1, %c0_i32_2 : i32, i32, i32, i32
  }
  func.func @transform_6(%arg0: i32) -> (i32, i32, i32, i32) {
    %c0_i32 = arith.constant 0 : i32
    %c0_i32_0 = arith.constant 0 : i32
    %c0_i32_1 = arith.constant 0 : i32
    %c0_i32_2 = arith.constant 0 : i32
    %c0_i32_3 = arith.constant 0 : i32
    return %c0_i32, %c0_i32_0, %c0_i32_1, %c0_i32_2 : i32, i32, i32, i32
  }
  func.func @transform_7(%arg0: i32) -> (i32, i32, i32) {
    %c0_i32 = arith.constant 0 : i32
    %c0_i32_0 = arith.constant 0 : i32
    %c0_i32_1 = arith.constant 0 : i32
    %c0_i32_2 = arith.constant 0 : i32
    return %c0_i32, %c0_i32_0, %c0_i32_1 : i32, i32, i32
  }
  func.func @transform_8(%arg0: i32) -> (i32, i32, i32) {
    %c0_i32 = arith.constant 0 : i32
    %c0_i32_0 = arith.constant 0 : i32
    %c0_i32_1 = arith.constant 0 : i32
    %c0_i32_2 = arith.constant 0 : i32
    return %c0_i32, %c0_i32_0, %c0_i32_1 : i32, i32, i32
  }
  func.func @transform_9(%arg0: i32) -> (i32, i32, i32) {
    %c0_i32 = arith.constant 0 : i32
    %c0_i32_0 = arith.constant 0 : i32
    %c0_i32_1 = arith.constant 0 : i32
    %c0_i32_2 = arith.constant 0 : i32
    return %c0_i32, %c0_i32_0, %c0_i32_1 : i32, i32, i32
  }
  func.func @transform_10(%arg0: i32) -> (i32, i32, i32) {
    %c0_i32 = arith.constant 0 : i32
    %c0_i32_0 = arith.constant 0 : i32
    %c0_i32_1 = arith.constant 0 : i32
    %c0_i32_2 = arith.constant 0 : i32
    return %c0_i32, %c0_i32_0, %c0_i32_1 : i32, i32, i32
  }
  func.func @transform_11(%arg0: i32) -> (i32, i32, i32) {
    %c0_i32 = arith.constant 0 : i32
    %c0_i32_0 = arith.constant 0 : i32
    %c0_i32_1 = arith.constant 0 : i32
    %c0_i32_2 = arith.constant 0 : i32
    return %c0_i32, %c0_i32_0, %c0_i32_1 : i32, i32, i32
  }
  func.func @transform_12(%arg0: i32) -> (i32, i32, i32) {
    %c0_i32 = arith.constant 0 : i32
    %c0_i32_0 = arith.constant 0 : i32
    %c0_i32_1 = arith.constant 0 : i32
    %c0_i32_2 = arith.constant 0 : i32
    return %c0_i32, %c0_i32_0, %c0_i32_1 : i32, i32, i32
  }
  func.func @transform_13(%arg0: i32) -> (i32, i32, i32) {
    %c0_i32 = arith.constant 0 : i32
    %c0_i32_0 = arith.constant 0 : i32
    %c0_i32_1 = arith.constant 0 : i32
    %c0_i32_2 = arith.constant 0 : i32
    return %c0_i32, %c0_i32_0, %c0_i32_1 : i32, i32, i32
  }
  func.func @transform_14(%arg0: i32) -> (i32, i32, i32) {
    %c0_i32 = arith.constant 0 : i32
    %c0_i32_0 = arith.constant 0 : i32
    %c0_i32_1 = arith.constant 0 : i32
    %c0_i32_2 = arith.constant 0 : i32
    return %c0_i32, %c0_i32_0, %c0_i32_1 : i32, i32, i32
  }
  func.func @transform_15(%arg0: i32) -> (i32, i32, i32) {
    %c0_i32 = arith.constant 0 : i32
    %c0_i32_0 = arith.constant 0 : i32
    %c0_i32_1 = arith.constant 0 : i32
    %c0_i32_2 = arith.constant 0 : i32
    return %c0_i32, %c0_i32_0, %c0_i32_1 : i32, i32, i32
  }
  func.func @transform_16(%arg0: i32) -> (i32, i32, i32) {
    %c0_i32 = arith.constant 0 : i32
    %c0_i32_0 = arith.constant 0 : i32
    %c0_i32_1 = arith.constant 0 : i32
    %c0_i32_2 = arith.constant 0 : i32
    return %c0_i32, %c0_i32_0, %c0_i32_1 : i32, i32, i32
  }
  func.func @transform_17(%arg0: i32) -> (i32, i32) {
    %c0_i32 = arith.constant 0 : i32
    %c0_i32_0 = arith.constant 0 : i32
    %c0_i32_1 = arith.constant 0 : i32
    return %c0_i32, %c0_i32_0 : i32, i32
  }
  func.func @transform_18(%arg0: i32) -> (i32, i32) {
    %c0_i32 = arith.constant 0 : i32
    %c0_i32_0 = arith.constant 0 : i32
    %c0_i32_1 = arith.constant 0 : i32
    return %c0_i32, %c0_i32_0 : i32, i32
  }
  func.func @transform_19(%arg0: i32) -> (i32, i32) {
    %c0_i32 = arith.constant 0 : i32
    %c0_i32_0 = arith.constant 0 : i32
    %c0_i32_1 = arith.constant 0 : i32
    return %c0_i32, %c0_i32_0 : i32, i32
  }
  func.func @transform_20(%arg0: i32) -> (i32, i32) {
    %c0_i32 = arith.constant 0 : i32
    %c0_i32_0 = arith.constant 0 : i32
    %c0_i32_1 = arith.constant 0 : i32
    return %c0_i32, %c0_i32_0 : i32, i32
  }
  func.func @transform_21(%arg0: i32) -> (i32, i32, i32) {
    %c0_i32 = arith.constant 0 : i32
    %c0_i32_0 = arith.constant 0 : i32
    %c0_i32_1 = arith.constant 0 : i32
    return %arg0, %c0_i32, %c0_i32_0 : i32, i32, i32
  }
}

</mosaic_0001>

<llo_original>
// kernel: vit3d_forward.1
$region0: #{vit3d_forward.1}
  #allocation0 [shape = 'u32[]', space=smem, size = 0x4, offset = 0x4, fixed_abs, tag = 'smem constant byte address 0x4 - core index']
  #allocation1 [shape = 'u32[144,128]{1,0:T(1,128)}', space=vmem, size = 0x12000, scoped, tag = 'internal scratch']
  #allocation2 [shape = 'f32[16,64]{1,0:T(8,128)}', space=vmem, size = 0x2000, scoped, tag = 'scratch operand']
  %s0 = inlined_call_operand.vmem [shape: f32[2,16,256], index: 0, kind: input, shape index: {}]
  %s1 = inlined_call_operand.vmem [shape: f32[2,16,16], index: 1, kind: input, shape index: {}]
  %s2 = inlined_call_operand.vmem [shape: f32[16,64], index: 2, kind: input, shape index: {}]
  %s3 = inlined_call_operand.vmem [shape: f32[256,64], index: 3, kind: input, shape index: {}]
  %s4 = inlined_call_operand.vmem [shape: f32[2,4,64,16], index: 4, kind: input, shape index: {}]
  %s5 = inlined_call_operand.vmem [shape: f32[2,4,64,16], index: 5, kind: input, shape index: {}]
  %s6 = inlined_call_operand.vmem [shape: f32[2,4,64,16], index: 6, kind: input, shape index: {}]
  %s7 = inlined_call_operand.vmem [shape: f32[2,1,64], index: 7, kind: input, shape index: {}]
  %s8 = inlined_call_operand.vmem [shape: f32[2,1,64], index: 8, kind: input, shape index: {}]
  %s9 = inlined_call_operand.vmem [shape: f32[2,64,64], index: 9, kind: input, shape index: {}]
  %s10 = inlined_call_operand.vmem [shape: f32[2,1,64], index: 10, kind: input, shape index: {}]
  %s11 = inlined_call_operand.vmem [shape: f32[2,1,64], index: 11, kind: input, shape index: {}]
  %s12 = inlined_call_operand.vmem [shape: f32[2,1,64], index: 12, kind: input, shape index: {}]
  %s13 = inlined_call_operand.vmem [shape: f32[2,64,128], index: 13, kind: input, shape index: {}]
  %s14 = inlined_call_operand.vmem [shape: f32[2,1,128], index: 14, kind: input, shape index: {}]
  %s15 = inlined_call_operand.vmem [shape: f32[2,128,64], index: 15, kind: input, shape index: {}]
  %s16 = inlined_call_operand.vmem [shape: f32[2,1,64], index: 16, kind: input, shape index: {}]
  %s17 = inlined_call_operand.vmem [shape: f32[1,64], index: 17, kind: input, shape index: {}]
  %s18 = inlined_call_operand.vmem [shape: f32[1,64], index: 18, kind: input, shape index: {}]
  %s19 = inlined_call_operand.vmem [shape: f32[64,128], index: 19, kind: input, shape index: {}]
  %s20 = inlined_call_operand.vmem [shape: f32[1,128], index: 20, kind: input, shape index: {}]
  %s21 = inlined_call_operand.vmem [shape: f32[2,16,128], index: 21, kind: output, shape index: {}]
  %s22 = sld [smem:[#allocation0]]
  $region117: #{vit3d_forward.1} parent=0
    _
  %s24 = ssub.s32 1, %s22
  %s25 = scalar_select 0, %s24, %s22
  loop: start=0, step=1, limit=4
  $region2: #{vit3d_forward.1} parent=0 // loop_pre_header
    _
  $region3: #{vit3d_forward.1} parent=0 // loop_header
    %s27 = sphi 0, %s31
    %p28 = scmp.ge.s32.totalorder %s27, 4
    %s37 = sphi 0, %s39
    %s40 = sphi 0, %s37
    %s41 = sphi 0, %s40
    %s57 = sphi 0, %s41
    %s63 = sphi 0, %s65
    %s66 = sphi 0, %s63
    %s67 = sphi 0, %s66
    %s83 = sphi 0, %s67
    %s87 = sphi 0, %s87
    %s89 = sphi 0, %s87
    %s90 = sphi 0, %s89
    %s104 = sphi 0, %s90
    %s108 = sphi 0, %s108
    %s110 = sphi 0, %s108
    %s111 = sphi 0, %s110
    %s125 = sphi 0, %s111
    %s129 = sphi 0, %s129
    %s131 = sphi 0, %s129
    %s132 = sphi 0, %s131
    %s146 = sphi 0, %s132
    %s150 = sphi 0, %s150
    %s152 = sphi 0, %s150
    %s153 = sphi 0, %s152
    %s167 = sphi 0, %s153
    %s171 = sphi 0, %s171
    %s173 = sphi 0, %s171
    %s174 = sphi 0, %s173
    %s188 = sphi 0, %s174
    %s192 = sphi 0, %s192
    %s194 = sphi 0, %s192
    %s195 = sphi 0, %s194
    %s209 = sphi 0, %s195
    %s213 = sphi 0, %s213
    %s215 = sphi 0, %s213
    %s216 = sphi 0, %s215
    %s230 = sphi 0, %s216
    %s234 = sphi 0, %s234
    %s236 = sphi 0, %s234
    %s237 = sphi 0, %s236
    %s251 = sphi 0, %s237
    %s255 = sphi 0, %s255
    %s257 = sphi 0, %s255
    %s258 = sphi 0, %s257
    %s272 = sphi 0, %s258
    %s276 = sphi 0, %s276
    %s278 = sphi 0, %s276
    %s279 = sphi 0, %s278
    %s293 = sphi 0, %s279
    %s297 = sphi 0, %s297
    %s299 = sphi 0, %s297
    %s300 = sphi 0, %s299
    %s314 = sphi 0, %s300
    %s318 = sphi 0, %s318
    %s320 = sphi 0, %s318
    %s321 = sphi 0, %s320
    %s335 = sphi 0, %s321
    %s339 = sphi 0, %s339
    %s341 = sphi 0, %s339
    %s342 = sphi 0, %s341
    %s356 = sphi 0, %s342
    %s360 = sphi 0, %s360
    %s362 = sphi 0, %s360
    %s363 = sphi 0, %s362
    %s377 = sphi 0, %s363
    %s381 = sphi 0, %s381
    %s383 = sphi 0, %s381
    %s384 = sphi 0, %s383
    %s398 = sphi 0, %s384
    %s402 = sphi 0, %s402
    %s404 = sphi 0, %s402
    %s405 = sphi 0, %s404
    %s419 = sphi 0, %s405
    %s423 = sphi 0, %s423
    %s425 = sphi 0, %s423
    %s426 = sphi 0, %s425
    %s440 = sphi 0, %s426
    %s444 = sphi 0, %s444
    %s446 = sphi 0, %s444
    %s447 = sphi 0, %s446
    %s461 = sphi 0, %s447
    %s465 = sphi 0, %s465
    %s467 = sphi 0, %s465
    %s468 = sphi 0, %s467
    %s482 = sphi 0, %s468
    %s488 = sphi 0, %s490
    %s491 = sphi 0, %s488
    %s492 = sphi 0, %s491
    %s508 = sphi 0, %s492
  $region4: #{vit3d_forward.1} parent=0 // loop_header_branch
    %30 = sbr.rel (%p28) target = $region8
  $region5: #{vit3d_forward.1} parent=0 // loop_body
    %s32 = ssub.s32 %s27, 1
    %s33 = ssub.s32 %s27, 2
    %s34 = sadd.s32 %s27, 1
    %s35 = ssub.s32 %s27, %s34
    %p36 = scmp.eq.s32.totalorder %s35, 0
    %s38 = sadd.s32 %s37, 1
    %s39 = scalar_select %p36, %s37, %s38
    %p42 = pneg %p36
    %p43 = scmp.eq.s32.totalorder %s27, 1
    %p44 = por %p42, %p43
    %p45 = scmp.ne.s32.totalorder %s37, %s40
    %p46 = scmp.eq.s32.totalorder %s27, 0
    %p47 = por %p45, %p46
    %p48 = scmp.ne.s32.totalorder %s37, %s40
    %p49 = scmp.eq.s32.totalorder %s32, 1
    %p50 = por %p48, %p49
    %p51 = scmp.ne.s32.totalorder %s40, %s41
    %p52 = scmp.eq.s32.totalorder %s32, 0
    %p53 = por %p51, %p52
    %p54 = scmp.ne.s32.totalorder %s40, %s41
    %p55 = scmp.eq.s32.totalorder %s33, 1
    %p56 = por %p54, %p55
    %p58 = scmp.ne.s32.totalorder %s41, %s57
    %p59 = scmp.eq.s32.totalorder %s33, 0
    %p60 = por %p58, %p59
    %s61 = ssub.s32 %s27, %s34
    %p62 = scmp.eq.s32.totalorder %s61, 0
    %s64 = sadd.s32 %s63, 1
    %s65 = scalar_select %p62, %s63, %s64
    %p68 = pneg %p62
    %p69 = scmp.eq.s32.totalorder %s27, 1
    %p70 = por %p68, %p69
    %p71 = scmp.ne.s32.totalorder %s63, %s66
    %p72 = scmp.eq.s32.totalorder %s27, 0
    %p73 = por %p71, %p72
    %p74 = scmp.ne.s32.totalorder %s63, %s66
    %p75 = scmp.eq.s32.totalorder %s32, 1
    %p76 = por %p74, %p75
    %p77 = scmp.ne.s32.totalorder %s66, %s67
    %p78 = scmp.eq.s32.totalorder %s32, 0
    %p79 = por %p77, %p78
    %p80 = scmp.ne.s32.totalorder %s66, %s67
    %p81 = scmp.eq.s32.totalorder %s33, 1
    %p82 = por %p80, %p81
    %p84 = scmp.ne.s32.totalorder %s67, %s83
    %p85 = scmp.eq.s32.totalorder %s33, 0
    %p86 = por %p84, %p85
    %s88 = sadd.s32 %s87, 1
    %p91 = scmp.eq.s32.totalorder %s27, 1
    %p92 = scmp.ne.s32.totalorder %s87, %s89
    %p93 = scmp.eq.s32.totalorder %s27, 0
    %p94 = por %p92, %p93
    %p95 = scmp.ne.s32.totalorder %s87, %s89
    %p96 = scmp.eq.s32.totalorder %s32, 1
    %p97 = por %p95, %p96
    %p98 = scmp.ne.s32.totalorder %s89, %s90
    %p99 = scmp.eq.s32.totalorder %s32, 0
    %p100 = por %p98, %p99
    %p101 = scmp.ne.s32.totalorder %s89, %s90
    %p102 = scmp.eq.s32.totalorder %s33, 1
    %p103 = por %p101, %p102
    %p105 = scmp.ne.s32.totalorder %s90, %s104
    %p106 = scmp.eq.s32.totalorder %s33, 0
    %p107 = por %p105, %p106
    %s109 = sadd.s32 %s108, 1
    %p112 = scmp.eq.s32.totalorder %s27, 1
    %p113 = scmp.ne.s32.totalorder %s108, %s110
    %p114 = scmp.eq.s32.totalorder %s27, 0
    %p115 = por %p113, %p114
    %p116 = scmp.ne.s32.totalorder %s108, %s110
    %p117 = scmp.eq.s32.totalorder %s32, 1
    %p118 = por %p116, %p117
    %p119 = scmp.ne.s32.totalorder %s110, %s111
    %p120 = scmp.eq.s32.totalorder %s32, 0
    %p121 = por %p119, %p120
    %p122 = scmp.ne.s32.totalorder %s110, %s111
    %p123 = scmp.eq.s32.totalorder %s33, 1
    %p124 = por %p122, %p123
    %p126 = scmp.ne.s32.totalorder %s111, %s125
    %p127 = scmp.eq.s32.totalorder %s33, 0
    %p128 = por %p126, %p127
    %s130 = sadd.s32 %s129, 1
    %p133 = scmp.eq.s32.totalorder %s27, 1
    %p134 = scmp.ne.s32.totalorder %s129, %s131
    %p135 = scmp.eq.s32.totalorder %s27, 0
    %p136 = por %p134, %p135
    %p137 = scmp.ne.s32.totalorder %s129, %s131
    %p138 = scmp.eq.s32.totalorder %s32, 1
    %p139 = por %p137, %p138
    %p140 = scmp.ne.s32.totalorder %s131, %s132
    %p141 = scmp.eq.s32.totalorder %s32, 0
    %p142 = por %p140, %p141
    %p143 = scmp.ne.s32.totalorder %s131, %s132
    %p144 = scmp.eq.s32.totalorder %s33, 1
    %p145 = por %p143, %p144
    %p147 = scmp.ne.s32.totalorder %s132, %s146
    %p148 = scmp.eq.s32.totalorder %s33, 0
    %p149 = por %p147, %p148
    %s151 = sadd.s32 %s150, 1
    %p154 = scmp.eq.s32.totalorder %s27, 1
    %p155 = scmp.ne.s32.totalorder %s150, %s152
    %p156 = scmp.eq.s32.totalorder %s27, 0
    %p157 = por %p155, %p156
    %p158 = scmp.ne.s32.totalorder %s150, %s152
    %p159 = scmp.eq.s32.totalorder %s32, 1
    %p160 = por %p158, %p159
    %p161 = scmp.ne.s32.totalorder %s152, %s153
    %p162 = scmp.eq.s32.totalorder %s32, 0
    %p163 = por %p161, %p162
    %p164 = scmp.ne.s32.totalorder %s152, %s153
    %p165 = scmp.eq.s32.totalorder %s33, 1
    %p166 = por %p164, %p165
    %p168 = scmp.ne.s32.totalorder %s153, %s167
    %p169 = scmp.eq.s32.totalorder %s33, 0
    %p170 = por %p168, %p169
    %s172 = sadd.s32 %s171, 1
    %p175 = scmp.eq.s32.totalorder %s27, 1
    %p176 = scmp.ne.s32.totalorder %s171, %s173
    %p177 = scmp.eq.s32.totalorder %s27, 0
    %p178 = por %p176, %p177
    %p179 = scmp.ne.s32.totalorder %s171, %s173
    %p180 = scmp.eq.s32.totalorder %s32, 1
    %p181 = por %p179, %p180
    %p182 = scmp.ne.s32.totalorder %s173, %s174
    %p183 = scmp.eq.s32.totalorder %s32, 0
    %p184 = por %p182, %p183
    %p185 = scmp.ne.s32.totalorder %s173, %s174
    %p186 = scmp.eq.s32.totalorder %s33, 1
    %p187 = por %p185, %p186
    %p189 = scmp.ne.s32.totalorder %s174, %s188
    %p190 = scmp.eq.s32.totalorder %s33, 0
    %p191 = por %p189, %p190
    %s193 = sadd.s32 %s192, 1
    %p196 = scmp.eq.s32.totalorder %s27, 1
    %p197 = scmp.ne.s32.totalorder %s192, %s194
    %p198 = scmp.eq.s32.totalorder %s27, 0
    %p199 = por %p197, %p198
    %p200 = scmp.ne.s32.totalorder %s192, %s194
    %p201 = scmp.eq.s32.totalorder %s32, 1
    %p202 = por %p200, %p201
    %p203 = scmp.ne.s32.totalorder %s194, %s195
    %p204 = scmp.eq.s32.totalorder %s32, 0
    %p205 = por %p203, %p204
    %p206 = scmp.ne.s32.totalorder %s194, %s195
    %p207 = scmp.eq.s32.totalorder %s33, 1
    %p208 = por %p206, %p207
    %p210 = scmp.ne.s32.totalorder %s195, %s209
    %p211 = scmp.eq.s32.totalorder %s33, 0
    %p212 = por %p210, %p211
    %s214 = sadd.s32 %s213, 1
    %p217 = scmp.eq.s32.totalorder %s27, 1
    %p218 = scmp.ne.s32.totalorder %s213, %s215
    %p219 = scmp.eq.s32.totalorder %s27, 0
    %p220 = por %p218, %p219
    %p221 = scmp.ne.s32.totalorder %s213, %s215
    %p222 = scmp.eq.s32.totalorder %s32, 1
    %p223 = por %p221, %p222
    %p224 = scmp.ne.s32.totalorder %s215, %s216
    %p225 = scmp.eq.s32.totalorder %s32, 0
    %p226 = por %p224, %p225
    %p227 = scmp.ne.s32.totalorder %s215, %s216
    %p228 = scmp.eq.s32.totalorder %s33, 1
    %p229 = por %p227, %p228
    %p231 = scmp.ne.s32.totalorder %s216, %s230
    %p232 = scmp.eq.s32.totalorder %s33, 0
    %p233 = por %p231, %p232
    %s235 = sadd.s32 %s234, 1
    %p238 = scmp.eq.s32.totalorder %s27, 1
    %p239 = scmp.ne.s32.totalorder %s234, %s236
    %p240 = scmp.eq.s32.totalorder %s27, 0
    %p241 = por %p239, %p240
    %p242 = scmp.ne.s32.totalorder %s234, %s236
    %p243 = scmp.eq.s32.totalorder %s32, 1
    %p244 = por %p242, %p243
    %p245 = scmp.ne.s32.totalorder %s236, %s237
    %p246 = scmp.eq.s32.totalorder %s32, 0
    %p247 = por %p245, %p246
    %p248 = scmp.ne.s32.totalorder %s236, %s237
    %p249 = scmp.eq.s32.totalorder %s33, 1
    %p250 = por %p248, %p249
    %p252 = scmp.ne.s32.totalorder %s237, %s251
    %p253 = scmp.eq.s32.totalorder %s33, 0
    %p254 = por %p252, %p253
    %s256 = sadd.s32 %s255, 1
    %p259 = scmp.eq.s32.totalorder %s27, 1
    %p260 = scmp.ne.s32.totalorder %s255, %s257
    %p261 = scmp.eq.s32.totalorder %s27, 0
    %p262 = por %p260, %p261
    %p263 = scmp.ne.s32.totalorder %s255, %s257
    %p264 = scmp.eq.s32.totalorder %s32, 1
    %p265 = por %p263, %p264
    %p266 = scmp.ne.s32.totalorder %s257, %s258
    %p267 = scmp.eq.s32.totalorder %s32, 0
    %p268 = por %p266, %p267
    %p269 = scmp.ne.s32.totalorder %s257, %s258
    %p270 = scmp.eq.s32.totalorder %s33, 1
    %p271 = por %p269, %p270
    %p273 = scmp.ne.s32.totalorder %s258, %s272
    %p274 = scmp.eq.s32.totalorder %s33, 0
    %p275 = por %p273, %p274
    %s277 = sadd.s32 %s276, 1
    %p280 = scmp.eq.s32.totalorder %s27, 1
    %p281 = scmp.ne.s32.totalorder %s276, %s278
    %p282 = scmp.eq.s32.totalorder %s27, 0
    %p283 = por %p281, %p282
    %p284 = scmp.ne.s32.totalorder %s276, %s278
    %p285 = scmp.eq.s32.totalorder %s32, 1
    %p286 = por %p284, %p285
    %p287 = scmp.ne.s32.totalorder %s278, %s279
    %p288 = scmp.eq.s32.totalorder %s32, 0
    %p289 = por %p287, %p288
    %p290 = scmp.ne.s32.totalorder %s278, %s279
    %p291 = scmp.eq.s32.totalorder %s33, 1
    %p292 = por %p290, %p291
    %p294 = scmp.ne.s32.totalorder %s279, %s293
    %p295 = scmp.eq.s32.totalorder %s33, 0
    %p296 = por %p294, %p295
    %s298 = sadd.s32 %s297, 1
    %p301 = scmp.eq.s32.totalorder %s27, 1
    %p302 = scmp.ne.s32.totalorder %s297, %s299
    %p303 = scmp.eq.s32.totalorder %s27, 0
    %p304 = por %p302, %p303
    %p305 = scmp.ne.s32.totalorder %s297, %s299
    %p306 = scmp.eq.s32.totalorder %s32, 1
    %p307 = por %p305, %p306
    %p308 = scmp.ne.s32.totalorder %s299, %s300
    %p309 = scmp.eq.s32.totalorder %s32, 0
    %p310 = por %p308, %p309
    %p311 = scmp.ne.s32.totalorder %s299, %s300
    %p312 = scmp.eq.s32.totalorder %s33, 1
    %p313 = por %p311, %p312
    %p315 = scmp.ne.s32.totalorder %s300, %s314
    %p316 = scmp.eq.s32.totalorder %s33, 0
    %p317 = por %p315, %p316
    %s319 = sadd.s32 %s318, 1
    %p322 = scmp.eq.s32.totalorder %s27, 1
    %p323 = scmp.ne.s32.totalorder %s318, %s320
    %p324 = scmp.eq.s32.totalorder %s27, 0
    %p325 = por %p323, %p324
    %p326 = scmp.ne.s32.totalorder %s318, %s320
    %p327 = scmp.eq.s32.totalorder %s32, 1
    %p328 = por %p326, %p327
    %p329 = scmp.ne.s32.totalorder %s320, %s321
    %p330 = scmp.eq.s32.totalorder %s32, 0
    %p331 = por %p329, %p330
    %p332 = scmp.ne.s32.totalorder %s320, %s321
    %p333 = scmp.eq.s32.totalorder %s33, 1
    %p334 = por %p332, %p333
    %p336 = scmp.ne.s32.totalorder %s321, %s335
    %p337 = scmp.eq.s32.totalorder %s33, 0
    %p338 = por %p336, %p337
    %s340 = sadd.s32 %s339, 1
    %p343 = scmp.eq.s32.totalorder %s27, 1
    %p344 = scmp.ne.s32.totalorder %s339, %s341
    %p345 = scmp.eq.s32.totalorder %s27, 0
    %p346 = por %p344, %p345
    %p347 = scmp.ne.s32.totalorder %s339, %s341
    %p348 = scmp.eq.s32.totalorder %s32, 1
    %p349 = por %p347, %p348
    %p350 = scmp.ne.s32.totalorder %s341, %s342
    %p351 = scmp.eq.s32.totalorder %s32, 0
    %p352 = por %p350, %p351
    %p353 = scmp.ne.s32.totalorder %s341, %s342
    %p354 = scmp.eq.s32.totalorder %s33, 1
    %p355 = por %p353, %p354
    %p357 = scmp.ne.s32.totalorder %s342, %s356
    %p358 = scmp.eq.s32.totalorder %s33, 0
    %p359 = por %p357, %p358
    %s361 = sadd.s32 %s360, 1
    %p364 = scmp.eq.s32.totalorder %s27, 1
    %p365 = scmp.ne.s32.totalorder %s360, %s362
    %p366 = scmp.eq.s32.totalorder %s27, 0
    %p367 = por %p365, %p366
    %p368 = scmp.ne.s32.totalorder %s360, %s362
    %p369 = scmp.eq.s32.totalorder %s32, 1
    %p370 = por %p368, %p369
    %p371 = scmp.ne.s32.totalorder %s362, %s363
    %p372 = scmp.eq.s32.totalorder %s32, 0
    %p373 = por %p371, %p372
    %p374 = scmp.ne.s32.totalorder %s362, %s363
    %p375 = scmp.eq.s32.totalorder %s33, 1
    %p376 = por %p374, %p375
    %p378 = scmp.ne.s32.totalorder %s363, %s377
    %p379 = scmp.eq.s32.totalorder %s33, 0
    %p380 = por %p378, %p379
    %s382 = sadd.s32 %s381, 1
    %p385 = scmp.eq.s32.totalorder %s27, 1
    %p386 = scmp.ne.s32.totalorder %s381, %s383
    %p387 = scmp.eq.s32.totalorder %s27, 0
    %p388 = por %p386, %p387
    %p389 = scmp.ne.s32.totalorder %s381, %s383
    %p390 = scmp.eq.s32.totalorder %s32, 1
    %p391 = por %p389, %p390
    %p392 = scmp.ne.s32.totalorder %s383, %s384
    %p393 = scmp.eq.s32.totalorder %s32, 0
    %p394 = por %p392, %p393
    %p395 = scmp.ne.s32.totalorder %s383, %s384
    %p396 = scmp.eq.s32.totalorder %s33, 1
    %p397 = por %p395, %p396
    %p399 = scmp.ne.s32.totalorder %s384, %s398
    %p400 = scmp.eq.s32.totalorder %s33, 0
    %p401 = por %p399, %p400
    %s403 = sadd.s32 %s402, 1
    %p406 = scmp.eq.s32.totalorder %s27, 1
    %p407 = scmp.ne.s32.totalorder %s402, %s404
    %p408 = scmp.eq.s32.totalorder %s27, 0
    %p409 = por %p407, %p408
    %p410 = scmp.ne.s32.totalorder %s402, %s404
    %p411 = scmp.eq.s32.totalorder %s32, 1
    %p412 = por %p410, %p411
    %p413 = scmp.ne.s32.totalorder %s404, %s405
    %p414 = scmp.eq.s32.totalorder %s32, 0
    %p415 = por %p413, %p414
    %p416 = scmp.ne.s32.totalorder %s404, %s405
    %p417 = scmp.eq.s32.totalorder %s33, 1
    %p418 = por %p416, %p417
    %p420 = scmp.ne.s32.totalorder %s405, %s419
    %p421 = scmp.eq.s32.totalorder %s33, 0
    %p422 = por %p420, %p421
    %s424 = sadd.s32 %s423, 1
    %p427 = scmp.eq.s32.totalorder %s27, 1
    %p428 = scmp.ne.s32.totalorder %s423, %s425
    %p429 = scmp.eq.s32.totalorder %s27, 0
    %p430 = por %p428, %p429
    %p431 = scmp.ne.s32.totalorder %s423, %s425
    %p432 = scmp.eq.s32.totalorder %s32, 1
    %p433 = por %p431, %p432
    %p434 = scmp.ne.s32.totalorder %s425, %s426
    %p435 = scmp.eq.s32.totalorder %s32, 0
    %p436 = por %p434, %p435
    %p437 = scmp.ne.s32.totalorder %s425, %s426
    %p438 = scmp.eq.s32.totalorder %s33, 1
    %p439 = por %p437, %p438
    %p441 = scmp.ne.s32.totalorder %s426, %s440
    %p442 = scmp.eq.s32.totalorder %s33, 0
    %p443 = por %p441, %p442
    %s445 = sadd.s32 %s444, 1
    %p448 = scmp.eq.s32.totalorder %s27, 1
    %p449 = scmp.ne.s32.totalorder %s444, %s446
    %p450 = scmp.eq.s32.totalorder %s27, 0
    %p451 = por %p449, %p450
    %p452 = scmp.ne.s32.totalorder %s444, %s446
    %p453 = scmp.eq.s32.totalorder %s32, 1
    %p454 = por %p452, %p453
    %p455 = scmp.ne.s32.totalorder %s446, %s447
    %p456 = scmp.eq.s32.totalorder %s32, 0
    %p457 = por %p455, %p456
    %p458 = scmp.ne.s32.totalorder %s446, %s447
    %p459 = scmp.eq.s32.totalorder %s33, 1
    %p460 = por %p458, %p459
    %p462 = scmp.ne.s32.totalorder %s447, %s461
    %p463 = scmp.eq.s32.totalorder %s33, 0
    %p464 = por %p462, %p463
    %s466 = sadd.s32 %s465, 1
    %p469 = scmp.eq.s32.totalorder %s27, 1
    %p470 = scmp.ne.s32.totalorder %s465, %s467
    %p471 = scmp.eq.s32.totalorder %s27, 0
    %p472 = por %p470, %p471
    %p473 = scmp.ne.s32.totalorder %s465, %s467
    %p474 = scmp.eq.s32.totalorder %s32, 1
    %p475 = por %p473, %p474
    %p476 = scmp.ne.s32.totalorder %s467, %s468
    %p477 = scmp.eq.s32.totalorder %s32, 0
    %p478 = por %p476, %p477
    %p479 = scmp.ne.s32.totalorder %s467, %s468
    %p480 = scmp.eq.s32.totalorder %s33, 1
    %p481 = por %p479, %p480
    %p483 = scmp.ne.s32.totalorder %s468, %s482
    %p484 = scmp.eq.s32.totalorder %s33, 0
    %p485 = por %p483, %p484
    %s486 = ssub.s32 %s27, %s34
    %p487 = scmp.eq.s32.totalorder %s486, 0
    %s489 = sadd.s32 %s488, 1
    %s490 = scalar_select %p487, %s488, %s489
    %p493 = pneg %p487
    %p494 = scmp.eq.s32.totalorder %s27, 1
    %p495 = por %p493, %p494
    %p496 = scmp.ne.s32.totalorder %s488, %s491
    %p497 = scmp.eq.s32.totalorder %s27, 0
    %p498 = por %p496, %p497
    %p499 = scmp.ne.s32.totalorder %s488, %s491
    %p500 = scmp.eq.s32.totalorder %s32, 1
    %p501 = por %p499, %p500
    %p502 = scmp.ne.s32.totalorder %s491, %s492
    %p503 = scmp.eq.s32.totalorder %s32, 0
    %p504 = por %p502, %p503
    %p505 = scmp.ne.s32.totalorder %s491, %s492
    %p506 = scmp.eq.s32.totalorder %s33, 1
    %p507 = por %p505, %p506
    %p509 = scmp.ne.s32.totalorder %s492, %s508
    %p510 = scmp.eq.s32.totalorder %s33, 0
    %p511 = por %p509, %p510
    %p512 = scmp.le.s32.totalorder 1, %s27
    %p513 = scmp.lt.s32.totalorder %s27, 3
    %p514 = pnand %p512, %p513
    %p515 = pneg %p514
    // Predicated region
    $region9: #{vit3d_forward.1} parent=5 // pred_check
      _
    $region10: #{vit3d_forward.1} parent=5 // pred_check_branch
      %517 = sbr.rel (%p514) target = $region12
    $region11: #{vit3d_forward.1} parent=5 // pred_region
      %s518 = ssub.s32 %s27, 1
      // Predicated region
      $region13: #{vit3d_forward.1} parent=11 // pred_check
        %p519 = pneg %p100
      $region14: #{vit3d_forward.1} parent=11 // pred_check_branch
        %521 = sbr.rel (%p519) target = $region16
      $region15: #{vit3d_forward.1} parent=11 // pred_region
        _
      $region16: #{vit3d_forward.1} parent=11 // pred_fallthru
        _
      // Predicated region
      $region17: #{vit3d_forward.1} parent=11 // pred_check
        %p522 = pneg %p121
      $region18: #{vit3d_forward.1} parent=11 // pred_check_branch
        %524 = sbr.rel (%p522) target = $region20
      $region19: #{vit3d_forward.1} parent=11 // pred_region
        _
      $region20: #{vit3d_forward.1} parent=11 // pred_fallthru
        _
      // Predicated region
      $region21: #{vit3d_forward.1} parent=11 // pred_check
        %p525 = pneg %p142
      $region22: #{vit3d_forward.1} parent=11 // pred_check_branch
        %527 = sbr.rel (%p525) target = $region24
      $region23: #{vit3d_forward.1} parent=11 // pred_region
        _
      $region24: #{vit3d_forward.1} parent=11 // pred_fallthru
        _
      // Predicated region
      $region25: #{vit3d_forward.1} parent=11 // pred_check
        %p528 = pneg %p163
      $region26: #{vit3d_forward.1} parent=11 // pred_check_branch
        %530 = sbr.rel (%p528) target = $region28
      $region27: #{vit3d_forward.1} parent=11 // pred_region
        _
      $region28: #{vit3d_forward.1} parent=11 // pred_fallthru
        _
      // Predicated region
      $region29: #{vit3d_forward.1} parent=11 // pred_check
        %p531 = pneg %p184
      $region30: #{vit3d_forward.1} parent=11 // pred_check_branch
        %533 = sbr.rel (%p531) target = $region32
      $region31: #{vit3d_forward.1} parent=11 // pred_region
        _
      $region32: #{vit3d_forward.1} parent=11 // pred_fallthru
        _
      // Predicated region
      $region33: #{vit3d_forward.1} parent=11 // pred_check
        %p534 = pneg %p205
      $region34: #{vit3d_forward.1} parent=11 // pred_check_branch
        %536 = sbr.rel (%p534) target = $region36
      $region35: #{vit3d_forward.1} parent=11 // pred_region
        _
      $region36: #{vit3d_forward.1} parent=11 // pred_fallthru
        _
      // Predicated region
      $region37: #{vit3d_forward.1} parent=11 // pred_check
        %p537 = pneg %p226
      $region38: #{vit3d_forward.1} parent=11 // pred_check_branch
        %539 = sbr.rel (%p537) target = $region40
      $region39: #{vit3d_forward.1} parent=11 // pred_region
        _
      $region40: #{vit3d_forward.1} parent=11 // pred_fallthru
        _
      // Predicated region
      $region41: #{vit3d_forward.1} parent=11 // pred_check
        %p540 = pneg %p247
      $region42: #{vit3d_forward.1} parent=11 // pred_check_branch
        %542 = sbr.rel (%p540) target = $region44
      $region43: #{vit3d_forward.1} parent=11 // pred_region
        _
      $region44: #{vit3d_forward.1} parent=11 // pred_fallthru
        _
      // Predicated region
      $region45: #{vit3d_forward.1} parent=11 // pred_check
        %p543 = pneg %p268
      $region46: #{vit3d_forward.1} parent=11 // pred_check_branch
        %545 = sbr.rel (%p543) target = $region48
      $region47: #{vit3d_forward.1} parent=11 // pred_region
        _
      $region48: #{vit3d_forward.1} parent=11 // pred_fallthru
        _
      // Predicated region
      $region49: #{vit3d_forward.1} parent=11 // pred_check
        %p546 = pneg %p289
      $region50: #{vit3d_forward.1} parent=11 // pred_check_branch
        %548 = sbr.rel (%p546) target = $region52
      $region51: #{vit3d_forward.1} parent=11 // pred_region
        _
      $region52: #{vit3d_forward.1} parent=11 // pred_fallthru
        _
      // Predicated region
      $region53: #{vit3d_forward.1} parent=11 // pred_check
        %p549 = pneg %p310
      $region54: #{vit3d_forward.1} parent=11 // pred_check_branch
        %551 = sbr.rel (%p549) target = $region56
      $region55: #{vit3d_forward.1} parent=11 // pred_region
        _
      $region56: #{vit3d_forward.1} parent=11 // pred_fallthru
        _
      // Predicated region
      $region57: #{vit3d_forward.1} parent=11 // pred_check
        %p552 = pneg %p331
      $region58: #{vit3d_forward.1} parent=11 // pred_check_branch
        %554 = sbr.rel (%p552) target = $region60
      $region59: #{vit3d_forward.1} parent=11 // pred_region
        _
      $region60: #{vit3d_forward.1} parent=11 // pred_fallthru
        _
      // Predicated region
      $region61: #{vit3d_forward.1} parent=11 // pred_check
        %p555 = pneg %p352
      $region62: #{vit3d_forward.1} parent=11 // pred_check_branch
        %557 = sbr.rel (%p555) target = $region64
      $region63: #{vit3d_forward.1} parent=11 // pred_region
        _
      $region64: #{vit3d_forward.1} parent=11 // pred_fallthru
        _
      // Predicated region
      $region65: #{vit3d_forward.1} parent=11 // pred_check
        %p558 = pneg %p373
      $region66: #{vit3d_forward.1} parent=11 // pred_check_branch
        %560 = sbr.rel (%p558) target = $region68
      $region67: #{vit3d_forward.1} parent=11 // pred_region
        _
      $region68: #{vit3d_forward.1} parent=11 // pred_fallthru
        _
      // Predicated region
      $region69: #{vit3d_forward.1} parent=11 // pred_check
        %p561 = pneg %p394
      $region70: #{vit3d_forward.1} parent=11 // pred_check_branch
        %563 = sbr.rel (%p561) target = $region72
      $region71: #{vit3d_forward.1} parent=11 // pred_region
        _
      $region72: #{vit3d_forward.1} parent=11 // pred_fallthru
        _
      // Predicated region
      $region73: #{vit3d_forward.1} parent=11 // pred_check
        %p564 = pneg %p415
      $region74: #{vit3d_forward.1} parent=11 // pred_check_branch
        %566 = sbr.rel (%p564) target = $region76
      $region75: #{vit3d_forward.1} parent=11 // pred_region
        _
      $region76: #{vit3d_forward.1} parent=11 // pred_fallthru
        _
      // Predicated region
      $region77: #{vit3d_forward.1} parent=11 // pred_check
        %p567 = pneg %p436
      $region78: #{vit3d_forward.1} parent=11 // pred_check_branch
        %569 = sbr.rel (%p567) target = $region80
      $region79: #{vit3d_forward.1} parent=11 // pred_region
        _
      $region80: #{vit3d_forward.1} parent=11 // pred_fallthru
        _
      // Predicated region
      $region81: #{vit3d_forward.1} parent=11 // pred_check
        %p570 = pneg %p457
      $region82: #{vit3d_forward.1} parent=11 // pred_check_branch
        %572 = sbr.rel (%p570) target = $region84
      $region83: #{vit3d_forward.1} parent=11 // pred_region
        _
      $region84: #{vit3d_forward.1} parent=11 // pred_fallthru
        _
      // Predicated region
      $region85: #{vit3d_forward.1} parent=11 // pred_check
        %p573 = pneg %p478
      $region86: #{vit3d_forward.1} parent=11 // pred_check_branch
        %575 = sbr.rel (%p573) target = $region88
      $region87: #{vit3d_forward.1} parent=11 // pred_region
        _
      $region88: #{vit3d_forward.1} parent=11 // pred_fallthru
        _
    $region12: #{vit3d_forward.1} parent=5 // pred_fallthru
      _
    %p576 = scmp.lt.s32.totalorder %s27, 2
    // Predicated region
    $region89: #{vit3d_forward.1} parent=5 // pred_check
      %p577 = pneg %p576
    $region90: #{vit3d_forward.1} parent=5 // pred_check_branch
      %579 = sbr.rel (%p577) target = $region92
    $region91: #{vit3d_forward.1} parent=5 // pred_region
      // Predicated region
      $region93: #{vit3d_forward.1} parent=91 // pred_check
        %p580 = pneg %p47
      $region94: #{vit3d_forward.1} parent=91 // pred_check_branch
        %582 = sbr.rel (%p580) target = $region96
      $region95: #{vit3d_forward.1} parent=91 // pred_region
        %p583 = scmp.lt.s32.totalorder %s27, 1
        %s584 = scalar_select %p583, %s27, 1
        %s585 = smul.addr %s584, 4
        %s586 = smul.addr %s585, 8
        %s587 = scalar_lea.vmem %s0, %s586
      $region96: #{vit3d_forward.1} parent=91 // pred_fallthru
        _
      // Predicated region
      $region97: #{vit3d_forward.1} parent=91 // pred_check
        %p588 = pneg %p73
      $region98: #{vit3d_forward.1} parent=91 // pred_check_branch
        %590 = sbr.rel (%p588) target = $region100
      $region99: #{vit3d_forward.1} parent=91 // pred_region
        %p591 = scmp.lt.s32.totalorder %s27, 1
        %s592 = scalar_select %p591, %s27, 1
        %s593 = smul.addr %s592, 2
        %s594 = smul.addr %s593, 8
        %s595 = scalar_lea.vmem %s1, %s594
      $region100: #{vit3d_forward.1} parent=91 // pred_fallthru
        _
    $region92: #{vit3d_forward.1} parent=5 // pred_fallthru
      _
    %p596 = scmp.le.s32.totalorder 1, %s27
    %p597 = scmp.lt.s32.totalorder %s27, 3
    %p598 = pnand %p596, %p597
    %p599 = pneg %p598
    // Predicated region
    $region101: #{vit3d_forward.1} parent=5 // pred_check
      _
    $region102: #{vit3d_forward.1} parent=5 // pred_check_branch
      %601 = sbr.rel (%p598) target = $region104
    $region103: #{vit3d_forward.1} parent=5 // pred_region
      %s602 = ssub.s32 %s27, 1
      %p603 = scmp.lt.s32.totalorder %s32, 1
      %s604 = scalar_select %p603, %s32, 1
      %s605 = smul.addr %s604, 4
      %s606 = smul.addr %s605, 8
      %s607 = scalar_lea.vmem %s0, %s606
      %p608 = pneg %p53
      %p609 = pneg %p50
      %p610 = scmp.lt.s32.totalorder %s32, 1
      %s611 = scalar_select %p610, %s32, 1
      %s612 = smul.addr %s611, 2
      %s613 = smul.addr %s612, 8
      %s614 = scalar_lea.vmem %s1, %s613
      %p615 = pneg %p79
      %p616 = pneg %p76
      %p617 = pneg %p100
      %p618 = pneg %p97
      %p619 = pneg %p121
      %p620 = pneg %p118
      %p621 = pneg %p142
      %p622 = pneg %p139
      %p623 = pneg %p163
      %p624 = pneg %p160
      %p625 = pneg %p184
      %p626 = pneg %p181
      %p627 = pneg %p205
      %p628 = pneg %p202
      %p629 = pneg %p226
      %p630 = pneg %p223
      %p631 = pneg %p247
      %p632 = pneg %p244
      %p633 = pneg %p268
      %p634 = pneg %p265
      %p635 = pneg %p289
      %p636 = pneg %p286
      %p637 = pneg %p310
      %p638 = pneg %p307
      %p639 = pneg %p331
      %p640 = pneg %p328
      %p641 = pneg %p352
      %p642 = pneg %p349
      %p643 = pneg %p373
      %p644 = pneg %p370
      %p645 = pneg %p394
      %p646 = pneg %p391
      %p647 = pneg %p415
      %p648 = pneg %p412
      %p649 = pneg %p436
      %p650 = pneg %p433
      %p651 = pneg %p457
      %p652 = pneg %p454
      %p653 = pneg %p478
      %p654 = pneg %p475
      %p655 = pneg %p504
      %p656 = pneg %p501
      %p657 = scmp.lt.s32.totalorder %s32, 1
      %s658 = scalar_select %p657, %s32, 1
      %s659 = smul.addr %s658, 2
      %s660 = smul.addr %s659, 8
      %s661 = scalar_lea.vmem %s21, %s660
      %p662 = scmp.lt.s32.totalorder %s32, 1
      %s663 = scalar_select %p662, %s32, 1
      %s664 = smul.addr %s663, 4
      %s665 = smul.addr %s664, 8
      %s666 = scalar_lea.vmem %s0, %s665
      %p667 = scmp.lt.s32.totalorder %s32, 1
      %s668 = scalar_select %p667, %s32, 1
      %s669 = smul.addr %s668, 2
      %s670 = smul.addr %s669, 8
      %s671 = scalar_lea.vmem %s1, %s670
      %p672 = scmp.lt.s32.totalorder %s32, 1
      %s673 = scalar_select %p672, %s32, 1
      %s674 = smul.addr %s673, 2
      %s675 = smul.addr %s674, 8
      %s676 = scalar_lea.vmem %s21, %s675
      %v677 = vld [vmem:[%s2] sm:$0xff]
      %v678 = vld [vmem:[%s2 + $0x8] sm:$0xff]
      %v679 = vld [vmem:[%s666] sm:$0xff]
      %v680 = vld [vmem:[%s666 + $0x8] sm:$0xff]
      %v681 = vld [vmem:[%s666 + $0x10] sm:$0xff]
      %v682 = vld [vmem:[%s666 + $0x18] sm:$0xff]
      %v683 = vld [vmem:[%s3] sm:$0xff]
      %v684 = vld [vmem:[%s3 + $0x8] sm:$0xff]
      %v685 = vld [vmem:[%s3 + $0x10] sm:$0xff]
      %v686 = vld [vmem:[%s3 + $0x18] sm:$0xff]
      %v687 = vld [vmem:[%s3 + $0x20] sm:$0xff]
      %v688 = vld [vmem:[%s3 + $0x28] sm:$0xff]
      %v689 = vld [vmem:[%s3 + $0x30] sm:$0xff]
      %v690 = vld [vmem:[%s3 + $0x38] sm:$0xff]
      %v691 = vld [vmem:[%s3 + $0x40] sm:$0xff]
      %v692 = vld [vmem:[%s3 + $0x48] sm:$0xff]
      %v693 = vld [vmem:[%s3 + $0x50] sm:$0xff]
      %v694 = vld [vmem:[%s3 + $0x58] sm:$0xff]
      %v695 = vld [vmem:[%s3 + $0x60] sm:$0xff]
      %v696 = vld [vmem:[%s3 + $0x68] sm:$0xff]
      %v697 = vld [vmem:[%s3 + $0x70] sm:$0xff]
      %v698 = vld [vmem:[%s3 + $0x78] sm:$0xff]
      %v699 = vld [vmem:[%s3 + $0x80] sm:$0xff]
      %v700 = vld [vmem:[%s3 + $0x88] sm:$0xff]
      %v701 = vld [vmem:[%s3 + $0x90] sm:$0xff]
      %v702 = vld [vmem:[%s3 + $0x98] sm:$0xff]
      %v703 = vld [vmem:[%s3 + $0xa0] sm:$0xff]
      %v704 = vld [vmem:[%s3 + $0xa8] sm:$0xff]
      %v705 = vld [vmem:[%s3 + $0xb0] sm:$0xff]
      %v706 = vld [vmem:[%s3 + $0xb8] sm:$0xff]
      %v707 = vld [vmem:[%s3 + $0xc0] sm:$0xff]
      %v708 = vld [vmem:[%s3 + $0xc8] sm:$0xff]
      %v709 = vld [vmem:[%s3 + $0xd0] sm:$0xff]
      %v710 = vld [vmem:[%s3 + $0xd8] sm:$0xff]
      %v711 = vld [vmem:[%s3 + $0xe0] sm:$0xff]
      %v712 = vld [vmem:[%s3 + $0xe8] sm:$0xff]
      %v713 = vld [vmem:[%s3 + $0xf0] sm:$0xff]
      %v714 = vld [vmem:[%s3 + $0xf8] sm:$0xff]
      %715 = vmatprep.subr.mxu0 0.0
      %716 = vmatpush1.msra.mxu0 %v698
      %717 = vmatprep.subr.mxu0 0.0
      %718 = vmatpush1.msra.mxu0 %v697
      %719 = vmatprep.subr.mxu0 0.0
      %720 = vmatpush1.msra.mxu0 %v696
      %721 = vmatprep.subr.mxu0 0.0
      %722 = vmatpush1.msra.mxu0 %v695
      %723 = vmatprep.subr.mxu0 0.0
      %724 = vmatpush1.msra.mxu0 %v694
      %725 = vmatprep.subr.mxu0 0.0
      %726 = vmatpush1.msra.mxu0 %v693
      %727 = vmatprep.subr.mxu0 0.0
      %728 = vmatpush1.msra.mxu0 %v692
      %729 = vmatprep.subr.mxu0 0.0
      %730 = vmatpush1.msra.mxu0 %v691
      %731 = vmatprep.subr.mxu0 0.0
      %732 = vmatpush1.msra.mxu0 %v690
      %733 = vmatprep.subr.mxu0 0.0
      %734 = vmatpush1.msra.mxu0 %v689
      %735 = vmatprep.subr.mxu0 0.0
      %736 = vmatpush1.msra.mxu0 %v688
      %737 = vmatprep.subr.mxu0 0.0
      %738 = vmatpush1.msra.mxu0 %v687
      %739 = vmatprep.subr.mxu0 0.0
      %740 = vmatpush1.msra.mxu0 %v686
      %741 = vmatprep.subr.mxu0 0.0
      %742 = vmatpush1.msra.mxu0 %v685
      %743 = vmatprep.subr.mxu0 0.0
      %744 = vmatpush1.msra.mxu0 %v684
      %745 = vmatprep.subr.mxu0 0.0
      %746 = vmatpush1.msra.mxu0 %v683
      %747 = vmatprep.subr.mxu0 0.0
      %748 = vmatpush2.msra.mxu0 %v714
      %749 = vmatprep.subr.mxu0 0.0
      %750 = vmatpush2.msra.mxu0 %v713
      %751 = vmatprep.subr.mxu0 0.0
      %752 = vmatpush2.msra.mxu0 %v712
      %753 = vmatprep.subr.mxu0 0.0
      %754 = vmatpush2.msra.mxu0 %v711
      %755 = vmatprep.subr.mxu0 0.0
      %756 = vmatpush2.msra.mxu0 %v710
      %757 = vmatprep.subr.mxu0 0.0
      %758 = vmatpush2.msra.mxu0 %v709
      %759 = vmatprep.subr.mxu0 0.0
      %760 = vmatpush2.msra.mxu0 %v708
      %761 = vmatprep.subr.mxu0 0.0
      %762 = vmatpush2.msra.mxu0 %v707
      %763 = vmatprep.subr.mxu0 0.0
      %764 = vmatpush2.msra.mxu0 %v706
      %765 = vmatprep.subr.mxu0 0.0
      %766 = vmatpush2.msra.mxu0 %v705
      %767 = vmatprep.subr.mxu0 0.0
      %768 = vmatpush2.msra.mxu0 %v704
      %769 = vmatprep.subr.mxu0 0.0
      %770 = vmatpush2.msra.mxu0 %v703
      %771 = vmatprep.subr.mxu0 0.0
      %772 = vmatpush2.msra.mxu0 %v702
      %773 = vmatprep.subr.mxu0 0.0
      %774 = vmatpush2.msra.mxu0 %v701
      %775 = vmatprep.subr.mxu0 0.0
      %776 = vmatpush2.msra.mxu0 %v700
      %777 = vmatprep.subr.mxu0 0.0
      %778 = vmatpush2.msra.mxu0 %v699
      %779 = vmatprep.mubr.f32.mxu0 %v680
      %780 = vmatmul.mubr.f32.gmra.mxu0 %v679
      %v781 = vpop.f32.mrf.mxu0
      %v782 = vadd.f32 0.0, %v781
      %v783 = vpop.f32.mrf.mxu0
      %784 = vmatprep.mubr.f32.mxu0 %v682
      %785 = vmatmul.mubr.f32.gmra.mxu0 %v681
      %v786 = vpop.f32.mrf.mxu0
      %v787 = vadd.f32 0.0, %v786
      %v788 = vpop.f32.mrf.mxu0
      %789 = vdwg.mxu0
      %v790 = vadd.f32 %v677, %v782
      %v791 = vadd.f32 %v678, %v787
      %v792 = vld [vmem:[%s671] sm:$0xff]
      %v793 = vld [vmem:[%s671 + $0x8] sm:$0xff]
      %v794 = vld [vmem:[%s7] sm:$0x1]
      %v795 = vld [vmem:[%s8] sm:$0x1]
      %vm796 = vcmask 523264
      %v797 = vsel %vm796, %v790, 0.0
      %798 = vadd.xlane.f32.xlu0 %v797
      %v799 = vpop.xlane.xlu0 %798
      %v800 = vsel %vm796, %v791, 0.0
      %801 = vadd.xlane.f32.xlu0 %v800
      %v802 = vpop.xlane.xlu0 %801
      %v803 = vrcp.pop 64.0
      %v804 = vmul.f32 %v799, %v803
      %v805 = vmul.f32 %v802, %v803
      %v806 = vsub.f32 %v790, %v804
      %v807 = vsub.f32 %v791, %v805
      %v808 = vmul.f32 %v806, %v806
      %v809 = vmul.f32 %v807, %v807
      %v810 = vsel %vm796, %v808, 0.0
      %811 = vadd.xlane.f32.xlu0 %v810
      %v812 = vpop.xlane.xlu0 %811
      %v813 = vsel %vm796, %v809, 0.0
      %814 = vadd.xlane.f32.xlu0 %v813
      %v815 = vpop.xlane.xlu0 %814
      %v816 = vmul.f32 %v812, %v803
      %v817 = vmul.f32 %v815, %v803
      %v818 = vadd.f32 %v816, 1e-05
      %v819 = vadd.f32 %v817, 1e-05
      %v820 = vrsqrt.pop %v818
      %v821 = vrsqrt.pop %v819
      %v822 = vmul.f32 %v806, %v820
      %v823 = vmul.f32 %v807, %v821
      %v825 = vlaneseq
      %v826 = vshrl.u32 %v825, 7
      %v827 = vsub.s32 0, %v826
      %v828 = vrot.slane %v794, %v827
      %v830 = vmul.f32 %v822, %v828
      %v831 = vmul.f32 %v823, %v828
      %v833 = vlaneseq
      %v834 = vshrl.u32 %v833, 7
      %v835 = vsub.s32 0, %v834
      %v836 = vrot.slane %v795, %v835
      %v838 = vadd.f32 %v830, %v836
      %v839 = vadd.f32 %v831, %v836
      %v840 = vld [vmem:[%s4] sm:$0xff]
      %v841 = vld [vmem:[%s4 + $0x8] sm:$0xff]
      %v842 = vld [vmem:[%s4 + $0x10] sm:$0xff]
      %v843 = vld [vmem:[%s4 + $0x18] sm:$0xff]
      %v844 = vld [vmem:[%s4 + $0x20] sm:$0xff]
      %v845 = vld [vmem:[%s4 + $0x28] sm:$0xff]
      %v846 = vld [vmem:[%s4 + $0x30] sm:$0xff]
      %v847 = vld [vmem:[%s4 + $0x38] sm:$0xff]
      %v849 = vsel %vm796, %v838, 0
      %v852 = vsel %vm796, %v839, 0
      %854 = vmatprep.subr.mxu0 0.0
      %855 = vmatpush1.msra.mxu0 0.0
      %856 = vmatprep.subr.mxu0 0.0
      %857 = vmatpush1.msra.mxu0 0.0
      %858 = vmatprep.subr.mxu0 0.0
      %859 = vmatpush1.msra.mxu0 0.0
      %860 = vmatprep.subr.mxu0 0.0
      %861 = vmatpush1.msra.mxu0 0.0
      %862 = vmatprep.subr.mxu0 0.0
      %863 = vmatpush1.msra.mxu0 0.0
      %864 = vmatprep.subr.mxu0 0.0
      %865 = vmatpush1.msra.mxu0 0.0
      %866 = vmatprep.subr.mxu0 0.0
      %867 = vmatpush1.msra.mxu0 0.0
      %868 = vmatprep.subr.mxu0 0.0
      %869 = vmatpush1.msra.mxu0 0.0
      %870 = vmatprep.subr.mxu0 0.0
      %871 = vmatpush1.msra.mxu0 %v847
      %872 = vmatprep.subr.mxu0 0.0
      %873 = vmatpush1.msra.mxu0 %v846
      %874 = vmatprep.subr.mxu0 0.0
      %875 = vmatpush1.msra.mxu0 %v845
      %876 = vmatprep.subr.mxu0 0.0
      %877 = vmatpush1.msra.mxu0 %v844
      %878 = vmatprep.subr.mxu0 0.0
      %879 = vmatpush1.msra.mxu0 %v843
      %880 = vmatprep.subr.mxu0 0.0
      %881 = vmatpush1.msra.mxu0 %v842
      %882 = vmatprep.subr.mxu0 0.0
      %883 = vmatpush1.msra.mxu0 %v841
      %884 = vmatprep.subr.mxu0 0.0
      %885 = vmatpush1.msra.mxu0 %v840
      %886 = vmatprep.subr.mxu0 0.0
      %887 = vmatpush2.msra.mxu0 0.0
      %888 = vmatprep.subr.mxu0 0.0
      %889 = vmatpush2.msra.mxu0 0.0
      %890 = vmatprep.subr.mxu0 0.0
      %891 = vmatpush2.msra.mxu0 0.0
      %892 = vmatprep.subr.mxu0 0.0
      %893 = vmatpush2.msra.mxu0 0.0
      %894 = vmatprep.subr.mxu0 0.0
      %895 = vmatpush2.msra.mxu0 0.0
      %896 = vmatprep.subr.mxu0 0.0
      %897 = vmatpush2.msra.mxu0 0.0
      %898 = vmatprep.subr.mxu0 0.0
      %899 = vmatpush2.msra.mxu0 0.0
      %900 = vmatprep.subr.mxu0 0.0
      %901 = vmatpush2.msra.mxu0 0.0
      %902 = vmatprep.subr.mxu0 0.0
      %903 = vmatpush2.msra.mxu0 0.0
      %904 = vmatprep.subr.mxu0 0.0
      %905 = vmatpush2.msra.mxu0 0.0
      %906 = vmatprep.subr.mxu0 0.0
      %907 = vmatpush2.msra.mxu0 0.0
      %908 = vmatprep.subr.mxu0 0.0
      %909 = vmatpush2.msra.mxu0 0.0
      %910 = vmatprep.subr.mxu0 0.0
      %911 = vmatpush2.msra.mxu0 0.0
      %912 = vmatprep.subr.mxu0 0.0
      %913 = vmatpush2.msra.mxu0 0.0
      %914 = vmatprep.subr.mxu0 0.0
      %915 = vmatpush2.msra.mxu0 0.0
      %916 = vmatprep.subr.mxu0 0.0
      %917 = vmatpush2.msra.mxu0 0.0
      %918 = vmatprep.mubr.f32.mxu0 0.0
      %919 = vmatmul.mubr.f32.gmra.mxu0 %v849
      %v920 = vpop.f32.mrf.mxu0
      %v921 = vadd.f32 0.0, %v920
      %v922 = vpop.f32.mrf.mxu0
      %923 = vmatprep.mubr.f32.mxu0 0.0
      %924 = vmatmul.mubr.f32.gmra.mxu0 %v852
      %v925 = vpop.f32.mrf.mxu0
      %v926 = vadd.f32 0.0, %v925
      %v927 = vpop.f32.mrf.mxu0
      %928 = vdwg.mxu0
      %v929 = vld [vmem:[%s5] sm:$0xff]
      %v930 = vld [vmem:[%s5 + $0x8] sm:$0xff]
      %v931 = vld [vmem:[%s5 + $0x10] sm:$0xff]
      %v932 = vld [vmem:[%s5 + $0x18] sm:$0xff]
      %v933 = vld [vmem:[%s5 + $0x20] sm:$0xff]
      %v934 = vld [vmem:[%s5 + $0x28] sm:$0xff]
      %v935 = vld [vmem:[%s5 + $0x30] sm:$0xff]
      %v936 = vld [vmem:[%s5 + $0x38] sm:$0xff]
      %937 = vmatprep.subr.mxu0 0.0
      %938 = vmatpush1.msra.mxu0 0.0
      %939 = vmatprep.subr.mxu0 0.0
      %940 = vmatpush1.msra.mxu0 0.0
      %941 = vmatprep.subr.mxu0 0.0
      %942 = vmatpush1.msra.mxu0 0.0
      %943 = vmatprep.subr.mxu0 0.0
      %944 = vmatpush1.msra.mxu0 0.0
      %945 = vmatprep.subr.mxu0 0.0
      %946 = vmatpush1.msra.mxu0 0.0
      %947 = vmatprep.subr.mxu0 0.0
      %948 = vmatpush1.msra.mxu0 0.0
      %949 = vmatprep.subr.mxu0 0.0
      %950 = vmatpush1.msra.mxu0 0.0
      %951 = vmatprep.subr.mxu0 0.0
      %952 = vmatpush1.msra.mxu0 0.0
      %953 = vmatprep.subr.mxu0 0.0
      %954 = vmatpush1.msra.mxu0 %v936
      %955 = vmatprep.subr.mxu0 0.0
      %956 = vmatpush1.msra.mxu0 %v935
      %957 = vmatprep.subr.mxu0 0.0
      %958 = vmatpush1.msra.mxu0 %v934
      %959 = vmatprep.subr.mxu0 0.0
      %960 = vmatpush1.msra.mxu0 %v933
      %961 = vmatprep.subr.mxu0 0.0
      %962 = vmatpush1.msra.mxu0 %v932
      %963 = vmatprep.subr.mxu0 0.0
      %964 = vmatpush1.msra.mxu0 %v931
      %965 = vmatprep.subr.mxu0 0.0
      %966 = vmatpush1.msra.mxu0 %v930
      %967 = vmatprep.subr.mxu0 0.0
      %968 = vmatpush1.msra.mxu0 %v929
      %969 = vmatprep.subr.mxu0 0.0
      %970 = vmatpush2.msra.mxu0 0.0
      %971 = vmatprep.subr.mxu0 0.0
      %972 = vmatpush2.msra.mxu0 0.0
      %973 = vmatprep.subr.mxu0 0.0
      %974 = vmatpush2.msra.mxu0 0.0
      %975 = vmatprep.subr.mxu0 0.0
      %976 = vmatpush2.msra.mxu0 0.0
      %977 = vmatprep.subr.mxu0 0.0
      %978 = vmatpush2.msra.mxu0 0.0
      %979 = vmatprep.subr.mxu0 0.0
      %980 = vmatpush2.msra.mxu0 0.0
      %981 = vmatprep.subr.mxu0 0.0
      %982 = vmatpush2.msra.mxu0 0.0
      %983 = vmatprep.subr.mxu0 0.0
      %984 = vmatpush2.msra.mxu0 0.0
      %985 = vmatprep.subr.mxu0 0.0
      %986 = vmatpush2.msra.mxu0 0.0
      %987 = vmatprep.subr.mxu0 0.0
      %988 = vmatpush2.msra.mxu0 0.0
      %989 = vmatprep.subr.mxu0 0.0
      %990 = vmatpush2.msra.mxu0 0.0
      %991 = vmatprep.subr.mxu0 0.0
      %992 = vmatpush2.msra.mxu0 0.0
      %993 = vmatprep.subr.mxu0 0.0
      %994 = vmatpush2.msra.mxu0 0.0
      %995 = vmatprep.subr.mxu0 0.0
      %996 = vmatpush2.msra.mxu0 0.0
      %997 = vmatprep.subr.mxu0 0.0
      %998 = vmatpush2.msra.mxu0 0.0
      %999 = vmatprep.subr.mxu0 0.0
      %1000 = vmatpush2.msra.mxu0 0.0
      %1001 = vmatprep.mubr.f32.mxu0 0.0
      %1002 = vmatmul.mubr.f32.gmra.mxu0 %v849
      %v1003 = vpop.f32.mrf.mxu0
      %v1004 = vadd.f32 0.0, %v1003
      %v1005 = vpop.f32.mrf.mxu0
      %1006 = vmatprep.mubr.f32.mxu0 0.0
      %1007 = vmatmul.mubr.f32.gmra.mxu0 %v852
      %v1008 = vpop.f32.mrf.mxu0
      %v1009 = vadd.f32 0.0, %v1008
      %v1010 = vpop.f32.mrf.mxu0
      %1011 = vdwg.mxu0
      %v1012 = vld [vmem:[%s6] sm:$0xff]
      %v1013 = vld [vmem:[%s6 + $0x8] sm:$0xff]
      %v1014 = vld [vmem:[%s6 + $0x10] sm:$0xff]
      %v1015 = vld [vmem:[%s6 + $0x18] sm:$0xff]
      %v1016 = vld [vmem:[%s6 + $0x20] sm:$0xff]
      %v1017 = vld [vmem:[%s6 + $0x28] sm:$0xff]
      %v1018 = vld [vmem:[%s6 + $0x30] sm:$0xff]
      %v1019 = vld [vmem:[%s6 + $0x38] sm:$0xff]
      %1020 = vmatprep.subr.mxu0 0.0
      %1021 = vmatpush1.msra.mxu0 0.0
      %1022 = vmatprep.subr.mxu0 0.0
      %1023 = vmatpush1.msra.mxu0 0.0
      %1024 = vmatprep.subr.mxu0 0.0
      %1025 = vmatpush1.msra.mxu0 0.0
      %1026 = vmatprep.subr.mxu0 0.0
      %1027 = vmatpush1.msra.mxu0 0.0
      %1028 = vmatprep.subr.mxu0 0.0
      %1029 = vmatpush1.msra.mxu0 0.0
      %1030 = vmatprep.subr.mxu0 0.0
      %1031 = vmatpush1.msra.mxu0 0.0
      %1032 = vmatprep.subr.mxu0 0.0
      %1033 = vmatpush1.msra.mxu0 0.0
      %1034 = vmatprep.subr.mxu0 0.0
      %1035 = vmatpush1.msra.mxu0 0.0
      %1036 = vmatprep.subr.mxu0 0.0
      %1037 = vmatpush1.msra.mxu0 %v1019
      %1038 = vmatprep.subr.mxu0 0.0
      %1039 = vmatpush1.msra.mxu0 %v1018
      %1040 = vmatprep.subr.mxu0 0.0
      %1041 = vmatpush1.msra.mxu0 %v1017
      %1042 = vmatprep.subr.mxu0 0.0
      %1043 = vmatpush1.msra.mxu0 %v1016
      %1044 = vmatprep.subr.mxu0 0.0
      %1045 = vmatpush1.msra.mxu0 %v1015
      %1046 = vmatprep.subr.mxu0 0.0
      %1047 = vmatpush1.msra.mxu0 %v1014
      %1048 = vmatprep.subr.mxu0 0.0
      %1049 = vmatpush1.msra.mxu0 %v1013
      %1050 = vmatprep.subr.mxu0 0.0
      %1051 = vmatpush1.msra.mxu0 %v1012
      %1052 = vmatprep.subr.mxu0 0.0
      %1053 = vmatpush2.msra.mxu0 0.0
      %1054 = vmatprep.subr.mxu0 0.0
      %1055 = vmatpush2.msra.mxu0 0.0
      %1056 = vmatprep.subr.mxu0 0.0
      %1057 = vmatpush2.msra.mxu0 0.0
      %1058 = vmatprep.subr.mxu0 0.0
      %1059 = vmatpush2.msra.mxu0 0.0
      %1060 = vmatprep.subr.mxu0 0.0
      %1061 = vmatpush2.msra.mxu0 0.0
      %1062 = vmatprep.subr.mxu0 0.0
      %1063 = vmatpush2.msra.mxu0 0.0
      %1064 = vmatprep.subr.mxu0 0.0
      %1065 = vmatpush2.msra.mxu0 0.0
      %1066 = vmatprep.subr.mxu0 0.0
      %1067 = vmatpush2.msra.mxu0 0.0
      %1068 = vmatprep.subr.mxu0 0.0
      %1069 = vmatpush2.msra.mxu0 0.0
      %1070 = vmatprep.subr.mxu0 0.0
      %1071 = vmatpush2.msra.mxu0 0.0
      %1072 = vmatprep.subr.mxu0 0.0
      %1073 = vmatpush2.msra.mxu0 0.0
      %1074 = vmatprep.subr.mxu0 0.0
      %1075 = vmatpush2.msra.mxu0 0.0
      %1076 = vmatprep.subr.mxu0 0.0
      %1077 = vmatpush2.msra.mxu0 0.0
      %1078 = vmatprep.subr.mxu0 0.0
      %1079 = vmatpush2.msra.mxu0 0.0
      %1080 = vmatprep.subr.mxu0 0.0
      %1081 = vmatpush2.msra.mxu0 0.0
      %1082 = vmatprep.subr.mxu0 0.0
      %1083 = vmatpush2.msra.mxu0 0.0
      %1084 = vmatprep.mubr.f32.mxu0 0.0
      %1085 = vmatmul.mubr.f32.gmra.mxu0 %v849
      %v1086 = vpop.f32.mrf.mxu0
      %v1087 = vadd.f32 0.0, %v1086
      %v1088 = vpop.f32.mrf.mxu0
      %1089 = vmatprep.mubr.f32.mxu0 0.0
      %1090 = vmatmul.mubr.f32.gmra.mxu0 %v852
      %v1091 = vpop.f32.mrf.mxu0
      %v1092 = vadd.f32 0.0, %v1091
      %v1093 = vpop.f32.mrf.mxu0
      %1094 = vdwg.mxu0
      %vm1095 = vcmask 130048
      %v1097 = vsel %vm1095, %v921, 0
      %v1100 = vsel %vm1095, %v926, 0
      %v1103 = vsel %vm1095, %v1004, 0
      %v1106 = vsel %vm1095, %v1009, 0
      %1108 = vmatprep.subr.mxu0 0.0
      %1109 = vmatpush1.xpose.msra.mxu0 0.0
      %1110 = vmatprep.subr.mxu0 0.0
      %1111 = vmatpush1.xpose.msra.mxu0 0.0
      %1112 = vmatprep.subr.mxu0 0.0
      %1113 = vmatpush1.xpose.msra.mxu0 0.0
      %1114 = vmatprep.subr.mxu0 0.0
      %1115 = vmatpush1.xpose.msra.mxu0 0.0
      %1116 = vmatprep.subr.mxu0 0.0
      %1117 = vmatpush1.xpose.msra.mxu0 0.0
      %1118 = vmatprep.subr.mxu0 0.0
      %1119 = vmatpush1.xpose.msra.mxu0 0.0
      %1120 = vmatprep.subr.mxu0 0.0
      %1121 = vmatpush1.xpose.msra.mxu0 0.0
      %1122 = vmatprep.subr.mxu0 0.0
      %1123 = vmatpush1.xpose.msra.mxu0 0.0
      %1124 = vmatprep.subr.mxu0 0.0
      %1125 = vmatpush1.xpose.msra.mxu0 0.0
      %1126 = vmatprep.subr.mxu0 0.0
      %1127 = vmatpush1.xpose.msra.mxu0 0.0
      %1128 = vmatprep.subr.mxu0 0.0
      %1129 = vmatpush1.xpose.msra.mxu0 0.0
      %1130 = vmatprep.subr.mxu0 0.0
      %1131 = vmatpush1.xpose.msra.mxu0 0.0
      %1132 = vmatprep.subr.mxu0 0.0
      %1133 = vmatpush1.xpose.msra.mxu0 0.0
      %1134 = vmatprep.subr.mxu0 0.0
      %1135 = vmatpush1.xpose.msra.mxu0 0.0
      %1136 = vmatprep.subr.mxu0 0.0
      %1137 = vmatpush1.xpose.msra.mxu0 %v1106
      %1138 = vmatprep.subr.mxu0 0.0
      %1139 = vmatpush1.xpose.msra.mxu0 %v1103
      %1140 = vmatprep.subr.mxu0 0.0
      %1141 = vmatpush2.xpose.msra.mxu0 0.0
      %1142 = vmatprep.subr.mxu0 0.0
      %1143 = vmatpush2.xpose.msra.mxu0 0.0
      %1144 = vmatprep.subr.mxu0 0.0
      %1145 = vmatpush2.xpose.msra.mxu0 0.0
      %1146 = vmatprep.subr.mxu0 0.0
      %1147 = vmatpush2.xpose.msra.mxu0 0.0
      %1148 = vmatprep.subr.mxu0 0.0
      %1149 = vmatpush2.xpose.msra.mxu0 0.0
      %1150 = vmatprep.subr.mxu0 0.0
      %1151 = vmatpush2.xpose.msra.mxu0 0.0
      %1152 = vmatprep.subr.mxu0 0.0
      %1153 = vmatpush2.xpose.msra.mxu0 0.0
      %1154 = vmatprep.subr.mxu0 0.0
      %1155 = vmatpush2.xpose.msra.mxu0 0.0
      %1156 = vmatprep.subr.mxu0 0.0
      %1157 = vmatpush2.xpose.msra.mxu0 0.0
      %1158 = vmatprep.subr.mxu0 0.0
      %1159 = vmatpush2.xpose.msra.mxu0 0.0
      %1160 = vmatprep.subr.mxu0 0.0
      %1161 = vmatpush2.xpose.msra.mxu0 0.0
      %1162 = vmatprep.subr.mxu0 0.0
      %1163 = vmatpush2.xpose.msra.mxu0 0.0
      %1164 = vmatprep.subr.mxu0 0.0
      %1165 = vmatpush2.xpose.msra.mxu0 0.0
      %1166 = vmatprep.subr.mxu0 0.0
      %1167 = vmatpush2.xpose.msra.mxu0 0.0
      %1168 = vmatprep.subr.mxu0 0.0
      %1169 = vmatpush2.xpose.msra.mxu0 0.0
      %1170 = vmatprep.subr.mxu0 0.0
      %1171 = vmatpush2.xpose.msra.mxu0 0.0
      %1172 = vmatprep.mubr.f32.mxu0 0.0
      %1173 = vmatmul.mubr.f32.gmra.mxu0 %v1097
      %v1174 = vpop.f32.mrf.mxu0
      %v1175 = vadd.f32 %v792, %v1174
      %v1176 = vpop.f32.mrf.mxu0
      %1177 = vmatprep.mubr.f32.mxu0 0.0
      %1178 = vmatmul.mubr.f32.gmra.mxu0 %v1100
      %v1179 = vpop.f32.mrf.mxu0
      %v1180 = vadd.f32 %v793, %v1179
      %v1181 = vpop.f32.mrf.mxu0
      %1182 = vdwg.mxu0
      %v1183 = vsel %vm1095, %v1175, -inf
      %1184 = vmax.xlane.f32.xlu0 %v1183
      %v1185 = vpop.xlane.xlu0 %1184
      %v1186 = vsel %vm1095, %v1180, -inf
      %1187 = vmax.xlane.f32.xlu0 %v1186
      %v1188 = vpop.xlane.xlu0 %1187
      %v1189 = vsub.f32 %v1175, %v1185
      %v1190 = vsub.f32 %v1180, %v1188
      %v1191 = vmul.f32 %v1189, 1.442695
      %v1192 = vpow.pop %v1191
      %v1193 = vmul.f32 %v1190, 1.442695
      %v1194 = vpow.pop %v1193
      %v1195 = vsel %vm1095, %v1192, 0.0
      %1196 = vadd.xlane.f32.xlu0 %v1195
      %v1197 = vpop.xlane.xlu0 %1196
      %v1198 = vsel %vm1095, %v1194, 0.0
      %1199 = vadd.xlane.f32.xlu0 %v1198
      %v1200 = vpop.xlane.xlu0 %1199
      %v1201 = vrcp.pop %v1197
      %v1202 = vrcp.pop %v1200
      %v1203 = vmul.f32 %v1192, %v1201
      %v1204 = vmul.f32 %v1194, %v1202
      %v1206 = vsel %vm1095, %v1203, 0
      %v1209 = vsel %vm1095, %v1204, 0
      %1211 = vmatprep.subr.mxu0 0.0
      %1212 = vmatpush1.msra.mxu0 0.0
      %1213 = vmatprep.subr.mxu0 0.0
      %1214 = vmatpush1.msra.mxu0 0.0
      %1215 = vmatprep.subr.mxu0 0.0
      %1216 = vmatpush1.msra.mxu0 0.0
      %1217 = vmatprep.subr.mxu0 0.0
      %1218 = vmatpush1.msra.mxu0 0.0
      %1219 = vmatprep.subr.mxu0 0.0
      %1220 = vmatpush1.msra.mxu0 0.0
      %1221 = vmatprep.subr.mxu0 0.0
      %1222 = vmatpush1.msra.mxu0 0.0
      %1223 = vmatprep.subr.mxu0 0.0
      %1224 = vmatpush1.msra.mxu0 0.0
      %1225 = vmatprep.subr.mxu0 0.0
      %1226 = vmatpush1.msra.mxu0 0.0
      %1227 = vmatprep.subr.mxu0 0.0
      %1228 = vmatpush1.msra.mxu0 0.0
      %1229 = vmatprep.subr.mxu0 0.0
      %1230 = vmatpush1.msra.mxu0 0.0
      %1231 = vmatprep.subr.mxu0 0.0
      %1232 = vmatpush1.msra.mxu0 0.0
      %1233 = vmatprep.subr.mxu0 0.0
      %1234 = vmatpush1.msra.mxu0 0.0
      %1235 = vmatprep.subr.mxu0 0.0
      %1236 = vmatpush1.msra.mxu0 0.0
      %1237 = vmatprep.subr.mxu0 0.0
      %1238 = vmatpush1.msra.mxu0 0.0
      %1239 = vmatprep.subr.mxu0 0.0
      %1240 = vmatpush1.msra.mxu0 %v1092
      %1241 = vmatprep.subr.mxu0 0.0
      %1242 = vmatpush1.msra.mxu0 %v1087
      %1243 = vmatprep.subr.mxu0 0.0
      %1244 = vmatpush2.msra.mxu0 0.0
      %1245 = vmatprep.subr.mxu0 0.0
      %1246 = vmatpush2.msra.mxu0 0.0
      %1247 = vmatprep.subr.mxu0 0.0
      %1248 = vmatpush2.msra.mxu0 0.0
      %1249 = vmatprep.subr.mxu0 0.0
      %1250 = vmatpush2.msra.mxu0 0.0
      %1251 = vmatprep.subr.mxu0 0.0
      %1252 = vmatpush2.msra.mxu0 0.0
      %1253 = vmatprep.subr.mxu0 0.0
      %1254 = vmatpush2.msra.mxu0 0.0
      %1255 = vmatprep.subr.mxu0 0.0
      %1256 = vmatpush2.msra.mxu0 0.0
      %1257 = vmatprep.subr.mxu0 0.0
      %1258 = vmatpush2.msra.mxu0 0.0
      %1259 = vmatprep.subr.mxu0 0.0
      %1260 = vmatpush2.msra.mxu0 0.0
      %1261 = vmatprep.subr.mxu0 0.0
      %1262 = vmatpush2.msra.mxu0 0.0
      %1263 = vmatprep.subr.mxu0 0.0
      %1264 = vmatpush2.msra.mxu0 0.0
      %1265 = vmatprep.subr.mxu0 0.0
      %1266 = vmatpush2.msra.mxu0 0.0
      %1267 = vmatprep.subr.mxu0 0.0
      %1268 = vmatpush2.msra.mxu0 0.0
      %1269 = vmatprep.subr.mxu0 0.0
      %1270 = vmatpush2.msra.mxu0 0.0
      %1271 = vmatprep.subr.mxu0 0.0
      %1272 = vmatpush2.msra.mxu0 0.0
      %1273 = vmatprep.subr.mxu0 0.0
      %1274 = vmatpush2.msra.mxu0 0.0
      %1275 = vmatprep.mubr.f32.mxu0 0.0
      %1276 = vmatmul.mubr.f32.gmra.mxu0 %v1206
      %v1277 = vpop.f32.mrf.mxu0
      %v1278 = vadd.f32 0.0, %v1277
      %v1279 = vpop.f32.mrf.mxu0
      %1280 = vmatprep.mubr.f32.mxu0 0.0
      %1281 = vmatmul.mubr.f32.gmra.mxu0 %v1209
      %v1282 = vpop.f32.mrf.mxu0
      %v1283 = vadd.f32 0.0, %v1282
      %v1284 = vpop.f32.mrf.mxu0
      %1285 = vdwg.mxu0
      %1286 = vst.msk [vmem:[#allocation2] sm:$0xff] %vm1095, %v1278
      %1287 = vst.msk [vmem:[#allocation2 + $0x8] sm:$0xff] %vm1095, %v1283
      %s1288 = scalar_lea.vmem %s4, 64
      %v1289 = vld [vmem:[%s1288] sm:$0xff]
      %v1290 = vld [vmem:[%s1288 + $0x8] sm:$0xff]
      %v1291 = vld [vmem:[%s1288 + $0x10] sm:$0xff]
      %v1292 = vld [vmem:[%s1288 + $0x18] sm:$0xff]
      %v1293 = vld [vmem:[%s1288 + $0x20] sm:$0xff]
      %v1294 = vld [vmem:[%s1288 + $0x28] sm:$0xff]
      %v1295 = vld [vmem:[%s1288 + $0x30] sm:$0xff]
      %v1296 = vld [vmem:[%s1288 + $0x38] sm:$0xff]
      %1297 = vmatprep.subr.mxu0 0.0
      %1298 = vmatpush1.msra.mxu0 0.0
      %1299 = vmatprep.subr.mxu0 0.0
      %1300 = vmatpush1.msra.mxu0 0.0
      %1301 = vmatprep.subr.mxu0 0.0
      %1302 = vmatpush1.msra.mxu0 0.0
      %1303 = vmatprep.subr.mxu0 0.0
      %1304 = vmatpush1.msra.mxu0 0.0
      %1305 = vmatprep.subr.mxu0 0.0
      %1306 = vmatpush1.msra.mxu0 0.0
      %1307 = vmatprep.subr.mxu0 0.0
      %1308 = vmatpush1.msra.mxu0 0.0
      %1309 = vmatprep.subr.mxu0 0.0
      %1310 = vmatpush1.msra.mxu0 0.0
      %1311 = vmatprep.subr.mxu0 0.0
      %1312 = vmatpush1.msra.mxu0 0.0
      %1313 = vmatprep.subr.mxu0 0.0
      %1314 = vmatpush1.msra.mxu0 %v1296
      %1315 = vmatprep.subr.mxu0 0.0
      %1316 = vmatpush1.msra.mxu0 %v1295
      %1317 = vmatprep.subr.mxu0 0.0
      %1318 = vmatpush1.msra.mxu0 %v1294
      %1319 = vmatprep.subr.mxu0 0.0
      %1320 = vmatpush1.msra.mxu0 %v1293
      %1321 = vmatprep.subr.mxu0 0.0
      %1322 = vmatpush1.msra.mxu0 %v1292
      %1323 = vmatprep.subr.mxu0 0.0
      %1324 = vmatpush1.msra.mxu0 %v1291
      %1325 = vmatprep.subr.mxu0 0.0
      %1326 = vmatpush1.msra.mxu0 %v1290
      %1327 = vmatprep.subr.mxu0 0.0
      %1328 = vmatpush1.msra.mxu0 %v1289
      %1329 = vmatprep.subr.mxu0 0.0
      %1330 = vmatpush2.msra.mxu0 0.0
      %1331 = vmatprep.subr.mxu0 0.0
      %1332 = vmatpush2.msra.mxu0 0.0
      %1333 = vmatprep.subr.mxu0 0.0
      %1334 = vmatpush2.msra.mxu0 0.0
      %1335 = vmatprep.subr.mxu0 0.0
      %1336 = vmatpush2.msra.mxu0 0.0
      %1337 = vmatprep.subr.mxu0 0.0
      %1338 = vmatpush2.msra.mxu0 0.0
      %1339 = vmatprep.subr.mxu0 0.0
      %1340 = vmatpush2.msra.mxu0 0.0
      %1341 = vmatprep.subr.mxu0 0.0
      %1342 = vmatpush2.msra.mxu0 0.0
      %1343 = vmatprep.subr.mxu0 0.0
      %1344 = vmatpush2.msra.mxu0 0.0
      %1345 = vmatprep.subr.mxu0 0.0
      %1346 = vmatpush2.msra.mxu0 0.0
      %1347 = vmatprep.subr.mxu0 0.0
      %1348 = vmatpush2.msra.mxu0 0.0
      %1349 = vmatprep.subr.mxu0 0.0
      %1350 = vmatpush2.msra.mxu0 0.0
      %1351 = vmatprep.subr.mxu0 0.0
      %1352 = vmatpush2.msra.mxu0 0.0
      %1353 = vmatprep.subr.mxu0 0.0
      %1354 = vmatpush2.msra.mxu0 0.0
      %1355 = vmatprep.subr.mxu0 0.0
      %1356 = vmatpush2.msra.mxu0 0.0
      %1357 = vmatprep.subr.mxu0 0.0
      %1358 = vmatpush2.msra.mxu0 0.0
      %1359 = vmatprep.subr.mxu0 0.0
      %1360 = vmatpush2.msra.mxu0 0.0
      %1361 = vmatprep.mubr.f32.mxu0 0.0
      %1362 = vmatmul.mubr.f32.gmra.mxu0 %v849
      %v1363 = vpop.f32.mrf.mxu0
      %v1364 = vadd.f32 0.0, %v1363
      %v1365 = vpop.f32.mrf.mxu0
      %1366 = vmatprep.mubr.f32.mxu0 0.0
      %1367 = vmatmul.mubr.f32.gmra.mxu0 %v852
      %v1368 = vpop.f32.mrf.mxu0
      %v1369 = vadd.f32 0.0, %v1368
      %v1370 = vpop.f32.mrf.mxu0
      %1371 = vdwg.mxu0
      %s1372 = scalar_lea.vmem %s5, 64
      %v1373 = vld [vmem:[%s1372] sm:$0xff]
      %v1374 = vld [vmem:[%s1372 + $0x8] sm:$0xff]
      %v1375 = vld [vmem:[%s1372 + $0x10] sm:$0xff]
      %v1376 = vld [vmem:[%s1372 + $0x18] sm:$0xff]
      %v1377 = vld [vmem:[%s1372 + $0x20] sm:$0xff]
      %v1378 = vld [vmem:[%s1372 + $0x28] sm:$0xff]
      %v1379 = vld [vmem:[%s1372 + $0x30] sm:$0xff]
      %v1380 = vld [vmem:[%s1372 + $0x38] sm:$0xff]
      %1381 = vmatprep.subr.mxu0 0.0
      %1382 = vmatpush1.msra.mxu0 0.0
      %1383 = vmatprep.subr.mxu0 0.0
      %1384 = vmatpush1.msra.mxu0 0.0
      %1385 = vmatprep.subr.mxu0 0.0
      %1386 = vmatpush1.msra.mxu0 0.0
      %1387 = vmatprep.subr.mxu0 0.0
      %1388 = vmatpush1.msra.mxu0 0.0
      %1389 = vmatprep.subr.mxu0 0.0
      %1390 = vmatpush1.msra.mxu0 0.0
      %1391 = vmatprep.subr.mxu0 0.0
      %1392 = vmatpush1.msra.mxu0 0.0
      %1393 = vmatprep.subr.mxu0 0.0
      %1394 = vmatpush1.msra.mxu0 0.0
      %1395 = vmatprep.subr.mxu0 0.0
      %1396 = vmatpush1.msra.mxu0 0.0
      %1397 = vmatprep.subr.mxu0 0.0
      %1398 = vmatpush1.msra.mxu0 %v1380
      %1399 = vmatprep.subr.mxu0 0.0
      %1400 = vmatpush1.msra.mxu0 %v1379
      %1401 = vmatprep.subr.mxu0 0.0
      %1402 = vmatpush1.msra.mxu0 %v1378
      %1403 = vmatprep.subr.mxu0 0.0
      %1404 = vmatpush1.msra.mxu0 %v1377
      %1405 = vmatprep.subr.mxu0 0.0
      %1406 = vmatpush1.msra.mxu0 %v1376
      %1407 = vmatprep.subr.mxu0 0.0
      %1408 = vmatpush1.msra.mxu0 %v1375
      %1409 = vmatprep.subr.mxu0 0.0
      %1410 = vmatpush1.msra.mxu0 %v1374
      %1411 = vmatprep.subr.mxu0 0.0
      %1412 = vmatpush1.msra.mxu0 %v1373
      %1413 = vmatprep.subr.mxu0 0.0
      %1414 = vmatpush2.msra.mxu0 0.0
      %1415 = vmatprep.subr.mxu0 0.0
      %1416 = vmatpush2.msra.mxu0 0.0
      %1417 = vmatprep.subr.mxu0 0.0
      %1418 = vmatpush2.msra.mxu0 0.0
      %1419 = vmatprep.subr.mxu0 0.0
      %1420 = vmatpush2.msra.mxu0 0.0
      %1421 = vmatprep.subr.mxu0 0.0
      %1422 = vmatpush2.msra.mxu0 0.0
      %1423 = vmatprep.subr.mxu0 0.0
      %1424 = vmatpush2.msra.mxu0 0.0
      %1425 = vmatprep.subr.mxu0 0.0
      %1426 = vmatpush2.msra.mxu0 0.0
      %1427 = vmatprep.subr.mxu0 0.0
      %1428 = vmatpush2.msra.mxu0 0.0
      %1429 = vmatprep.subr.mxu0 0.0
      %1430 = vmatpush2.msra.mxu0 0.0
      %1431 = vmatprep.subr.mxu0 0.0
      %1432 = vmatpush2.msra.mxu0 0.0
      %1433 = vmatprep.subr.mxu0 0.0
      %1434 = vmatpush2.msra.mxu0 0.0
      %1435 = vmatprep.subr.mxu0 0.0
      %1436 = vmatpush2.msra.mxu0 0.0
      %1437 = vmatprep.subr.mxu0 0.0
      %1438 = vmatpush2.msra.mxu0 0.0
      %1439 = vmatprep.subr.mxu0 0.0
      %1440 = vmatpush2.msra.mxu0 0.0
      %1441 = vmatprep.subr.mxu0 0.0
      %1442 = vmatpush2.msra.mxu0 0.0
      %1443 = vmatprep.subr.mxu0 0.0
      %1444 = vmatpush2.msra.mxu0 0.0
      %1445 = vmatprep.mubr.f32.mxu0 0.0
      %1446 = vmatmul.mubr.f32.gmra.mxu0 %v849
      %v1447 = vpop.f32.mrf.mxu0
      %v1448 = vadd.f32 0.0, %v1447
      %v1449 = vpop.f32.mrf.mxu0
      %1450 = vmatprep.mubr.f32.mxu0 0.0
      %1451 = vmatmul.mubr.f32.gmra.mxu0 %v852
      %v1452 = vpop.f32.mrf.mxu0
      %v1453 = vadd.f32 0.0, %v1452
      %v1454 = vpop.f32.mrf.mxu0
      %1455 = vdwg.mxu0
      %s1456 = scalar_lea.vmem %s6, 64
      %v1457 = vld [vmem:[%s1456] sm:$0xff]
      %v1458 = vld [vmem:[%s1456 + $0x8] sm:$0xff]
      %v1459 = vld [vmem:[%s1456 + $0x10] sm:$0xff]
      %v1460 = vld [vmem:[%s1456 + $0x18] sm:$0xff]
      %v1461 = vld [vmem:[%s1456 + $0x20] sm:$0xff]
      %v1462 = vld [vmem:[%s1456 + $0x28] sm:$0xff]
      %v1463 = vld [vmem:[%s1456 + $0x30] sm:$0xff]
      %v1464 = vld [vmem:[%s1456 + $0x38] sm:$0xff]
      %1465 = vmatprep.subr.mxu0 0.0
      %1466 = vmatpush1.msra.mxu0 0.0
      %1467 = vmatprep.subr.mxu0 0.0
      %1468 = vmatpush1.msra.mxu0 0.0
      %1469 = vmatprep.subr.mxu0 0.0
      %1470 = vmatpush1.msra.mxu0 0.0
      %1471 = vmatprep.subr.mxu0 0.0
      %1472 = vmatpush1.msra.mxu0 0.0
      %1473 = vmatprep.subr.mxu0 0.0
      %1474 = vmatpush1.msra.mxu0 0.0
      %1475 = vmatprep.subr.mxu0 0.0
      %1476 = vmatpush1.msra.mxu0 0.0
      %1477 = vmatprep.subr.mxu0 0.0
      %1478 = vmatpush1.msra.mxu0 0.0
      %1479 = vmatprep.subr.mxu0 0.0
      %1480 = vmatpush1.msra.mxu0 0.0
      %1481 = vmatprep.subr.mxu0 0.0
      %1482 = vmatpush1.msra.mxu0 %v1464
      %1483 = vmatprep.subr.mxu0 0.0
      %1484 = vmatpush1.msra.mxu0 %v1463
      %1485 = vmatprep.subr.mxu0 0.0
      %1486 = vmatpush1.msra.mxu0 %v1462
      %1487 = vmatprep.subr.mxu0 0.0
      %1488 = vmatpush1.msra.mxu0 %v1461
      %1489 = vmatprep.subr.mxu0 0.0
      %1490 = vmatpush1.msra.mxu0 %v1460
      %1491 = vmatprep.subr.mxu0 0.0
      %1492 = vmatpush1.msra.mxu0 %v1459
      %1493 = vmatprep.subr.mxu0 0.0
      %1494 = vmatpush1.msra.mxu0 %v1458
      %1495 = vmatprep.subr.mxu0 0.0
      %1496 = vmatpush1.msra.mxu0 %v1457
      %1497 = vmatprep.subr.mxu0 0.0
      %1498 = vmatpush2.msra.mxu0 0.0
      %1499 = vmatprep.subr.mxu0 0.0
      %1500 = vmatpush2.msra.mxu0 0.0
      %1501 = vmatprep.subr.mxu0 0.0
      %1502 = vmatpush2.msra.mxu0 0.0
      %1503 = vmatprep.subr.mxu0 0.0
      %1504 = vmatpush2.msra.mxu0 0.0
      %1505 = vmatprep.subr.mxu0 0.0
      %1506 = vmatpush2.msra.mxu0 0.0
      %1507 = vmatprep.subr.mxu0 0.0
      %1508 = vmatpush2.msra.mxu0 0.0
      %1509 = vmatprep.subr.mxu0 0.0
      %1510 = vmatpush2.msra.mxu0 0.0
      %1511 = vmatprep.subr.mxu0 0.0
      %1512 = vmatpush2.msra.mxu0 0.0
      %1513 = vmatprep.subr.mxu0 0.0
      %1514 = vmatpush2.msra.mxu0 0.0
      %1515 = vmatprep.subr.mxu0 0.0
      %1516 = vmatpush2.msra.mxu0 0.0
      %1517 = vmatprep.subr.mxu0 0.0
      %1518 = vmatpush2.msra.mxu0 0.0
      %1519 = vmatprep.subr.mxu0 0.0
      %1520 = vmatpush2.msra.mxu0 0.0
      %1521 = vmatprep.subr.mxu0 0.0
      %1522 = vmatpush2.msra.mxu0 0.0
      %1523 = vmatprep.subr.mxu0 0.0
      %1524 = vmatpush2.msra.mxu0 0.0
      %1525 = vmatprep.subr.mxu0 0.0
      %1526 = vmatpush2.msra.mxu0 0.0
      %1527 = vmatprep.subr.mxu0 0.0
      %1528 = vmatpush2.msra.mxu0 0.0
      %1529 = vmatprep.mubr.f32.mxu0 0.0
      %1530 = vmatmul.mubr.f32.gmra.mxu0 %v849
      %v1531 = vpop.f32.mrf.mxu0
      %v1532 = vadd.f32 0.0, %v1531
      %v1533 = vpop.f32.mrf.mxu0
      %1534 = vmatprep.mubr.f32.mxu0 0.0
      %1535 = vmatmul.mubr.f32.gmra.mxu0 %v852
      %v1536 = vpop.f32.mrf.mxu0
      %v1537 = vadd.f32 0.0, %v1536
      %v1538 = vpop.f32.mrf.mxu0
      %1539 = vdwg.mxu0
      %v1541 = vsel %vm1095, %v1364, 0
      %v1544 = vsel %vm1095, %v1369, 0
      %v1547 = vsel %vm1095, %v1448, 0
      %v1550 = vsel %vm1095, %v1453, 0
      %1552 = vmatprep.subr.mxu0 0.0
      %1553 = vmatpush1.xpose.msra.mxu0 0.0
      %1554 = vmatprep.subr.mxu0 0.0
      %1555 = vmatpush1.xpose.msra.mxu0 0.0
      %1556 = vmatprep.subr.mxu0 0.0
      %1557 = vmatpush1.xpose.msra.mxu0 0.0
      %1558 = vmatprep.subr.mxu0 0.0
      %1559 = vmatpush1.xpose.msra.mxu0 0.0
      %1560 = vmatprep.subr.mxu0 0.0
      %1561 = vmatpush1.xpose.msra.mxu0 0.0
      %1562 = vmatprep.subr.mxu0 0.0
      %1563 = vmatpush1.xpose.msra.mxu0 0.0
      %1564 = vmatprep.subr.mxu0 0.0
      %1565 = vmatpush1.xpose.msra.mxu0 0.0
      %1566 = vmatprep.subr.mxu0 0.0
      %1567 = vmatpush1.xpose.msra.mxu0 0.0
      %1568 = vmatprep.subr.mxu0 0.0
      %1569 = vmatpush1.xpose.msra.mxu0 0.0
      %1570 = vmatprep.subr.mxu0 0.0
      %1571 = vmatpush1.xpose.msra.mxu0 0.0
      %1572 = vmatprep.subr.mxu0 0.0
      %1573 = vmatpush1.xpose.msra.mxu0 0.0
      %1574 = vmatprep.subr.mxu0 0.0
      %1575 = vmatpush1.xpose.msra.mxu0 0.0
      %1576 = vmatprep.subr.mxu0 0.0
      %1577 = vmatpush1.xpose.msra.mxu0 0.0
      %1578 = vmatprep.subr.mxu0 0.0
      %1579 = vmatpush1.xpose.msra.mxu0 0.0
      %1580 = vmatprep.subr.mxu0 0.0
      %1581 = vmatpush1.xpose.msra.mxu0 %v1550
      %1582 = vmatprep.subr.mxu0 0.0
      %1583 = vmatpush1.xpose.msra.mxu0 %v1547
      %1584 = vmatprep.subr.mxu0 0.0
      %1585 = vmatpush2.xpose.msra.mxu0 0.0
      %1586 = vmatprep.subr.mxu0 0.0
      %1587 = vmatpush2.xpose.msra.mxu0 0.0
      %1588 = vmatprep.subr.mxu0 0.0
      %1589 = vmatpush2.xpose.msra.mxu0 0.0
      %1590 = vmatprep.subr.mxu0 0.0
      %1591 = vmatpush2.xpose.msra.mxu0 0.0
      %1592 = vmatprep.subr.mxu0 0.0
      %1593 = vmatpush2.xpose.msra.mxu0 0.0
      %1594 = vmatprep.subr.mxu0 0.0
      %1595 = vmatpush2.xpose.msra.mxu0 0.0
      %1596 = vmatprep.subr.mxu0 0.0
      %1597 = vmatpush2.xpose.msra.mxu0 0.0
      %1598 = vmatprep.subr.mxu0 0.0
      %1599 = vmatpush2.xpose.msra.mxu0 0.0
      %1600 = vmatprep.subr.mxu0 0.0
      %1601 = vmatpush2.xpose.msra.mxu0 0.0
      %1602 = vmatprep.subr.mxu0 0.0
      %1603 = vmatpush2.xpose.msra.mxu0 0.0
      %1604 = vmatprep.subr.mxu0 0.0
      %1605 = vmatpush2.xpose.msra.mxu0 0.0
      %1606 = vmatprep.subr.mxu0 0.0
      %1607 = vmatpush2.xpose.msra.mxu0 0.0
      %1608 = vmatprep.subr.mxu0 0.0
      %1609 = vmatpush2.xpose.msra.mxu0 0.0
      %1610 = vmatprep.subr.mxu0 0.0
      %1611 = vmatpush2.xpose.msra.mxu0 0.0
      %1612 = vmatprep.subr.mxu0 0.0
      %1613 = vmatpush2.xpose.msra.mxu0 0.0
      %1614 = vmatprep.subr.mxu0 0.0
      %1615 = vmatpush2.xpose.msra.mxu0 0.0
      %1616 = vmatprep.mubr.f32.mxu0 0.0
      %1617 = vmatmul.mubr.f32.gmra.mxu0 %v1541
      %v1618 = vpop.f32.mrf.mxu0
      %v1619 = vadd.f32 %v792, %v1618
      %v1620 = vpop.f32.mrf.mxu0
      %1621 = vmatprep.mubr.f32.mxu0 0.0
      %1622 = vmatmul.mubr.f32.gmra.mxu0 %v1544
      %v1623 = vpop.f32.mrf.mxu0
      %v1624 = vadd.f32 %v793, %v1623
      %v1625 = vpop.f32.mrf.mxu0
      %1626 = vdwg.mxu0
      %v1627 = vsel %vm1095, %v1619, -inf
      %1628 = vmax.xlane.f32.xlu0 %v1627
      %v1629 = vpop.xlane.xlu0 %1628
      %v1630 = vsel %vm1095, %v1624, -inf
      %1631 = vmax.xlane.f32.xlu0 %v1630
      %v1632 = vpop.xlane.xlu0 %1631
      %v1633 = vsub.f32 %v1619, %v1629
      %v1634 = vsub.f32 %v1624, %v1632
      %v1635 = vmul.f32 %v1633, 1.442695
      %v1636 = vpow.pop %v1635
      %v1637 = vmul.f32 %v1634, 1.442695
      %v1638 = vpow.pop %v1637
      %v1639 = vsel %vm1095, %v1636, 0.0
      %1640 = vadd.xlane.f32.xlu0 %v1639
      %v1641 = vpop.xlane.xlu0 %1640
      %v1642 = vsel %vm1095, %v1638, 0.0
      %1643 = vadd.xlane.f32.xlu0 %v1642
      %v1644 = vpop.xlane.xlu0 %1643
      %v1645 = vrcp.pop %v1641
      %v1646 = vrcp.pop %v1644
      %v1647 = vmul.f32 %v1636, %v1645
      %v1648 = vmul.f32 %v1638, %v1646
      %v1650 = vsel %vm1095, %v1647, 0
      %v1653 = vsel %vm1095, %v1648, 0
      %1655 = vmatprep.subr.mxu0 0.0
      %1656 = vmatpush1.msra.mxu0 0.0
      %1657 = vmatprep.subr.mxu0 0.0
      %1658 = vmatpush1.msra.mxu0 0.0
      %1659 = vmatprep.subr.mxu0 0.0
      %1660 = vmatpush1.msra.mxu0 0.0
      %1661 = vmatprep.subr.mxu0 0.0
      %1662 = vmatpush1.msra.mxu0 0.0
      %1663 = vmatprep.subr.mxu0 0.0
      %1664 = vmatpush1.msra.mxu0 0.0
      %1665 = vmatprep.subr.mxu0 0.0
      %1666 = vmatpush1.msra.mxu0 0.0
      %1667 = vmatprep.subr.mxu0 0.0
      %1668 = vmatpush1.msra.mxu0 0.0
      %1669 = vmatprep.subr.mxu0 0.0
      %1670 = vmatpush1.msra.mxu0 0.0
      %1671 = vmatprep.subr.mxu0 0.0
      %1672 = vmatpush1.msra.mxu0 0.0
      %1673 = vmatprep.subr.mxu0 0.0
      %1674 = vmatpush1.msra.mxu0 0.0
      %1675 = vmatprep.subr.mxu0 0.0
      %1676 = vmatpush1.msra.mxu0 0.0
      %1677 = vmatprep.subr.mxu0 0.0
      %1678 = vmatpush1.msra.mxu0 0.0
      %1679 = vmatprep.subr.mxu0 0.0
      %1680 = vmatpush1.msra.mxu0 0.0
      %1681 = vmatprep.subr.mxu0 0.0
      %1682 = vmatpush1.msra.mxu0 0.0
      %1683 = vmatprep.subr.mxu0 0.0
      %1684 = vmatpush1.msra.mxu0 %v1537
      %1685 = vmatprep.subr.mxu0 0.0
      %1686 = vmatpush1.msra.mxu0 %v1532
      %1687 = vmatprep.subr.mxu0 0.0
      %1688 = vmatpush2.msra.mxu0 0.0
      %1689 = vmatprep.subr.mxu0 0.0
      %1690 = vmatpush2.msra.mxu0 0.0
      %1691 = vmatprep.subr.mxu0 0.0
      %1692 = vmatpush2.msra.mxu0 0.0
      %1693 = vmatprep.subr.mxu0 0.0
      %1694 = vmatpush2.msra.mxu0 0.0
      %1695 = vmatprep.subr.mxu0 0.0
      %1696 = vmatpush2.msra.mxu0 0.0
      %1697 = vmatprep.subr.mxu0 0.0
      %1698 = vmatpush2.msra.mxu0 0.0
      %1699 = vmatprep.subr.mxu0 0.0
      %1700 = vmatpush2.msra.mxu0 0.0
      %1701 = vmatprep.subr.mxu0 0.0
      %1702 = vmatpush2.msra.mxu0 0.0
      %1703 = vmatprep.subr.mxu0 0.0
      %1704 = vmatpush2.msra.mxu0 0.0
      %1705 = vmatprep.subr.mxu0 0.0
      %1706 = vmatpush2.msra.mxu0 0.0
      %1707 = vmatprep.subr.mxu0 0.0
      %1708 = vmatpush2.msra.mxu0 0.0
      %1709 = vmatprep.subr.mxu0 0.0
      %1710 = vmatpush2.msra.mxu0 0.0
      %1711 = vmatprep.subr.mxu0 0.0
      %1712 = vmatpush2.msra.mxu0 0.0
      %1713 = vmatprep.subr.mxu0 0.0
      %1714 = vmatpush2.msra.mxu0 0.0
      %1715 = vmatprep.subr.mxu0 0.0
      %1716 = vmatpush2.msra.mxu0 0.0
      %1717 = vmatprep.subr.mxu0 0.0
      %1718 = vmatpush2.msra.mxu0 0.0
      %1719 = vmatprep.mubr.f32.mxu0 0.0
      %1720 = vmatmul.mubr.f32.gmra.mxu0 %v1650
      %v1721 = vpop.f32.mrf.mxu0
      %v1722 = vadd.f32 0.0, %v1721
      %v1723 = vpop.f32.mrf.mxu0
      %1724 = vmatprep.mubr.f32.mxu0 0.0
      %1725 = vmatmul.mubr.f32.gmra.mxu0 %v1653
      %v1726 = vpop.f32.mrf.mxu0
      %v1727 = vadd.f32 0.0, %v1726
      %v1728 = vpop.f32.mrf.mxu0
      %1729 = vdwg.mxu0
      %1732 = vrot.lane.b32.xlu0 %v1722, 16
      %v1733 = vpop.permute.xlu0 %1732
      %1734 = vrot.lane.b32.xlu0 %v1727, 16
      %v1735 = vpop.permute.xlu0 %1734
      %vm1738 = vcmask 261248
      %1739 = vst.msk [vmem:[#allocation2] sm:$0xff] %vm1738, %v1733
      %1740 = vst.msk [vmem:[#allocation2 + $0x8] sm:$0xff] %vm1738, %v1735
      %s1741 = scalar_lea.vmem %s4, 128
      %v1742 = vld [vmem:[%s1741] sm:$0xff]
      %v1743 = vld [vmem:[%s1741 + $0x8] sm:$0xff]
      %v1744 = vld [vmem:[%s1741 + $0x10] sm:$0xff]
      %v1745 = vld [vmem:[%s1741 + $0x18] sm:$0xff]
      %v1746 = vld [vmem:[%s1741 + $0x20] sm:$0xff]
      %v1747 = vld [vmem:[%s1741 + $0x28] sm:$0xff]
      %v1748 = vld [vmem:[%s1741 + $0x30] sm:$0xff]
      %v1749 = vld [vmem:[%s1741 + $0x38] sm:$0xff]
      %1750 = vmatprep.subr.mxu0 0.0
      %1751 = vmatpush1.msra.mxu0 0.0
      %1752 = vmatprep.subr.mxu0 0.0
      %1753 = vmatpush1.msra.mxu0 0.0
      %1754 = vmatprep.subr.mxu0 0.0
      %1755 = vmatpush1.msra.mxu0 0.0
      %1756 = vmatprep.subr.mxu0 0.0
      %1757 = vmatpush1.msra.mxu0 0.0
      %1758 = vmatprep.subr.mxu0 0.0
      %1759 = vmatpush1.msra.mxu0 0.0
      %1760 = vmatprep.subr.mxu0 0.0
      %1761 = vmatpush1.msra.mxu0 0.0
      %1762 = vmatprep.subr.mxu0 0.0
      %1763 = vmatpush1.msra.mxu0 0.0
      %1764 = vmatprep.subr.mxu0 0.0
      %1765 = vmatpush1.msra.mxu0 0.0
      %1766 = vmatprep.subr.mxu0 0.0
      %1767 = vmatpush1.msra.mxu0 %v1749
      %1768 = vmatprep.subr.mxu0 0.0
      %1769 = vmatpush1.msra.mxu0 %v1748
      %1770 = vmatprep.subr.mxu0 0.0
      %1771 = vmatpush1.msra.mxu0 %v1747
      %1772 = vmatprep.subr.mxu0 0.0
      %1773 = vmatpush1.msra.mxu0 %v1746
      %1774 = vmatprep.subr.mxu0 0.0
      %1775 = vmatpush1.msra.mxu0 %v1745
      %1776 = vmatprep.subr.mxu0 0.0
      %1777 = vmatpush1.msra.mxu0 %v1744
      %1778 = vmatprep.subr.mxu0 0.0
      %1779 = vmatpush1.msra.mxu0 %v1743
      %1780 = vmatprep.subr.mxu0 0.0
      %1781 = vmatpush1.msra.mxu0 %v1742
      %1782 = vmatprep.subr.mxu0 0.0
      %1783 = vmatpush2.msra.mxu0 0.0
      %1784 = vmatprep.subr.mxu0 0.0
      %1785 = vmatpush2.msra.mxu0 0.0
      %1786 = vmatprep.subr.mxu0 0.0
      %1787 = vmatpush2.msra.mxu0 0.0
      %1788 = vmatprep.subr.mxu0 0.0
      %1789 = vmatpush2.msra.mxu0 0.0
      %1790 = vmatprep.subr.mxu0 0.0
      %1791 = vmatpush2.msra.mxu0 0.0
      %1792 = vmatprep.subr.mxu0 0.0
      %1793 = vmatpush2.msra.mxu0 0.0
      %1794 = vmatprep.subr.mxu0 0.0
      %1795 = vmatpush2.msra.mxu0 0.0
      %1796 = vmatprep.subr.mxu0 0.0
      %1797 = vmatpush2.msra.mxu0 0.0
      %1798 = vmatprep.subr.mxu0 0.0
      %1799 = vmatpush2.msra.mxu0 0.0
      %1800 = vmatprep.subr.mxu0 0.0
      %1801 = vmatpush2.msra.mxu0 0.0
      %1802 = vmatprep.subr.mxu0 0.0
      %1803 = vmatpush2.msra.mxu0 0.0
      %1804 = vmatprep.subr.mxu0 0.0
      %1805 = vmatpush2.msra.mxu0 0.0
      %1806 = vmatprep.subr.mxu0 0.0
      %1807 = vmatpush2.msra.mxu0 0.0
      %1808 = vmatprep.subr.mxu0 0.0
      %1809 = vmatpush2.msra.mxu0 0.0
      %1810 = vmatprep.subr.mxu0 0.0
      %1811 = vmatpush2.msra.mxu0 0.0
      %1812 = vmatprep.subr.mxu0 0.0
      %1813 = vmatpush2.msra.mxu0 0.0
      %1814 = vmatprep.mubr.f32.mxu0 0.0
      %1815 = vmatmul.mubr.f32.gmra.mxu0 %v849
      %v1816 = vpop.f32.mrf.mxu0
      %v1817 = vadd.f32 0.0, %v1816
      %v1818 = vpop.f32.mrf.mxu0
      %1819 = vmatprep.mubr.f32.mxu0 0.0
      %1820 = vmatmul.mubr.f32.gmra.mxu0 %v852
      %v1821 = vpop.f32.mrf.mxu0
      %v1822 = vadd.f32 0.0, %v1821
      %v1823 = vpop.f32.mrf.mxu0
      %1824 = vdwg.mxu0
      %s1825 = scalar_lea.vmem %s5, 128
      %v1826 = vld [vmem:[%s1825] sm:$0xff]
      %v1827 = vld [vmem:[%s1825 + $0x8] sm:$0xff]
      %v1828 = vld [vmem:[%s1825 + $0x10] sm:$0xff]
      %v1829 = vld [vmem:[%s1825 + $0x18] sm:$0xff]
      %v1830 = vld [vmem:[%s1825 + $0x20] sm:$0xff]
      %v1831 = vld [vmem:[%s1825 + $0x28] sm:$0xff]
      %v1832 = vld [vmem:[%s1825 + $0x30] sm:$0xff]
      %v1833 = vld [vmem:[%s1825 + $0x38] sm:$0xff]
      %1834 = vmatprep.subr.mxu0 0.0
      %1835 = vmatpush1.msra.mxu0 0.0
      %1836 = vmatprep.subr.mxu0 0.0
      %1837 = vmatpush1.msra.mxu0 0.0
      %1838 = vmatprep.subr.mxu0 0.0
      %1839 = vmatpush1.msra.mxu0 0.0
      %1840 = vmatprep.subr.mxu0 0.0
      %1841 = vmatpush1.msra.mxu0 0.0
      %1842 = vmatprep.subr.mxu0 0.0
      %1843 = vmatpush1.msra.mxu0 0.0
      %1844 = vmatprep.subr.mxu0 0.0
      %1845 = vmatpush1.msra.mxu0 0.0
      %1846 = vmatprep.subr.mxu0 0.0
      %1847 = vmatpush1.msra.mxu0 0.0
      %1848 = vmatprep.subr.mxu0 0.0
      %1849 = vmatpush1.msra.mxu0 0.0
      %1850 = vmatprep.subr.mxu0 0.0
      %1851 = vmatpush1.msra.mxu0 %v1833
      %1852 = vmatprep.subr.mxu0 0.0
      %1853 = vmatpush1.msra.mxu0 %v1832
      %1854 = vmatprep.subr.mxu0 0.0
      %1855 = vmatpush1.msra.mxu0 %v1831
      %1856 = vmatprep.subr.mxu0 0.0
      %1857 = vmatpush1.msra.mxu0 %v1830
      %1858 = vmatprep.subr.mxu0 0.0
      %1859 = vmatpush1.msra.mxu0 %v1829
      %1860 = vmatprep.subr.mxu0 0.0
      %1861 = vmatpush1.msra.mxu0 %v1828
      %1862 = vmatprep.subr.mxu0 0.0
      %1863 = vmatpush1.msra.mxu0 %v1827
      %1864 = vmatprep.subr.mxu0 0.0
      %1865 = vmatpush1.msra.mxu0 %v1826
      %1866 = vmatprep.subr.mxu0 0.0
      %1867 = vmatpush2.msra.mxu0 0.0
      %1868 = vmatprep.subr.mxu0 0.0
      %1869 = vmatpush2.msra.mxu0 0.0
      %1870 = vmatprep.subr.mxu0 0.0
      %1871 = vmatpush2.msra.mxu0 0.0
      %1872 = vmatprep.subr.mxu0 0.0
      %1873 = vmatpush2.msra.mxu0 0.0
      %1874 = vmatprep.subr.mxu0 0.0
      %1875 = vmatpush2.msra.mxu0 0.0
      %1876 = vmatprep.subr.mxu0 0.0
      %1877 = vmatpush2.msra.mxu0 0.0
      %1878 = vmatprep.subr.mxu0 0.0
      %1879 = vmatpush2.msra.mxu0 0.0
      %1880 = vmatprep.subr.mxu0 0.0
      %1881 = vmatpush2.msra.mxu0 0.0
      %1882 = vmatprep.subr.mxu0 0.0
      %1883 = vmatpush2.msra.mxu0 0.0
      %1884 = vmatprep.subr.mxu0 0.0
      %1885 = vmatpush2.msra.mxu0 0.0
      %1886 = vmatprep.subr.mxu0 0.0
      %1887 = vmatpush2.msra.mxu0 0.0
      %1888 = vmatprep.subr.mxu0 0.0
      %1889 = vmatpush2.msra.mxu0 0.0
      %1890 = vmatprep.subr.mxu0 0.0
      %1891 = vmatpush2.msra.mxu0 0.0
      %1892 = vmatprep.subr.mxu0 0.0
      %1893 = vmatpush2.msra.mxu0 0.0
      %1894 = vmatprep.subr.mxu0 0.0
      %1895 = vmatpush2.msra.mxu0 0.0
      %1896 = vmatprep.subr.mxu0 0.0
      %1897 = vmatpush2.msra.mxu0 0.0
      %1898 = vmatprep.mubr.f32.mxu0 0.0
      %1899 = vmatmul.mubr.f32.gmra.mxu0 %v849
      %v1900 = vpop.f32.mrf.mxu0
      %v1901 = vadd.f32 0.0, %v1900
      %v1902 = vpop.f32.mrf.mxu0
      %1903 = vmatprep.mubr.f32.mxu0 0.0
      %1904 = vmatmul.mubr.f32.gmra.mxu0 %v852
      %v1905 = vpop.f32.mrf.mxu0
      %v1906 = vadd.f32 0.0, %v1905
      %v1907 = vpop.f32.mrf.mxu0
      %1908 = vdwg.mxu0
      %s1909 = scalar_lea.vmem %s6, 128
      %v1910 = vld [vmem:[%s1909] sm:$0xff]
      %v1911 = vld [vmem:[%s1909 + $0x8] sm:$0xff]
      %v1912 = vld [vmem:[%s1909 + $0x10] sm:$0xff]
      %v1913 = vld [vmem:[%s1909 + $0x18] sm:$0xff]
      %v1914 = vld [vmem:[%s1909 + $0x20] sm:$0xff]
      %v1915 = vld [vmem:[%s1909 + $0x28] sm:$0xff]
      %v1916 = vld [vmem:[%s1909 + $0x30] sm:$0xff]
      %v1917 = vld [vmem:[%s1909 + $0x38] sm:$0xff]
      %1918 = vmatprep.subr.mxu0 0.0
      %1919 = vmatpush1.msra.mxu0 0.0
      %1920 = vmatprep.subr.mxu0 0.0
      %1921 = vmatpush1.msra.mxu0 0.0
      %1922 = vmatprep.subr.mxu0 0.0
      %1923 = vmatpush1.msra.mxu0 0.0
      %1924 = vmatprep.subr.mxu0 0.0
      %1925 = vmatpush1.msra.mxu0 0.0
      %1926 = vmatprep.subr.mxu0 0.0
      %1927 = vmatpush1.msra.mxu0 0.0
      %1928 = vmatprep.subr.mxu0 0.0
      %1929 = vmatpush1.msra.mxu0 0.0
      %1930 = vmatprep.subr.mxu0 0.0
      %1931 = vmatpush1.msra.mxu0 0.0
      %1932 = vmatprep.subr.mxu0 0.0
      %1933 = vmatpush1.msra.mxu0 0.0
      %1934 = vmatprep.subr.mxu0 0.0
      %1935 = vmatpush1.msra.mxu0 %v1917
      %1936 = vmatprep.subr.mxu0 0.0
      %1937 = vmatpush1.msra.mxu0 %v1916
      %1938 = vmatprep.subr.mxu0 0.0
      %1939 = vmatpush1.msra.mxu0 %v1915
      %1940 = vmatprep.subr.mxu0 0.0
      %1941 = vmatpush1.msra.mxu0 %v1914
      %1942 = vmatprep.subr.mxu0 0.0
      %1943 = vmatpush1.msra.mxu0 %v1913
      %1944 = vmatprep.subr.mxu0 0.0
      %1945 = vmatpush1.msra.mxu0 %v1912
      %1946 = vmatprep.subr.mxu0 0.0
      %1947 = vmatpush1.msra.mxu0 %v1911
      %1948 = vmatprep.subr.mxu0 0.0
      %1949 = vmatpush1.msra.mxu0 %v1910
      %1950 = vmatprep.subr.mxu0 0.0
      %1951 = vmatpush2.msra.mxu0 0.0
      %1952 = vmatprep.subr.mxu0 0.0
      %1953 = vmatpush2.msra.mxu0 0.0
      %1954 = vmatprep.subr.mxu0 0.0
      %1955 = vmatpush2.msra.mxu0 0.0
      %1956 = vmatprep.subr.mxu0 0.0
      %1957 = vmatpush2.msra.mxu0 0.0
      %1958 = vmatprep.subr.mxu0 0.0
      %1959 = vmatpush2.msra.mxu0 0.0
      %1960 = vmatprep.subr.mxu0 0.0
      %1961 = vmatpush2.msra.mxu0 0.0
      %1962 = vmatprep.subr.mxu0 0.0
      %1963 = vmatpush2.msra.mxu0 0.0
      %1964 = vmatprep.subr.mxu0 0.0
      %1965 = vmatpush2.msra.mxu0 0.0
      %1966 = vmatprep.subr.mxu0 0.0
      %1967 = vmatpush2.msra.mxu0 0.0
      %1968 = vmatprep.subr.mxu0 0.0
      %1969 = vmatpush2.msra.mxu0 0.0
      %1970 = vmatprep.subr.mxu0 0.0
      %1971 = vmatpush2.msra.mxu0 0.0
      %1972 = vmatprep.subr.mxu0 0.0
      %1973 = vmatpush2.msra.mxu0 0.0
      %1974 = vmatprep.subr.mxu0 0.0
      %1975 = vmatpush2.msra.mxu0 0.0
      %1976 = vmatprep.subr.mxu0 0.0
      %1977 = vmatpush2.msra.mxu0 0.0
      %1978 = vmatprep.subr.mxu0 0.0
      %1979 = vmatpush2.msra.mxu0 0.0
      %1980 = vmatprep.subr.mxu0 0.0
      %1981 = vmatpush2.msra.mxu0 0.0
      %1982 = vmatprep.mubr.f32.mxu0 0.0
      %1983 = vmatmul.mubr.f32.gmra.mxu0 %v849
      %v1984 = vpop.f32.mrf.mxu0
      %v1985 = vadd.f32 0.0, %v1984
      %v1986 = vpop.f32.mrf.mxu0
      %1987 = vmatprep.mubr.f32.mxu0 0.0
      %1988 = vmatmul.mubr.f32.gmra.mxu0 %v852
      %v1989 = vpop.f32.mrf.mxu0
      %v1990 = vadd.f32 0.0, %v1989
      %v1991 = vpop.f32.mrf.mxu0
      %1992 = vdwg.mxu0
      %v1994 = vsel %vm1095, %v1817, 0
      %v1997 = vsel %vm1095, %v1822, 0
      %v2000 = vsel %vm1095, %v1901, 0
      %v2003 = vsel %vm1095, %v1906, 0
      %2005 = vmatprep.subr.mxu0 0.0
      %2006 = vmatpush1.xpose.msra.mxu0 0.0
      %2007 = vmatprep.subr.mxu0 0.0
      %2008 = vmatpush1.xpose.msra.mxu0 0.0
      %2009 = vmatprep.subr.mxu0 0.0
      %2010 = vmatpush1.xpose.msra.mxu0 0.0
      %2011 = vmatprep.subr.mxu0 0.0
      %2012 = vmatpush1.xpose.msra.mxu0 0.0
      %2013 = vmatprep.subr.mxu0 0.0
      %2014 = vmatpush1.xpose.msra.mxu0 0.0
      %2015 = vmatprep.subr.mxu0 0.0
      %2016 = vmatpush1.xpose.msra.mxu0 0.0
      %2017 = vmatprep.subr.mxu0 0.0
      %2018 = vmatpush1.xpose.msra.mxu0 0.0
      %2019 = vmatprep.subr.mxu0 0.0
      %2020 = vmatpush1.xpose.msra.mxu0 0.0
      %2021 = vmatprep.subr.mxu0 0.0
      %2022 = vmatpush1.xpose.msra.mxu0 0.0
      %2023 = vmatprep.subr.mxu0 0.0
      %2024 = vmatpush1.xpose.msra.mxu0 0.0
      %2025 = vmatprep.subr.mxu0 0.0
      %2026 = vmatpush1.xpose.msra.mxu0 0.0
      %2027 = vmatprep.subr.mxu0 0.0
      %2028 = vmatpush1.xpose.msra.mxu0 0.0
      %2029 = vmatprep.subr.mxu0 0.0
      %2030 = vmatpush1.xpose.msra.mxu0 0.0
      %2031 = vmatprep.subr.mxu0 0.0
      %2032 = vmatpush1.xpose.msra.mxu0 0.0
      %2033 = vmatprep.subr.mxu0 0.0
      %2034 = vmatpush1.xpose.msra.mxu0 %v2003
      %2035 = vmatprep.subr.mxu0 0.0
      %2036 = vmatpush1.xpose.msra.mxu0 %v2000
      %2037 = vmatprep.subr.mxu0 0.0
      %2038 = vmatpush2.xpose.msra.mxu0 0.0
      %2039 = vmatprep.subr.mxu0 0.0
      %2040 = vmatpush2.xpose.msra.mxu0 0.0
      %2041 = vmatprep.subr.mxu0 0.0
      %2042 = vmatpush2.xpose.msra.mxu0 0.0
      %2043 = vmatprep.subr.mxu0 0.0
      %2044 = vmatpush2.xpose.msra.mxu0 0.0
      %2045 = vmatprep.subr.mxu0 0.0
      %2046 = vmatpush2.xpose.msra.mxu0 0.0
      %2047 = vmatprep.subr.mxu0 0.0
      %2048 = vmatpush2.xpose.msra.mxu0 0.0
      %2049 = vmatprep.subr.mxu0 0.0
      %2050 = vmatpush2.xpose.msra.mxu0 0.0
      %2051 = vmatprep.subr.mxu0 0.0
      %2052 = vmatpush2.xpose.msra.mxu0 0.0
      %2053 = vmatprep.subr.mxu0 0.0
      %2054 = vmatpush2.xpose.msra.mxu0 0.0
      %2055 = vmatprep.subr.mxu0 0.0
      %2056 = vmatpush2.xpose.msra.mxu0 0.0
      %2057 = vmatprep.subr.mxu0 0.0
      %2058 = vmatpush2.xpose.msra.mxu0 0.0
      %2059 = vmatprep.subr.mxu0 0.0
      %2060 = vmatpush2.xpose.msra.mxu0 0.0
      %2061 = vmatprep.subr.mxu0 0.0
      %2062 = vmatpush2.xpose.msra.mxu0 0.0
      %2063 = vmatprep.subr.mxu0 0.0
      %2064 = vmatpush2.xpose.msra.mxu0 0.0
      %2065 = vmatprep.subr.mxu0 0.0
      %2066 = vmatpush2.xpose.msra.mxu0 0.0
      %2067 = vmatprep.subr.mxu0 0.0
      %2068 = vmatpush2.xpose.msra.mxu0 0.0
      %2069 = vmatprep.mubr.f32.mxu0 0.0
      %2070 = vmatmul.mubr.f32.gmra.mxu0 %v1994
      %v2071 = vpop.f32.mrf.mxu0
      %v2072 = vadd.f32 %v792, %v2071
      %v2073 = vpop.f32.mrf.mxu0
      %2074 = vmatprep.mubr.f32.mxu0 0.0
      %2075 = vmatmul.mubr.f32.gmra.mxu0 %v1997
      %v2076 = vpop.f32.mrf.mxu0
      %v2077 = vadd.f32 %v793, %v2076
      %v2078 = vpop.f32.mrf.mxu0
      %2079 = vdwg.mxu0
      %v2080 = vsel %vm1095, %v2072, -inf
      %2081 = vmax.xlane.f32.xlu0 %v2080
      %v2082 = vpop.xlane.xlu0 %2081
      %v2083 = vsel %vm1095, %v2077, -inf
      %2084 = vmax.xlane.f32.xlu0 %v2083
      %v2085 = vpop.xlane.xlu0 %2084
      %v2086 = vsub.f32 %v2072, %v2082
      %v2087 = vsub.f32 %v2077, %v2085
      %v2088 = vmul.f32 %v2086, 1.442695
      %v2089 = vpow.pop %v2088
      %v2090 = vmul.f32 %v2087, 1.442695
      %v2091 = vpow.pop %v2090
      %v2092 = vsel %vm1095, %v2089, 0.0
      %2093 = vadd.xlane.f32.xlu0 %v2092
      %v2094 = vpop.xlane.xlu0 %2093
      %v2095 = vsel %vm1095, %v2091, 0.0
      %2096 = vadd.xlane.f32.xlu0 %v2095
      %v2097 = vpop.xlane.xlu0 %2096
      %v2098 = vrcp.pop %v2094
      %v2099 = vrcp.pop %v2097
      %v2100 = vmul.f32 %v2089, %v2098
      %v2101 = vmul.f32 %v2091, %v2099
      %v2103 = vsel %vm1095, %v2100, 0
      %v2106 = vsel %vm1095, %v2101, 0
      %2108 = vmatprep.subr.mxu0 0.0
      %2109 = vmatpush1.msra.mxu0 0.0
      %2110 = vmatprep.subr.mxu0 0.0
      %2111 = vmatpush1.msra.mxu0 0.0
      %2112 = vmatprep.subr.mxu0 0.0
      %2113 = vmatpush1.msra.mxu0 0.0
      %2114 = vmatprep.subr.mxu0 0.0
      %2115 = vmatpush1.msra.mxu0 0.0
      %2116 = vmatprep.subr.mxu0 0.0
      %2117 = vmatpush1.msra.mxu0 0.0
      %2118 = vmatprep.subr.mxu0 0.0
      %2119 = vmatpush1.msra.mxu0 0.0
      %2120 = vmatprep.subr.mxu0 0.0
      %2121 = vmatpush1.msra.mxu0 0.0
      %2122 = vmatprep.subr.mxu0 0.0
      %2123 = vmatpush1.msra.mxu0 0.0
      %2124 = vmatprep.subr.mxu0 0.0
      %2125 = vmatpush1.msra.mxu0 0.0
      %2126 = vmatprep.subr.mxu0 0.0
      %2127 = vmatpush1.msra.mxu0 0.0
      %2128 = vmatprep.subr.mxu0 0.0
      %2129 = vmatpush1.msra.mxu0 0.0
      %2130 = vmatprep.subr.mxu0 0.0
      %2131 = vmatpush1.msra.mxu0 0.0
      %2132 = vmatprep.subr.mxu0 0.0
      %2133 = vmatpush1.msra.mxu0 0.0
      %2134 = vmatprep.subr.mxu0 0.0
      %2135 = vmatpush1.msra.mxu0 0.0
      %2136 = vmatprep.subr.mxu0 0.0
      %2137 = vmatpush1.msra.mxu0 %v1990
      %2138 = vmatprep.subr.mxu0 0.0
      %2139 = vmatpush1.msra.mxu0 %v1985
      %2140 = vmatprep.subr.mxu0 0.0
      %2141 = vmatpush2.msra.mxu0 0.0
      %2142 = vmatprep.subr.mxu0 0.0
      %2143 = vmatpush2.msra.mxu0 0.0
      %2144 = vmatprep.subr.mxu0 0.0
      %2145 = vmatpush2.msra.mxu0 0.0
      %2146 = vmatprep.subr.mxu0 0.0
      %2147 = vmatpush2.msra.mxu0 0.0
      %2148 = vmatprep.subr.mxu0 0.0
      %2149 = vmatpush2.msra.mxu0 0.0
      %2150 = vmatprep.subr.mxu0 0.0
      %2151 = vmatpush2.msra.mxu0 0.0
      %2152 = vmatprep.subr.mxu0 0.0
      %2153 = vmatpush2.msra.mxu0 0.0
      %2154 = vmatprep.subr.mxu0 0.0
      %2155 = vmatpush2.msra.mxu0 0.0
      %2156 = vmatprep.subr.mxu0 0.0
      %2157 = vmatpush2.msra.mxu0 0.0
      %2158 = vmatprep.subr.mxu0 0.0
      %2159 = vmatpush2.msra.mxu0 0.0
      %2160 = vmatprep.subr.mxu0 0.0
      %2161 = vmatpush2.msra.mxu0 0.0
      %2162 = vmatprep.subr.mxu0 0.0
      %2163 = vmatpush2.msra.mxu0 0.0
      %2164 = vmatprep.subr.mxu0 0.0
      %2165 = vmatpush2.msra.mxu0 0.0
      %2166 = vmatprep.subr.mxu0 0.0
      %2167 = vmatpush2.msra.mxu0 0.0
      %2168 = vmatprep.subr.mxu0 0.0
      %2169 = vmatpush2.msra.mxu0 0.0
      %2170 = vmatprep.subr.mxu0 0.0
      %2171 = vmatpush2.msra.mxu0 0.0
      %2172 = vmatprep.mubr.f32.mxu0 0.0
      %2173 = vmatmul.mubr.f32.gmra.mxu0 %v2103
      %v2174 = vpop.f32.mrf.mxu0
      %v2175 = vadd.f32 0.0, %v2174
      %v2176 = vpop.f32.mrf.mxu0
      %2177 = vmatprep.mubr.f32.mxu0 0.0
      %2178 = vmatmul.mubr.f32.gmra.mxu0 %v2106
      %v2179 = vpop.f32.mrf.mxu0
      %v2180 = vadd.f32 0.0, %v2179
      %v2181 = vpop.f32.mrf.mxu0
      %2182 = vdwg.mxu0
      %2185 = vrot.lane.b32.xlu0 %v2175, 32
      %v2186 = vpop.permute.xlu0 %2185
      %2187 = vrot.lane.b32.xlu0 %v2180, 32
      %v2188 = vpop.permute.xlu0 %2187
      %vm2191 = vcmask 392448
      %2192 = vst.msk [vmem:[#allocation2] sm:$0xff] %vm2191, %v2186
      %2193 = vst.msk [vmem:[#allocation2 + $0x8] sm:$0xff] %vm2191, %v2188
      %s2194 = scalar_lea.vmem %s4, 192
      %v2195 = vld [vmem:[%s2194] sm:$0xff]
      %v2196 = vld [vmem:[%s2194 + $0x8] sm:$0xff]
      %v2197 = vld [vmem:[%s2194 + $0x10] sm:$0xff]
      %v2198 = vld [vmem:[%s2194 + $0x18] sm:$0xff]
      %v2199 = vld [vmem:[%s2194 + $0x20] sm:$0xff]
      %v2200 = vld [vmem:[%s2194 + $0x28] sm:$0xff]
      %v2201 = vld [vmem:[%s2194 + $0x30] sm:$0xff]
      %v2202 = vld [vmem:[%s2194 + $0x38] sm:$0xff]
      %2203 = vmatprep.subr.mxu0 0.0
      %2204 = vmatpush1.msra.mxu0 0.0
      %2205 = vmatprep.subr.mxu0 0.0
      %2206 = vmatpush1.msra.mxu0 0.0
      %2207 = vmatprep.subr.mxu0 0.0
      %2208 = vmatpush1.msra.mxu0 0.0
      %2209 = vmatprep.subr.mxu0 0.0
      %2210 = vmatpush1.msra.mxu0 0.0
      %2211 = vmatprep.subr.mxu0 0.0
      %2212 = vmatpush1.msra.mxu0 0.0
      %2213 = vmatprep.subr.mxu0 0.0
      %2214 = vmatpush1.msra.mxu0 0.0
      %2215 = vmatprep.subr.mxu0 0.0
      %2216 = vmatpush1.msra.mxu0 0.0
      %2217 = vmatprep.subr.mxu0 0.0
      %2218 = vmatpush1.msra.mxu0 0.0
      %2219 = vmatprep.subr.mxu0 0.0
      %2220 = vmatpush1.msra.mxu0 %v2202
      %2221 = vmatprep.subr.mxu0 0.0
      %2222 = vmatpush1.msra.mxu0 %v2201
      %2223 = vmatprep.subr.mxu0 0.0
      %2224 = vmatpush1.msra.mxu0 %v2200
      %2225 = vmatprep.subr.mxu0 0.0
      %2226 = vmatpush1.msra.mxu0 %v2199
      %2227 = vmatprep.subr.mxu0 0.0
      %2228 = vmatpush1.msra.mxu0 %v2198
      %2229 = vmatprep.subr.mxu0 0.0
      %2230 = vmatpush1.msra.mxu0 %v2197
      %2231 = vmatprep.subr.mxu0 0.0
      %2232 = vmatpush1.msra.mxu0 %v2196
      %2233 = vmatprep.subr.mxu0 0.0
      %2234 = vmatpush1.msra.mxu0 %v2195
      %2235 = vmatprep.subr.mxu0 0.0
      %2236 = vmatpush2.msra.mxu0 0.0
      %2237 = vmatprep.subr.mxu0 0.0
      %2238 = vmatpush2.msra.mxu0 0.0
      %2239 = vmatprep.subr.mxu0 0.0
      %2240 = vmatpush2.msra.mxu0 0.0
      %2241 = vmatprep.subr.mxu0 0.0
      %2242 = vmatpush2.msra.mxu0 0.0
      %2243 = vmatprep.subr.mxu0 0.0
      %2244 = vmatpush2.msra.mxu0 0.0
      %2245 = vmatprep.subr.mxu0 0.0
      %2246 = vmatpush2.msra.mxu0 0.0
      %2247 = vmatprep.subr.mxu0 0.0
      %2248 = vmatpush2.msra.mxu0 0.0
      %2249 = vmatprep.subr.mxu0 0.0
      %2250 = vmatpush2.msra.mxu0 0.0
      %2251 = vmatprep.subr.mxu0 0.0
      %2252 = vmatpush2.msra.mxu0 0.0
      %2253 = vmatprep.subr.mxu0 0.0
      %2254 = vmatpush2.msra.mxu0 0.0
      %2255 = vmatprep.subr.mxu0 0.0
      %2256 = vmatpush2.msra.mxu0 0.0
      %2257 = vmatprep.subr.mxu0 0.0
      %2258 = vmatpush2.msra.mxu0 0.0
      %2259 = vmatprep.subr.mxu0 0.0
      %2260 = vmatpush2.msra.mxu0 0.0
      %2261 = vmatprep.subr.mxu0 0.0
      %2262 = vmatpush2.msra.mxu0 0.0
      %2263 = vmatprep.subr.mxu0 0.0
      %2264 = vmatpush2.msra.mxu0 0.0
      %2265 = vmatprep.subr.mxu0 0.0
      %2266 = vmatpush2.msra.mxu0 0.0
      %2267 = vmatprep.mubr.f32.mxu0 0.0
      %2268 = vmatmul.mubr.f32.gmra.mxu0 %v849
      %v2269 = vpop.f32.mrf.mxu0
      %v2270 = vadd.f32 0.0, %v2269
      %v2271 = vpop.f32.mrf.mxu0
      %2272 = vmatprep.mubr.f32.mxu0 0.0
      %2273 = vmatmul.mubr.f32.gmra.mxu0 %v852
      %v2274 = vpop.f32.mrf.mxu0
      %v2275 = vadd.f32 0.0, %v2274
      %v2276 = vpop.f32.mrf.mxu0
      %2277 = vdwg.mxu0
      %s2278 = scalar_lea.vmem %s5, 192
      %v2279 = vld [vmem:[%s2278] sm:$0xff]
      %v2280 = vld [vmem:[%s2278 + $0x8] sm:$0xff]
      %v2281 = vld [vmem:[%s2278 + $0x10] sm:$0xff]
      %v2282 = vld [vmem:[%s2278 + $0x18] sm:$0xff]
      %v2283 = vld [vmem:[%s2278 + $0x20] sm:$0xff]
      %v2284 = vld [vmem:[%s2278 + $0x28] sm:$0xff]
      %v2285 = vld [vmem:[%s2278 + $0x30] sm:$0xff]
      %v2286 = vld [vmem:[%s2278 + $0x38] sm:$0xff]
      %2287 = vmatprep.subr.mxu0 0.0
      %2288 = vmatpush1.msra.mxu0 0.0
      %2289 = vmatprep.subr.mxu0 0.0
      %2290 = vmatpush1.msra.mxu0 0.0
      %2291 = vmatprep.subr.mxu0 0.0
      %2292 = vmatpush1.msra.mxu0 0.0
      %2293 = vmatprep.subr.mxu0 0.0
      %2294 = vmatpush1.msra.mxu0 0.0
      %2295 = vmatprep.subr.mxu0 0.0
      %2296 = vmatpush1.msra.mxu0 0.0
      %2297 = vmatprep.subr.mxu0 0.0
      %2298 = vmatpush1.msra.mxu0 0.0
      %2299 = vmatprep.subr.mxu0 0.0
      %2300 = vmatpush1.msra.mxu0 0.0
      %2301 = vmatprep.subr.mxu0 0.0
      %2302 = vmatpush1.msra.mxu0 0.0
      %2303 = vmatprep.subr.mxu0 0.0
      %2304 = vmatpush1.msra.mxu0 %v2286
      %2305 = vmatprep.subr.mxu0 0.0
      %2306 = vmatpush1.msra.mxu0 %v2285
      %2307 = vmatprep.subr.mxu0 0.0
      %2308 = vmatpush1.msra.mxu0 %v2284
      %2309 = vmatprep.subr.mxu0 0.0
      %2310 = vmatpush1.msra.mxu0 %v2283
      %2311 = vmatprep.subr.mxu0 0.0
      %2312 = vmatpush1.msra.mxu0 %v2282
      %2313 = vmatprep.subr.mxu0 0.0
      %2314 = vmatpush1.msra.mxu0 %v2281
      %2315 = vmatprep.subr.mxu0 0.0
      %2316 = vmatpush1.msra.mxu0 %v2280
      %2317 = vmatprep.subr.mxu0 0.0
      %2318 = vmatpush1.msra.mxu0 %v2279
      %2319 = vmatprep.subr.mxu0 0.0
      %2320 = vmatpush2.msra.mxu0 0.0
      %2321 = vmatprep.subr.mxu0 0.0
      %2322 = vmatpush2.msra.mxu0 0.0
      %2323 = vmatprep.subr.mxu0 0.0
      %2324 = vmatpush2.msra.mxu0 0.0
      %2325 = vmatprep.subr.mxu0 0.0
      %2326 = vmatpush2.msra.mxu0 0.0
      %2327 = vmatprep.subr.mxu0 0.0
      %2328 = vmatpush2.msra.mxu0 0.0
      %2329 = vmatprep.subr.mxu0 0.0
      %2330 = vmatpush2.msra.mxu0 0.0
      %2331 = vmatprep.subr.mxu0 0.0
      %2332 = vmatpush2.msra.mxu0 0.0
      %2333 = vmatprep.subr.mxu0 0.0
      %2334 = vmatpush2.msra.mxu0 0.0
      %2335 = vmatprep.subr.mxu0 0.0
      %2336 = vmatpush2.msra.mxu0 0.0
      %2337 = vmatprep.subr.mxu0 0.0
      %2338 = vmatpush2.msra.mxu0 0.0
      %2339 = vmatprep.subr.mxu0 0.0
      %2340 = vmatpush2.msra.mxu0 0.0
      %2341 = vmatprep.subr.mxu0 0.0
      %2342 = vmatpush2.msra.mxu0 0.0
      %2343 = vmatprep.subr.mxu0 0.0
      %2344 = vmatpush2.msra.mxu0 0.0
      %2345 = vmatprep.subr.mxu0 0.0
      %2346 = vmatpush2.msra.mxu0 0.0
      %2347 = vmatprep.subr.mxu0 0.0
      %2348 = vmatpush2.msra.mxu0 0.0
      %2349 = vmatprep.subr.mxu0 0.0
      %2350 = vmatpush2.msra.mxu0 0.0
      %2351 = vmatprep.mubr.f32.mxu0 0.0
      %2352 = vmatmul.mubr.f32.gmra.mxu0 %v849
      %v2353 = vpop.f32.mrf.mxu0
      %v2354 = vadd.f32 0.0, %v2353
      %v2355 = vpop.f32.mrf.mxu0
      %2356 = vmatprep.mubr.f32.mxu0 0.0
      %2357 = vmatmul.mubr.f32.gmra.mxu0 %v852
      %v2358 = vpop.f32.mrf.mxu0
      %v2359 = vadd.f32 0.0, %v2358
      %v2360 = vpop.f32.mrf.mxu0
      %2361 = vdwg.mxu0
      %s2362 = scalar_lea.vmem %s6, 192
      %v2363 = vld [vmem:[%s2362] sm:$0xff]
      %v2364 = vld [vmem:[%s2362 + $0x8] sm:$0xff]
      %v2365 = vld [vmem:[%s2362 + $0x10] sm:$0xff]
      %v2366 = vld [vmem:[%s2362 + $0x18] sm:$0xff]
      %v2367 = vld [vmem:[%s2362 + $0x20] sm:$0xff]
      %v2368 = vld [vmem:[%s2362 + $0x28] sm:$0xff]
      %v2369 = vld [vmem:[%s2362 + $0x30] sm:$0xff]
      %v2370 = vld [vmem:[%s2362 + $0x38] sm:$0xff]
      %2371 = vmatprep.subr.mxu0 0.0
      %2372 = vmatpush1.msra.mxu0 0.0
      %2373 = vmatprep.subr.mxu0 0.0
      %2374 = vmatpush1.msra.mxu0 0.0
      %2375 = vmatprep.subr.mxu0 0.0
      %2376 = vmatpush1.msra.mxu0 0.0
      %2377 = vmatprep.subr.mxu0 0.0
      %2378 = vmatpush1.msra.mxu0 0.0
      %2379 = vmatprep.subr.mxu0 0.0
      %2380 = vmatpush1.msra.mxu0 0.0
      %2381 = vmatprep.subr.mxu0 0.0
      %2382 = vmatpush1.msra.mxu0 0.0
      %2383 = vmatprep.subr.mxu0 0.0
      %2384 = vmatpush1.msra.mxu0 0.0
      %2385 = vmatprep.subr.mxu0 0.0
      %2386 = vmatpush1.msra.mxu0 0.0
      %2387 = vmatprep.subr.mxu0 0.0
      %2388 = vmatpush1.msra.mxu0 %v2370
      %2389 = vmatprep.subr.mxu0 0.0
      %2390 = vmatpush1.msra.mxu0 %v2369
      %2391 = vmatprep.subr.mxu0 0.0
      %2392 = vmatpush1.msra.mxu0 %v2368
      %2393 = vmatprep.subr.mxu0 0.0
      %2394 = vmatpush1.msra.mxu0 %v2367
      %2395 = vmatprep.subr.mxu0 0.0
      %2396 = vmatpush1.msra.mxu0 %v2366
      %2397 = vmatprep.subr.mxu0 0.0
      %2398 = vmatpush1.msra.mxu0 %v2365
      %2399 = vmatprep.subr.mxu0 0.0
      %2400 = vmatpush1.msra.mxu0 %v2364
      %2401 = vmatprep.subr.mxu0 0.0
      %2402 = vmatpush1.msra.mxu0 %v2363
      %2403 = vmatprep.subr.mxu0 0.0
      %2404 = vmatpush2.msra.mxu0 0.0
      %2405 = vmatprep.subr.mxu0 0.0
      %2406 = vmatpush2.msra.mxu0 0.0
      %2407 = vmatprep.subr.mxu0 0.0
      %2408 = vmatpush2.msra.mxu0 0.0
      %2409 = vmatprep.subr.mxu0 0.0
      %2410 = vmatpush2.msra.mxu0 0.0
      %2411 = vmatprep.subr.mxu0 0.0
      %2412 = vmatpush2.msra.mxu0 0.0
      %2413 = vmatprep.subr.mxu0 0.0
      %2414 = vmatpush2.msra.mxu0 0.0
      %2415 = vmatprep.subr.mxu0 0.0
      %2416 = vmatpush2.msra.mxu0 0.0
      %2417 = vmatprep.subr.mxu0 0.0
      %2418 = vmatpush2.msra.mxu0 0.0
      %2419 = vmatprep.subr.mxu0 0.0
      %2420 = vmatpush2.msra.mxu0 0.0
      %2421 = vmatprep.subr.mxu0 0.0
      %2422 = vmatpush2.msra.mxu0 0.0
      %2423 = vmatprep.subr.mxu0 0.0
      %2424 = vmatpush2.msra.mxu0 0.0
      %2425 = vmatprep.subr.mxu0 0.0
      %2426 = vmatpush2.msra.mxu0 0.0
      %2427 = vmatprep.subr.mxu0 0.0
      %2428 = vmatpush2.msra.mxu0 0.0
      %2429 = vmatprep.subr.mxu0 0.0
      %2430 = vmatpush2.msra.mxu0 0.0
      %2431 = vmatprep.subr.mxu0 0.0
      %2432 = vmatpush2.msra.mxu0 0.0
      %2433 = vmatprep.subr.mxu0 0.0
      %2434 = vmatpush2.msra.mxu0 0.0
      %2435 = vmatprep.mubr.f32.mxu0 0.0
      %2436 = vmatmul.mubr.f32.gmra.mxu0 %v849
      %v2437 = vpop.f32.mrf.mxu0
      %v2438 = vadd.f32 0.0, %v2437
      %v2439 = vpop.f32.mrf.mxu0
      %2440 = vmatprep.mubr.f32.mxu0 0.0
      %2441 = vmatmul.mubr.f32.gmra.mxu0 %v852
      %v2442 = vpop.f32.mrf.mxu0
      %v2443 = vadd.f32 0.0, %v2442
      %v2444 = vpop.f32.mrf.mxu0
      %2445 = vdwg.mxu0
      %v2447 = vsel %vm1095, %v2270, 0
      %v2450 = vsel %vm1095, %v2275, 0
      %v2453 = vsel %vm1095, %v2354, 0
      %v2456 = vsel %vm1095, %v2359, 0
      %2458 = vmatprep.subr.mxu0 0.0
      %2459 = vmatpush1.xpose.msra.mxu0 0.0
      %2460 = vmatprep.subr.mxu0 0.0
      %2461 = vmatpush1.xpose.msra.mxu0 0.0
      %2462 = vmatprep.subr.mxu0 0.0
      %2463 = vmatpush1.xpose.msra.mxu0 0.0
      %2464 = vmatprep.subr.mxu0 0.0
      %2465 = vmatpush1.xpose.msra.mxu0 0.0
      %2466 = vmatprep.subr.mxu0 0.0
      %2467 = vmatpush1.xpose.msra.mxu0 0.0
      %2468 = vmatprep.subr.mxu0 0.0
      %2469 = vmatpush1.xpose.msra.mxu0 0.0
      %2470 = vmatprep.subr.mxu0 0.0
      %2471 = vmatpush1.xpose.msra.mxu0 0.0
      %2472 = vmatprep.subr.mxu0 0.0
      %2473 = vmatpush1.xpose.msra.mxu0 0.0
      %2474 = vmatprep.subr.mxu0 0.0
      %2475 = vmatpush1.xpose.msra.mxu0 0.0
      %2476 = vmatprep.subr.mxu0 0.0
      %2477 = vmatpush1.xpose.msra.mxu0 0.0
      %2478 = vmatprep.subr.mxu0 0.0
      %2479 = vmatpush1.xpose.msra.mxu0 0.0
      %2480 = vmatprep.subr.mxu0 0.0
      %2481 = vmatpush1.xpose.msra.mxu0 0.0
      %2482 = vmatprep.subr.mxu0 0.0
      %2483 = vmatpush1.xpose.msra.mxu0 0.0
      %2484 = vmatprep.subr.mxu0 0.0
      %2485 = vmatpush1.xpose.msra.mxu0 0.0
      %2486 = vmatprep.subr.mxu0 0.0
      %2487 = vmatpush1.xpose.msra.mxu0 %v2456
      %2488 = vmatprep.subr.mxu0 0.0
      %2489 = vmatpush1.xpose.msra.mxu0 %v2453
      %2490 = vmatprep.subr.mxu0 0.0
      %2491 = vmatpush2.xpose.msra.mxu0 0.0
      %2492 = vmatprep.subr.mxu0 0.0
      %2493 = vmatpush2.xpose.msra.mxu0 0.0
      %2494 = vmatprep.subr.mxu0 0.0
      %2495 = vmatpush2.xpose.msra.mxu0 0.0
      %2496 = vmatprep.subr.mxu0 0.0
      %2497 = vmatpush2.xpose.msra.mxu0 0.0
      %2498 = vmatprep.subr.mxu0 0.0
      %2499 = vmatpush2.xpose.msra.mxu0 0.0
      %2500 = vmatprep.subr.mxu0 0.0
      %2501 = vmatpush2.xpose.msra.mxu0 0.0
      %2502 = vmatprep.subr.mxu0 0.0
      %2503 = vmatpush2.xpose.msra.mxu0 0.0
      %2504 = vmatprep.subr.mxu0 0.0
      %2505 = vmatpush2.xpose.msra.mxu0 0.0
      %2506 = vmatprep.subr.mxu0 0.0
      %2507 = vmatpush2.xpose.msra.mxu0 0.0
      %2508 = vmatprep.subr.mxu0 0.0
      %2509 = vmatpush2.xpose.msra.mxu0 0.0
      %2510 = vmatprep.subr.mxu0 0.0
      %2511 = vmatpush2.xpose.msra.mxu0 0.0
      %2512 = vmatprep.subr.mxu0 0.0
      %2513 = vmatpush2.xpose.msra.mxu0 0.0
      %2514 = vmatprep.subr.mxu0 0.0
      %2515 = vmatpush2.xpose.msra.mxu0 0.0
      %2516 = vmatprep.subr.mxu0 0.0
      %2517 = vmatpush2.xpose.msra.mxu0 0.0
      %2518 = vmatprep.subr.mxu0 0.0
      %2519 = vmatpush2.xpose.msra.mxu0 0.0
      %2520 = vmatprep.subr.mxu0 0.0
      %2521 = vmatpush2.xpose.msra.mxu0 0.0
      %2522 = vmatprep.mubr.f32.mxu0 0.0
      %2523 = vmatmul.mubr.f32.gmra.mxu0 %v2447
      %v2524 = vpop.f32.mrf.mxu0
      %v2525 = vadd.f32 %v792, %v2524
      %v2526 = vpop.f32.mrf.mxu0
      %2527 = vmatprep.mubr.f32.mxu0 0.0
      %2528 = vmatmul.mubr.f32.gmra.mxu0 %v2450
      %v2529 = vpop.f32.mrf.mxu0
      %v2530 = vadd.f32 %v793, %v2529
      %v2531 = vpop.f32.mrf.mxu0
      %2532 = vdwg.mxu0
      %v2533 = vsel %vm1095, %v2525, -inf
      %2534 = vmax.xlane.f32.xlu0 %v2533
      %v2535 = vpop.xlane.xlu0 %2534
      %v2536 = vsel %vm1095, %v2530, -inf
      %2537 = vmax.xlane.f32.xlu0 %v2536
      %v2538 = vpop.xlane.xlu0 %2537
      %v2539 = vsub.f32 %v2525, %v2535
      %v2540 = vsub.f32 %v2530, %v2538
      %v2541 = vmul.f32 %v2539, 1.442695
      %v2542 = vpow.pop %v2541
      %v2543 = vmul.f32 %v2540, 1.442695
      %v2544 = vpow.pop %v2543
      %v2545 = vsel %vm1095, %v2542, 0.0
      %2546 = vadd.xlane.f32.xlu0 %v2545
      %v2547 = vpop.xlane.xlu0 %2546
      %v2548 = vsel %vm1095, %v2544, 0.0
      %2549 = vadd.xlane.f32.xlu0 %v2548
      %v2550 = vpop.xlane.xlu0 %2549
      %v2551 = vrcp.pop %v2547
      %v2552 = vrcp.pop %v2550
      %v2553 = vmul.f32 %v2542, %v2551
      %v2554 = vmul.f32 %v2544, %v2552
      %v2556 = vsel %vm1095, %v2553, 0
      %v2559 = vsel %vm1095, %v2554, 0
      %2561 = vmatprep.subr.mxu0 0.0
      %2562 = vmatpush1.msra.mxu0 0.0
      %2563 = vmatprep.subr.mxu0 0.0
      %2564 = vmatpush1.msra.mxu0 0.0
      %2565 = vmatprep.subr.mxu0 0.0
      %2566 = vmatpush1.msra.mxu0 0.0
      %2567 = vmatprep.subr.mxu0 0.0
      %2568 = vmatpush1.msra.mxu0 0.0
      %2569 = vmatprep.subr.mxu0 0.0
      %2570 = vmatpush1.msra.mxu0 0.0
      %2571 = vmatprep.subr.mxu0 0.0
      %2572 = vmatpush1.msra.mxu0 0.0
      %2573 = vmatprep.subr.mxu0 0.0
      %2574 = vmatpush1.msra.mxu0 0.0
      %2575 = vmatprep.subr.mxu0 0.0
      %2576 = vmatpush1.msra.mxu0 0.0
      %2577 = vmatprep.subr.mxu0 0.0
      %2578 = vmatpush1.msra.mxu0 0.0
      %2579 = vmatprep.subr.mxu0 0.0
      %2580 = vmatpush1.msra.mxu0 0.0
      %2581 = vmatprep.subr.mxu0 0.0
      %2582 = vmatpush1.msra.mxu0 0.0
      %2583 = vmatprep.subr.mxu0 0.0
      %2584 = vmatpush1.msra.mxu0 0.0
      %2585 = vmatprep.subr.mxu0 0.0
      %2586 = vmatpush1.msra.mxu0 0.0
      %2587 = vmatprep.subr.mxu0 0.0
      %2588 = vmatpush1.msra.mxu0 0.0
      %2589 = vmatprep.subr.mxu0 0.0
      %2590 = vmatpush1.msra.mxu0 %v2443
      %2591 = vmatprep.subr.mxu0 0.0
      %2592 = vmatpush1.msra.mxu0 %v2438
      %2593 = vmatprep.subr.mxu0 0.0
      %2594 = vmatpush2.msra.mxu0 0.0
      %2595 = vmatprep.subr.mxu0 0.0
      %2596 = vmatpush2.msra.mxu0 0.0
      %2597 = vmatprep.subr.mxu0 0.0
      %2598 = vmatpush2.msra.mxu0 0.0
      %2599 = vmatprep.subr.mxu0 0.0
      %2600 = vmatpush2.msra.mxu0 0.0
      %2601 = vmatprep.subr.mxu0 0.0
      %2602 = vmatpush2.msra.mxu0 0.0
      %2603 = vmatprep.subr.mxu0 0.0
      %2604 = vmatpush2.msra.mxu0 0.0
      %2605 = vmatprep.subr.mxu0 0.0
      %2606 = vmatpush2.msra.mxu0 0.0
      %2607 = vmatprep.subr.mxu0 0.0
      %2608 = vmatpush2.msra.mxu0 0.0
      %2609 = vmatprep.subr.mxu0 0.0
      %2610 = vmatpush2.msra.mxu0 0.0
      %2611 = vmatprep.subr.mxu0 0.0
      %2612 = vmatpush2.msra.mxu0 0.0
      %2613 = vmatprep.subr.mxu0 0.0
      %2614 = vmatpush2.msra.mxu0 0.0
      %2615 = vmatprep.subr.mxu0 0.0
      %2616 = vmatpush2.msra.mxu0 0.0
      %2617 = vmatprep.subr.mxu0 0.0
      %2618 = vmatpush2.msra.mxu0 0.0
      %2619 = vmatprep.subr.mxu0 0.0
      %2620 = vmatpush2.msra.mxu0 0.0
      %2621 = vmatprep.subr.mxu0 0.0
      %2622 = vmatpush2.msra.mxu0 0.0
      %2623 = vmatprep.subr.mxu0 0.0
      %2624 = vmatpush2.msra.mxu0 0.0
      %2625 = vmatprep.mubr.f32.mxu0 0.0
      %2626 = vmatmul.mubr.f32.gmra.mxu0 %v2556
      %v2627 = vpop.f32.mrf.mxu0
      %v2628 = vadd.f32 0.0, %v2627
      %v2629 = vpop.f32.mrf.mxu0
      %2630 = vmatprep.mubr.f32.mxu0 0.0
      %2631 = vmatmul.mubr.f32.gmra.mxu0 %v2559
      %v2632 = vpop.f32.mrf.mxu0
      %v2633 = vadd.f32 0.0, %v2632
      %v2634 = vpop.f32.mrf.mxu0
      %2635 = vdwg.mxu0
      %2638 = vrot.lane.b32.xlu0 %v2628, 48
      %v2639 = vpop.permute.xlu0 %2638
      %2640 = vrot.lane.b32.xlu0 %v2633, 48
      %v2641 = vpop.permute.xlu0 %2640
      %vm2644 = vcmask 523648
      %2645 = vst.msk [vmem:[#allocation2] sm:$0xff] %vm2644, %v2639
      %2646 = vst.msk [vmem:[#allocation2 + $0x8] sm:$0xff] %vm2644, %v2641
      %v2647 = vld [vmem:[#allocation2] sm:$0xff]
      %v2648 = vld [vmem:[#allocation2 + $0x8] sm:$0xff]
      %v2649 = vld [vmem:[%s9] sm:$0xff]
      %v2650 = vld [vmem:[%s9 + $0x8] sm:$0xff]
      %v2651 = vld [vmem:[%s9 + $0x10] sm:$0xff]
      %v2652 = vld [vmem:[%s9 + $0x18] sm:$0xff]
      %v2653 = vld [vmem:[%s9 + $0x20] sm:$0xff]
      %v2654 = vld [vmem:[%s9 + $0x28] sm:$0xff]
      %v2655 = vld [vmem:[%s9 + $0x30] sm:$0xff]
      %v2656 = vld [vmem:[%s9 + $0x38] sm:$0xff]
      %v2657 = vld [vmem:[%s10] sm:$0x1]
      %v2659 = vlaneseq
      %v2660 = vshrl.u32 %v2659, 7
      %v2661 = vsub.s32 0, %v2660
      %v2662 = vrot.slane %v2657, %v2661
      %v2665 = vsel %vm796, %v2647, 0
      %v2668 = vsel %vm796, %v2648, 0
      %2670 = vmatprep.subr.mxu0 0.0
      %2671 = vmatpush1.msra.mxu0 0.0
      %2672 = vmatprep.subr.mxu0 0.0
      %2673 = vmatpush1.msra.mxu0 0.0
      %2674 = vmatprep.subr.mxu0 0.0
      %2675 = vmatpush1.msra.mxu0 0.0
      %2676 = vmatprep.subr.mxu0 0.0
      %2677 = vmatpush1.msra.mxu0 0.0
      %2678 = vmatprep.subr.mxu0 0.0
      %2679 = vmatpush1.msra.mxu0 0.0
      %2680 = vmatprep.subr.mxu0 0.0
      %2681 = vmatpush1.msra.mxu0 0.0
      %2682 = vmatprep.subr.mxu0 0.0
      %2683 = vmatpush1.msra.mxu0 0.0
      %2684 = vmatprep.subr.mxu0 0.0
      %2685 = vmatpush1.msra.mxu0 0.0
      %2686 = vmatprep.subr.mxu0 0.0
      %2687 = vmatpush1.msra.mxu0 %v2656
      %2688 = vmatprep.subr.mxu0 0.0
      %2689 = vmatpush1.msra.mxu0 %v2655
      %2690 = vmatprep.subr.mxu0 0.0
      %2691 = vmatpush1.msra.mxu0 %v2654
      %2692 = vmatprep.subr.mxu0 0.0
      %2693 = vmatpush1.msra.mxu0 %v2653
      %2694 = vmatprep.subr.mxu0 0.0
      %2695 = vmatpush1.msra.mxu0 %v2652
      %2696 = vmatprep.subr.mxu0 0.0
      %2697 = vmatpush1.msra.mxu0 %v2651
      %2698 = vmatprep.subr.mxu0 0.0
      %2699 = vmatpush1.msra.mxu0 %v2650
      %2700 = vmatprep.subr.mxu0 0.0
      %2701 = vmatpush1.msra.mxu0 %v2649
      %2702 = vmatprep.subr.mxu0 0.0
      %2703 = vmatpush2.msra.mxu0 0.0
      %2704 = vmatprep.subr.mxu0 0.0
      %2705 = vmatpush2.msra.mxu0 0.0
      %2706 = vmatprep.subr.mxu0 0.0
      %2707 = vmatpush2.msra.mxu0 0.0
      %2708 = vmatprep.subr.mxu0 0.0
      %2709 = vmatpush2.msra.mxu0 0.0
      %2710 = vmatprep.subr.mxu0 0.0
      %2711 = vmatpush2.msra.mxu0 0.0
      %2712 = vmatprep.subr.mxu0 0.0
      %2713 = vmatpush2.msra.mxu0 0.0
      %2714 = vmatprep.subr.mxu0 0.0
      %2715 = vmatpush2.msra.mxu0 0.0
      %2716 = vmatprep.subr.mxu0 0.0
      %2717 = vmatpush2.msra.mxu0 0.0
      %2718 = vmatprep.subr.mxu0 0.0
      %2719 = vmatpush2.msra.mxu0 0.0
      %2720 = vmatprep.subr.mxu0 0.0
      %2721 = vmatpush2.msra.mxu0 0.0
      %2722 = vmatprep.subr.mxu0 0.0
      %2723 = vmatpush2.msra.mxu0 0.0
      %2724 = vmatprep.subr.mxu0 0.0
      %2725 = vmatpush2.msra.mxu0 0.0
      %2726 = vmatprep.subr.mxu0 0.0
      %2727 = vmatpush2.msra.mxu0 0.0
      %2728 = vmatprep.subr.mxu0 0.0
      %2729 = vmatpush2.msra.mxu0 0.0
      %2730 = vmatprep.subr.mxu0 0.0
      %2731 = vmatpush2.msra.mxu0 0.0
      %2732 = vmatprep.subr.mxu0 0.0
      %2733 = vmatpush2.msra.mxu0 0.0
      %2734 = vmatprep.mubr.f32.mxu0 0.0
      %2735 = vmatmul.mubr.f32.gmra.mxu0 %v2665
      %v2736 = vpop.f32.mrf.mxu0
      %v2737 = vadd.f32 %v2662, %v2736
      %v2738 = vpop.f32.mrf.mxu0
      %2739 = vmatprep.mubr.f32.mxu0 0.0
      %2740 = vmatmul.mubr.f32.gmra.mxu0 %v2668
      %v2741 = vpop.f32.mrf.mxu0
      %v2742 = vadd.f32 %v2662, %v2741
      %v2743 = vpop.f32.mrf.mxu0
      %2744 = vdwg.mxu0
      %v2745 = vadd.f32 %v790, %v2737
      %v2746 = vadd.f32 %v791, %v2742
      %v2747 = vld [vmem:[%s11] sm:$0x1]
      %v2748 = vld [vmem:[%s12] sm:$0x1]
      %v2749 = vsel %vm796, %v2745, 0.0
      %2750 = vadd.xlane.f32.xlu0 %v2749
      %v2751 = vpop.xlane.xlu0 %2750
      %v2752 = vsel %vm796, %v2746, 0.0
      %2753 = vadd.xlane.f32.xlu0 %v2752
      %v2754 = vpop.xlane.xlu0 %2753
      %v2755 = vmul.f32 %v2751, %v803
      %v2756 = vmul.f32 %v2754, %v803
      %v2757 = vsub.f32 %v2745, %v2755
      %v2758 = vsub.f32 %v2746, %v2756
      %v2759 = vmul.f32 %v2757, %v2757
      %v2760 = vmul.f32 %v2758, %v2758
      %v2761 = vsel %vm796, %v2759, 0.0
      %2762 = vadd.xlane.f32.xlu0 %v2761
      %v2763 = vpop.xlane.xlu0 %2762
      %v2764 = vsel %vm796, %v2760, 0.0
      %2765 = vadd.xlane.f32.xlu0 %v2764
      %v2766 = vpop.xlane.xlu0 %2765
      %v2767 = vmul.f32 %v2763, %v803
      %v2768 = vmul.f32 %v2766, %v803
      %v2769 = vadd.f32 %v2767, 1e-05
      %v2770 = vadd.f32 %v2768, 1e-05
      %v2771 = vrsqrt.pop %v2769
      %v2772 = vrsqrt.pop %v2770
      %v2773 = vmul.f32 %v2757, %v2771
      %v2774 = vmul.f32 %v2758, %v2772
      %v2776 = vlaneseq
      %v2777 = vshrl.u32 %v2776, 7
      %v2778 = vsub.s32 0, %v2777
      %v2779 = vrot.slane %v2747, %v2778
      %v2781 = vmul.f32 %v2773, %v2779
      %v2782 = vmul.f32 %v2774, %v2779
      %v2784 = vlaneseq
      %v2785 = vshrl.u32 %v2784, 7
      %v2786 = vsub.s32 0, %v2785
      %v2787 = vrot.slane %v2748, %v2786
      %v2789 = vadd.f32 %v2781, %v2787
      %v2790 = vadd.f32 %v2782, %v2787
      %v2791 = vld [vmem:[%s13] sm:$0xff]
      %v2792 = vld [vmem:[%s13 + $0x8] sm:$0xff]
      %v2793 = vld [vmem:[%s13 + $0x10] sm:$0xff]
      %v2794 = vld [vmem:[%s13 + $0x18] sm:$0xff]
      %v2795 = vld [vmem:[%s13 + $0x20] sm:$0xff]
      %v2796 = vld [vmem:[%s13 + $0x28] sm:$0xff]
      %v2797 = vld [vmem:[%s13 + $0x30] sm:$0xff]
      %v2798 = vld [vmem:[%s13 + $0x38] sm:$0xff]
      %v2799 = vld [vmem:[%s14] sm:$0x1]
      %v2801 = vlaneseq
      %v2802 = vshrl.u32 %v2801, 7
      %v2803 = vsub.s32 0, %v2802
      %v2804 = vrot.slane %v2799, %v2803
      %v2807 = vsel %vm796, %v2789, 0
      %v2810 = vsel %vm796, %v2790, 0
      %2812 = vmatprep.subr.mxu0 0.0
      %2813 = vmatpush1.msra.mxu0 0.0
      %2814 = vmatprep.subr.mxu0 0.0
      %2815 = vmatpush1.msra.mxu0 0.0
      %2816 = vmatprep.subr.mxu0 0.0
      %2817 = vmatpush1.msra.mxu0 0.0
      %2818 = vmatprep.subr.mxu0 0.0
      %2819 = vmatpush1.msra.mxu0 0.0
      %2820 = vmatprep.subr.mxu0 0.0
      %2821 = vmatpush1.msra.mxu0 0.0
      %2822 = vmatprep.subr.mxu0 0.0
      %2823 = vmatpush1.msra.mxu0 0.0
      %2824 = vmatprep.subr.mxu0 0.0
      %2825 = vmatpush1.msra.mxu0 0.0
      %2826 = vmatprep.subr.mxu0 0.0
      %2827 = vmatpush1.msra.mxu0 0.0
      %2828 = vmatprep.subr.mxu0 0.0
      %2829 = vmatpush1.msra.mxu0 %v2798
      %2830 = vmatprep.subr.mxu0 0.0
      %2831 = vmatpush1.msra.mxu0 %v2797
      %2832 = vmatprep.subr.mxu0 0.0
      %2833 = vmatpush1.msra.mxu0 %v2796
      %2834 = vmatprep.subr.mxu0 0.0
      %2835 = vmatpush1.msra.mxu0 %v2795
      %2836 = vmatprep.subr.mxu0 0.0
      %2837 = vmatpush1.msra.mxu0 %v2794
      %2838 = vmatprep.subr.mxu0 0.0
      %2839 = vmatpush1.msra.mxu0 %v2793
      %2840 = vmatprep.subr.mxu0 0.0
      %2841 = vmatpush1.msra.mxu0 %v2792
      %2842 = vmatprep.subr.mxu0 0.0
      %2843 = vmatpush1.msra.mxu0 %v2791
      %2844 = vmatprep.subr.mxu0 0.0
      %2845 = vmatpush2.msra.mxu0 0.0
      %2846 = vmatprep.subr.mxu0 0.0
      %2847 = vmatpush2.msra.mxu0 0.0
      %2848 = vmatprep.subr.mxu0 0.0
      %2849 = vmatpush2.msra.mxu0 0.0
      %2850 = vmatprep.subr.mxu0 0.0
      %2851 = vmatpush2.msra.mxu0 0.0
      %2852 = vmatprep.subr.mxu0 0.0
      %2853 = vmatpush2.msra.mxu0 0.0
      %2854 = vmatprep.subr.mxu0 0.0
      %2855 = vmatpush2.msra.mxu0 0.0
      %2856 = vmatprep.subr.mxu0 0.0
      %2857 = vmatpush2.msra.mxu0 0.0
      %2858 = vmatprep.subr.mxu0 0.0
      %2859 = vmatpush2.msra.mxu0 0.0
      %2860 = vmatprep.subr.mxu0 0.0
      %2861 = vmatpush2.msra.mxu0 0.0
      %2862 = vmatprep.subr.mxu0 0.0
      %2863 = vmatpush2.msra.mxu0 0.0
      %2864 = vmatprep.subr.mxu0 0.0
      %2865 = vmatpush2.msra.mxu0 0.0
      %2866 = vmatprep.subr.mxu0 0.0
      %2867 = vmatpush2.msra.mxu0 0.0
      %2868 = vmatprep.subr.mxu0 0.0
      %2869 = vmatpush2.msra.mxu0 0.0
      %2870 = vmatprep.subr.mxu0 0.0
      %2871 = vmatpush2.msra.mxu0 0.0
      %2872 = vmatprep.subr.mxu0 0.0
      %2873 = vmatpush2.msra.mxu0 0.0
      %2874 = vmatprep.subr.mxu0 0.0
      %2875 = vmatpush2.msra.mxu0 0.0
      %2876 = vmatprep.mubr.f32.mxu0 0.0
      %2877 = vmatmul.mubr.f32.gmra.mxu0 %v2807
      %v2878 = vpop.f32.mrf.mxu0
      %v2879 = vadd.f32 %v2804, %v2878
      %v2880 = vpop.f32.mrf.mxu0
      %2881 = vmatprep.mubr.f32.mxu0 0.0
      %2882 = vmatmul.mubr.f32.gmra.mxu0 %v2810
      %v2883 = vpop.f32.mrf.mxu0
      %v2884 = vadd.f32 %v2804, %v2883
      %v2885 = vpop.f32.mrf.mxu0
      %2886 = vdwg.mxu0
      %v2887 = vmul.f32 %v2879, 0.5
      %v2888 = vmul.f32 %v2884, 0.5
      %v2889 = vmul.f32 %v2879, 0.70710677
      %v2890 = vmul.f32 %v2884, 0.70710677
      %vm2891 = vcmp.ge.f32.partialorder %v2889, 0.0
      %vm2892 = vcmp.ge.f32.partialorder %v2890, 0.0
      %v2893 = vsel %vm2891, 1.0, -1.0
      %v2894 = vsel %vm2892, 1.0, -1.0
      %v2895 = vand.u32 2147483647, %v2889
      %v2896 = vand.u32 2147483647, %v2890
      %v2897 = vmul.f32 %v2895, 0.3275911
      %v2898 = vmul.f32 %v2896, 0.3275911
      %v2899 = vadd.f32 %v2897, 1.0
      %v2900 = vadd.f32 %v2898, 1.0
      %v2901 = vrcp.pop %v2899
      %v2902 = vmul.f32 1.0, %v2901
      %v2903 = vrcp.pop %v2900
      %v2904 = vmul.f32 1.0, %v2903
      %v2905 = vmul.f32 %v2902, 1.0614054
      %v2906 = vmul.f32 %v2904, 1.0614054
      %v2907 = vadd.f32 %v2905, -1.4531521
      %v2908 = vadd.f32 %v2906, -1.4531521
      %v2909 = vmul.f32 %v2907, %v2902
      %v2910 = vmul.f32 %v2908, %v2904
      %v2911 = vadd.f32 %v2909, 1.4214138
      %v2912 = vadd.f32 %v2910, 1.4214138
      %v2913 = vmul.f32 %v2911, %v2902
      %v2914 = vmul.f32 %v2912, %v2904
      %v2915 = vadd.f32 %v2913, -0.28449672
      %v2916 = vadd.f32 %v2914, -0.28449672
      %v2917 = vmul.f32 %v2915, %v2902
      %v2918 = vmul.f32 %v2916, %v2904
      %v2919 = vadd.f32 %v2917, 0.2548296
      %v2920 = vadd.f32 %v2918, 0.2548296
      %v2921 = vmul.f32 %v2919, %v2902
      %v2922 = vmul.f32 %v2920, %v2904
      %v2923 = vsub.f32 0.0, %v2895
      %v2924 = vsub.f32 0.0, %v2896
      %v2925 = vmul.f32 %v2923, %v2895
      %v2926 = vmul.f32 %v2924, %v2896
      %v2927 = vmul.f32 %v2925, 1.442695
      %v2928 = vpow.pop %v2927
      %v2929 = vmul.f32 %v2926, 1.442695
      %v2930 = vpow.pop %v2929
      %v2931 = vmul.f32 %v2921, %v2928
      %v2932 = vmul.f32 %v2922, %v2930
      %v2933 = vsub.f32 1.0, %v2931
      %v2934 = vsub.f32 1.0, %v2932
      %v2935 = vmul.f32 %v2893, %v2933
      %v2936 = vmul.f32 %v2894, %v2934
      %v2937 = vadd.f32 %v2935, 1.0
      %v2938 = vadd.f32 %v2936, 1.0
      %v2939 = vmul.f32 %v2887, %v2937
      %v2940 = vmul.f32 %v2888, %v2938
      %v2941 = vld [vmem:[%s15] sm:$0xff]
      %v2942 = vld [vmem:[%s15 + $0x8] sm:$0xff]
      %v2943 = vld [vmem:[%s15 + $0x10] sm:$0xff]
      %v2944 = vld [vmem:[%s15 + $0x18] sm:$0xff]
      %v2945 = vld [vmem:[%s15 + $0x20] sm:$0xff]
      %v2946 = vld [vmem:[%s15 + $0x28] sm:$0xff]
      %v2947 = vld [vmem:[%s15 + $0x30] sm:$0xff]
      %v2948 = vld [vmem:[%s15 + $0x38] sm:$0xff]
      %v2949 = vld [vmem:[%s15 + $0x40] sm:$0xff]
      %v2950 = vld [vmem:[%s15 + $0x48] sm:$0xff]
      %v2951 = vld [vmem:[%s15 + $0x50] sm:$0xff]
      %v2952 = vld [vmem:[%s15 + $0x58] sm:$0xff]
      %v2953 = vld [vmem:[%s15 + $0x60] sm:$0xff]
      %v2954 = vld [vmem:[%s15 + $0x68] sm:$0xff]
      %v2955 = vld [vmem:[%s15 + $0x70] sm:$0xff]
      %v2956 = vld [vmem:[%s15 + $0x78] sm:$0xff]
      %2957 = vmatprep.subr.mxu0 0.0
      %2958 = vmatpush1.msra.mxu0 %v2956
      %2959 = vmatprep.subr.mxu0 0.0
      %2960 = vmatpush1.msra.mxu0 %v2955
      %2961 = vmatprep.subr.mxu0 0.0
      %2962 = vmatpush1.msra.mxu0 %v2954
      %2963 = vmatprep.subr.mxu0 0.0
      %2964 = vmatpush1.msra.mxu0 %v2953
      %2965 = vmatprep.subr.mxu0 0.0
      %2966 = vmatpush1.msra.mxu0 %v2952
      %2967 = vmatprep.subr.mxu0 0.0
      %2968 = vmatpush1.msra.mxu0 %v2951
      %2969 = vmatprep.subr.mxu0 0.0
      %2970 = vmatpush1.msra.mxu0 %v2950
      %2971 = vmatprep.subr.mxu0 0.0
      %2972 = vmatpush1.msra.mxu0 %v2949
      %2973 = vmatprep.subr.mxu0 0.0
      %2974 = vmatpush1.msra.mxu0 %v2948
      %2975 = vmatprep.subr.mxu0 0.0
      %2976 = vmatpush1.msra.mxu0 %v2947
      %2977 = vmatprep.subr.mxu0 0.0
      %2978 = vmatpush1.msra.mxu0 %v2946
      %2979 = vmatprep.subr.mxu0 0.0
      %2980 = vmatpush1.msra.mxu0 %v2945
      %2981 = vmatprep.subr.mxu0 0.0
      %2982 = vmatpush1.msra.mxu0 %v2944
      %2983 = vmatprep.subr.mxu0 0.0
      %2984 = vmatpush1.msra.mxu0 %v2943
      %2985 = vmatprep.subr.mxu0 0.0
      %2986 = vmatpush1.msra.mxu0 %v2942
      %2987 = vmatprep.subr.mxu0 0.0
      %2988 = vmatpush1.msra.mxu0 %v2941
      %2989 = vmatprep.subr.mxu0 0.0
      %2990 = vmatpush2.msra.mxu0 0.0
      %2991 = vmatprep.subr.mxu0 0.0
      %2992 = vmatpush2.msra.mxu0 0.0
      %2993 = vmatprep.subr.mxu0 0.0
      %2994 = vmatpush2.msra.mxu0 0.0
      %2995 = vmatprep.subr.mxu0 0.0
      %2996 = vmatpush2.msra.mxu0 0.0
      %2997 = vmatprep.subr.mxu0 0.0
      %2998 = vmatpush2.msra.mxu0 0.0
      %2999 = vmatprep.subr.mxu0 0.0
      %3000 = vmatpush2.msra.mxu0 0.0
      %3001 = vmatprep.subr.mxu0 0.0
      %3002 = vmatpush2.msra.mxu0 0.0
      %3003 = vmatprep.subr.mxu0 0.0
      %3004 = vmatpush2.msra.mxu0 0.0
      %3005 = vmatprep.subr.mxu0 0.0
      %3006 = vmatpush2.msra.mxu0 0.0
      %3007 = vmatprep.subr.mxu0 0.0
      %3008 = vmatpush2.msra.mxu0 0.0
      %3009 = vmatprep.subr.mxu0 0.0
      %3010 = vmatpush2.msra.mxu0 0.0
      %3011 = vmatprep.subr.mxu0 0.0
      %3012 = vmatpush2.msra.mxu0 0.0
      %3013 = vmatprep.subr.mxu0 0.0
      %3014 = vmatpush2.msra.mxu0 0.0
      %3015 = vmatprep.subr.mxu0 0.0
      %3016 = vmatpush2.msra.mxu0 0.0
      %3017 = vmatprep.subr.mxu0 0.0
      %3018 = vmatpush2.msra.mxu0 0.0
      %3019 = vmatprep.subr.mxu0 0.0
      %3020 = vmatpush2.msra.mxu0 0.0
      %3021 = vmatprep.mubr.f32.mxu0 0.0
      %3022 = vmatmul.mubr.f32.gmra.mxu0 %v2939
      %v3023 = vpop.f32.mrf.mxu0
      %v3024 = vadd.f32 0.0, %v3023
      %v3025 = vpop.f32.mrf.mxu0
      %3026 = vmatprep.mubr.f32.mxu0 0.0
      %3027 = vmatmul.mubr.f32.gmra.mxu0 %v2940
      %v3028 = vpop.f32.mrf.mxu0
      %v3029 = vadd.f32 0.0, %v3028
      %v3030 = vpop.f32.mrf.mxu0
      %3031 = vdwg.mxu0
      %v3032 = vadd.f32 %v2745, %v3024
      %v3033 = vadd.f32 %v2746, %v3029
      %v3034 = vld [vmem:[%s16] sm:$0x1]
      %v3036 = vlaneseq
      %v3037 = vshrl.u32 %v3036, 7
      %v3038 = vsub.s32 0, %v3037
      %v3039 = vrot.slane %v3034, %v3038
      %v3041 = vadd.f32 %v3032, %v3039
      %v3042 = vadd.f32 %v3033, %v3039
      %s3043 = scalar_lea.vmem %s7, 1
      %v3044 = vld [vmem:[%s3043] sm:$0x1]
      %s3045 = scalar_lea.vmem %s8, 1
      %v3046 = vld [vmem:[%s3045] sm:$0x1]
      %v3047 = vsel %vm796, %v3041, 0.0
      %3048 = vadd.xlane.f32.xlu0 %v3047
      %v3049 = vpop.xlane.xlu0 %3048
      %v3050 = vsel %vm796, %v3042, 0.0
      %3051 = vadd.xlane.f32.xlu0 %v3050
      %v3052 = vpop.xlane.xlu0 %3051
      %v3053 = vmul.f32 %v3049, %v803
      %v3054 = vmul.f32 %v3052, %v803
      %v3055 = vsub.f32 %v3041, %v3053
      %v3056 = vsub.f32 %v3042, %v3054
      %v3057 = vmul.f32 %v3055, %v3055
      %v3058 = vmul.f32 %v3056, %v3056
      %v3059 = vsel %vm796, %v3057, 0.0
      %3060 = vadd.xlane.f32.xlu0 %v3059
      %v3061 = vpop.xlane.xlu0 %3060
      %v3062 = vsel %vm796, %v3058, 0.0
      %3063 = vadd.xlane.f32.xlu0 %v3062
      %v3064 = vpop.xlane.xlu0 %3063
      %v3065 = vmul.f32 %v3061, %v803
      %v3066 = vmul.f32 %v3064, %v803
      %v3067 = vadd.f32 %v3065, 1e-05
      %v3068 = vadd.f32 %v3066, 1e-05
      %v3069 = vrsqrt.pop %v3067
      %v3070 = vrsqrt.pop %v3068
      %v3071 = vmul.f32 %v3055, %v3069
      %v3072 = vmul.f32 %v3056, %v3070
      %v3074 = vlaneseq
      %v3075 = vshrl.u32 %v3074, 7
      %v3076 = vsub.s32 0, %v3075
      %v3077 = vrot.slane %v3044, %v3076
      %v3079 = vmul.f32 %v3071, %v3077
      %v3080 = vmul.f32 %v3072, %v3077
      %v3082 = vlaneseq
      %v3083 = vshrl.u32 %v3082, 7
      %v3084 = vsub.s32 0, %v3083
      %v3085 = vrot.slane %v3046, %v3084
      %v3087 = vadd.f32 %v3079, %v3085
      %v3088 = vadd.f32 %v3080, %v3085
      %s3089 = scalar_lea.vmem %s4, 256
      %v3090 = vld [vmem:[%s3089] sm:$0xff]
      %v3091 = vld [vmem:[%s3089 + $0x8] sm:$0xff]
      %v3092 = vld [vmem:[%s3089 + $0x10] sm:$0xff]
      %v3093 = vld [vmem:[%s3089 + $0x18] sm:$0xff]
      %v3094 = vld [vmem:[%s3089 + $0x20] sm:$0xff]
      %v3095 = vld [vmem:[%s3089 + $0x28] sm:$0xff]
      %v3096 = vld [vmem:[%s3089 + $0x30] sm:$0xff]
      %v3097 = vld [vmem:[%s3089 + $0x38] sm:$0xff]
      %v3099 = vsel %vm796, %v3087, 0
      %v3102 = vsel %vm796, %v3088, 0
      %3104 = vmatprep.subr.mxu0 0.0
      %3105 = vmatpush1.msra.mxu0 0.0
      %3106 = vmatprep.subr.mxu0 0.0
      %3107 = vmatpush1.msra.mxu0 0.0
      %3108 = vmatprep.subr.mxu0 0.0
      %3109 = vmatpush1.msra.mxu0 0.0
      %3110 = vmatprep.subr.mxu0 0.0
      %3111 = vmatpush1.msra.mxu0 0.0
      %3112 = vmatprep.subr.mxu0 0.0
      %3113 = vmatpush1.msra.mxu0 0.0
      %3114 = vmatprep.subr.mxu0 0.0
      %3115 = vmatpush1.msra.mxu0 0.0
      %3116 = vmatprep.subr.mxu0 0.0
      %3117 = vmatpush1.msra.mxu0 0.0
      %3118 = vmatprep.subr.mxu0 0.0
      %3119 = vmatpush1.msra.mxu0 0.0
      %3120 = vmatprep.subr.mxu0 0.0
      %3121 = vmatpush1.msra.mxu0 %v3097
      %3122 = vmatprep.subr.mxu0 0.0
      %3123 = vmatpush1.msra.mxu0 %v3096
      %3124 = vmatprep.subr.mxu0 0.0
      %3125 = vmatpush1.msra.mxu0 %v3095
      %3126 = vmatprep.subr.mxu0 0.0
      %3127 = vmatpush1.msra.mxu0 %v3094
      %3128 = vmatprep.subr.mxu0 0.0
      %3129 = vmatpush1.msra.mxu0 %v3093
      %3130 = vmatprep.subr.mxu0 0.0
      %3131 = vmatpush1.msra.mxu0 %v3092
      %3132 = vmatprep.subr.mxu0 0.0
      %3133 = vmatpush1.msra.mxu0 %v3091
      %3134 = vmatprep.subr.mxu0 0.0
      %3135 = vmatpush1.msra.mxu0 %v3090
      %3136 = vmatprep.subr.mxu0 0.0
      %3137 = vmatpush2.msra.mxu0 0.0
      %3138 = vmatprep.subr.mxu0 0.0
      %3139 = vmatpush2.msra.mxu0 0.0
      %3140 = vmatprep.subr.mxu0 0.0
      %3141 = vmatpush2.msra.mxu0 0.0
      %3142 = vmatprep.subr.mxu0 0.0
      %3143 = vmatpush2.msra.mxu0 0.0
      %3144 = vmatprep.subr.mxu0 0.0
      %3145 = vmatpush2.msra.mxu0 0.0
      %3146 = vmatprep.subr.mxu0 0.0
      %3147 = vmatpush2.msra.mxu0 0.0
      %3148 = vmatprep.subr.mxu0 0.0
      %3149 = vmatpush2.msra.mxu0 0.0
      %3150 = vmatprep.subr.mxu0 0.0
      %3151 = vmatpush2.msra.mxu0 0.0
      %3152 = vmatprep.subr.mxu0 0.0
      %3153 = vmatpush2.msra.mxu0 0.0
      %3154 = vmatprep.subr.mxu0 0.0
      %3155 = vmatpush2.msra.mxu0 0.0
      %3156 = vmatprep.subr.mxu0 0.0
      %3157 = vmatpush2.msra.mxu0 0.0
      %3158 = vmatprep.subr.mxu0 0.0
      %3159 = vmatpush2.msra.mxu0 0.0
      %3160 = vmatprep.subr.mxu0 0.0
      %3161 = vmatpush2.msra.mxu0 0.0
      %3162 = vmatprep.subr.mxu0 0.0
      %3163 = vmatpush2.msra.mxu0 0.0
      %3164 = vmatprep.subr.mxu0 0.0
      %3165 = vmatpush2.msra.mxu0 0.0
      %3166 = vmatprep.subr.mxu0 0.0
      %3167 = vmatpush2.msra.mxu0 0.0
      %3168 = vmatprep.mubr.f32.mxu0 0.0
      %3169 = vmatmul.mubr.f32.gmra.mxu0 %v3099
      %v3170 = vpop.f32.mrf.mxu0
      %v3171 = vadd.f32 0.0, %v3170
      %v3172 = vpop.f32.mrf.mxu0
      %3173 = vmatprep.mubr.f32.mxu0 0.0
      %3174 = vmatmul.mubr.f32.gmra.mxu0 %v3102
      %v3175 = vpop.f32.mrf.mxu0
      %v3176 = vadd.f32 0.0, %v3175
      %v3177 = vpop.f32.mrf.mxu0
      %3178 = vdwg.mxu0
      %s3179 = scalar_lea.vmem %s5, 256
      %v3180 = vld [vmem:[%s3179] sm:$0xff]
      %v3181 = vld [vmem:[%s3179 + $0x8] sm:$0xff]
      %v3182 = vld [vmem:[%s3179 + $0x10] sm:$0xff]
      %v3183 = vld [vmem:[%s3179 + $0x18] sm:$0xff]
      %v3184 = vld [vmem:[%s3179 + $0x20] sm:$0xff]
      %v3185 = vld [vmem:[%s3179 + $0x28] sm:$0xff]
      %v3186 = vld [vmem:[%s3179 + $0x30] sm:$0xff]
      %v3187 = vld [vmem:[%s3179 + $0x38] sm:$0xff]
      %3188 = vmatprep.subr.mxu0 0.0
      %3189 = vmatpush1.msra.mxu0 0.0
      %3190 = vmatprep.subr.mxu0 0.0
      %3191 = vmatpush1.msra.mxu0 0.0
      %3192 = vmatprep.subr.mxu0 0.0
      %3193 = vmatpush1.msra.mxu0 0.0
      %3194 = vmatprep.subr.mxu0 0.0
      %3195 = vmatpush1.msra.mxu0 0.0
      %3196 = vmatprep.subr.mxu0 0.0
      %3197 = vmatpush1.msra.mxu0 0.0
      %3198 = vmatprep.subr.mxu0 0.0
      %3199 = vmatpush1.msra.mxu0 0.0
      %3200 = vmatprep.subr.mxu0 0.0
      %3201 = vmatpush1.msra.mxu0 0.0
      %3202 = vmatprep.subr.mxu0 0.0
      %3203 = vmatpush1.msra.mxu0 0.0
      %3204 = vmatprep.subr.mxu0 0.0
      %3205 = vmatpush1.msra.mxu0 %v3187
      %3206 = vmatprep.subr.mxu0 0.0
      %3207 = vmatpush1.msra.mxu0 %v3186
      %3208 = vmatprep.subr.mxu0 0.0
      %3209 = vmatpush1.msra.mxu0 %v3185
      %3210 = vmatprep.subr.mxu0 0.0
      %3211 = vmatpush1.msra.mxu0 %v3184
      %3212 = vmatprep.subr.mxu0 0.0
      %3213 = vmatpush1.msra.mxu0 %v3183
      %3214 = vmatprep.subr.mxu0 0.0
      %3215 = vmatpush1.msra.mxu0 %v3182
      %3216 = vmatprep.subr.mxu0 0.0
      %3217 = vmatpush1.msra.mxu0 %v3181
      %3218 = vmatprep.subr.mxu0 0.0
      %3219 = vmatpush1.msra.mxu0 %v3180
      %3220 = vmatprep.subr.mxu0 0.0
      %3221 = vmatpush2.msra.mxu0 0.0
      %3222 = vmatprep.subr.mxu0 0.0
      %3223 = vmatpush2.msra.mxu0 0.0
      %3224 = vmatprep.subr.mxu0 0.0
      %3225 = vmatpush2.msra.mxu0 0.0
      %3226 = vmatprep.subr.mxu0 0.0
      %3227 = vmatpush2.msra.mxu0 0.0
      %3228 = vmatprep.subr.mxu0 0.0
      %3229 = vmatpush2.msra.mxu0 0.0
      %3230 = vmatprep.subr.mxu0 0.0
      %3231 = vmatpush2.msra.mxu0 0.0
      %3232 = vmatprep.subr.mxu0 0.0
      %3233 = vmatpush2.msra.mxu0 0.0
      %3234 = vmatprep.subr.mxu0 0.0
      %3235 = vmatpush2.msra.mxu0 0.0
      %3236 = vmatprep.subr.mxu0 0.0
      %3237 = vmatpush2.msra.mxu0 0.0
      %3238 = vmatprep.subr.mxu0 0.0
      %3239 = vmatpush2.msra.mxu0 0.0
      %3240 = vmatprep.subr.mxu0 0.0
      %3241 = vmatpush2.msra.mxu0 0.0
      %3242 = vmatprep.subr.mxu0 0.0
      %3243 = vmatpush2.msra.mxu0 0.0
      %3244 = vmatprep.subr.mxu0 0.0
      %3245 = vmatpush2.msra.mxu0 0.0
      %3246 = vmatprep.subr.mxu0 0.0
      %3247 = vmatpush2.msra.mxu0 0.0
      %3248 = vmatprep.subr.mxu0 0.0
      %3249 = vmatpush2.msra.mxu0 0.0
      %3250 = vmatprep.subr.mxu0 0.0
      %3251 = vmatpush2.msra.mxu0 0.0
      %3252 = vmatprep.mubr.f32.mxu0 0.0
      %3253 = vmatmul.mubr.f32.gmra.mxu0 %v3099
      %v3254 = vpop.f32.mrf.mxu0
      %v3255 = vadd.f32 0.0, %v3254
      %v3256 = vpop.f32.mrf.mxu0
      %3257 = vmatprep.mubr.f32.mxu0 0.0
      %3258 = vmatmul.mubr.f32.gmra.mxu0 %v3102
      %v3259 = vpop.f32.mrf.mxu0
      %v3260 = vadd.f32 0.0, %v3259
      %v3261 = vpop.f32.mrf.mxu0
      %3262 = vdwg.mxu0
      %s3263 = scalar_lea.vmem %s6, 256
      %v3264 = vld [vmem:[%s3263] sm:$0xff]
      %v3265 = vld [vmem:[%s3263 + $0x8] sm:$0xff]
      %v3266 = vld [vmem:[%s3263 + $0x10] sm:$0xff]
      %v3267 = vld [vmem:[%s3263 + $0x18] sm:$0xff]
      %v3268 = vld [vmem:[%s3263 + $0x20] sm:$0xff]
      %v3269 = vld [vmem:[%s3263 + $0x28] sm:$0xff]
      %v3270 = vld [vmem:[%s3263 + $0x30] sm:$0xff]
      %v3271 = vld [vmem:[%s3263 + $0x38] sm:$0xff]
      %3272 = vmatprep.subr.mxu0 0.0
      %3273 = vmatpush1.msra.mxu0 0.0
      %3274 = vmatprep.subr.mxu0 0.0
      %3275 = vmatpush1.msra.mxu0 0.0
      %3276 = vmatprep.subr.mxu0 0.0
      %3277 = vmatpush1.msra.mxu0 0.0
      %3278 = vmatprep.subr.mxu0 0.0
      %3279 = vmatpush1.msra.mxu0 0.0
      %3280 = vmatprep.subr.mxu0 0.0
      %3281 = vmatpush1.msra.mxu0 0.0
      %3282 = vmatprep.subr.mxu0 0.0
      %3283 = vmatpush1.msra.mxu0 0.0
      %3284 = vmatprep.subr.mxu0 0.0
      %3285 = vmatpush1.msra.mxu0 0.0
      %3286 = vmatprep.subr.mxu0 0.0
      %3287 = vmatpush1.msra.mxu0 0.0
      %3288 = vmatprep.subr.mxu0 0.0
      %3289 = vmatpush1.msra.mxu0 %v3271
      %3290 = vmatprep.subr.mxu0 0.0
      %3291 = vmatpush1.msra.mxu0 %v3270
      %3292 = vmatprep.subr.mxu0 0.0
      %3293 = vmatpush1.msra.mxu0 %v3269
      %3294 = vmatprep.subr.mxu0 0.0
      %3295 = vmatpush1.msra.mxu0 %v3268
      %3296 = vmatprep.subr.mxu0 0.0
      %3297 = vmatpush1.msra.mxu0 %v3267
      %3298 = vmatprep.subr.mxu0 0.0
      %3299 = vmatpush1.msra.mxu0 %v3266
      %3300 = vmatprep.subr.mxu0 0.0
      %3301 = vmatpush1.msra.mxu0 %v3265
      %3302 = vmatprep.subr.mxu0 0.0
      %3303 = vmatpush1.msra.mxu0 %v3264
      %3304 = vmatprep.subr.mxu0 0.0
      %3305 = vmatpush2.msra.mxu0 0.0
      %3306 = vmatprep.subr.mxu0 0.0
      %3307 = vmatpush2.msra.mxu0 0.0
      %3308 = vmatprep.subr.mxu0 0.0
      %3309 = vmatpush2.msra.mxu0 0.0
      %3310 = vmatprep.subr.mxu0 0.0
      %3311 = vmatpush2.msra.mxu0 0.0
      %3312 = vmatprep.subr.mxu0 0.0
      %3313 = vmatpush2.msra.mxu0 0.0
      %3314 = vmatprep.subr.mxu0 0.0
      %3315 = vmatpush2.msra.mxu0 0.0
      %3316 = vmatprep.subr.mxu0 0.0
      %3317 = vmatpush2.msra.mxu0 0.0
      %3318 = vmatprep.subr.mxu0 0.0
      %3319 = vmatpush2.msra.mxu0 0.0
      %3320 = vmatprep.subr.mxu0 0.0
      %3321 = vmatpush2.msra.mxu0 0.0
      %3322 = vmatprep.subr.mxu0 0.0
      %3323 = vmatpush2.msra.mxu0 0.0
      %3324 = vmatprep.subr.mxu0 0.0
      %3325 = vmatpush2.msra.mxu0 0.0
      %3326 = vmatprep.subr.mxu0 0.0
      %3327 = vmatpush2.msra.mxu0 0.0
      %3328 = vmatprep.subr.mxu0 0.0
      %3329 = vmatpush2.msra.mxu0 0.0
      %3330 = vmatprep.subr.mxu0 0.0
      %3331 = vmatpush2.msra.mxu0 0.0
      %3332 = vmatprep.subr.mxu0 0.0
      %3333 = vmatpush2.msra.mxu0 0.0
      %3334 = vmatprep.subr.mxu0 0.0
      %3335 = vmatpush2.msra.mxu0 0.0
      %3336 = vmatprep.mubr.f32.mxu0 0.0
      %3337 = vmatmul.mubr.f32.gmra.mxu0 %v3099
      %v3338 = vpop.f32.mrf.mxu0
      %v3339 = vadd.f32 0.0, %v3338
      %v3340 = vpop.f32.mrf.mxu0
      %3341 = vmatprep.mubr.f32.mxu0 0.0
      %3342 = vmatmul.mubr.f32.gmra.mxu0 %v3102
      %v3343 = vpop.f32.mrf.mxu0
      %v3344 = vadd.f32 0.0, %v3343
      %v3345 = vpop.f32.mrf.mxu0
      %3346 = vdwg.mxu0
      %v3348 = vsel %vm1095, %v3171, 0
      %v3351 = vsel %vm1095, %v3176, 0
      %v3354 = vsel %vm1095, %v3255, 0
      %v3357 = vsel %vm1095, %v3260, 0
      %3359 = vmatprep.subr.mxu0 0.0
      %3360 = vmatpush1.xpose.msra.mxu0 0.0
      %3361 = vmatprep.subr.mxu0 0.0
      %3362 = vmatpush1.xpose.msra.mxu0 0.0
      %3363 = vmatprep.subr.mxu0 0.0
      %3364 = vmatpush1.xpose.msra.mxu0 0.0
      %3365 = vmatprep.subr.mxu0 0.0
      %3366 = vmatpush1.xpose.msra.mxu0 0.0
      %3367 = vmatprep.subr.mxu0 0.0
      %3368 = vmatpush1.xpose.msra.mxu0 0.0
      %3369 = vmatprep.subr.mxu0 0.0
      %3370 = vmatpush1.xpose.msra.mxu0 0.0
      %3371 = vmatprep.subr.mxu0 0.0
      %3372 = vmatpush1.xpose.msra.mxu0 0.0
      %3373 = vmatprep.subr.mxu0 0.0
      %3374 = vmatpush1.xpose.msra.mxu0 0.0
      %3375 = vmatprep.subr.mxu0 0.0
      %3376 = vmatpush1.xpose.msra.mxu0 0.0
      %3377 = vmatprep.subr.mxu0 0.0
      %3378 = vmatpush1.xpose.msra.mxu0 0.0
      %3379 = vmatprep.subr.mxu0 0.0
      %3380 = vmatpush1.xpose.msra.mxu0 0.0
      %3381 = vmatprep.subr.mxu0 0.0
      %3382 = vmatpush1.xpose.msra.mxu0 0.0
      %3383 = vmatprep.subr.mxu0 0.0
      %3384 = vmatpush1.xpose.msra.mxu0 0.0
      %3385 = vmatprep.subr.mxu0 0.0
      %3386 = vmatpush1.xpose.msra.mxu0 0.0
      %3387 = vmatprep.subr.mxu0 0.0
      %3388 = vmatpush1.xpose.msra.mxu0 %v3357
      %3389 = vmatprep.subr.mxu0 0.0
      %3390 = vmatpush1.xpose.msra.mxu0 %v3354
      %3391 = vmatprep.subr.mxu0 0.0
      %3392 = vmatpush2.xpose.msra.mxu0 0.0
      %3393 = vmatprep.subr.mxu0 0.0
      %3394 = vmatpush2.xpose.msra.mxu0 0.0
      %3395 = vmatprep.subr.mxu0 0.0
      %3396 = vmatpush2.xpose.msra.mxu0 0.0
      %3397 = vmatprep.subr.mxu0 0.0
      %3398 = vmatpush2.xpose.msra.mxu0 0.0
      %3399 = vmatprep.subr.mxu0 0.0
      %3400 = vmatpush2.xpose.msra.mxu0 0.0
      %3401 = vmatprep.subr.mxu0 0.0
      %3402 = vmatpush2.xpose.msra.mxu0 0.0
      %3403 = vmatprep.subr.mxu0 0.0
      %3404 = vmatpush2.xpose.msra.mxu0 0.0
      %3405 = vmatprep.subr.mxu0 0.0
      %3406 = vmatpush2.xpose.msra.mxu0 0.0
      %3407 = vmatprep.subr.mxu0 0.0
      %3408 = vmatpush2.xpose.msra.mxu0 0.0
      %3409 = vmatprep.subr.mxu0 0.0
      %3410 = vmatpush2.xpose.msra.mxu0 0.0
      %3411 = vmatprep.subr.mxu0 0.0
      %3412 = vmatpush2.xpose.msra.mxu0 0.0
      %3413 = vmatprep.subr.mxu0 0.0
      %3414 = vmatpush2.xpose.msra.mxu0 0.0
      %3415 = vmatprep.subr.mxu0 0.0
      %3416 = vmatpush2.xpose.msra.mxu0 0.0
      %3417 = vmatprep.subr.mxu0 0.0
      %3418 = vmatpush2.xpose.msra.mxu0 0.0
      %3419 = vmatprep.subr.mxu0 0.0
      %3420 = vmatpush2.xpose.msra.mxu0 0.0
      %3421 = vmatprep.subr.mxu0 0.0
      %3422 = vmatpush2.xpose.msra.mxu0 0.0
      %3423 = vmatprep.mubr.f32.mxu0 0.0
      %3424 = vmatmul.mubr.f32.gmra.mxu0 %v3348
      %v3425 = vpop.f32.mrf.mxu0
      %v3426 = vadd.f32 %v792, %v3425
      %v3427 = vpop.f32.mrf.mxu0
      %3428 = vmatprep.mubr.f32.mxu0 0.0
      %3429 = vmatmul.mubr.f32.gmra.mxu0 %v3351
      %v3430 = vpop.f32.mrf.mxu0
      %v3431 = vadd.f32 %v793, %v3430
      %v3432 = vpop.f32.mrf.mxu0
      %3433 = vdwg.mxu0
      %v3434 = vsel %vm1095, %v3426, -inf
      %3435 = vmax.xlane.f32.xlu0 %v3434
      %v3436 = vpop.xlane.xlu0 %3435
      %v3437 = vsel %vm1095, %v3431, -inf
      %3438 = vmax.xlane.f32.xlu0 %v3437
      %v3439 = vpop.xlane.xlu0 %3438
      %v3440 = vsub.f32 %v3426, %v3436
      %v3441 = vsub.f32 %v3431, %v3439
      %v3442 = vmul.f32 %v3440, 1.442695
      %v3443 = vpow.pop %v3442
      %v3444 = vmul.f32 %v3441, 1.442695
      %v3445 = vpow.pop %v3444
      %v3446 = vsel %vm1095, %v3443, 0.0
      %3447 = vadd.xlane.f32.xlu0 %v3446
      %v3448 = vpop.xlane.xlu0 %3447
      %v3449 = vsel %vm1095, %v3445, 0.0
      %3450 = vadd.xlane.f32.xlu0 %v3449
      %v3451 = vpop.xlane.xlu0 %3450
      %v3452 = vrcp.pop %v3448
      %v3453 = vrcp.pop %v3451
      %v3454 = vmul.f32 %v3443, %v3452
      %v3455 = vmul.f32 %v3445, %v3453
      %v3457 = vsel %vm1095, %v3454, 0
      %v3460 = vsel %vm1095, %v3455, 0
      %3462 = vmatprep.subr.mxu0 0.0
      %3463 = vmatpush1.msra.mxu0 0.0
      %3464 = vmatprep.subr.mxu0 0.0
      %3465 = vmatpush1.msra.mxu0 0.0
      %3466 = vmatprep.subr.mxu0 0.0
      %3467 = vmatpush1.msra.mxu0 0.0
      %3468 = vmatprep.subr.mxu0 0.0
      %3469 = vmatpush1.msra.mxu0 0.0
      %3470 = vmatprep.subr.mxu0 0.0
      %3471 = vmatpush1.msra.mxu0 0.0
      %3472 = vmatprep.subr.mxu0 0.0
      %3473 = vmatpush1.msra.mxu0 0.0
      %3474 = vmatprep.subr.mxu0 0.0
      %3475 = vmatpush1.msra.mxu0 0.0
      %3476 = vmatprep.subr.mxu0 0.0
      %3477 = vmatpush1.msra.mxu0 0.0
      %3478 = vmatprep.subr.mxu0 0.0
      %3479 = vmatpush1.msra.mxu0 0.0
      %3480 = vmatprep.subr.mxu0 0.0
      %3481 = vmatpush1.msra.mxu0 0.0
      %3482 = vmatprep.subr.mxu0 0.0
      %3483 = vmatpush1.msra.mxu0 0.0
      %3484 = vmatprep.subr.mxu0 0.0
      %3485 = vmatpush1.msra.mxu0 0.0
      %3486 = vmatprep.subr.mxu0 0.0
      %3487 = vmatpush1.msra.mxu0 0.0
      %3488 = vmatprep.subr.mxu0 0.0
      %3489 = vmatpush1.msra.mxu0 0.0
      %3490 = vmatprep.subr.mxu0 0.0
      %3491 = vmatpush1.msra.mxu0 %v3344
      %3492 = vmatprep.subr.mxu0 0.0
      %3493 = vmatpush1.msra.mxu0 %v3339
      %3494 = vmatprep.subr.mxu0 0.0
      %3495 = vmatpush2.msra.mxu0 0.0
      %3496 = vmatprep.subr.mxu0 0.0
      %3497 = vmatpush2.msra.mxu0 0.0
      %3498 = vmatprep.subr.mxu0 0.0
      %3499 = vmatpush2.msra.mxu0 0.0
      %3500 = vmatprep.subr.mxu0 0.0
      %3501 = vmatpush2.msra.mxu0 0.0
      %3502 = vmatprep.subr.mxu0 0.0
      %3503 = vmatpush2.msra.mxu0 0.0
      %3504 = vmatprep.subr.mxu0 0.0
      %3505 = vmatpush2.msra.mxu0 0.0
      %3506 = vmatprep.subr.mxu0 0.0
      %3507 = vmatpush2.msra.mxu0 0.0
      %3508 = vmatprep.subr.mxu0 0.0
      %3509 = vmatpush2.msra.mxu0 0.0
      %3510 = vmatprep.subr.mxu0 0.0
      %3511 = vmatpush2.msra.mxu0 0.0
      %3512 = vmatprep.subr.mxu0 0.0
      %3513 = vmatpush2.msra.mxu0 0.0
      %3514 = vmatprep.subr.mxu0 0.0
      %3515 = vmatpush2.msra.mxu0 0.0
      %3516 = vmatprep.subr.mxu0 0.0
      %3517 = vmatpush2.msra.mxu0 0.0
      %3518 = vmatprep.subr.mxu0 0.0
      %3519 = vmatpush2.msra.mxu0 0.0
      %3520 = vmatprep.subr.mxu0 0.0
      %3521 = vmatpush2.msra.mxu0 0.0
      %3522 = vmatprep.subr.mxu0 0.0
      %3523 = vmatpush2.msra.mxu0 0.0
      %3524 = vmatprep.subr.mxu0 0.0
      %3525 = vmatpush2.msra.mxu0 0.0
      %3526 = vmatprep.mubr.f32.mxu0 0.0
      %3527 = vmatmul.mubr.f32.gmra.mxu0 %v3457
      %v3528 = vpop.f32.mrf.mxu0
      %v3529 = vadd.f32 0.0, %v3528
      %v3530 = vpop.f32.mrf.mxu0
      %3531 = vmatprep.mubr.f32.mxu0 0.0
      %3532 = vmatmul.mubr.f32.gmra.mxu0 %v3460
      %v3533 = vpop.f32.mrf.mxu0
      %v3534 = vadd.f32 0.0, %v3533
      %v3535 = vpop.f32.mrf.mxu0
      %3536 = vdwg.mxu0
      %3537 = vst.msk [vmem:[#allocation2] sm:$0xff] %vm1095, %v3529
      %3538 = vst.msk [vmem:[#allocation2 + $0x8] sm:$0xff] %vm1095, %v3534
      %s3539 = scalar_lea.vmem %s4, 320
      %v3540 = vld [vmem:[%s3539] sm:$0xff]
      %v3541 = vld [vmem:[%s3539 + $0x8] sm:$0xff]
      %v3542 = vld [vmem:[%s3539 + $0x10] sm:$0xff]
      %v3543 = vld [vmem:[%s3539 + $0x18] sm:$0xff]
      %v3544 = vld [vmem:[%s3539 + $0x20] sm:$0xff]
      %v3545 = vld [vmem:[%s3539 + $0x28] sm:$0xff]
      %v3546 = vld [vmem:[%s3539 + $0x30] sm:$0xff]
      %v3547 = vld [vmem:[%s3539 + $0x38] sm:$0xff]
      %3548 = vmatprep.subr.mxu0 0.0
      %3549 = vmatpush1.msra.mxu0 0.0
      %3550 = vmatprep.subr.mxu0 0.0
      %3551 = vmatpush1.msra.mxu0 0.0
      %3552 = vmatprep.subr.mxu0 0.0
      %3553 = vmatpush1.msra.mxu0 0.0
      %3554 = vmatprep.subr.mxu0 0.0
      %3555 = vmatpush1.msra.mxu0 0.0
      %3556 = vmatprep.subr.mxu0 0.0
      %3557 = vmatpush1.msra.mxu0 0.0
      %3558 = vmatprep.subr.mxu0 0.0
      %3559 = vmatpush1.msra.mxu0 0.0
      %3560 = vmatprep.subr.mxu0 0.0
      %3561 = vmatpush1.msra.mxu0 0.0
      %3562 = vmatprep.subr.mxu0 0.0
      %3563 = vmatpush1.msra.mxu0 0.0
      %3564 = vmatprep.subr.mxu0 0.0
      %3565 = vmatpush1.msra.mxu0 %v3547
      %3566 = vmatprep.subr.mxu0 0.0
      %3567 = vmatpush1.msra.mxu0 %v3546
      %3568 = vmatprep.subr.mxu0 0.0
      %3569 = vmatpush1.msra.mxu0 %v3545
      %3570 = vmatprep.subr.mxu0 0.0
      %3571 = vmatpush1.msra.mxu0 %v3544
      %3572 = vmatprep.subr.mxu0 0.0
      %3573 = vmatpush1.msra.mxu0 %v3543
      %3574 = vmatprep.subr.mxu0 0.0
      %3575 = vmatpush1.msra.mxu0 %v3542
      %3576 = vmatprep.subr.mxu0 0.0
      %3577 = vmatpush1.msra.mxu0 %v3541
      %3578 = vmatprep.subr.mxu0 0.0
      %3579 = vmatpush1.msra.mxu0 %v3540
      %3580 = vmatprep.subr.mxu0 0.0
      %3581 = vmatpush2.msra.mxu0 0.0
      %3582 = vmatprep.subr.mxu0 0.0
      %3583 = vmatpush2.msra.mxu0 0.0
      %3584 = vmatprep.subr.mxu0 0.0
      %3585 = vmatpush2.msra.mxu0 0.0
      %3586 = vmatprep.subr.mxu0 0.0
      %3587 = vmatpush2.msra.mxu0 0.0
      %3588 = vmatprep.subr.mxu0 0.0
      %3589 = vmatpush2.msra.mxu0 0.0
      %3590 = vmatprep.subr.mxu0 0.0
      %3591 = vmatpush2.msra.mxu0 0.0
      %3592 = vmatprep.subr.mxu0 0.0
      %3593 = vmatpush2.msra.mxu0 0.0
      %3594 = vmatprep.subr.mxu0 0.0
      %3595 = vmatpush2.msra.mxu0 0.0
      %3596 = vmatprep.subr.mxu0 0.0
      %3597 = vmatpush2.msra.mxu0 0.0
      %3598 = vmatprep.subr.mxu0 0.0
      %3599 = vmatpush2.msra.mxu0 0.0
      %3600 = vmatprep.subr.mxu0 0.0
      %3601 = vmatpush2.msra.mxu0 0.0
      %3602 = vmatprep.subr.mxu0 0.0
      %3603 = vmatpush2.msra.mxu0 0.0
      %3604 = vmatprep.subr.mxu0 0.0
      %3605 = vmatpush2.msra.mxu0 0.0
      %3606 = vmatprep.subr.mxu0 0.0
      %3607 = vmatpush2.msra.mxu0 0.0
      %3608 = vmatprep.subr.mxu0 0.0
      %3609 = vmatpush2.msra.mxu0 0.0
      %3610 = vmatprep.subr.mxu0 0.0
      %3611 = vmatpush2.msra.mxu0 0.0
      %3612 = vmatprep.mubr.f32.mxu0 0.0
      %3613 = vmatmul.mubr.f32.gmra.mxu0 %v3099
      %v3614 = vpop.f32.mrf.mxu0
      %v3615 = vadd.f32 0.0, %v3614
      %v3616 = vpop.f32.mrf.mxu0
      %3617 = vmatprep.mubr.f32.mxu0 0.0
      %3618 = vmatmul.mubr.f32.gmra.mxu0 %v3102
      %v3619 = vpop.f32.mrf.mxu0
      %v3620 = vadd.f32 0.0, %v3619
      %v3621 = vpop.f32.mrf.mxu0
      %3622 = vdwg.mxu0
      %s3623 = scalar_lea.vmem %s5, 320
      %v3624 = vld [vmem:[%s3623] sm:$0xff]
      %v3625 = vld [vmem:[%s3623 + $0x8] sm:$0xff]
      %v3626 = vld [vmem:[%s3623 + $0x10] sm:$0xff]
      %v3627 = vld [vmem:[%s3623 + $0x18] sm:$0xff]
      %v3628 = vld [vmem:[%s3623 + $0x20] sm:$0xff]
      %v3629 = vld [vmem:[%s3623 + $0x28] sm:$0xff]
      %v3630 = vld [vmem:[%s3623 + $0x30] sm:$0xff]
      %v3631 = vld [vmem:[%s3623 + $0x38] sm:$0xff]
      %3632 = vmatprep.subr.mxu0 0.0
      %3633 = vmatpush1.msra.mxu0 0.0
      %3634 = vmatprep.subr.mxu0 0.0
      %3635 = vmatpush1.msra.mxu0 0.0
      %3636 = vmatprep.subr.mxu0 0.0
      %3637 = vmatpush1.msra.mxu0 0.0
      %3638 = vmatprep.subr.mxu0 0.0
      %3639 = vmatpush1.msra.mxu0 0.0
      %3640 = vmatprep.subr.mxu0 0.0
      %3641 = vmatpush1.msra.mxu0 0.0
      %3642 = vmatprep.subr.mxu0 0.0
      %3643 = vmatpush1.msra.mxu0 0.0
      %3644 = vmatprep.subr.mxu0 0.0
      %3645 = vmatpush1.msra.mxu0 0.0
      %3646 = vmatprep.subr.mxu0 0.0
      %3647 = vmatpush1.msra.mxu0 0.0
      %3648 = vmatprep.subr.mxu0 0.0
      %3649 = vmatpush1.msra.mxu0 %v3631
      %3650 = vmatprep.subr.mxu0 0.0
      %3651 = vmatpush1.msra.mxu0 %v3630
      %3652 = vmatprep.subr.mxu0 0.0
      %3653 = vmatpush1.msra.mxu0 %v3629
      %3654 = vmatprep.subr.mxu0 0.0
      %3655 = vmatpush1.msra.mxu0 %v3628
      %3656 = vmatprep.subr.mxu0 0.0
      %3657 = vmatpush1.msra.mxu0 %v3627
      %3658 = vmatprep.subr.mxu0 0.0
      %3659 = vmatpush1.msra.mxu0 %v3626
      %3660 = vmatprep.subr.mxu0 0.0
      %3661 = vmatpush1.msra.mxu0 %v3625
      %3662 = vmatprep.subr.mxu0 0.0
      %3663 = vmatpush1.msra.mxu0 %v3624
      %3664 = vmatprep.subr.mxu0 0.0
      %3665 = vmatpush2.msra.mxu0 0.0
      %3666 = vmatprep.subr.mxu0 0.0
      %3667 = vmatpush2.msra.mxu0 0.0
      %3668 = vmatprep.subr.mxu0 0.0
      %3669 = vmatpush2.msra.mxu0 0.0
      %3670 = vmatprep.subr.mxu0 0.0
      %3671 = vmatpush2.msra.mxu0 0.0
      %3672 = vmatprep.subr.mxu0 0.0
      %3673 = vmatpush2.msra.mxu0 0.0
      %3674 = vmatprep.subr.mxu0 0.0
      %3675 = vmatpush2.msra.mxu0 0.0
      %3676 = vmatprep.subr.mxu0 0.0
      %3677 = vmatpush2.msra.mxu0 0.0
      %3678 = vmatprep.subr.mxu0 0.0
      %3679 = vmatpush2.msra.mxu0 0.0
      %3680 = vmatprep.subr.mxu0 0.0
      %3681 = vmatpush2.msra.mxu0 0.0
      %3682 = vmatprep.subr.mxu0 0.0
      %3683 = vmatpush2.msra.mxu0 0.0
      %3684 = vmatprep.subr.mxu0 0.0
      %3685 = vmatpush2.msra.mxu0 0.0
      %3686 = vmatprep.subr.mxu0 0.0
      %3687 = vmatpush2.msra.mxu0 0.0
      %3688 = vmatprep.subr.mxu0 0.0
      %3689 = vmatpush2.msra.mxu0 0.0
      %3690 = vmatprep.subr.mxu0 0.0
      %3691 = vmatpush2.msra.mxu0 0.0
      %3692 = vmatprep.subr.mxu0 0.0
      %3693 = vmatpush2.msra.mxu0 0.0
      %3694 = vmatprep.subr.mxu0 0.0
      %3695 = vmatpush2.msra.mxu0 0.0
      %3696 = vmatprep.mubr.f32.mxu0 0.0
      %3697 = vmatmul.mubr.f32.gmra.mxu0 %v3099
      %v3698 = vpop.f32.mrf.mxu0
      %v3699 = vadd.f32 0.0, %v3698
      %v3700 = vpop.f32.mrf.mxu0
      %3701 = vmatprep.mubr.f32.mxu0 0.0
      %3702 = vmatmul.mubr.f32.gmra.mxu0 %v3102
      %v3703 = vpop.f32.mrf.mxu0
      %v3704 = vadd.f32 0.0, %v3703
      %v3705 = vpop.f32.mrf.mxu0
      %3706 = vdwg.mxu0
      %s3707 = scalar_lea.vmem %s6, 320
      %v3708 = vld [vmem:[%s3707] sm:$0xff]
      %v3709 = vld [vmem:[%s3707 + $0x8] sm:$0xff]
      %v3710 = vld [vmem:[%s3707 + $0x10] sm:$0xff]
      %v3711 = vld [vmem:[%s3707 + $0x18] sm:$0xff]
      %v3712 = vld [vmem:[%s3707 + $0x20] sm:$0xff]
      %v3713 = vld [vmem:[%s3707 + $0x28] sm:$0xff]
      %v3714 = vld [vmem:[%s3707 + $0x30] sm:$0xff]
      %v3715 = vld [vmem:[%s3707 + $0x38] sm:$0xff]
      %3716 = vmatprep.subr.mxu0 0.0
      %3717 = vmatpush1.msra.mxu0 0.0
      %3718 = vmatprep.subr.mxu0 0.0
      %3719 = vmatpush1.msra.mxu0 0.0
      %3720 = vmatprep.subr.mxu0 0.0
      %3721 = vmatpush1.msra.mxu0 0.0
      %3722 = vmatprep.subr.mxu0 0.0
      %3723 = vmatpush1.msra.mxu0 0.0
      %3724 = vmatprep.subr.mxu0 0.0
      %3725 = vmatpush1.msra.mxu0 0.0
      %3726 = vmatprep.subr.mxu0 0.0
      %3727 = vmatpush1.msra.mxu0 0.0
      %3728 = vmatprep.subr.mxu0 0.0
      %3729 = vmatpush1.msra.mxu0 0.0
      %3730 = vmatprep.subr.mxu0 0.0
      %3731 = vmatpush1.msra.mxu0 0.0
      %3732 = vmatprep.subr.mxu0 0.0
      %3733 = vmatpush1.msra.mxu0 %v3715
      %3734 = vmatprep.subr.mxu0 0.0
      %3735 = vmatpush1.msra.mxu0 %v3714
      %3736 = vmatprep.subr.mxu0 0.0
      %3737 = vmatpush1.msra.mxu0 %v3713
      %3738 = vmatprep.subr.mxu0 0.0
      %3739 = vmatpush1.msra.mxu0 %v3712
      %3740 = vmatprep.subr.mxu0 0.0
      %3741 = vmatpush1.msra.mxu0 %v3711
      %3742 = vmatprep.subr.mxu0 0.0
      %3743 = vmatpush1.msra.mxu0 %v3710
      %3744 = vmatprep.subr.mxu0 0.0
      %3745 = vmatpush1.msra.mxu0 %v3709
      %3746 = vmatprep.subr.mxu0 0.0
      %3747 = vmatpush1.msra.mxu0 %v3708
      %3748 = vmatprep.subr.mxu0 0.0
      %3749 = vmatpush2.msra.mxu0 0.0
      %3750 = vmatprep.subr.mxu0 0.0
      %3751 = vmatpush2.msra.mxu0 0.0
      %3752 = vmatprep.subr.mxu0 0.0
      %3753 = vmatpush2.msra.mxu0 0.0
      %3754 = vmatprep.subr.mxu0 0.0
      %3755 = vmatpush2.msra.mxu0 0.0
      %3756 = vmatprep.subr.mxu0 0.0
      %3757 = vmatpush2.msra.mxu0 0.0
      %3758 = vmatprep.subr.mxu0 0.0
      %3759 = vmatpush2.msra.mxu0 0.0
      %3760 = vmatprep.subr.mxu0 0.0
      %3761 = vmatpush2.msra.mxu0 0.0
      %3762 = vmatprep.subr.mxu0 0.0
      %3763 = vmatpush2.msra.mxu0 0.0
      %3764 = vmatprep.subr.mxu0 0.0
      %3765 = vmatpush2.msra.mxu0 0.0
      %3766 = vmatprep.subr.mxu0 0.0
      %3767 = vmatpush2.msra.mxu0 0.0
      %3768 = vmatprep.subr.mxu0 0.0
      %3769 = vmatpush2.msra.mxu0 0.0
      %3770 = vmatprep.subr.mxu0 0.0
      %3771 = vmatpush2.msra.mxu0 0.0
      %3772 = vmatprep.subr.mxu0 0.0
      %3773 = vmatpush2.msra.mxu0 0.0
      %3774 = vmatprep.subr.mxu0 0.0
      %3775 = vmatpush2.msra.mxu0 0.0
      %3776 = vmatprep.subr.mxu0 0.0
      %3777 = vmatpush2.msra.mxu0 0.0
      %3778 = vmatprep.subr.mxu0 0.0
      %3779 = vmatpush2.msra.mxu0 0.0
      %3780 = vmatprep.mubr.f32.mxu0 0.0
      %3781 = vmatmul.mubr.f32.gmra.mxu0 %v3099
      %v3782 = vpop.f32.mrf.mxu0
      %v3783 = vadd.f32 0.0, %v3782
      %v3784 = vpop.f32.mrf.mxu0
      %3785 = vmatprep.mubr.f32.mxu0 0.0
      %3786 = vmatmul.mubr.f32.gmra.mxu0 %v3102
      %v3787 = vpop.f32.mrf.mxu0
      %v3788 = vadd.f32 0.0, %v3787
      %v3789 = vpop.f32.mrf.mxu0
      %3790 = vdwg.mxu0
      %v3792 = vsel %vm1095, %v3615, 0
      %v3795 = vsel %vm1095, %v3620, 0
      %v3798 = vsel %vm1095, %v3699, 0
      %v3801 = vsel %vm1095, %v3704, 0
      %3803 = vmatprep.subr.mxu0 0.0
      %3804 = vmatpush1.xpose.msra.mxu0 0.0
      %3805 = vmatprep.subr.mxu0 0.0
      %3806 = vmatpush1.xpose.msra.mxu0 0.0
      %3807 = vmatprep.subr.mxu0 0.0
      %3808 = vmatpush1.xpose.msra.mxu0 0.0
      %3809 = vmatprep.subr.mxu0 0.0
      %3810 = vmatpush1.xpose.msra.mxu0 0.0
      %3811 = vmatprep.subr.mxu0 0.0
      %3812 = vmatpush1.xpose.msra.mxu0 0.0
      %3813 = vmatprep.subr.mxu0 0.0
      %3814 = vmatpush1.xpose.msra.mxu0 0.0
      %3815 = vmatprep.subr.mxu0 0.0
      %3816 = vmatpush1.xpose.msra.mxu0 0.0
      %3817 = vmatprep.subr.mxu0 0.0
      %3818 = vmatpush1.xpose.msra.mxu0 0.0
      %3819 = vmatprep.subr.mxu0 0.0
      %3820 = vmatpush1.xpose.msra.mxu0 0.0
      %3821 = vmatprep.subr.mxu0 0.0
      %3822 = vmatpush1.xpose.msra.mxu0 0.0
      %3823 = vmatprep.subr.mxu0 0.0
      %3824 = vmatpush1.xpose.msra.mxu0 0.0
      %3825 = vmatprep.subr.mxu0 0.0
      %3826 = vmatpush1.xpose.msra.mxu0 0.0
      %3827 = vmatprep.subr.mxu0 0.0
      %3828 = vmatpush1.xpose.msra.mxu0 0.0
      %3829 = vmatprep.subr.mxu0 0.0
      %3830 = vmatpush1.xpose.msra.mxu0 0.0
      %3831 = vmatprep.subr.mxu0 0.0
      %3832 = vmatpush1.xpose.msra.mxu0 %v3801
      %3833 = vmatprep.subr.mxu0 0.0
      %3834 = vmatpush1.xpose.msra.mxu0 %v3798
      %3835 = vmatprep.subr.mxu0 0.0
      %3836 = vmatpush2.xpose.msra.mxu0 0.0
      %3837 = vmatprep.subr.mxu0 0.0
      %3838 = vmatpush2.xpose.msra.mxu0 0.0
      %3839 = vmatprep.subr.mxu0 0.0
      %3840 = vmatpush2.xpose.msra.mxu0 0.0
      %3841 = vmatprep.subr.mxu0 0.0
      %3842 = vmatpush2.xpose.msra.mxu0 0.0
      %3843 = vmatprep.subr.mxu0 0.0
      %3844 = vmatpush2.xpose.msra.mxu0 0.0
      %3845 = vmatprep.subr.mxu0 0.0
      %3846 = vmatpush2.xpose.msra.mxu0 0.0
      %3847 = vmatprep.subr.mxu0 0.0
      %3848 = vmatpush2.xpose.msra.mxu0 0.0
      %3849 = vmatprep.subr.mxu0 0.0
      %3850 = vmatpush2.xpose.msra.mxu0 0.0
      %3851 = vmatprep.subr.mxu0 0.0
      %3852 = vmatpush2.xpose.msra.mxu0 0.0
      %3853 = vmatprep.subr.mxu0 0.0
      %3854 = vmatpush2.xpose.msra.mxu0 0.0
      %3855 = vmatprep.subr.mxu0 0.0
      %3856 = vmatpush2.xpose.msra.mxu0 0.0
      %3857 = vmatprep.subr.mxu0 0.0
      %3858 = vmatpush2.xpose.msra.mxu0 0.0
      %3859 = vmatprep.subr.mxu0 0.0
      %3860 = vmatpush2.xpose.msra.mxu0 0.0
      %3861 = vmatprep.subr.mxu0 0.0
      %3862 = vmatpush2.xpose.msra.mxu0 0.0
      %3863 = vmatprep.subr.mxu0 0.0
      %3864 = vmatpush2.xpose.msra.mxu0 0.0
      %3865 = vmatprep.subr.mxu0 0.0
      %3866 = vmatpush2.xpose.msra.mxu0 0.0
      %3867 = vmatprep.mubr.f32.mxu0 0.0
      %3868 = vmatmul.mubr.f32.gmra.mxu0 %v3792
      %v3869 = vpop.f32.mrf.mxu0
      %v3870 = vadd.f32 %v792, %v3869
      %v3871 = vpop.f32.mrf.mxu0
      %3872 = vmatprep.mubr.f32.mxu0 0.0
      %3873 = vmatmul.mubr.f32.gmra.mxu0 %v3795
      %v3874 = vpop.f32.mrf.mxu0
      %v3875 = vadd.f32 %v793, %v3874
      %v3876 = vpop.f32.mrf.mxu0
      %3877 = vdwg.mxu0
      %v3878 = vsel %vm1095, %v3870, -inf
      %3879 = vmax.xlane.f32.xlu0 %v3878
      %v3880 = vpop.xlane.xlu0 %3879
      %v3881 = vsel %vm1095, %v3875, -inf
      %3882 = vmax.xlane.f32.xlu0 %v3881
      %v3883 = vpop.xlane.xlu0 %3882
      %v3884 = vsub.f32 %v3870, %v3880
      %v3885 = vsub.f32 %v3875, %v3883
      %v3886 = vmul.f32 %v3884, 1.442695
      %v3887 = vpow.pop %v3886
      %v3888 = vmul.f32 %v3885, 1.442695
      %v3889 = vpow.pop %v3888
      %v3890 = vsel %vm1095, %v3887, 0.0
      %3891 = vadd.xlane.f32.xlu0 %v3890
      %v3892 = vpop.xlane.xlu0 %3891
      %v3893 = vsel %vm1095, %v3889, 0.0
      %3894 = vadd.xlane.f32.xlu0 %v3893
      %v3895 = vpop.xlane.xlu0 %3894
      %v3896 = vrcp.pop %v3892
      %v3897 = vrcp.pop %v3895
      %v3898 = vmul.f32 %v3887, %v3896
      %v3899 = vmul.f32 %v3889, %v3897
      %v3901 = vsel %vm1095, %v3898, 0
      %v3904 = vsel %vm1095, %v3899, 0
      %3906 = vmatprep.subr.mxu0 0.0
      %3907 = vmatpush1.msra.mxu0 0.0
      %3908 = vmatprep.subr.mxu0 0.0
      %3909 = vmatpush1.msra.mxu0 0.0
      %3910 = vmatprep.subr.mxu0 0.0
      %3911 = vmatpush1.msra.mxu0 0.0
      %3912 = vmatprep.subr.mxu0 0.0
      %3913 = vmatpush1.msra.mxu0 0.0
      %3914 = vmatprep.subr.mxu0 0.0
      %3915 = vmatpush1.msra.mxu0 0.0
      %3916 = vmatprep.subr.mxu0 0.0
      %3917 = vmatpush1.msra.mxu0 0.0
      %3918 = vmatprep.subr.mxu0 0.0
      %3919 = vmatpush1.msra.mxu0 0.0
      %3920 = vmatprep.subr.mxu0 0.0
      %3921 = vmatpush1.msra.mxu0 0.0
      %3922 = vmatprep.subr.mxu0 0.0
      %3923 = vmatpush1.msra.mxu0 0.0
      %3924 = vmatprep.subr.mxu0 0.0
      %3925 = vmatpush1.msra.mxu0 0.0
      %3926 = vmatprep.subr.mxu0 0.0
      %3927 = vmatpush1.msra.mxu0 0.0
      %3928 = vmatprep.subr.mxu0 0.0
      %3929 = vmatpush1.msra.mxu0 0.0
      %3930 = vmatprep.subr.mxu0 0.0
      %3931 = vmatpush1.msra.mxu0 0.0
      %3932 = vmatprep.subr.mxu0 0.0
      %3933 = vmatpush1.msra.mxu0 0.0
      %3934 = vmatprep.subr.mxu0 0.0
      %3935 = vmatpush1.msra.mxu0 %v3788
      %3936 = vmatprep.subr.mxu0 0.0
      %3937 = vmatpush1.msra.mxu0 %v3783
      %3938 = vmatprep.subr.mxu0 0.0
      %3939 = vmatpush2.msra.mxu0 0.0
      %3940 = vmatprep.subr.mxu0 0.0
      %3941 = vmatpush2.msra.mxu0 0.0
      %3942 = vmatprep.subr.mxu0 0.0
      %3943 = vmatpush2.msra.mxu0 0.0
      %3944 = vmatprep.subr.mxu0 0.0
      %3945 = vmatpush2.msra.mxu0 0.0
      %3946 = vmatprep.subr.mxu0 0.0
      %3947 = vmatpush2.msra.mxu0 0.0
      %3948 = vmatprep.subr.mxu0 0.0
      %3949 = vmatpush2.msra.mxu0 0.0
      %3950 = vmatprep.subr.mxu0 0.0
      %3951 = vmatpush2.msra.mxu0 0.0
      %3952 = vmatprep.subr.mxu0 0.0
      %3953 = vmatpush2.msra.mxu0 0.0
      %3954 = vmatprep.subr.mxu0 0.0
      %3955 = vmatpush2.msra.mxu0 0.0
      %3956 = vmatprep.subr.mxu0 0.0
      %3957 = vmatpush2.msra.mxu0 0.0
      %3958 = vmatprep.subr.mxu0 0.0
      %3959 = vmatpush2.msra.mxu0 0.0
      %3960 = vmatprep.subr.mxu0 0.0
      %3961 = vmatpush2.msra.mxu0 0.0
      %3962 = vmatprep.subr.mxu0 0.0
      %3963 = vmatpush2.msra.mxu0 0.0
      %3964 = vmatprep.subr.mxu0 0.0
      %3965 = vmatpush2.msra.mxu0 0.0
      %3966 = vmatprep.subr.mxu0 0.0
      %3967 = vmatpush2.msra.mxu0 0.0
      %3968 = vmatprep.subr.mxu0 0.0
      %3969 = vmatpush2.msra.mxu0 0.0
      %3970 = vmatprep.mubr.f32.mxu0 0.0
      %3971 = vmatmul.mubr.f32.gmra.mxu0 %v3901
      %v3972 = vpop.f32.mrf.mxu0
      %v3973 = vadd.f32 0.0, %v3972
      %v3974 = vpop.f32.mrf.mxu0
      %3975 = vmatprep.mubr.f32.mxu0 0.0
      %3976 = vmatmul.mubr.f32.gmra.mxu0 %v3904
      %v3977 = vpop.f32.mrf.mxu0
      %v3978 = vadd.f32 0.0, %v3977
      %v3979 = vpop.f32.mrf.mxu0
      %3980 = vdwg.mxu0
      %3983 = vrot.lane.b32.xlu0 %v3973, 16
      %v3984 = vpop.permute.xlu0 %3983
      %3985 = vrot.lane.b32.xlu0 %v3978, 16
      %v3986 = vpop.permute.xlu0 %3985
      %3989 = vst.msk [vmem:[#allocation2] sm:$0xff] %vm1738, %v3984
      %3990 = vst.msk [vmem:[#allocation2 + $0x8] sm:$0xff] %vm1738, %v3986
      %s3991 = scalar_lea.vmem %s4, 384
      %v3992 = vld [vmem:[%s3991] sm:$0xff]
      %v3993 = vld [vmem:[%s3991 + $0x8] sm:$0xff]
      %v3994 = vld [vmem:[%s3991 + $0x10] sm:$0xff]
      %v3995 = vld [vmem:[%s3991 + $0x18] sm:$0xff]
      %v3996 = vld [vmem:[%s3991 + $0x20] sm:$0xff]
      %v3997 = vld [vmem:[%s3991 + $0x28] sm:$0xff]
      %v3998 = vld [vmem:[%s3991 + $0x30] sm:$0xff]
      %v3999 = vld [vmem:[%s3991 + $0x38] sm:$0xff]
      %4000 = vmatprep.subr.mxu0 0.0
      %4001 = vmatpush1.msra.mxu0 0.0
      %4002 = vmatprep.subr.mxu0 0.0
      %4003 = vmatpush1.msra.mxu0 0.0
      %4004 = vmatprep.subr.mxu0 0.0
      %4005 = vmatpush1.msra.mxu0 0.0
      %4006 = vmatprep.subr.mxu0 0.0
      %4007 = vmatpush1.msra.mxu0 0.0
      %4008 = vmatprep.subr.mxu0 0.0
      %4009 = vmatpush1.msra.mxu0 0.0
      %4010 = vmatprep.subr.mxu0 0.0
      %4011 = vmatpush1.msra.mxu0 0.0
      %4012 = vmatprep.subr.mxu0 0.0
      %4013 = vmatpush1.msra.mxu0 0.0
      %4014 = vmatprep.subr.mxu0 0.0
      %4015 = vmatpush1.msra.mxu0 0.0
      %4016 = vmatprep.subr.mxu0 0.0
      %4017 = vmatpush1.msra.mxu0 %v3999
      %4018 = vmatprep.subr.mxu0 0.0
      %4019 = vmatpush1.msra.mxu0 %v3998
      %4020 = vmatprep.subr.mxu0 0.0
      %4021 = vmatpush1.msra.mxu0 %v3997
      %4022 = vmatprep.subr.mxu0 0.0
      %4023 = vmatpush1.msra.mxu0 %v3996
      %4024 = vmatprep.subr.mxu0 0.0
      %4025 = vmatpush1.msra.mxu0 %v3995
      %4026 = vmatprep.subr.mxu0 0.0
      %4027 = vmatpush1.msra.mxu0 %v3994
      %4028 = vmatprep.subr.mxu0 0.0
      %4029 = vmatpush1.msra.mxu0 %v3993
      %4030 = vmatprep.subr.mxu0 0.0
      %4031 = vmatpush1.msra.mxu0 %v3992
      %4032 = vmatprep.subr.mxu0 0.0
      %4033 = vmatpush2.msra.mxu0 0.0
      %4034 = vmatprep.subr.mxu0 0.0
      %4035 = vmatpush2.msra.mxu0 0.0
      %4036 = vmatprep.subr.mxu0 0.0
      %4037 = vmatpush2.msra.mxu0 0.0
      %4038 = vmatprep.subr.mxu0 0.0
      %4039 = vmatpush2.msra.mxu0 0.0
      %4040 = vmatprep.subr.mxu0 0.0
      %4041 = vmatpush2.msra.mxu0 0.0
      %4042 = vmatprep.subr.mxu0 0.0
      %4043 = vmatpush2.msra.mxu0 0.0
      %4044 = vmatprep.subr.mxu0 0.0
      %4045 = vmatpush2.msra.mxu0 0.0
      %4046 = vmatprep.subr.mxu0 0.0
      %4047 = vmatpush2.msra.mxu0 0.0
      %4048 = vmatprep.subr.mxu0 0.0
      %4049 = vmatpush2.msra.mxu0 0.0
      %4050 = vmatprep.subr.mxu0 0.0
      %4051 = vmatpush2.msra.mxu0 0.0
      %4052 = vmatprep.subr.mxu0 0.0
      %4053 = vmatpush2.msra.mxu0 0.0
      %4054 = vmatprep.subr.mxu0 0.0
      %4055 = vmatpush2.msra.mxu0 0.0
      %4056 = vmatprep.subr.mxu0 0.0
      %4057 = vmatpush2.msra.mxu0 0.0
      %4058 = vmatprep.subr.mxu0 0.0
      %4059 = vmatpush2.msra.mxu0 0.0
      %4060 = vmatprep.subr.mxu0 0.0
      %4061 = vmatpush2.msra.mxu0 0.0
      %4062 = vmatprep.subr.mxu0 0.0
      %4063 = vmatpush2.msra.mxu0 0.0
      %4064 = vmatprep.mubr.f32.mxu0 0.0
      %4065 = vmatmul.mubr.f32.gmra.mxu0 %v3099
      %v4066 = vpop.f32.mrf.mxu0
      %v4067 = vadd.f32 0.0, %v4066
      %v4068 = vpop.f32.mrf.mxu0
      %4069 = vmatprep.mubr.f32.mxu0 0.0
      %4070 = vmatmul.mubr.f32.gmra.mxu0 %v3102
      %v4071 = vpop.f32.mrf.mxu0
      %v4072 = vadd.f32 0.0, %v4071
      %v4073 = vpop.f32.mrf.mxu0
      %4074 = vdwg.mxu0
      %s4075 = scalar_lea.vmem %s5, 384
      %v4076 = vld [vmem:[%s4075] sm:$0xff]
      %v4077 = vld [vmem:[%s4075 + $0x8] sm:$0xff]
      %v4078 = vld [vmem:[%s4075 + $0x10] sm:$0xff]
      %v4079 = vld [vmem:[%s4075 + $0x18] sm:$0xff]
      %v4080 = vld [vmem:[%s4075 + $0x20] sm:$0xff]
      %v4081 = vld [vmem:[%s4075 + $0x28] sm:$0xff]
      %v4082 = vld [vmem:[%s4075 + $0x30] sm:$0xff]
      %v4083 = vld [vmem:[%s4075 + $0x38] sm:$0xff]
      %4084 = vmatprep.subr.mxu0 0.0
      %4085 = vmatpush1.msra.mxu0 0.0
      %4086 = vmatprep.subr.mxu0 0.0
      %4087 = vmatpush1.msra.mxu0 0.0
      %4088 = vmatprep.subr.mxu0 0.0
      %4089 = vmatpush1.msra.mxu0 0.0
      %4090 = vmatprep.subr.mxu0 0.0
      %4091 = vmatpush1.msra.mxu0 0.0
      %4092 = vmatprep.subr.mxu0 0.0
      %4093 = vmatpush1.msra.mxu0 0.0
      %4094 = vmatprep.subr.mxu0 0.0
      %4095 = vmatpush1.msra.mxu0 0.0
      %4096 = vmatprep.subr.mxu0 0.0
      %4097 = vmatpush1.msra.mxu0 0.0
      %4098 = vmatprep.subr.mxu0 0.0
      %4099 = vmatpush1.msra.mxu0 0.0
      %4100 = vmatprep.subr.mxu0 0.0
      %4101 = vmatpush1.msra.mxu0 %v4083
      %4102 = vmatprep.subr.mxu0 0.0
      %4103 = vmatpush1.msra.mxu0 %v4082
      %4104 = vmatprep.subr.mxu0 0.0
      %4105 = vmatpush1.msra.mxu0 %v4081
      %4106 = vmatprep.subr.mxu0 0.0
      %4107 = vmatpush1.msra.mxu0 %v4080
      %4108 = vmatprep.subr.mxu0 0.0
      %4109 = vmatpush1.msra.mxu0 %v4079
      %4110 = vmatprep.subr.mxu0 0.0
      %4111 = vmatpush1.msra.mxu0 %v4078
      %4112 = vmatprep.subr.mxu0 0.0
      %4113 = vmatpush1.msra.mxu0 %v4077
      %4114 = vmatprep.subr.mxu0 0.0
      %4115 = vmatpush1.msra.mxu0 %v4076
      %4116 = vmatprep.subr.mxu0 0.0
      %4117 = vmatpush2.msra.mxu0 0.0
      %4118 = vmatprep.subr.mxu0 0.0
      %4119 = vmatpush2.msra.mxu0 0.0
      %4120 = vmatprep.subr.mxu0 0.0
      %4121 = vmatpush2.msra.mxu0 0.0
      %4122 = vmatprep.subr.mxu0 0.0
      %4123 = vmatpush2.msra.mxu0 0.0
      %4124 = vmatprep.subr.mxu0 0.0
      %4125 = vmatpush2.msra.mxu0 0.0
      %4126 = vmatprep.subr.mxu0 0.0
      %4127 = vmatpush2.msra.mxu0 0.0
      %4128 = vmatprep.subr.mxu0 0.0
      %4129 = vmatpush2.msra.mxu0 0.0
      %4130 = vmatprep.subr.mxu0 0.0
      %4131 = vmatpush2.msra.mxu0 0.0
      %4132 = vmatprep.subr.mxu0 0.0
      %4133 = vmatpush2.msra.mxu0 0.0
      %4134 = vmatprep.subr.mxu0 0.0
      %4135 = vmatpush2.msra.mxu0 0.0
      %4136 = vmatprep.subr.mxu0 0.0
      %4137 = vmatpush2.msra.mxu0 0.0
      %4138 = vmatprep.subr.mxu0 0.0
      %4139 = vmatpush2.msra.mxu0 0.0
      %4140 = vmatprep.subr.mxu0 0.0
      %4141 = vmatpush2.msra.mxu0 0.0
      %4142 = vmatprep.subr.mxu0 0.0
      %4143 = vmatpush2.msra.mxu0 0.0
      %4144 = vmatprep.subr.mxu0 0.0
      %4145 = vmatpush2.msra.mxu0 0.0
      %4146 = vmatprep.subr.mxu0 0.0
      %4147 = vmatpush2.msra.mxu0 0.0
      %4148 = vmatprep.mubr.f32.mxu0 0.0
      %4149 = vmatmul.mubr.f32.gmra.mxu0 %v3099
      %v4150 = vpop.f32.mrf.mxu0
      %v4151 = vadd.f32 0.0, %v4150
      %v4152 = vpop.f32.mrf.mxu0
      %4153 = vmatprep.mubr.f32.mxu0 0.0
      %4154 = vmatmul.mubr.f32.gmra.mxu0 %v3102
      %v4155 = vpop.f32.mrf.mxu0
      %v4156 = vadd.f32 0.0, %v4155
      %v4157 = vpop.f32.mrf.mxu0
      %4158 = vdwg.mxu0
      %s4159 = scalar_lea.vmem %s6, 384
      %v4160 = vld [vmem:[%s4159] sm:$0xff]
      %v4161 = vld [vmem:[%s4159 + $0x8] sm:$0xff]
      %v4162 = vld [vmem:[%s4159 + $0x10] sm:$0xff]
      %v4163 = vld [vmem:[%s4159 + $0x18] sm:$0xff]
      %v4164 = vld [vmem:[%s4159 + $0x20] sm:$0xff]
      %v4165 = vld [vmem:[%s4159 + $0x28] sm:$0xff]
      %v4166 = vld [vmem:[%s4159 + $0x30] sm:$0xff]
      %v4167 = vld [vmem:[%s4159 + $0x38] sm:$0xff]
      %4168 = vmatprep.subr.mxu0 0.0
      %4169 = vmatpush1.msra.mxu0 0.0
      %4170 = vmatprep.subr.mxu0 0.0
      %4171 = vmatpush1.msra.mxu0 0.0
      %4172 = vmatprep.subr.mxu0 0.0
      %4173 = vmatpush1.msra.mxu0 0.0
      %4174 = vmatprep.subr.mxu0 0.0
      %4175 = vmatpush1.msra.mxu0 0.0
      %4176 = vmatprep.subr.mxu0 0.0
      %4177 = vmatpush1.msra.mxu0 0.0
      %4178 = vmatprep.subr.mxu0 0.0
      %4179 = vmatpush1.msra.mxu0 0.0
      %4180 = vmatprep.subr.mxu0 0.0
      %4181 = vmatpush1.msra.mxu0 0.0
      %4182 = vmatprep.subr.mxu0 0.0
      %4183 = vmatpush1.msra.mxu0 0.0
      %4184 = vmatprep.subr.mxu0 0.0
      %4185 = vmatpush1.msra.mxu0 %v4167
      %4186 = vmatprep.subr.mxu0 0.0
      %4187 = vmatpush1.msra.mxu0 %v4166
      %4188 = vmatprep.subr.mxu0 0.0
      %4189 = vmatpush1.msra.mxu0 %v4165
      %4190 = vmatprep.subr.mxu0 0.0
      %4191 = vmatpush1.msra.mxu0 %v4164
      %4192 = vmatprep.subr.mxu0 0.0
      %4193 = vmatpush1.msra.mxu0 %v4163
      %4194 = vmatprep.subr.mxu0 0.0
      %4195 = vmatpush1.msra.mxu0 %v4162
      %4196 = vmatprep.subr.mxu0 0.0
      %4197 = vmatpush1.msra.mxu0 %v4161
      %4198 = vmatprep.subr.mxu0 0.0
      %4199 = vmatpush1.msra.mxu0 %v4160
      %4200 = vmatprep.subr.mxu0 0.0
      %4201 = vmatpush2.msra.mxu0 0.0
      %4202 = vmatprep.subr.mxu0 0.0
      %4203 = vmatpush2.msra.mxu0 0.0
      %4204 = vmatprep.subr.mxu0 0.0
      %4205 = vmatpush2.msra.mxu0 0.0
      %4206 = vmatprep.subr.mxu0 0.0
      %4207 = vmatpush2.msra.mxu0 0.0
      %4208 = vmatprep.subr.mxu0 0.0
      %4209 = vmatpush2.msra.mxu0 0.0
      %4210 = vmatprep.subr.mxu0 0.0
      %4211 = vmatpush2.msra.mxu0 0.0
      %4212 = vmatprep.subr.mxu0 0.0
      %4213 = vmatpush2.msra.mxu0 0.0
      %4214 = vmatprep.subr.mxu0 0.0
      %4215 = vmatpush2.msra.mxu0 0.0
      %4216 = vmatprep.subr.mxu0 0.0
      %4217 = vmatpush2.msra.mxu0 0.0
      %4218 = vmatprep.subr.mxu0 0.0
      %4219 = vmatpush2.msra.mxu0 0.0
      %4220 = vmatprep.subr.mxu0 0.0
      %4221 = vmatpush2.msra.mxu0 0.0
      %4222 = vmatprep.subr.mxu0 0.0
      %4223 = vmatpush2.msra.mxu0 0.0
      %4224 = vmatprep.subr.mxu0 0.0
      %4225 = vmatpush2.msra.mxu0 0.0
      %4226 = vmatprep.subr.mxu0 0.0
      %4227 = vmatpush2.msra.mxu0 0.0
      %4228 = vmatprep.subr.mxu0 0.0
      %4229 = vmatpush2.msra.mxu0 0.0
      %4230 = vmatprep.subr.mxu0 0.0
      %4231 = vmatpush2.msra.mxu0 0.0
      %4232 = vmatprep.mubr.f32.mxu0 0.0
      %4233 = vmatmul.mubr.f32.gmra.mxu0 %v3099
      %v4234 = vpop.f32.mrf.mxu0
      %v4235 = vadd.f32 0.0, %v4234
      %v4236 = vpop.f32.mrf.mxu0
      %4237 = vmatprep.mubr.f32.mxu0 0.0
      %4238 = vmatmul.mubr.f32.gmra.mxu0 %v3102
      %v4239 = vpop.f32.mrf.mxu0
      %v4240 = vadd.f32 0.0, %v4239
      %v4241 = vpop.f32.mrf.mxu0
      %4242 = vdwg.mxu0
      %v4244 = vsel %vm1095, %v4067, 0
      %v4247 = vsel %vm1095, %v4072, 0
      %v4250 = vsel %vm1095, %v4151, 0
      %v4253 = vsel %vm1095, %v4156, 0
      %4255 = vmatprep.subr.mxu0 0.0
      %4256 = vmatpush1.xpose.msra.mxu0 0.0
      %4257 = vmatprep.subr.mxu0 0.0
      %4258 = vmatpush1.xpose.msra.mxu0 0.0
      %4259 = vmatprep.subr.mxu0 0.0
      %4260 = vmatpush1.xpose.msra.mxu0 0.0
      %4261 = vmatprep.subr.mxu0 0.0
      %4262 = vmatpush1.xpose.msra.mxu0 0.0
      %4263 = vmatprep.subr.mxu0 0.0
      %4264 = vmatpush1.xpose.msra.mxu0 0.0
      %4265 = vmatprep.subr.mxu0 0.0
      %4266 = vmatpush1.xpose.msra.mxu0 0.0
      %4267 = vmatprep.subr.mxu0 0.0
      %4268 = vmatpush1.xpose.msra.mxu0 0.0
      %4269 = vmatprep.subr.mxu0 0.0
      %4270 = vmatpush1.xpose.msra.mxu0 0.0
      %4271 = vmatprep.subr.mxu0 0.0
      %4272 = vmatpush1.xpose.msra.mxu0 0.0
      %4273 = vmatprep.subr.mxu0 0.0
      %4274 = vmatpush1.xpose.msra.mxu0 0.0
      %4275 = vmatprep.subr.mxu0 0.0
      %4276 = vmatpush1.xpose.msra.mxu0 0.0
      %4277 = vmatprep.subr.mxu0 0.0
      %4278 = vmatpush1.xpose.msra.mxu0 0.0
      %4279 = vmatprep.subr.mxu0 0.0
      %4280 = vmatpush1.xpose.msra.mxu0 0.0
      %4281 = vmatprep.subr.mxu0 0.0
      %4282 = vmatpush1.xpose.msra.mxu0 0.0
      %4283 = vmatprep.subr.mxu0 0.0
      %4284 = vmatpush1.xpose.msra.mxu0 %v4253
      %4285 = vmatprep.subr.mxu0 0.0
      %4286 = vmatpush1.xpose.msra.mxu0 %v4250
      %4287 = vmatprep.subr.mxu0 0.0
      %4288 = vmatpush2.xpose.msra.mxu0 0.0
      %4289 = vmatprep.subr.mxu0 0.0
      %4290 = vmatpush2.xpose.msra.mxu0 0.0
      %4291 = vmatprep.subr.mxu0 0.0
      %4292 = vmatpush2.xpose.msra.mxu0 0.0
      %4293 = vmatprep.subr.mxu0 0.0
      %4294 = vmatpush2.xpose.msra.mxu0 0.0
      %4295 = vmatprep.subr.mxu0 0.0
      %4296 = vmatpush2.xpose.msra.mxu0 0.0
      %4297 = vmatprep.subr.mxu0 0.0
      %4298 = vmatpush2.xpose.msra.mxu0 0.0
      %4299 = vmatprep.subr.mxu0 0.0
      %4300 = vmatpush2.xpose.msra.mxu0 0.0
      %4301 = vmatprep.subr.mxu0 0.0
      %4302 = vmatpush2.xpose.msra.mxu0 0.0
      %4303 = vmatprep.subr.mxu0 0.0
      %4304 = vmatpush2.xpose.msra.mxu0 0.0
      %4305 = vmatprep.subr.mxu0 0.0
      %4306 = vmatpush2.xpose.msra.mxu0 0.0
      %4307 = vmatprep.subr.mxu0 0.0
      %4308 = vmatpush2.xpose.msra.mxu0 0.0
      %4309 = vmatprep.subr.mxu0 0.0
      %4310 = vmatpush2.xpose.msra.mxu0 0.0
      %4311 = vmatprep.subr.mxu0 0.0
      %4312 = vmatpush2.xpose.msra.mxu0 0.0
      %4313 = vmatprep.subr.mxu0 0.0
      %4314 = vmatpush2.xpose.msra.mxu0 0.0
      %4315 = vmatprep.subr.mxu0 0.0
      %4316 = vmatpush2.xpose.msra.mxu0 0.0
      %4317 = vmatprep.subr.mxu0 0.0
      %4318 = vmatpush2.xpose.msra.mxu0 0.0
      %4319 = vmatprep.mubr.f32.mxu0 0.0
      %4320 = vmatmul.mubr.f32.gmra.mxu0 %v4244
      %v4321 = vpop.f32.mrf.mxu0
      %v4322 = vadd.f32 %v792, %v4321
      %v4323 = vpop.f32.mrf.mxu0
      %4324 = vmatprep.mubr.f32.mxu0 0.0
      %4325 = vmatmul.mubr.f32.gmra.mxu0 %v4247
      %v4326 = vpop.f32.mrf.mxu0
      %v4327 = vadd.f32 %v793, %v4326
      %v4328 = vpop.f32.mrf.mxu0
      %4329 = vdwg.mxu0
      %v4330 = vsel %vm1095, %v4322, -inf
      %4331 = vmax.xlane.f32.xlu0 %v4330
      %v4332 = vpop.xlane.xlu0 %4331
      %v4333 = vsel %vm1095, %v4327, -inf
      %4334 = vmax.xlane.f32.xlu0 %v4333
      %v4335 = vpop.xlane.xlu0 %4334
      %v4336 = vsub.f32 %v4322, %v4332
      %v4337 = vsub.f32 %v4327, %v4335
      %v4338 = vmul.f32 %v4336, 1.442695
      %v4339 = vpow.pop %v4338
      %v4340 = vmul.f32 %v4337, 1.442695
      %v4341 = vpow.pop %v4340
      %v4342 = vsel %vm1095, %v4339, 0.0
      %4343 = vadd.xlane.f32.xlu0 %v4342
      %v4344 = vpop.xlane.xlu0 %4343
      %v4345 = vsel %vm1095, %v4341, 0.0
      %4346 = vadd.xlane.f32.xlu0 %v4345
      %v4347 = vpop.xlane.xlu0 %4346
      %v4348 = vrcp.pop %v4344
      %v4349 = vrcp.pop %v4347
      %v4350 = vmul.f32 %v4339, %v4348
      %v4351 = vmul.f32 %v4341, %v4349
      %v4353 = vsel %vm1095, %v4350, 0
      %v4356 = vsel %vm1095, %v4351, 0
      %4358 = vmatprep.subr.mxu0 0.0
      %4359 = vmatpush1.msra.mxu0 0.0
      %4360 = vmatprep.subr.mxu0 0.0
      %4361 = vmatpush1.msra.mxu0 0.0
      %4362 = vmatprep.subr.mxu0 0.0
      %4363 = vmatpush1.msra.mxu0 0.0
      %4364 = vmatprep.subr.mxu0 0.0
      %4365 = vmatpush1.msra.mxu0 0.0
      %4366 = vmatprep.subr.mxu0 0.0
      %4367 = vmatpush1.msra.mxu0 0.0
      %4368 = vmatprep.subr.mxu0 0.0
      %4369 = vmatpush1.msra.mxu0 0.0
      %4370 = vmatprep.subr.mxu0 0.0
      %4371 = vmatpush1.msra.mxu0 0.0
      %4372 = vmatprep.subr.mxu0 0.0
      %4373 = vmatpush1.msra.mxu0 0.0
      %4374 = vmatprep.subr.mxu0 0.0
      %4375 = vmatpush1.msra.mxu0 0.0
      %4376 = vmatprep.subr.mxu0 0.0
      %4377 = vmatpush1.msra.mxu0 0.0
      %4378 = vmatprep.subr.mxu0 0.0
      %4379 = vmatpush1.msra.mxu0 0.0
      %4380 = vmatprep.subr.mxu0 0.0
      %4381 = vmatpush1.msra.mxu0 0.0
      %4382 = vmatprep.subr.mxu0 0.0
      %4383 = vmatpush1.msra.mxu0 0.0
      %4384 = vmatprep.subr.mxu0 0.0
      %4385 = vmatpush1.msra.mxu0 0.0
      %4386 = vmatprep.subr.mxu0 0.0
      %4387 = vmatpush1.msra.mxu0 %v4240
      %4388 = vmatprep.subr.mxu0 0.0
      %4389 = vmatpush1.msra.mxu0 %v4235
      %4390 = vmatprep.subr.mxu0 0.0
      %4391 = vmatpush2.msra.mxu0 0.0
      %4392 = vmatprep.subr.mxu0 0.0
      %4393 = vmatpush2.msra.mxu0 0.0
      %4394 = vmatprep.subr.mxu0 0.0
      %4395 = vmatpush2.msra.mxu0 0.0
      %4396 = vmatprep.subr.mxu0 0.0
      %4397 = vmatpush2.msra.mxu0 0.0
      %4398 = vmatprep.subr.mxu0 0.0
      %4399 = vmatpush2.msra.mxu0 0.0
      %4400 = vmatprep.subr.mxu0 0.0
      %4401 = vmatpush2.msra.mxu0 0.0
      %4402 = vmatprep.subr.mxu0 0.0
      %4403 = vmatpush2.msra.mxu0 0.0
      %4404 = vmatprep.subr.mxu0 0.0
      %4405 = vmatpush2.msra.mxu0 0.0
      %4406 = vmatprep.subr.mxu0 0.0
      %4407 = vmatpush2.msra.mxu0 0.0
      %4408 = vmatprep.subr.mxu0 0.0
      %4409 = vmatpush2.msra.mxu0 0.0
      %4410 = vmatprep.subr.mxu0 0.0
      %4411 = vmatpush2.msra.mxu0 0.0
      %4412 = vmatprep.subr.mxu0 0.0
      %4413 = vmatpush2.msra.mxu0 0.0
      %4414 = vmatprep.subr.mxu0 0.0
      %4415 = vmatpush2.msra.mxu0 0.0
      %4416 = vmatprep.subr.mxu0 0.0
      %4417 = vmatpush2.msra.mxu0 0.0
      %4418 = vmatprep.subr.mxu0 0.0
      %4419 = vmatpush2.msra.mxu0 0.0
      %4420 = vmatprep.subr.mxu0 0.0
      %4421 = vmatpush2.msra.mxu0 0.0
      %4422 = vmatprep.mubr.f32.mxu0 0.0
      %4423 = vmatmul.mubr.f32.gmra.mxu0 %v4353
      %v4424 = vpop.f32.mrf.mxu0
      %v4425 = vadd.f32 0.0, %v4424
      %v4426 = vpop.f32.mrf.mxu0
      %4427 = vmatprep.mubr.f32.mxu0 0.0
      %4428 = vmatmul.mubr.f32.gmra.mxu0 %v4356
      %v4429 = vpop.f32.mrf.mxu0
      %v4430 = vadd.f32 0.0, %v4429
      %v4431 = vpop.f32.mrf.mxu0
      %4432 = vdwg.mxu0
      %4435 = vrot.lane.b32.xlu0 %v4425, 32
      %v4436 = vpop.permute.xlu0 %4435
      %4437 = vrot.lane.b32.xlu0 %v4430, 32
      %v4438 = vpop.permute.xlu0 %4437
      %4441 = vst.msk [vmem:[#allocation2] sm:$0xff] %vm2191, %v4436
      %4442 = vst.msk [vmem:[#allocation2 + $0x8] sm:$0xff] %vm2191, %v4438
      %s4443 = scalar_lea.vmem %s4, 448
      %v4444 = vld [vmem:[%s4443] sm:$0xff]
      %v4445 = vld [vmem:[%s4443 + $0x8] sm:$0xff]
      %v4446 = vld [vmem:[%s4443 + $0x10] sm:$0xff]
      %v4447 = vld [vmem:[%s4443 + $0x18] sm:$0xff]
      %v4448 = vld [vmem:[%s4443 + $0x20] sm:$0xff]
      %v4449 = vld [vmem:[%s4443 + $0x28] sm:$0xff]
      %v4450 = vld [vmem:[%s4443 + $0x30] sm:$0xff]
      %v4451 = vld [vmem:[%s4443 + $0x38] sm:$0xff]
      %4452 = vmatprep.subr.mxu0 0.0
      %4453 = vmatpush1.msra.mxu0 0.0
      %4454 = vmatprep.subr.mxu0 0.0
      %4455 = vmatpush1.msra.mxu0 0.0
      %4456 = vmatprep.subr.mxu0 0.0
      %4457 = vmatpush1.msra.mxu0 0.0
      %4458 = vmatprep.subr.mxu0 0.0
      %4459 = vmatpush1.msra.mxu0 0.0
      %4460 = vmatprep.subr.mxu0 0.0
      %4461 = vmatpush1.msra.mxu0 0.0
      %4462 = vmatprep.subr.mxu0 0.0
      %4463 = vmatpush1.msra.mxu0 0.0
      %4464 = vmatprep.subr.mxu0 0.0
      %4465 = vmatpush1.msra.mxu0 0.0
      %4466 = vmatprep.subr.mxu0 0.0
      %4467 = vmatpush1.msra.mxu0 0.0
      %4468 = vmatprep.subr.mxu0 0.0
      %4469 = vmatpush1.msra.mxu0 %v4451
      %4470 = vmatprep.subr.mxu0 0.0
      %4471 = vmatpush1.msra.mxu0 %v4450
      %4472 = vmatprep.subr.mxu0 0.0
      %4473 = vmatpush1.msra.mxu0 %v4449
      %4474 = vmatprep.subr.mxu0 0.0
      %4475 = vmatpush1.msra.mxu0 %v4448
      %4476 = vmatprep.subr.mxu0 0.0
      %4477 = vmatpush1.msra.mxu0 %v4447
      %4478 = vmatprep.subr.mxu0 0.0
      %4479 = vmatpush1.msra.mxu0 %v4446
      %4480 = vmatprep.subr.mxu0 0.0
      %4481 = vmatpush1.msra.mxu0 %v4445
      %4482 = vmatprep.subr.mxu0 0.0
      %4483 = vmatpush1.msra.mxu0 %v4444
      %4484 = vmatprep.subr.mxu0 0.0
      %4485 = vmatpush2.msra.mxu0 0.0
      %4486 = vmatprep.subr.mxu0 0.0
      %4487 = vmatpush2.msra.mxu0 0.0
      %4488 = vmatprep.subr.mxu0 0.0
      %4489 = vmatpush2.msra.mxu0 0.0
      %4490 = vmatprep.subr.mxu0 0.0
      %4491 = vmatpush2.msra.mxu0 0.0
      %4492 = vmatprep.subr.mxu0 0.0
      %4493 = vmatpush2.msra.mxu0 0.0
      %4494 = vmatprep.subr.mxu0 0.0
      %4495 = vmatpush2.msra.mxu0 0.0
      %4496 = vmatprep.subr.mxu0 0.0
      %4497 = vmatpush2.msra.mxu0 0.0
      %4498 = vmatprep.subr.mxu0 0.0
      %4499 = vmatpush2.msra.mxu0 0.0
      %4500 = vmatprep.subr.mxu0 0.0
      %4501 = vmatpush2.msra.mxu0 0.0
      %4502 = vmatprep.subr.mxu0 0.0
      %4503 = vmatpush2.msra.mxu0 0.0
      %4504 = vmatprep.subr.mxu0 0.0
      %4505 = vmatpush2.msra.mxu0 0.0
      %4506 = vmatprep.subr.mxu0 0.0
      %4507 = vmatpush2.msra.mxu0 0.0
      %4508 = vmatprep.subr.mxu0 0.0
      %4509 = vmatpush2.msra.mxu0 0.0
      %4510 = vmatprep.subr.mxu0 0.0
      %4511 = vmatpush2.msra.mxu0 0.0
      %4512 = vmatprep.subr.mxu0 0.0
      %4513 = vmatpush2.msra.mxu0 0.0
      %4514 = vmatprep.subr.mxu0 0.0
      %4515 = vmatpush2.msra.mxu0 0.0
      %4516 = vmatprep.mubr.f32.mxu0 0.0
      %4517 = vmatmul.mubr.f32.gmra.mxu0 %v3099
      %v4518 = vpop.f32.mrf.mxu0
      %v4519 = vadd.f32 0.0, %v4518
      %v4520 = vpop.f32.mrf.mxu0
      %4521 = vmatprep.mubr.f32.mxu0 0.0
      %4522 = vmatmul.mubr.f32.gmra.mxu0 %v3102
      %v4523 = vpop.f32.mrf.mxu0
      %v4524 = vadd.f32 0.0, %v4523
      %v4525 = vpop.f32.mrf.mxu0
      %4526 = vdwg.mxu0
      %s4527 = scalar_lea.vmem %s5, 448
      %v4528 = vld [vmem:[%s4527] sm:$0xff]
      %v4529 = vld [vmem:[%s4527 + $0x8] sm:$0xff]
      %v4530 = vld [vmem:[%s4527 + $0x10] sm:$0xff]
      %v4531 = vld [vmem:[%s4527 + $0x18] sm:$0xff]
      %v4532 = vld [vmem:[%s4527 + $0x20] sm:$0xff]
      %v4533 = vld [vmem:[%s4527 + $0x28] sm:$0xff]
      %v4534 = vld [vmem:[%s4527 + $0x30] sm:$0xff]
      %v4535 = vld [vmem:[%s4527 + $0x38] sm:$0xff]
      %4536 = vmatprep.subr.mxu0 0.0
      %4537 = vmatpush1.msra.mxu0 0.0
      %4538 = vmatprep.subr.mxu0 0.0
      %4539 = vmatpush1.msra.mxu0 0.0
      %4540 = vmatprep.subr.mxu0 0.0
      %4541 = vmatpush1.msra.mxu0 0.0
      %4542 = vmatprep.subr.mxu0 0.0
      %4543 = vmatpush1.msra.mxu0 0.0
      %4544 = vmatprep.subr.mxu0 0.0
      %4545 = vmatpush1.msra.mxu0 0.0
      %4546 = vmatprep.subr.mxu0 0.0
      %4547 = vmatpush1.msra.mxu0 0.0
      %4548 = vmatprep.subr.mxu0 0.0
      %4549 = vmatpush1.msra.mxu0 0.0
      %4550 = vmatprep.subr.mxu0 0.0
      %4551 = vmatpush1.msra.mxu0 0.0
      %4552 = vmatprep.subr.mxu0 0.0
      %4553 = vmatpush1.msra.mxu0 %v4535
      %4554 = vmatprep.subr.mxu0 0.0
      %4555 = vmatpush1.msra.mxu0 %v4534
      %4556 = vmatprep.subr.mxu0 0.0
      %4557 = vmatpush1.msra.mxu0 %v4533
      %4558 = vmatprep.subr.mxu0 0.0
      %4559 = vmatpush1.msra.mxu0 %v4532
      %4560 = vmatprep.subr.mxu0 0.0
      %4561 = vmatpush1.msra.mxu0 %v4531
      %4562 = vmatprep.subr.mxu0 0.0
      %4563 = vmatpush1.msra.mxu0 %v4530
      %4564 = vmatprep.subr.mxu0 0.0
      %4565 = vmatpush1.msra.mxu0 %v4529
      %4566 = vmatprep.subr.mxu0 0.0
      %4567 = vmatpush1.msra.mxu0 %v4528
      %4568 = vmatprep.subr.mxu0 0.0
      %4569 = vmatpush2.msra.mxu0 0.0
      %4570 = vmatprep.subr.mxu0 0.0
      %4571 = vmatpush2.msra.mxu0 0.0
      %4572 = vmatprep.subr.mxu0 0.0
      %4573 = vmatpush2.msra.mxu0 0.0
      %4574 = vmatprep.subr.mxu0 0.0
      %4575 = vmatpush2.msra.mxu0 0.0
      %4576 = vmatprep.subr.mxu0 0.0
      %4577 = vmatpush2.msra.mxu0 0.0
      %4578 = vmatprep.subr.mxu0 0.0
      %4579 = vmatpush2.msra.mxu0 0.0
      %4580 = vmatprep.subr.mxu0 0.0
      %4581 = vmatpush2.msra.mxu0 0.0
      %4582 = vmatprep.subr.mxu0 0.0
      %4583 = vmatpush2.msra.mxu0 0.0
      %4584 = vmatprep.subr.mxu0 0.0
      %4585 = vmatpush2.msra.mxu0 0.0
      %4586 = vmatprep.subr.mxu0 0.0
      %4587 = vmatpush2.msra.mxu0 0.0
      %4588 = vmatprep.subr.mxu0 0.0
      %4589 = vmatpush2.msra.mxu0 0.0
      %4590 = vmatprep.subr.mxu0 0.0
      %4591 = vmatpush2.msra.mxu0 0.0
      %4592 = vmatprep.subr.mxu0 0.0
      %4593 = vmatpush2.msra.mxu0 0.0
      %4594 = vmatprep.subr.mxu0 0.0
      %4595 = vmatpush2.msra.mxu0 0.0
      %4596 = vmatprep.subr.mxu0 0.0
      %4597 = vmatpush2.msra.mxu0 0.0
      %4598 = vmatprep.subr.mxu0 0.0
      %4599 = vmatpush2.msra.mxu0 0.0
      %4600 = vmatprep.mubr.f32.mxu0 0.0
      %4601 = vmatmul.mubr.f32.gmra.mxu0 %v3099
      %v4602 = vpop.f32.mrf.mxu0
      %v4603 = vadd.f32 0.0, %v4602
      %v4604 = vpop.f32.mrf.mxu0
      %4605 = vmatprep.mubr.f32.mxu0 0.0
      %4606 = vmatmul.mubr.f32.gmra.mxu0 %v3102
      %v4607 = vpop.f32.mrf.mxu0
      %v4608 = vadd.f32 0.0, %v4607
      %v4609 = vpop.f32.mrf.mxu0
      %4610 = vdwg.mxu0
      %s4611 = scalar_lea.vmem %s6, 448
      %v4612 = vld [vmem:[%s4611] sm:$0xff]
      %v4613 = vld [vmem:[%s4611 + $0x8] sm:$0xff]
      %v4614 = vld [vmem:[%s4611 + $0x10] sm:$0xff]
      %v4615 = vld [vmem:[%s4611 + $0x18] sm:$0xff]
      %v4616 = vld [vmem:[%s4611 + $0x20] sm:$0xff]
      %v4617 = vld [vmem:[%s4611 + $0x28] sm:$0xff]
      %v4618 = vld [vmem:[%s4611 + $0x30] sm:$0xff]
      %v4619 = vld [vmem:[%s4611 + $0x38] sm:$0xff]
      %4620 = vmatprep.subr.mxu0 0.0
      %4621 = vmatpush1.msra.mxu0 0.0
      %4622 = vmatprep.subr.mxu0 0.0
      %4623 = vmatpush1.msra.mxu0 0.0
      %4624 = vmatprep.subr.mxu0 0.0
      %4625 = vmatpush1.msra.mxu0 0.0
      %4626 = vmatprep.subr.mxu0 0.0
      %4627 = vmatpush1.msra.mxu0 0.0
      %4628 = vmatprep.subr.mxu0 0.0
      %4629 = vmatpush1.msra.mxu0 0.0
      %4630 = vmatprep.subr.mxu0 0.0
      %4631 = vmatpush1.msra.mxu0 0.0
      %4632 = vmatprep.subr.mxu0 0.0
      %4633 = vmatpush1.msra.mxu0 0.0
      %4634 = vmatprep.subr.mxu0 0.0
      %4635 = vmatpush1.msra.mxu0 0.0
      %4636 = vmatprep.subr.mxu0 0.0
      %4637 = vmatpush1.msra.mxu0 %v4619
      %4638 = vmatprep.subr.mxu0 0.0
      %4639 = vmatpush1.msra.mxu0 %v4618
      %4640 = vmatprep.subr.mxu0 0.0
      %4641 = vmatpush1.msra.mxu0 %v4617
      %4642 = vmatprep.subr.mxu0 0.0
      %4643 = vmatpush1.msra.mxu0 %v4616
      %4644 = vmatprep.subr.mxu0 0.0
      %4645 = vmatpush1.msra.mxu0 %v4615
      %4646 = vmatprep.subr.mxu0 0.0
      %4647 = vmatpush1.msra.mxu0 %v4614
      %4648 = vmatprep.subr.mxu0 0.0
      %4649 = vmatpush1.msra.mxu0 %v4613
      %4650 = vmatprep.subr.mxu0 0.0
      %4651 = vmatpush1.msra.mxu0 %v4612
      %4652 = vmatprep.subr.mxu0 0.0
      %4653 = vmatpush2.msra.mxu0 0.0
      %4654 = vmatprep.subr.mxu0 0.0
      %4655 = vmatpush2.msra.mxu0 0.0
      %4656 = vmatprep.subr.mxu0 0.0
      %4657 = vmatpush2.msra.mxu0 0.0
      %4658 = vmatprep.subr.mxu0 0.0
      %4659 = vmatpush2.msra.mxu0 0.0
      %4660 = vmatprep.subr.mxu0 0.0
      %4661 = vmatpush2.msra.mxu0 0.0
      %4662 = vmatprep.subr.mxu0 0.0
      %4663 = vmatpush2.msra.mxu0 0.0
      %4664 = vmatprep.subr.mxu0 0.0
      %4665 = vmatpush2.msra.mxu0 0.0
      %4666 = vmatprep.subr.mxu0 0.0
      %4667 = vmatpush2.msra.mxu0 0.0
      %4668 = vmatprep.subr.mxu0 0.0
      %4669 = vmatpush2.msra.mxu0 0.0
      %4670 = vmatprep.subr.mxu0 0.0
      %4671 = vmatpush2.msra.mxu0 0.0
      %4672 = vmatprep.subr.mxu0 0.0
      %4673 = vmatpush2.msra.mxu0 0.0
      %4674 = vmatprep.subr.mxu0 0.0
      %4675 = vmatpush2.msra.mxu0 0.0
      %4676 = vmatprep.subr.mxu0 0.0
      %4677 = vmatpush2.msra.mxu0 0.0
      %4678 = vmatprep.subr.mxu0 0.0
      %4679 = vmatpush2.msra.mxu0 0.0
      %4680 = vmatprep.subr.mxu0 0.0
      %4681 = vmatpush2.msra.mxu0 0.0
      %4682 = vmatprep.subr.mxu0 0.0
      %4683 = vmatpush2.msra.mxu0 0.0
      %4684 = vmatprep.mubr.f32.mxu0 0.0
      %4685 = vmatmul.mubr.f32.gmra.mxu0 %v3099
      %v4686 = vpop.f32.mrf.mxu0
      %v4687 = vadd.f32 0.0, %v4686
      %v4688 = vpop.f32.mrf.mxu0
      %4689 = vmatprep.mubr.f32.mxu0 0.0
      %4690 = vmatmul.mubr.f32.gmra.mxu0 %v3102
      %v4691 = vpop.f32.mrf.mxu0
      %v4692 = vadd.f32 0.0, %v4691
      %v4693 = vpop.f32.mrf.mxu0
      %4694 = vdwg.mxu0
      %v4696 = vsel %vm1095, %v4519, 0
      %v4699 = vsel %vm1095, %v4524, 0
      %v4702 = vsel %vm1095, %v4603, 0
      %v4705 = vsel %vm1095, %v4608, 0
      %4707 = vmatprep.subr.mxu0 0.0
      %4708 = vmatpush1.xpose.msra.mxu0 0.0
      %4709 = vmatprep.subr.mxu0 0.0
      %4710 = vmatpush1.xpose.msra.mxu0 0.0
      %4711 = vmatprep.subr.mxu0 0.0
      %4712 = vmatpush1.xpose.msra.mxu0 0.0
      %4713 = vmatprep.subr.mxu0 0.0
      %4714 = vmatpush1.xpose.msra.mxu0 0.0
      %4715 = vmatprep.subr.mxu0 0.0
      %4716 = vmatpush1.xpose.msra.mxu0 0.0
      %4717 = vmatprep.subr.mxu0 0.0
      %4718 = vmatpush1.xpose.msra.mxu0 0.0
      %4719 = vmatprep.subr.mxu0 0.0
      %4720 = vmatpush1.xpose.msra.mxu0 0.0
      %4721 = vmatprep.subr.mxu0 0.0
      %4722 = vmatpush1.xpose.msra.mxu0 0.0
      %4723 = vmatprep.subr.mxu0 0.0
      %4724 = vmatpush1.xpose.msra.mxu0 0.0
      %4725 = vmatprep.subr.mxu0 0.0
      %4726 = vmatpush1.xpose.msra.mxu0 0.0
      %4727 = vmatprep.subr.mxu0 0.0
      %4728 = vmatpush1.xpose.msra.mxu0 0.0
      %4729 = vmatprep.subr.mxu0 0.0
      %4730 = vmatpush1.xpose.msra.mxu0 0.0
      %4731 = vmatprep.subr.mxu0 0.0
      %4732 = vmatpush1.xpose.msra.mxu0 0.0
      %4733 = vmatprep.subr.mxu0 0.0
      %4734 = vmatpush1.xpose.msra.mxu0 0.0
      %4735 = vmatprep.subr.mxu0 0.0
      %4736 = vmatpush1.xpose.msra.mxu0 %v4705
      %4737 = vmatprep.subr.mxu0 0.0
      %4738 = vmatpush1.xpose.msra.mxu0 %v4702
      %4739 = vmatprep.subr.mxu0 0.0
      %4740 = vmatpush2.xpose.msra.mxu0 0.0
      %4741 = vmatprep.subr.mxu0 0.0
      %4742 = vmatpush2.xpose.msra.mxu0 0.0
      %4743 = vmatprep.subr.mxu0 0.0
      %4744 = vmatpush2.xpose.msra.mxu0 0.0
      %4745 = vmatprep.subr.mxu0 0.0
      %4746 = vmatpush2.xpose.msra.mxu0 0.0
      %4747 = vmatprep.subr.mxu0 0.0
      %4748 = vmatpush2.xpose.msra.mxu0 0.0
      %4749 = vmatprep.subr.mxu0 0.0
      %4750 = vmatpush2.xpose.msra.mxu0 0.0
      %4751 = vmatprep.subr.mxu0 0.0
      %4752 = vmatpush2.xpose.msra.mxu0 0.0
      %4753 = vmatprep.subr.mxu0 0.0
      %4754 = vmatpush2.xpose.msra.mxu0 0.0
      %4755 = vmatprep.subr.mxu0 0.0
      %4756 = vmatpush2.xpose.msra.mxu0 0.0
      %4757 = vmatprep.subr.mxu0 0.0
      %4758 = vmatpush2.xpose.msra.mxu0 0.0
      %4759 = vmatprep.subr.mxu0 0.0
      %4760 = vmatpush2.xpose.msra.mxu0 0.0
      %4761 = vmatprep.subr.mxu0 0.0
      %4762 = vmatpush2.xpose.msra.mxu0 0.0
      %4763 = vmatprep.subr.mxu0 0.0
      %4764 = vmatpush2.xpose.msra.mxu0 0.0
      %4765 = vmatprep.subr.mxu0 0.0
      %4766 = vmatpush2.xpose.msra.mxu0 0.0
      %4767 = vmatprep.subr.mxu0 0.0
      %4768 = vmatpush2.xpose.msra.mxu0 0.0
      %4769 = vmatprep.subr.mxu0 0.0
      %4770 = vmatpush2.xpose.msra.mxu0 0.0
      %4771 = vmatprep.mubr.f32.mxu0 0.0
      %4772 = vmatmul.mubr.f32.gmra.mxu0 %v4696
      %v4773 = vpop.f32.mrf.mxu0
      %v4774 = vadd.f32 %v792, %v4773
      %v4775 = vpop.f32.mrf.mxu0
      %4776 = vmatprep.mubr.f32.mxu0 0.0
      %4777 = vmatmul.mubr.f32.gmra.mxu0 %v4699
      %v4778 = vpop.f32.mrf.mxu0
      %v4779 = vadd.f32 %v793, %v4778
      %v4780 = vpop.f32.mrf.mxu0
      %4781 = vdwg.mxu0
      %v4782 = vsel %vm1095, %v4774, -inf
      %4783 = vmax.xlane.f32.xlu0 %v4782
      %v4784 = vpop.xlane.xlu0 %4783
      %v4785 = vsel %vm1095, %v4779, -inf
      %4786 = vmax.xlane.f32.xlu0 %v4785
      %v4787 = vpop.xlane.xlu0 %4786
      %v4788 = vsub.f32 %v4774, %v4784
      %v4789 = vsub.f32 %v4779, %v4787
      %v4790 = vmul.f32 %v4788, 1.442695
      %v4791 = vpow.pop %v4790
      %v4792 = vmul.f32 %v4789, 1.442695
      %v4793 = vpow.pop %v4792
      %v4794 = vsel %vm1095, %v4791, 0.0
      %4795 = vadd.xlane.f32.xlu0 %v4794
      %v4796 = vpop.xlane.xlu0 %4795
      %v4797 = vsel %vm1095, %v4793, 0.0
      %4798 = vadd.xlane.f32.xlu0 %v4797
      %v4799 = vpop.xlane.xlu0 %4798
      %v4800 = vrcp.pop %v4796
      %v4801 = vrcp.pop %v4799
      %v4802 = vmul.f32 %v4791, %v4800
      %v4803 = vmul.f32 %v4793, %v4801
      %v4805 = vsel %vm1095, %v4802, 0
      %v4808 = vsel %vm1095, %v4803, 0
      %4810 = vmatprep.subr.mxu0 0.0
      %4811 = vmatpush1.msra.mxu0 0.0
      %4812 = vmatprep.subr.mxu0 0.0
      %4813 = vmatpush1.msra.mxu0 0.0
      %4814 = vmatprep.subr.mxu0 0.0
      %4815 = vmatpush1.msra.mxu0 0.0
      %4816 = vmatprep.subr.mxu0 0.0
      %4817 = vmatpush1.msra.mxu0 0.0
      %4818 = vmatprep.subr.mxu0 0.0
      %4819 = vmatpush1.msra.mxu0 0.0
      %4820 = vmatprep.subr.mxu0 0.0
      %4821 = vmatpush1.msra.mxu0 0.0
      %4822 = vmatprep.subr.mxu0 0.0
      %4823 = vmatpush1.msra.mxu0 0.0
      %4824 = vmatprep.subr.mxu0 0.0
      %4825 = vmatpush1.msra.mxu0 0.0
      %4826 = vmatprep.subr.mxu0 0.0
      %4827 = vmatpush1.msra.mxu0 0.0
      %4828 = vmatprep.subr.mxu0 0.0
      %4829 = vmatpush1.msra.mxu0 0.0
      %4830 = vmatprep.subr.mxu0 0.0
      %4831 = vmatpush1.msra.mxu0 0.0
      %4832 = vmatprep.subr.mxu0 0.0
      %4833 = vmatpush1.msra.mxu0 0.0
      %4834 = vmatprep.subr.mxu0 0.0
      %4835 = vmatpush1.msra.mxu0 0.0
      %4836 = vmatprep.subr.mxu0 0.0
      %4837 = vmatpush1.msra.mxu0 0.0
      %4838 = vmatprep.subr.mxu0 0.0
      %4839 = vmatpush1.msra.mxu0 %v4692
      %4840 = vmatprep.subr.mxu0 0.0
      %4841 = vmatpush1.msra.mxu0 %v4687
      %4842 = vmatprep.subr.mxu0 0.0
      %4843 = vmatpush2.msra.mxu0 0.0
      %4844 = vmatprep.subr.mxu0 0.0
      %4845 = vmatpush2.msra.mxu0 0.0
      %4846 = vmatprep.subr.mxu0 0.0
      %4847 = vmatpush2.msra.mxu0 0.0
      %4848 = vmatprep.subr.mxu0 0.0
      %4849 = vmatpush2.msra.mxu0 0.0
      %4850 = vmatprep.subr.mxu0 0.0
      %4851 = vmatpush2.msra.mxu0 0.0
      %4852 = vmatprep.subr.mxu0 0.0
      %4853 = vmatpush2.msra.mxu0 0.0
      %4854 = vmatprep.subr.mxu0 0.0
      %4855 = vmatpush2.msra.mxu0 0.0
      %4856 = vmatprep.subr.mxu0 0.0
      %4857 = vmatpush2.msra.mxu0 0.0
      %4858 = vmatprep.subr.mxu0 0.0
      %4859 = vmatpush2.msra.mxu0 0.0
      %4860 = vmatprep.subr.mxu0 0.0
      %4861 = vmatpush2.msra.mxu0 0.0
      %4862 = vmatprep.subr.mxu0 0.0
      %4863 = vmatpush2.msra.mxu0 0.0
      %4864 = vmatprep.subr.mxu0 0.0
      %4865 = vmatpush2.msra.mxu0 0.0
      %4866 = vmatprep.subr.mxu0 0.0
      %4867 = vmatpush2.msra.mxu0 0.0
      %4868 = vmatprep.subr.mxu0 0.0
      %4869 = vmatpush2.msra.mxu0 0.0
      %4870 = vmatprep.subr.mxu0 0.0
      %4871 = vmatpush2.msra.mxu0 0.0
      %4872 = vmatprep.subr.mxu0 0.0
      %4873 = vmatpush2.msra.mxu0 0.0
      %4874 = vmatprep.mubr.f32.mxu0 0.0
      %4875 = vmatmul.mubr.f32.gmra.mxu0 %v4805
      %v4876 = vpop.f32.mrf.mxu0
      %v4877 = vadd.f32 0.0, %v4876
      %v4878 = vpop.f32.mrf.mxu0
      %4879 = vmatprep.mubr.f32.mxu0 0.0
      %4880 = vmatmul.mubr.f32.gmra.mxu0 %v4808
      %v4881 = vpop.f32.mrf.mxu0
      %v4882 = vadd.f32 0.0, %v4881
      %v4883 = vpop.f32.mrf.mxu0
      %4884 = vdwg.mxu0
      %4887 = vrot.lane.b32.xlu0 %v4877, 48
      %v4888 = vpop.permute.xlu0 %4887
      %4889 = vrot.lane.b32.xlu0 %v4882, 48
      %v4890 = vpop.permute.xlu0 %4889
      %4893 = vst.msk [vmem:[#allocation2] sm:$0xff] %vm2644, %v4888
      %4894 = vst.msk [vmem:[#allocation2 + $0x8] sm:$0xff] %vm2644, %v4890
      %v4895 = vld [vmem:[#allocation2] sm:$0xff]
      %v4896 = vld [vmem:[#allocation2 + $0x8] sm:$0xff]
      %s4897 = scalar_lea.vmem %s9, 64
      %v4898 = vld [vmem:[%s4897] sm:$0xff]
      %v4899 = vld [vmem:[%s4897 + $0x8] sm:$0xff]
      %v4900 = vld [vmem:[%s4897 + $0x10] sm:$0xff]
      %v4901 = vld [vmem:[%s4897 + $0x18] sm:$0xff]
      %v4902 = vld [vmem:[%s4897 + $0x20] sm:$0xff]
      %v4903 = vld [vmem:[%s4897 + $0x28] sm:$0xff]
      %v4904 = vld [vmem:[%s4897 + $0x30] sm:$0xff]
      %v4905 = vld [vmem:[%s4897 + $0x38] sm:$0xff]
      %s4906 = scalar_lea.vmem %s10, 1
      %v4907 = vld [vmem:[%s4906] sm:$0x1]
      %v4909 = vlaneseq
      %v4910 = vshrl.u32 %v4909, 7
      %v4911 = vsub.s32 0, %v4910
      %v4912 = vrot.slane %v4907, %v4911
      %v4915 = vsel %vm796, %v4895, 0
      %v4918 = vsel %vm796, %v4896, 0
      %4920 = vmatprep.subr.mxu0 0.0
      %4921 = vmatpush1.msra.mxu0 0.0
      %4922 = vmatprep.subr.mxu0 0.0
      %4923 = vmatpush1.msra.mxu0 0.0
      %4924 = vmatprep.subr.mxu0 0.0
      %4925 = vmatpush1.msra.mxu0 0.0
      %4926 = vmatprep.subr.mxu0 0.0
      %4927 = vmatpush1.msra.mxu0 0.0
      %4928 = vmatprep.subr.mxu0 0.0
      %4929 = vmatpush1.msra.mxu0 0.0
      %4930 = vmatprep.subr.mxu0 0.0
      %4931 = vmatpush1.msra.mxu0 0.0
      %4932 = vmatprep.subr.mxu0 0.0
      %4933 = vmatpush1.msra.mxu0 0.0
      %4934 = vmatprep.subr.mxu0 0.0
      %4935 = vmatpush1.msra.mxu0 0.0
      %4936 = vmatprep.subr.mxu0 0.0
      %4937 = vmatpush1.msra.mxu0 %v4905
      %4938 = vmatprep.subr.mxu0 0.0
      %4939 = vmatpush1.msra.mxu0 %v4904
      %4940 = vmatprep.subr.mxu0 0.0
      %4941 = vmatpush1.msra.mxu0 %v4903
      %4942 = vmatprep.subr.mxu0 0.0
      %4943 = vmatpush1.msra.mxu0 %v4902
      %4944 = vmatprep.subr.mxu0 0.0
      %4945 = vmatpush1.msra.mxu0 %v4901
      %4946 = vmatprep.subr.mxu0 0.0
      %4947 = vmatpush1.msra.mxu0 %v4900
      %4948 = vmatprep.subr.mxu0 0.0
      %4949 = vmatpush1.msra.mxu0 %v4899
      %4950 = vmatprep.subr.mxu0 0.0
      %4951 = vmatpush1.msra.mxu0 %v4898
      %4952 = vmatprep.subr.mxu0 0.0
      %4953 = vmatpush2.msra.mxu0 0.0
      %4954 = vmatprep.subr.mxu0 0.0
      %4955 = vmatpush2.msra.mxu0 0.0
      %4956 = vmatprep.subr.mxu0 0.0
      %4957 = vmatpush2.msra.mxu0 0.0
      %4958 = vmatprep.subr.mxu0 0.0
      %4959 = vmatpush2.msra.mxu0 0.0
      %4960 = vmatprep.subr.mxu0 0.0
      %4961 = vmatpush2.msra.mxu0 0.0
      %4962 = vmatprep.subr.mxu0 0.0
      %4963 = vmatpush2.msra.mxu0 0.0
      %4964 = vmatprep.subr.mxu0 0.0
      %4965 = vmatpush2.msra.mxu0 0.0
      %4966 = vmatprep.subr.mxu0 0.0
      %4967 = vmatpush2.msra.mxu0 0.0
      %4968 = vmatprep.subr.mxu0 0.0
      %4969 = vmatpush2.msra.mxu0 0.0
      %4970 = vmatprep.subr.mxu0 0.0
      %4971 = vmatpush2.msra.mxu0 0.0
      %4972 = vmatprep.subr.mxu0 0.0
      %4973 = vmatpush2.msra.mxu0 0.0
      %4974 = vmatprep.subr.mxu0 0.0
      %4975 = vmatpush2.msra.mxu0 0.0
      %4976 = vmatprep.subr.mxu0 0.0
      %4977 = vmatpush2.msra.mxu0 0.0
      %4978 = vmatprep.subr.mxu0 0.0
      %4979 = vmatpush2.msra.mxu0 0.0
      %4980 = vmatprep.subr.mxu0 0.0
      %4981 = vmatpush2.msra.mxu0 0.0
      %4982 = vmatprep.subr.mxu0 0.0
      %4983 = vmatpush2.msra.mxu0 0.0
      %4984 = vmatprep.mubr.f32.mxu0 0.0
      %4985 = vmatmul.mubr.f32.gmra.mxu0 %v4915
      %v4986 = vpop.f32.mrf.mxu0
      %v4987 = vadd.f32 %v4912, %v4986
      %v4988 = vpop.f32.mrf.mxu0
      %4989 = vmatprep.mubr.f32.mxu0 0.0
      %4990 = vmatmul.mubr.f32.gmra.mxu0 %v4918
      %v4991 = vpop.f32.mrf.mxu0
      %v4992 = vadd.f32 %v4912, %v4991
      %v4993 = vpop.f32.mrf.mxu0
      %4994 = vdwg.mxu0
      %v4995 = vadd.f32 %v3041, %v4987
      %v4996 = vadd.f32 %v3042, %v4992
      %s4997 = scalar_lea.vmem %s11, 1
      %v4998 = vld [vmem:[%s4997] sm:$0x1]
      %s4999 = scalar_lea.vmem %s12, 1
      %v5000 = vld [vmem:[%s4999] sm:$0x1]
      %v5001 = vsel %vm796, %v4995, 0.0
      %5002 = vadd.xlane.f32.xlu0 %v5001
      %v5003 = vpop.xlane.xlu0 %5002
      %v5004 = vsel %vm796, %v4996, 0.0
      %5005 = vadd.xlane.f32.xlu0 %v5004
      %v5006 = vpop.xlane.xlu0 %5005
      %v5007 = vmul.f32 %v5003, %v803
      %v5008 = vmul.f32 %v5006, %v803
      %v5009 = vsub.f32 %v4995, %v5007
      %v5010 = vsub.f32 %v4996, %v5008
      %v5011 = vmul.f32 %v5009, %v5009
      %v5012 = vmul.f32 %v5010, %v5010
      %v5013 = vsel %vm796, %v5011, 0.0
      %5014 = vadd.xlane.f32.xlu0 %v5013
      %v5015 = vpop.xlane.xlu0 %5014
      %v5016 = vsel %vm796, %v5012, 0.0
      %5017 = vadd.xlane.f32.xlu0 %v5016
      %v5018 = vpop.xlane.xlu0 %5017
      %v5019 = vmul.f32 %v5015, %v803
      %v5020 = vmul.f32 %v5018, %v803
      %v5021 = vadd.f32 %v5019, 1e-05
      %v5022 = vadd.f32 %v5020, 1e-05
      %v5023 = vrsqrt.pop %v5021
      %v5024 = vrsqrt.pop %v5022
      %v5025 = vmul.f32 %v5009, %v5023
      %v5026 = vmul.f32 %v5010, %v5024
      %v5028 = vlaneseq
      %v5029 = vshrl.u32 %v5028, 7
      %v5030 = vsub.s32 0, %v5029
      %v5031 = vrot.slane %v4998, %v5030
      %v5033 = vmul.f32 %v5025, %v5031
      %v5034 = vmul.f32 %v5026, %v5031
      %v5036 = vlaneseq
      %v5037 = vshrl.u32 %v5036, 7
      %v5038 = vsub.s32 0, %v5037
      %v5039 = vrot.slane %v5000, %v5038
      %v5041 = vadd.f32 %v5033, %v5039
      %v5042 = vadd.f32 %v5034, %v5039
      %s5043 = scalar_lea.vmem %s13, 64
      %v5044 = vld [vmem:[%s5043] sm:$0xff]
      %v5045 = vld [vmem:[%s5043 + $0x8] sm:$0xff]
      %v5046 = vld [vmem:[%s5043 + $0x10] sm:$0xff]
      %v5047 = vld [vmem:[%s5043 + $0x18] sm:$0xff]
      %v5048 = vld [vmem:[%s5043 + $0x20] sm:$0xff]
      %v5049 = vld [vmem:[%s5043 + $0x28] sm:$0xff]
      %v5050 = vld [vmem:[%s5043 + $0x30] sm:$0xff]
      %v5051 = vld [vmem:[%s5043 + $0x38] sm:$0xff]
      %s5052 = scalar_lea.vmem %s14, 1
      %v5053 = vld [vmem:[%s5052] sm:$0x1]
      %v5055 = vlaneseq
      %v5056 = vshrl.u32 %v5055, 7
      %v5057 = vsub.s32 0, %v5056
      %v5058 = vrot.slane %v5053, %v5057
      %v5061 = vsel %vm796, %v5041, 0
      %v5064 = vsel %vm796, %v5042, 0
      %5066 = vmatprep.subr.mxu0 0.0
      %5067 = vmatpush1.msra.mxu0 0.0
      %5068 = vmatprep.subr.mxu0 0.0
      %5069 = vmatpush1.msra.mxu0 0.0
      %5070 = vmatprep.subr.mxu0 0.0
      %5071 = vmatpush1.msra.mxu0 0.0
      %5072 = vmatprep.subr.mxu0 0.0
      %5073 = vmatpush1.msra.mxu0 0.0
      %5074 = vmatprep.subr.mxu0 0.0
      %5075 = vmatpush1.msra.mxu0 0.0
      %5076 = vmatprep.subr.mxu0 0.0
      %5077 = vmatpush1.msra.mxu0 0.0
      %5078 = vmatprep.subr.mxu0 0.0
      %5079 = vmatpush1.msra.mxu0 0.0
      %5080 = vmatprep.subr.mxu0 0.0
      %5081 = vmatpush1.msra.mxu0 0.0
      %5082 = vmatprep.subr.mxu0 0.0
      %5083 = vmatpush1.msra.mxu0 %v5051
      %5084 = vmatprep.subr.mxu0 0.0
      %5085 = vmatpush1.msra.mxu0 %v5050
      %5086 = vmatprep.subr.mxu0 0.0
      %5087 = vmatpush1.msra.mxu0 %v5049
      %5088 = vmatprep.subr.mxu0 0.0
      %5089 = vmatpush1.msra.mxu0 %v5048
      %5090 = vmatprep.subr.mxu0 0.0
      %5091 = vmatpush1.msra.mxu0 %v5047
      %5092 = vmatprep.subr.mxu0 0.0
      %5093 = vmatpush1.msra.mxu0 %v5046
      %5094 = vmatprep.subr.mxu0 0.0
      %5095 = vmatpush1.msra.mxu0 %v5045
      %5096 = vmatprep.subr.mxu0 0.0
      %5097 = vmatpush1.msra.mxu0 %v5044
      %5098 = vmatprep.subr.mxu0 0.0
      %5099 = vmatpush2.msra.mxu0 0.0
      %5100 = vmatprep.subr.mxu0 0.0
      %5101 = vmatpush2.msra.mxu0 0.0
      %5102 = vmatprep.subr.mxu0 0.0
      %5103 = vmatpush2.msra.mxu0 0.0
      %5104 = vmatprep.subr.mxu0 0.0
      %5105 = vmatpush2.msra.mxu0 0.0
      %5106 = vmatprep.subr.mxu0 0.0
      %5107 = vmatpush2.msra.mxu0 0.0
      %5108 = vmatprep.subr.mxu0 0.0
      %5109 = vmatpush2.msra.mxu0 0.0
      %5110 = vmatprep.subr.mxu0 0.0
      %5111 = vmatpush2.msra.mxu0 0.0
      %5112 = vmatprep.subr.mxu0 0.0
      %5113 = vmatpush2.msra.mxu0 0.0
      %5114 = vmatprep.subr.mxu0 0.0
      %5115 = vmatpush2.msra.mxu0 0.0
      %5116 = vmatprep.subr.mxu0 0.0
      %5117 = vmatpush2.msra.mxu0 0.0
      %5118 = vmatprep.subr.mxu0 0.0
      %5119 = vmatpush2.msra.mxu0 0.0
      %5120 = vmatprep.subr.mxu0 0.0
      %5121 = vmatpush2.msra.mxu0 0.0
      %5122 = vmatprep.subr.mxu0 0.0
      %5123 = vmatpush2.msra.mxu0 0.0
      %5124 = vmatprep.subr.mxu0 0.0
      %5125 = vmatpush2.msra.mxu0 0.0
      %5126 = vmatprep.subr.mxu0 0.0
      %5127 = vmatpush2.msra.mxu0 0.0
      %5128 = vmatprep.subr.mxu0 0.0
      %5129 = vmatpush2.msra.mxu0 0.0
      %5130 = vmatprep.mubr.f32.mxu0 0.0
      %5131 = vmatmul.mubr.f32.gmra.mxu0 %v5061
      %v5132 = vpop.f32.mrf.mxu0
      %v5133 = vadd.f32 %v5058, %v5132
      %v5134 = vpop.f32.mrf.mxu0
      %5135 = vmatprep.mubr.f32.mxu0 0.0
      %5136 = vmatmul.mubr.f32.gmra.mxu0 %v5064
      %v5137 = vpop.f32.mrf.mxu0
      %v5138 = vadd.f32 %v5058, %v5137
      %v5139 = vpop.f32.mrf.mxu0
      %5140 = vdwg.mxu0
      %v5141 = vmul.f32 %v5133, 0.5
      %v5142 = vmul.f32 %v5138, 0.5
      %v5143 = vmul.f32 %v5133, 0.70710677
      %v5144 = vmul.f32 %v5138, 0.70710677
      %vm5145 = vcmp.ge.f32.partialorder %v5143, 0.0
      %vm5146 = vcmp.ge.f32.partialorder %v5144, 0.0
      %v5147 = vsel %vm5145, 1.0, -1.0
      %v5148 = vsel %vm5146, 1.0, -1.0
      %v5149 = vand.u32 2147483647, %v5143
      %v5150 = vand.u32 2147483647, %v5144
      %v5151 = vmul.f32 %v5149, 0.3275911
      %v5152 = vmul.f32 %v5150, 0.3275911
      %v5153 = vadd.f32 %v5151, 1.0
      %v5154 = vadd.f32 %v5152, 1.0
      %v5155 = vrcp.pop %v5153
      %v5156 = vmul.f32 1.0, %v5155
      %v5157 = vrcp.pop %v5154
      %v5158 = vmul.f32 1.0, %v5157
      %v5159 = vmul.f32 %v5156, 1.0614054
      %v5160 = vmul.f32 %v5158, 1.0614054
      %v5161 = vadd.f32 %v5159, -1.4531521
      %v5162 = vadd.f32 %v5160, -1.4531521
      %v5163 = vmul.f32 %v5161, %v5156
      %v5164 = vmul.f32 %v5162, %v5158
      %v5165 = vadd.f32 %v5163, 1.4214138
      %v5166 = vadd.f32 %v5164, 1.4214138
      %v5167 = vmul.f32 %v5165, %v5156
      %v5168 = vmul.f32 %v5166, %v5158
      %v5169 = vadd.f32 %v5167, -0.28449672
      %v5170 = vadd.f32 %v5168, -0.28449672
      %v5171 = vmul.f32 %v5169, %v5156
      %v5172 = vmul.f32 %v5170, %v5158
      %v5173 = vadd.f32 %v5171, 0.2548296
      %v5174 = vadd.f32 %v5172, 0.2548296
      %v5175 = vmul.f32 %v5173, %v5156
      %v5176 = vmul.f32 %v5174, %v5158
      %v5177 = vsub.f32 0.0, %v5149
      %v5178 = vsub.f32 0.0, %v5150
      %v5179 = vmul.f32 %v5177, %v5149
      %v5180 = vmul.f32 %v5178, %v5150
      %v5181 = vmul.f32 %v5179, 1.442695
      %v5182 = vpow.pop %v5181
      %v5183 = vmul.f32 %v5180, 1.442695
      %v5184 = vpow.pop %v5183
      %v5185 = vmul.f32 %v5175, %v5182
      %v5186 = vmul.f32 %v5176, %v5184
      %v5187 = vsub.f32 1.0, %v5185
      %v5188 = vsub.f32 1.0, %v5186
      %v5189 = vmul.f32 %v5147, %v5187
      %v5190 = vmul.f32 %v5148, %v5188
      %v5191 = vadd.f32 %v5189, 1.0
      %v5192 = vadd.f32 %v5190, 1.0
      %v5193 = vmul.f32 %v5141, %v5191
      %v5194 = vmul.f32 %v5142, %v5192
      %s5195 = scalar_lea.vmem %s15, 128
      %v5196 = vld [vmem:[%s5195] sm:$0xff]
      %v5197 = vld [vmem:[%s5195 + $0x8] sm:$0xff]
      %v5198 = vld [vmem:[%s5195 + $0x10] sm:$0xff]
      %v5199 = vld [vmem:[%s5195 + $0x18] sm:$0xff]
      %v5200 = vld [vmem:[%s5195 + $0x20] sm:$0xff]
      %v5201 = vld [vmem:[%s5195 + $0x28] sm:$0xff]
      %v5202 = vld [vmem:[%s5195 + $0x30] sm:$0xff]
      %v5203 = vld [vmem:[%s5195 + $0x38] sm:$0xff]
      %v5204 = vld [vmem:[%s5195 + $0x40] sm:$0xff]
      %v5205 = vld [vmem:[%s5195 + $0x48] sm:$0xff]
      %v5206 = vld [vmem:[%s5195 + $0x50] sm:$0xff]
      %v5207 = vld [vmem:[%s5195 + $0x58] sm:$0xff]
      %v5208 = vld [vmem:[%s5195 + $0x60] sm:$0xff]
      %v5209 = vld [vmem:[%s5195 + $0x68] sm:$0xff]
      %v5210 = vld [vmem:[%s5195 + $0x70] sm:$0xff]
      %v5211 = vld [vmem:[%s5195 + $0x78] sm:$0xff]
      %5212 = vmatprep.subr.mxu0 0.0
      %5213 = vmatpush1.msra.mxu0 %v5211
      %5214 = vmatprep.subr.mxu0 0.0
      %5215 = vmatpush1.msra.mxu0 %v5210
      %5216 = vmatprep.subr.mxu0 0.0
      %5217 = vmatpush1.msra.mxu0 %v5209
      %5218 = vmatprep.subr.mxu0 0.0
      %5219 = vmatpush1.msra.mxu0 %v5208
      %5220 = vmatprep.subr.mxu0 0.0
      %5221 = vmatpush1.msra.mxu0 %v5207
      %5222 = vmatprep.subr.mxu0 0.0
      %5223 = vmatpush1.msra.mxu0 %v5206
      %5224 = vmatprep.subr.mxu0 0.0
      %5225 = vmatpush1.msra.mxu0 %v5205
      %5226 = vmatprep.subr.mxu0 0.0
      %5227 = vmatpush1.msra.mxu0 %v5204
      %5228 = vmatprep.subr.mxu0 0.0
      %5229 = vmatpush1.msra.mxu0 %v5203
      %5230 = vmatprep.subr.mxu0 0.0
      %5231 = vmatpush1.msra.mxu0 %v5202
      %5232 = vmatprep.subr.mxu0 0.0
      %5233 = vmatpush1.msra.mxu0 %v5201
      %5234 = vmatprep.subr.mxu0 0.0
      %5235 = vmatpush1.msra.mxu0 %v5200
      %5236 = vmatprep.subr.mxu0 0.0
      %5237 = vmatpush1.msra.mxu0 %v5199
      %5238 = vmatprep.subr.mxu0 0.0
      %5239 = vmatpush1.msra.mxu0 %v5198
      %5240 = vmatprep.subr.mxu0 0.0
      %5241 = vmatpush1.msra.mxu0 %v5197
      %5242 = vmatprep.subr.mxu0 0.0
      %5243 = vmatpush1.msra.mxu0 %v5196
      %5244 = vmatprep.subr.mxu0 0.0
      %5245 = vmatpush2.msra.mxu0 0.0
      %5246 = vmatprep.subr.mxu0 0.0
      %5247 = vmatpush2.msra.mxu0 0.0
      %5248 = vmatprep.subr.mxu0 0.0
      %5249 = vmatpush2.msra.mxu0 0.0
      %5250 = vmatprep.subr.mxu0 0.0
      %5251 = vmatpush2.msra.mxu0 0.0
      %5252 = vmatprep.subr.mxu0 0.0
      %5253 = vmatpush2.msra.mxu0 0.0
      %5254 = vmatprep.subr.mxu0 0.0
      %5255 = vmatpush2.msra.mxu0 0.0
      %5256 = vmatprep.subr.mxu0 0.0
      %5257 = vmatpush2.msra.mxu0 0.0
      %5258 = vmatprep.subr.mxu0 0.0
      %5259 = vmatpush2.msra.mxu0 0.0
      %5260 = vmatprep.subr.mxu0 0.0
      %5261 = vmatpush2.msra.mxu0 0.0
      %5262 = vmatprep.subr.mxu0 0.0
      %5263 = vmatpush2.msra.mxu0 0.0
      %5264 = vmatprep.subr.mxu0 0.0
      %5265 = vmatpush2.msra.mxu0 0.0
      %5266 = vmatprep.subr.mxu0 0.0
      %5267 = vmatpush2.msra.mxu0 0.0
      %5268 = vmatprep.subr.mxu0 0.0
      %5269 = vmatpush2.msra.mxu0 0.0
      %5270 = vmatprep.subr.mxu0 0.0
      %5271 = vmatpush2.msra.mxu0 0.0
      %5272 = vmatprep.subr.mxu0 0.0
      %5273 = vmatpush2.msra.mxu0 0.0
      %5274 = vmatprep.subr.mxu0 0.0
      %5275 = vmatpush2.msra.mxu0 0.0
      %5276 = vmatprep.mubr.f32.mxu0 0.0
      %5277 = vmatmul.mubr.f32.gmra.mxu0 %v5193
      %v5278 = vpop.f32.mrf.mxu0
      %v5279 = vadd.f32 0.0, %v5278
      %v5280 = vpop.f32.mrf.mxu0
      %5281 = vmatprep.mubr.f32.mxu0 0.0
      %5282 = vmatmul.mubr.f32.gmra.mxu0 %v5194
      %v5283 = vpop.f32.mrf.mxu0
      %v5284 = vadd.f32 0.0, %v5283
      %v5285 = vpop.f32.mrf.mxu0
      %5286 = vdwg.mxu0
      %v5287 = vadd.f32 %v4995, %v5279
      %v5288 = vadd.f32 %v4996, %v5284
      %s5289 = scalar_lea.vmem %s16, 1
      %v5290 = vld [vmem:[%s5289] sm:$0x1]
      %v5292 = vlaneseq
      %v5293 = vshrl.u32 %v5292, 7
      %v5294 = vsub.s32 0, %v5293
      %v5295 = vrot.slane %v5290, %v5294
      %v5297 = vadd.f32 %v5287, %v5295
      %v5298 = vadd.f32 %v5288, %v5295
      %v5299 = vld [vmem:[%s17] sm:$0x1]
      %v5300 = vld [vmem:[%s18] sm:$0x1]
      %v5301 = vsel %vm796, %v5297, 0.0
      %5302 = vadd.xlane.f32.xlu0 %v5301
      %v5303 = vpop.xlane.xlu0 %5302
      %v5304 = vsel %vm796, %v5298, 0.0
      %5305 = vadd.xlane.f32.xlu0 %v5304
      %v5306 = vpop.xlane.xlu0 %5305
      %v5307 = vmul.f32 %v5303, %v803
      %v5308 = vmul.f32 %v5306, %v803
      %v5309 = vsub.f32 %v5297, %v5307
      %v5310 = vsub.f32 %v5298, %v5308
      %v5311 = vmul.f32 %v5309, %v5309
      %v5312 = vmul.f32 %v5310, %v5310
      %v5313 = vsel %vm796, %v5311, 0.0
      %5314 = vadd.xlane.f32.xlu0 %v5313
      %v5315 = vpop.xlane.xlu0 %5314
      %v5316 = vsel %vm796, %v5312, 0.0
      %5317 = vadd.xlane.f32.xlu0 %v5316
      %v5318 = vpop.xlane.xlu0 %5317
      %v5319 = vmul.f32 %v5315, %v803
      %v5320 = vmul.f32 %v5318, %v803
      %v5321 = vadd.f32 %v5319, 1e-05
      %v5322 = vadd.f32 %v5320, 1e-05
      %v5323 = vrsqrt.pop %v5321
      %v5324 = vrsqrt.pop %v5322
      %v5325 = vmul.f32 %v5309, %v5323
      %v5326 = vmul.f32 %v5310, %v5324
      %v5328 = vlaneseq
      %v5329 = vshrl.u32 %v5328, 7
      %v5330 = vsub.s32 0, %v5329
      %v5331 = vrot.slane %v5299, %v5330
      %v5333 = vmul.f32 %v5325, %v5331
      %v5334 = vmul.f32 %v5326, %v5331
      %v5336 = vlaneseq
      %v5337 = vshrl.u32 %v5336, 7
      %v5338 = vsub.s32 0, %v5337
      %v5339 = vrot.slane %v5300, %v5338
      %v5341 = vadd.f32 %v5333, %v5339
      %v5342 = vadd.f32 %v5334, %v5339
      %v5343 = vld [vmem:[%s19] sm:$0xff]
      %v5344 = vld [vmem:[%s19 + $0x8] sm:$0xff]
      %v5345 = vld [vmem:[%s19 + $0x10] sm:$0xff]
      %v5346 = vld [vmem:[%s19 + $0x18] sm:$0xff]
      %v5347 = vld [vmem:[%s19 + $0x20] sm:$0xff]
      %v5348 = vld [vmem:[%s19 + $0x28] sm:$0xff]
      %v5349 = vld [vmem:[%s19 + $0x30] sm:$0xff]
      %v5350 = vld [vmem:[%s19 + $0x38] sm:$0xff]
      %v5351 = vld [vmem:[%s20] sm:$0x1]
      %v5353 = vlaneseq
      %v5354 = vshrl.u32 %v5353, 7
      %v5355 = vsub.s32 0, %v5354
      %v5356 = vrot.slane %v5351, %v5355
      %v5359 = vsel %vm796, %v5341, 0
      %v5362 = vsel %vm796, %v5342, 0
      %5364 = vmatprep.subr.mxu0 0.0
      %5365 = vmatpush1.msra.mxu0 0.0
      %5366 = vmatprep.subr.mxu0 0.0
      %5367 = vmatpush1.msra.mxu0 0.0
      %5368 = vmatprep.subr.mxu0 0.0
      %5369 = vmatpush1.msra.mxu0 0.0
      %5370 = vmatprep.subr.mxu0 0.0
      %5371 = vmatpush1.msra.mxu0 0.0
      %5372 = vmatprep.subr.mxu0 0.0
      %5373 = vmatpush1.msra.mxu0 0.0
      %5374 = vmatprep.subr.mxu0 0.0
      %5375 = vmatpush1.msra.mxu0 0.0
      %5376 = vmatprep.subr.mxu0 0.0
      %5377 = vmatpush1.msra.mxu0 0.0
      %5378 = vmatprep.subr.mxu0 0.0
      %5379 = vmatpush1.msra.mxu0 0.0
      %5380 = vmatprep.subr.mxu0 0.0
      %5381 = vmatpush1.msra.mxu0 %v5350
      %5382 = vmatprep.subr.mxu0 0.0
      %5383 = vmatpush1.msra.mxu0 %v5349
      %5384 = vmatprep.subr.mxu0 0.0
      %5385 = vmatpush1.msra.mxu0 %v5348
      %5386 = vmatprep.subr.mxu0 0.0
      %5387 = vmatpush1.msra.mxu0 %v5347
      %5388 = vmatprep.subr.mxu0 0.0
      %5389 = vmatpush1.msra.mxu0 %v5346
      %5390 = vmatprep.subr.mxu0 0.0
      %5391 = vmatpush1.msra.mxu0 %v5345
      %5392 = vmatprep.subr.mxu0 0.0
      %5393 = vmatpush1.msra.mxu0 %v5344
      %5394 = vmatprep.subr.mxu0 0.0
      %5395 = vmatpush1.msra.mxu0 %v5343
      %5396 = vmatprep.subr.mxu0 0.0
      %5397 = vmatpush2.msra.mxu0 0.0
      %5398 = vmatprep.subr.mxu0 0.0
      %5399 = vmatpush2.msra.mxu0 0.0
      %5400 = vmatprep.subr.mxu0 0.0
      %5401 = vmatpush2.msra.mxu0 0.0
      %5402 = vmatprep.subr.mxu0 0.0
      %5403 = vmatpush2.msra.mxu0 0.0
      %5404 = vmatprep.subr.mxu0 0.0
      %5405 = vmatpush2.msra.mxu0 0.0
      %5406 = vmatprep.subr.mxu0 0.0
      %5407 = vmatpush2.msra.mxu0 0.0
      %5408 = vmatprep.subr.mxu0 0.0
      %5409 = vmatpush2.msra.mxu0 0.0
      %5410 = vmatprep.subr.mxu0 0.0
      %5411 = vmatpush2.msra.mxu0 0.0
      %5412 = vmatprep.subr.mxu0 0.0
      %5413 = vmatpush2.msra.mxu0 0.0
      %5414 = vmatprep.subr.mxu0 0.0
      %5415 = vmatpush2.msra.mxu0 0.0
      %5416 = vmatprep.subr.mxu0 0.0
      %5417 = vmatpush2.msra.mxu0 0.0
      %5418 = vmatprep.subr.mxu0 0.0
      %5419 = vmatpush2.msra.mxu0 0.0
      %5420 = vmatprep.subr.mxu0 0.0
      %5421 = vmatpush2.msra.mxu0 0.0
      %5422 = vmatprep.subr.mxu0 0.0
      %5423 = vmatpush2.msra.mxu0 0.0
      %5424 = vmatprep.subr.mxu0 0.0
      %5425 = vmatpush2.msra.mxu0 0.0
      %5426 = vmatprep.subr.mxu0 0.0
      %5427 = vmatpush2.msra.mxu0 0.0
      %5428 = vmatprep.mubr.f32.mxu0 0.0
      %5429 = vmatmul.mubr.f32.gmra.mxu0 %v5359
      %v5430 = vpop.f32.mrf.mxu0
      %v5431 = vadd.f32 %v5356, %v5430
      %v5432 = vpop.f32.mrf.mxu0
      %5433 = vmatprep.mubr.f32.mxu0 0.0
      %5434 = vmatmul.mubr.f32.gmra.mxu0 %v5362
      %v5435 = vpop.f32.mrf.mxu0
      %v5436 = vadd.f32 %v5356, %v5435
      %v5437 = vpop.f32.mrf.mxu0
      %5438 = vdwg.mxu0
      %5439 = vst [vmem:[%s676] sm:$0xff] %v5431
      %5440 = vst [vmem:[%s676 + $0x8] sm:$0xff] %v5436
      %p5441 = scmp.lt.s32.totalorder %s32, 1
      %s5442 = scalar_select %p5441, %s32, 1
      %s5443 = smul.addr %s5442, 2
      %s5444 = smul.addr %s5443, 8
      %s5445 = scalar_lea.vmem %s21, %s5444
      // Predicated region
      $region105: #{vit3d_forward.1} parent=103 // pred_check
        %p5446 = pneg %p501
      $region106: #{vit3d_forward.1} parent=103 // pred_check_branch
        %5448 = sbr.rel (%p5446) target = $region108
      $region107: #{vit3d_forward.1} parent=103 // pred_region
        _
      $region108: #{vit3d_forward.1} parent=103 // pred_fallthru
        _
    $region104: #{vit3d_forward.1} parent=5 // pred_fallthru
      _
    %p5449 = scmp.le.s32.totalorder 2, %s27
    // Predicated region
    $region109: #{vit3d_forward.1} parent=5 // pred_check
      %p5450 = pneg %p5449
    $region110: #{vit3d_forward.1} parent=5 // pred_check_branch
      %5452 = sbr.rel (%p5450) target = $region112
    $region111: #{vit3d_forward.1} parent=5 // pred_region
      %s5453 = ssub.s32 %s27, 2
      // Predicated region
      $region113: #{vit3d_forward.1} parent=111 // pred_check
        %p5454 = pneg %p507
      $region114: #{vit3d_forward.1} parent=111 // pred_check_branch
        %5456 = sbr.rel (%p5454) target = $region116
      $region115: #{vit3d_forward.1} parent=111 // pred_region
        %p5457 = scmp.lt.s32.totalorder %s33, 1
        %s5458 = scalar_select %p5457, %s33, 1
        %s5459 = smul.addr %s5458, 2
        %s5460 = smul.addr %s5459, 8
        %s5461 = scalar_lea.vmem %s21, %s5460
      $region116: #{vit3d_forward.1} parent=111 // pred_fallthru
        _
    $region112: #{vit3d_forward.1} parent=5 // pred_fallthru
      _
  $region6: #{vit3d_forward.1} parent=0 // loop_footer
    %s31 = sadd.s32 1, %s27
  $region7: #{vit3d_forward.1} parent=0 // loop_footer_branch
    %26 = sbr.rel target = $region3
  $region8: #{vit3d_forward.1} parent=0 // loop_exit
    _

</llo_original>
